<compile_context>
chip_gen: v6e
topology: v6e:2x2x1
jax: 0.10.0
libtpu: 0.0.40
codegen_flags: <defaults>
</compile_context>

<pallas_src>
import math

import jax
import jax.numpy as jnp
from jax import lax
from jax.experimental import pallas as pl
from jax.experimental.pallas import tpu as pltpu


# ---------------------------------------------------------------------------
# Fused kernel: conv3x3(s1,p1)+LReLU  ->  conv4x4(s2,p1) + 1x1(s2) skip + LReLU
# One (batch, output-row-tile) step per grid point.
# ---------------------------------------------------------------------------
def _make_kernel(H, W, TRo, Wo, Cin, Cout):
    RB = 2 * TRo + 2      # h1 band rows   (incl. conv2's top/bottom zero pad)
    BP = Wo + 1           # h1 band column-pairs (incl. conv2's l/r zero pad)

    def kernel(xp_ref, w1_ref, b1_ref, w2d_ref, b2d_ref, out_ref):
        # xp_ref : (H+4, Wo+2, 2*Cin)  x padded by 2, width viewed as col-pairs
        # w1_ref : (9*Cin, Cout)       conv1 weights, rows ordered (kh, kw, c)
        # b1_ref : (1, Cout) f32
        # w2d_ref: (16*Cout + Cin, Cout)  conv2 taps (kh, kw, c) + skip weight
        # b2d_ref: (1, Cout) f32       b2 + bd
        # out_ref: (TRo*Wo, Cout) f32
        r = pl.program_id(1)
        a0 = r * TRo                                   # first output row of tile
        row0 = pl.multiple_of(2 * TRo * r, 2 * TRo)    # xp row of the band start
        cdt = w1_ref.dtype

        # ---- stage 1: conv 3x3 s1 p1 + bias + LeakyReLU over the h1 band ----
        # The band covers h1_padded rows [2*a0, 2*a0 + RB) and all W+2 padded
        # columns, stored per column parity (even/odd) so stage 2 needs no
        # strided access.  One im2col + one MXU dot (K = 9*Cin) per parity.
        pieces = ([], [])
        for kh in range(3):
            rows = xp_ref[pl.ds(row0 + kh, RB), :, :]       # (RB, Wo+2, 2*Cin)
            for pw in (0, 1):
                for kw in range(3):
                    t = pw + kw                   # xp column offset = 2b + t
                    off_b, off_p = t // 2, t % 2
                    pieces[pw].append(
                        rows[:, off_b:off_b + BP,
                             off_p * Cin:(off_p + 1) * Cin]
                        .reshape(RB * BP, Cin))

        bands = []
        for pw in (0, 1):
            pmat = jnp.concatenate(pieces[pw], axis=-1)     # (RB*BP, 9*Cin)
            h = jnp.dot(pmat, w1_ref[...],
                        preferred_element_type=jnp.float32)
            h = h + b1_ref[...]
            h = jnp.where(h >= 0, h, 0.2 * h)               # LeakyReLU(0.2)
            h = h.reshape(RB, BP, Cout)
            # zero band positions outside the real h1 extent: this reproduces
            # conv2's zero padding of h1 (pad must be 0, not lrelu(bias)).
            rowi = lax.broadcasted_iota(jnp.int32, (RB, BP, Cout), 0)
            coli = lax.broadcasted_iota(jnp.int32, (RB, BP, Cout), 1)
            hrow = rowi + (2 * a0 - 1)
            hcol = 2 * coli + (pw - 1)
            valid = (hrow >= 0) & (hrow < H) & (hcol >= 0) & (hcol < W)
            h = jnp.where(valid, h, 0.0).astype(cdt)
            # split the row dim into (row-pair, row-parity): leading dims only,
            # so this reshape is free (no relayout).
            bands.append(h.reshape(TRo + 1, 2, BP, Cout))

        # ---- stage 2: conv 4x4 s2 p1 + 1x1 s2 skip + add + LeakyReLU --------
        # All 16 taps plus the skip path are folded into ONE MXU contraction
        # with K = 16*Cout + Cin.
        taps = []
        for kh in range(4):
            bh, ph = kh // 2, kh % 2
            for kw in range(4):
                bw, pw = kw // 2, kw % 2
                taps.append(bands[pw][bh:bh + TRo, ph, bw:bw + Wo, :]
                            .reshape(TRo * Wo, Cout))
        # skip reads x at even positions: x[2a, 2b] = xp[2a+2, pair b+1, lane 0]
        xe = xp_ref[pl.ds(row0 + 2, 2 * TRo), 1:1 + Wo, 0:Cin]
        xe = xe.reshape(TRo, 2, Wo, Cin)[:, 0].reshape(TRo * Wo, Cin)
        tmat = jnp.concatenate(taps + [xe], axis=-1)        # (TRo*Wo, 16*Cout+Cin)

        y = jnp.dot(tmat, w2d_ref[...], preferred_element_type=jnp.float32)
        y = y + b2d_ref[...]
        y = jnp.where(y >= 0, y, 0.2 * y)                   # LeakyReLU(0.2)
        out_ref[...] = y

    return kernel


# ---------------------------------------------------------------------------
# Wrapper: layout / dtype prep, tiling choice, pallas_call.
# ---------------------------------------------------------------------------
def down_res_block(x_nchw, params, *, row_tile=None,
                   compute_dtype=jnp.bfloat16, vmem_limit_bytes=None):
    x = jnp.transpose(x_nchw, (0, 2, 3, 1))                 # NCHW -> NHWC
    N, H, W, Cin = x.shape
    Cout = params["w1"].shape[-1]
    assert H % 2 == 0 and W % 2 == 0, "stride-2 conv needs even spatial dims"
    Ho, Wo = H // 2, W // 2

    if row_tile is None:                                    # simple VMEM-bounding pick
        row_tile = Ho
        for cand in (64, 32, 16, 8, 4, 2, 1):
            if cand < Ho and Ho % cand == 0 and (cand * Wo) % 8 == 0:
                row_tile = cand
                break
    assert Ho % row_tile == 0
    assert row_tile == Ho or (row_tile * Wo) % 8 == 0
    TRo, R = row_tile, Ho // row_tile

    # One-time dtype/layout prep.  Padding by 2 then viewing the width as
    # (column pairs, 2*Cin) is a free reshape that puts the stride-2 column
    # parity on the lane axis (denser lanes, no strided access in-kernel).
    xp = jnp.pad(x.astype(compute_dtype), ((0, 0), (2, 2), (2, 2), (0, 0)))
    xp = xp.reshape(N, H + 4, Wo + 2, 2 * Cin)
    w1r = params["w1"].reshape(9 * Cin, Cout).astype(compute_dtype)
    w2d = jnp.concatenate(
        [params["w2"].reshape(16 * Cout, Cout),
         params["wd"].reshape(Cin, Cout)], axis=0).astype(compute_dtype)
    b1r = params["b1"].reshape(1, Cout).astype(jnp.float32)
    b2d = (params["b2"] + params["bd"]).reshape(1, Cout).astype(jnp.float32)

    kernel = _make_kernel(H, W, TRo, Wo, Cin, Cout)
    cparams = dict(dimension_semantics=("parallel", "parallel"))
    if vmem_limit_bytes is not None:
        cparams["vmem_limit_bytes"] = vmem_limit_bytes

    y = pl.pallas_call(
        kernel,
        out_shape=jax.ShapeDtypeStruct((N, Ho * Wo, Cout), jnp.float32),
        grid=(N, R),
        in_specs=[
            # Padded input image: block index constant along the row-tile axis,
            # so it is fetched once per batch element and stays resident.
            pl.BlockSpec((None, H + 4, Wo + 2, 2 * Cin),
                         lambda n, r: (n, 0, 0, 0)),
            pl.BlockSpec((9 * Cin, Cout), lambda n, r: (0, 0)),
            pl.BlockSpec((1, Cout), lambda n, r: (0, 0)),
            pl.BlockSpec((16 * Cout + Cin, Cout), lambda n, r: (0, 0)),
            pl.BlockSpec((1, Cout), lambda n, r: (0, 0)),
        ],
        out_specs=pl.BlockSpec((None, TRo * Wo, Cout), lambda n, r: (n, r, 0)),
        compiler_params=pltpu.CompilerParams(**cparams),
    )(xp, w1r, b1r, w2d, b2d)

    y = y.reshape(N, Ho, Wo, Cout)
    return jnp.transpose(y, (0, 3, 1, 2))                   # back to NCHW (f32)


# ---------------------------------------------------------------------------
# Pure-JAX reference (lax convs) with the same bf16-in / f32-accumulate recipe.
# ---------------------------------------------------------------------------
def _leaky(v):
    return jnp.where(v >= 0, v, 0.2 * v)


def reference_forward(x_nchw, params, compute_dtype=jnp.bfloat16):
    dn = ("NHWC", "HWIO", "NHWC")
    x = jnp.transpose(x_nchw, (0, 2, 3, 1)).astype(compute_dtype)
    w1 = params["w1"].astype(compute_dtype)
    w2 = params["w2"].astype(compute_dtype)
    wd = params["wd"].astype(compute_dtype)
    h = lax.conv_general_dilated(x, w1, (1, 1), ((1, 1), (1, 1)),
                                 dimension_numbers=dn,
                                 preferred_element_type=jnp.float32)
    h = _leaky(h + params["b1"]).astype(compute_dtype)
    h2 = lax.conv_general_dilated(h, w2, (2, 2), ((1, 1), (1, 1)),
                                  dimension_numbers=dn,
                                  preferred_element_type=jnp.float32) + params["b2"]
    d = lax.conv_general_dilated(x, wd, (2, 2), ((0, 0), (0, 0)),
                                 dimension_numbers=dn,
                                 preferred_element_type=jnp.float32) + params["bd"]
    y = _leaky(h2 + d)
    return jnp.transpose(y, (0, 3, 1, 2))


def init_params(key, in_channels, out_channels):
    """Deterministic init mimicking PyTorch's default Conv2d init (HWIO weights)."""
    ks = jax.random.split(key, 6)

    def u(k, shape, fan_in):
        bound = 1.0 / math.sqrt(fan_in)
        return jax.random.uniform(k, shape, jnp.float32, -bound, bound)

    return {
        "w1": u(ks[0], (3, 3, in_channels, out_channels), in_channels * 9),
        "b1": u(ks[1], (out_channels,), in_channels * 9),
        "w2": u(ks[2], (4, 4, out_channels, out_channels), out_channels * 16),
        "b2": u(ks[3], (out_channels,), out_channels * 16),
        "wd": u(ks[4], (1, 1, in_channels, out_channels), in_channels * 1),
        "bd": u(ks[5], (out_channels,), in_channels * 1),
    }


if __name__ == "__main__":
    N, Cin, Cout, H, W = 2, 4, 8, 16, 16

    key = jax.random.PRNGKey(0)
    kx, kp = jax.random.split(key)
    x_nchw = jax.random.normal(kx, (N, Cin, H, W), jnp.float32)
    params = init_params(kp, Cin, Cout)

    # row_tile=4 -> 2 row tiles per image: exercises the halo/masking logic.
    out = jax.block_until_ready(down_res_block(x_nchw, params, row_tile=4))
    ref = jax.block_until_ready(reference_forward(x_nchw, params))

    assert out.shape == (N, Cout, H // 2, W // 2), out.shape
    err = float(jnp.max(jnp.abs(out - ref)))
    assert jnp.allclose(out, ref, atol=1e-2, rtol=1e-2), err
    print("KERNEL_OK")
</pallas_src>

<mosaic_0001>
module attributes {stable_mosaic.version = 11 : i64} {
  func.func @kernel(%arg0: i32, %arg1: i32, %arg2: memref<1x20x10x8xbf16, #tpu.memory_space<vmem>>, %arg3: memref<36x8xbf16, #tpu.memory_space<vmem>>, %arg4: memref<1x8xf32, #tpu.memory_space<vmem>>, %arg5: memref<132x8xbf16, #tpu.memory_space<vmem>>, %arg6: memref<1x8xf32, #tpu.memory_space<vmem>>, %arg7: memref<1x32x8xf32, #tpu.memory_space<vmem>>) attributes {dimension_semantics = [#tpu.dimension_semantics<parallel>, #tpu.dimension_semantics<parallel>], iteration_bounds = array<i64: 2, 2>, scalar_prefetch = 0 : i64, scratch_operands = 0 : i64, tpu.core_type = #tpu.core_type<tc>, window_params = [{transform_indices = @transform_0, window_bounds = array<i64: 1, 20, 10, 8>}, {pipeline_mode = #tpu.pipeline_mode<synchronous>, transform_indices = @transform_1, window_bounds = array<i64: 36, 8>}, {pipeline_mode = #tpu.pipeline_mode<synchronous>, transform_indices = @transform_2, window_bounds = array<i64: 1, 8>}, {pipeline_mode = #tpu.pipeline_mode<synchronous>, transform_indices = @transform_3, window_bounds = array<i64: 132, 8>}, {pipeline_mode = #tpu.pipeline_mode<synchronous>, transform_indices = @transform_4, window_bounds = array<i64: 1, 8>}, {transform_indices = @transform_5, window_bounds = array<i64: 1, 32, 8>}]} {
    %c4_i32 = arith.constant 4 : i32
    %0 = arith.muli %arg1, %c4_i32 : i32
    %c8_i32 = arith.constant 8 : i32
    %1 = arith.muli %c8_i32, %arg1 : i32
    %2 = tpu.assume_multiple %1, 8 : i32
    %c0_i32 = arith.constant 0 : i32
    %3 = arith.addi %2, %c0_i32 : i32
    %c0 = arith.constant 0 : index
    %4 = arith.index_cast %3 : i32 to index
    %c0_0 = arith.constant 0 : index
    %c0_1 = arith.constant 0 : index
    %5 = vector.load %arg2[%c0, %4, %c0_0, %c0_1] : memref<1x20x10x8xbf16, #tpu.memory_space<vmem>>, vector<1x10x10x8xbf16>
    %6 = vector.shape_cast %5 : vector<1x10x10x8xbf16> to vector<10x10x8xbf16>
    %7 = vector.extract_strided_slice %6 {offsets = [0, 0, 0], sizes = [10, 9, 4], strides = [1, 1, 1]} : vector<10x10x8xbf16> to vector<10x9x4xbf16>
    %8 = vector.shape_cast %7 : vector<10x9x4xbf16> to vector<90x4xbf16>
    %9 = vector.extract_strided_slice %6 {offsets = [0, 0, 4], sizes = [10, 9, 4], strides = [1, 1, 1]} : vector<10x10x8xbf16> to vector<10x9x4xbf16>
    %10 = vector.shape_cast %9 : vector<10x9x4xbf16> to vector<90x4xbf16>
    %11 = vector.extract_strided_slice %6 {offsets = [0, 1, 0], sizes = [10, 9, 4], strides = [1, 1, 1]} : vector<10x10x8xbf16> to vector<10x9x4xbf16>
    %12 = vector.shape_cast %11 : vector<10x9x4xbf16> to vector<90x4xbf16>
    %13 = vector.extract_strided_slice %6 {offsets = [0, 0, 4], sizes = [10, 9, 4], strides = [1, 1, 1]} : vector<10x10x8xbf16> to vector<10x9x4xbf16>
    %14 = vector.shape_cast %13 : vector<10x9x4xbf16> to vector<90x4xbf16>
    %15 = vector.extract_strided_slice %6 {offsets = [0, 1, 0], sizes = [10, 9, 4], strides = [1, 1, 1]} : vector<10x10x8xbf16> to vector<10x9x4xbf16>
    %16 = vector.shape_cast %15 : vector<10x9x4xbf16> to vector<90x4xbf16>
    %17 = vector.extract_strided_slice %6 {offsets = [0, 1, 4], sizes = [10, 9, 4], strides = [1, 1, 1]} : vector<10x10x8xbf16> to vector<10x9x4xbf16>
    %18 = vector.shape_cast %17 : vector<10x9x4xbf16> to vector<90x4xbf16>
    %c1_i32 = arith.constant 1 : i32
    %19 = arith.addi %2, %c1_i32 : i32
    %c0_2 = arith.constant 0 : index
    %20 = arith.index_cast %19 : i32 to index
    %c0_3 = arith.constant 0 : index
    %c0_4 = arith.constant 0 : index
    %21 = vector.load %arg2[%c0_2, %20, %c0_3, %c0_4] : memref<1x20x10x8xbf16, #tpu.memory_space<vmem>>, vector<1x10x10x8xbf16>
    %22 = vector.shape_cast %21 : vector<1x10x10x8xbf16> to vector<10x10x8xbf16>
    %23 = vector.extract_strided_slice %22 {offsets = [0, 0, 0], sizes = [10, 9, 4], strides = [1, 1, 1]} : vector<10x10x8xbf16> to vector<10x9x4xbf16>
    %24 = vector.shape_cast %23 : vector<10x9x4xbf16> to vector<90x4xbf16>
    %25 = vector.extract_strided_slice %22 {offsets = [0, 0, 4], sizes = [10, 9, 4], strides = [1, 1, 1]} : vector<10x10x8xbf16> to vector<10x9x4xbf16>
    %26 = vector.shape_cast %25 : vector<10x9x4xbf16> to vector<90x4xbf16>
    %27 = vector.extract_strided_slice %22 {offsets = [0, 1, 0], sizes = [10, 9, 4], strides = [1, 1, 1]} : vector<10x10x8xbf16> to vector<10x9x4xbf16>
    %28 = vector.shape_cast %27 : vector<10x9x4xbf16> to vector<90x4xbf16>
    %29 = vector.extract_strided_slice %22 {offsets = [0, 0, 4], sizes = [10, 9, 4], strides = [1, 1, 1]} : vector<10x10x8xbf16> to vector<10x9x4xbf16>
    %30 = vector.shape_cast %29 : vector<10x9x4xbf16> to vector<90x4xbf16>
    %31 = vector.extract_strided_slice %22 {offsets = [0, 1, 0], sizes = [10, 9, 4], strides = [1, 1, 1]} : vector<10x10x8xbf16> to vector<10x9x4xbf16>
    %32 = vector.shape_cast %31 : vector<10x9x4xbf16> to vector<90x4xbf16>
    %33 = vector.extract_strided_slice %22 {offsets = [0, 1, 4], sizes = [10, 9, 4], strides = [1, 1, 1]} : vector<10x10x8xbf16> to vector<10x9x4xbf16>
    %34 = vector.shape_cast %33 : vector<10x9x4xbf16> to vector<90x4xbf16>
    %c2_i32 = arith.constant 2 : i32
    %35 = arith.addi %2, %c2_i32 : i32
    %c0_5 = arith.constant 0 : index
    %36 = arith.index_cast %35 : i32 to index
    %c0_6 = arith.constant 0 : index
    %c0_7 = arith.constant 0 : index
    %37 = vector.load %arg2[%c0_5, %36, %c0_6, %c0_7] : memref<1x20x10x8xbf16, #tpu.memory_space<vmem>>, vector<1x10x10x8xbf16>
    %38 = vector.shape_cast %37 : vector<1x10x10x8xbf16> to vector<10x10x8xbf16>
    %39 = vector.extract_strided_slice %38 {offsets = [0, 0, 0], sizes = [10, 9, 4], strides = [1, 1, 1]} : vector<10x10x8xbf16> to vector<10x9x4xbf16>
    %40 = vector.shape_cast %39 : vector<10x9x4xbf16> to vector<90x4xbf16>
    %41 = vector.extract_strided_slice %38 {offsets = [0, 0, 4], sizes = [10, 9, 4], strides = [1, 1, 1]} : vector<10x10x8xbf16> to vector<10x9x4xbf16>
    %42 = vector.shape_cast %41 : vector<10x9x4xbf16> to vector<90x4xbf16>
    %43 = vector.extract_strided_slice %38 {offsets = [0, 1, 0], sizes = [10, 9, 4], strides = [1, 1, 1]} : vector<10x10x8xbf16> to vector<10x9x4xbf16>
    %44 = vector.shape_cast %43 : vector<10x9x4xbf16> to vector<90x4xbf16>
    %45 = vector.extract_strided_slice %38 {offsets = [0, 0, 4], sizes = [10, 9, 4], strides = [1, 1, 1]} : vector<10x10x8xbf16> to vector<10x9x4xbf16>
    %46 = vector.shape_cast %45 : vector<10x9x4xbf16> to vector<90x4xbf16>
    %47 = vector.extract_strided_slice %38 {offsets = [0, 1, 0], sizes = [10, 9, 4], strides = [1, 1, 1]} : vector<10x10x8xbf16> to vector<10x9x4xbf16>
    %48 = vector.shape_cast %47 : vector<10x9x4xbf16> to vector<90x4xbf16>
    %49 = vector.extract_strided_slice %38 {offsets = [0, 1, 4], sizes = [10, 9, 4], strides = [1, 1, 1]} : vector<10x10x8xbf16> to vector<10x9x4xbf16>
    %50 = vector.shape_cast %49 : vector<10x9x4xbf16> to vector<90x4xbf16>
    %51 = tpu.concatenate %8, %10, %12, %24, %26, %28, %40, %42, %44 in 1 : vector<90x4xbf16>, vector<90x4xbf16>, vector<90x4xbf16>, vector<90x4xbf16>, vector<90x4xbf16>, vector<90x4xbf16>, vector<90x4xbf16>, vector<90x4xbf16>, vector<90x4xbf16> -> vector<90x36xbf16>
    %c0_8 = arith.constant 0 : index
    %c0_9 = arith.constant 0 : index
    %52 = vector.load %arg3[%c0_8, %c0_9] : memref<36x8xbf16, #tpu.memory_space<vmem>>, vector<36x8xbf16>
    %cst = arith.constant dense<0.000000e+00> : vector<90x8xf32>
    %53 = tpu.matmul %51, %52, %cst {dimension_numbers = #tpu.dot_dimension_numbers<[1], [0], [0], [1], [0, 0, 1, 1], [], []>} : vector<90x36xbf16>, vector<36x8xbf16>, vector<90x8xf32> -> vector<90x8xf32>
    %c0_10 = arith.constant 0 : index
    %c0_11 = arith.constant 0 : index
    %54 = vector.load %arg4[%c0_10, %c0_11] : memref<1x8xf32, #tpu.memory_space<vmem>>, vector<1x8xf32>
    %55 = vector.broadcast %54 : vector<1x8xf32> to vector<90x8xf32>
    %56 = arith.addf %53, %55 : vector<90x8xf32>
    %cst_12 = arith.constant 0.000000e+00 : f32
    %57 = vector.broadcast %cst_12 : f32 to vector<90x8xf32>
    %58 = arith.cmpf oge, %56, %57 : vector<90x8xf32>
    %cst_13 = arith.constant 2.000000e-01 : f32
    %59 = vector.broadcast %cst_13 : f32 to vector<90x8xf32>
    %60 = arith.mulf %59, %56 : vector<90x8xf32>
    %61 = arith.select %58, %56, %60 : vector<90x8xi1>, vector<90x8xf32>
    %62 = vector.shape_cast %61 : vector<90x8xf32> to vector<10x9x8xf32>
    %63 = tpu.iota {dimensions = array<i32: 0>} : vector<10x9x8xi32>
    %64 = tpu.iota {dimensions = array<i32: 1>} : vector<10x9x8xi32>
    %c2_i32_14 = arith.constant 2 : i32
    %65 = arith.muli %c2_i32_14, %0 : i32
    %c1_i32_15 = arith.constant 1 : i32
    %66 = arith.subi %65, %c1_i32_15 : i32
    %67 = vector.broadcast %66 : i32 to vector<10x9x8xi32>
    %68 = arith.addi %63, %67 : vector<10x9x8xi32>
    %c2_i32_16 = arith.constant 2 : i32
    %69 = vector.broadcast %c2_i32_16 : i32 to vector<10x9x8xi32>
    %70 = arith.muli %69, %64 : vector<10x9x8xi32>
    %c-1_i32 = arith.constant -1 : i32
    %71 = vector.broadcast %c-1_i32 : i32 to vector<10x9x8xi32>
    %72 = arith.addi %70, %71 : vector<10x9x8xi32>
    %c0_i32_17 = arith.constant 0 : i32
    %73 = vector.broadcast %c0_i32_17 : i32 to vector<10x9x8xi32>
    %74 = arith.cmpi sge, %68, %73 : vector<10x9x8xi32>
    %c16_i32 = arith.constant 16 : i32
    %75 = vector.broadcast %c16_i32 : i32 to vector<10x9x8xi32>
    %76 = arith.cmpi slt, %68, %75 : vector<10x9x8xi32>
    %77 = arith.andi %74, %76 : vector<10x9x8xi1>
    %c0_i32_18 = arith.constant 0 : i32
    %78 = vector.broadcast %c0_i32_18 : i32 to vector<10x9x8xi32>
    %79 = arith.cmpi sge, %72, %78 : vector<10x9x8xi32>
    %80 = arith.andi %77, %79 : vector<10x9x8xi1>
    %c16_i32_19 = arith.constant 16 : i32
    %81 = vector.broadcast %c16_i32_19 : i32 to vector<10x9x8xi32>
    %82 = arith.cmpi slt, %72, %81 : vector<10x9x8xi32>
    %83 = arith.andi %80, %82 : vector<10x9x8xi1>
    %cst_20 = arith.constant 0.000000e+00 : f32
    %84 = vector.broadcast %cst_20 : f32 to vector<10x9x8xf32>
    %85 = arith.select %83, %62, %84 : vector<10x9x8xi1>, vector<10x9x8xf32>
    %86 = arith.truncf %85 : vector<10x9x8xf32> to vector<10x9x8xbf16>
    %87 = vector.shape_cast %86 : vector<10x9x8xbf16> to vector<5x2x9x8xbf16>
    %88 = tpu.concatenate %14, %16, %18, %30, %32, %34, %46, %48, %50 in 1 : vector<90x4xbf16>, vector<90x4xbf16>, vector<90x4xbf16>, vector<90x4xbf16>, vector<90x4xbf16>, vector<90x4xbf16>, vector<90x4xbf16>, vector<90x4xbf16>, vector<90x4xbf16> -> vector<90x36xbf16>
    %c0_21 = arith.constant 0 : index
    %c0_22 = arith.constant 0 : index
    %89 = vector.load %arg3[%c0_21, %c0_22] : memref<36x8xbf16, #tpu.memory_space<vmem>>, vector<36x8xbf16>
    %cst_23 = arith.constant dense<0.000000e+00> : vector<90x8xf32>
    %90 = tpu.matmul %88, %89, %cst_23 {dimension_numbers = #tpu.dot_dimension_numbers<[1], [0], [0], [1], [0, 0, 1, 1], [], []>} : vector<90x36xbf16>, vector<36x8xbf16>, vector<90x8xf32> -> vector<90x8xf32>
    %c0_24 = arith.constant 0 : index
    %c0_25 = arith.constant 0 : index
    %91 = vector.load %arg4[%c0_24, %c0_25] : memref<1x8xf32, #tpu.memory_space<vmem>>, vector<1x8xf32>
    %92 = vector.broadcast %91 : vector<1x8xf32> to vector<90x8xf32>
    %93 = arith.addf %90, %92 : vector<90x8xf32>
    %cst_26 = arith.constant 0.000000e+00 : f32
    %94 = vector.broadcast %cst_26 : f32 to vector<90x8xf32>
    %95 = arith.cmpf oge, %93, %94 : vector<90x8xf32>
    %cst_27 = arith.constant 2.000000e-01 : f32
    %96 = vector.broadcast %cst_27 : f32 to vector<90x8xf32>
    %97 = arith.mulf %96, %93 : vector<90x8xf32>
    %98 = arith.select %95, %93, %97 : vector<90x8xi1>, vector<90x8xf32>
    %99 = vector.shape_cast %98 : vector<90x8xf32> to vector<10x9x8xf32>
    %100 = tpu.iota {dimensions = array<i32: 0>} : vector<10x9x8xi32>
    %101 = tpu.iota {dimensions = array<i32: 1>} : vector<10x9x8xi32>
    %c2_i32_28 = arith.constant 2 : i32
    %102 = arith.muli %c2_i32_28, %0 : i32
    %c1_i32_29 = arith.constant 1 : i32
    %103 = arith.subi %102, %c1_i32_29 : i32
    %104 = vector.broadcast %103 : i32 to vector<10x9x8xi32>
    %105 = arith.addi %100, %104 : vector<10x9x8xi32>
    %c2_i32_30 = arith.constant 2 : i32
    %106 = vector.broadcast %c2_i32_30 : i32 to vector<10x9x8xi32>
    %107 = arith.muli %106, %101 : vector<10x9x8xi32>
    %c0_i32_31 = arith.constant 0 : i32
    %108 = vector.broadcast %c0_i32_31 : i32 to vector<10x9x8xi32>
    %109 = arith.addi %107, %108 : vector<10x9x8xi32>
    %c0_i32_32 = arith.constant 0 : i32
    %110 = vector.broadcast %c0_i32_32 : i32 to vector<10x9x8xi32>
    %111 = arith.cmpi sge, %105, %110 : vector<10x9x8xi32>
    %c16_i32_33 = arith.constant 16 : i32
    %112 = vector.broadcast %c16_i32_33 : i32 to vector<10x9x8xi32>
    %113 = arith.cmpi slt, %105, %112 : vector<10x9x8xi32>
    %114 = arith.andi %111, %113 : vector<10x9x8xi1>
    %c0_i32_34 = arith.constant 0 : i32
    %115 = vector.broadcast %c0_i32_34 : i32 to vector<10x9x8xi32>
    %116 = arith.cmpi sge, %109, %115 : vector<10x9x8xi32>
    %117 = arith.andi %114, %116 : vector<10x9x8xi1>
    %c16_i32_35 = arith.constant 16 : i32
    %118 = vector.broadcast %c16_i32_35 : i32 to vector<10x9x8xi32>
    %119 = arith.cmpi slt, %109, %118 : vector<10x9x8xi32>
    %120 = arith.andi %117, %119 : vector<10x9x8xi1>
    %cst_36 = arith.constant 0.000000e+00 : f32
    %121 = vector.broadcast %cst_36 : f32 to vector<10x9x8xf32>
    %122 = arith.select %120, %99, %121 : vector<10x9x8xi1>, vector<10x9x8xf32>
    %123 = arith.truncf %122 : vector<10x9x8xf32> to vector<10x9x8xbf16>
    %124 = vector.shape_cast %123 : vector<10x9x8xbf16> to vector<5x2x9x8xbf16>
    %125 = vector.extract_strided_slice %87 {offsets = [0, 0, 0, 0], sizes = [4, 1, 8, 8], strides = [1, 1, 1, 1]} : vector<5x2x9x8xbf16> to vector<4x1x8x8xbf16>
    %126 = vector.shape_cast %125 : vector<4x1x8x8xbf16> to vector<4x8x8xbf16>
    %127 = vector.shape_cast %126 : vector<4x8x8xbf16> to vector<32x8xbf16>
    %128 = vector.extract_strided_slice %124 {offsets = [0, 0, 0, 0], sizes = [4, 1, 8, 8], strides = [1, 1, 1, 1]} : vector<5x2x9x8xbf16> to vector<4x1x8x8xbf16>
    %129 = vector.shape_cast %128 : vector<4x1x8x8xbf16> to vector<4x8x8xbf16>
    %130 = vector.shape_cast %129 : vector<4x8x8xbf16> to vector<32x8xbf16>
    %131 = vector.extract_strided_slice %87 {offsets = [0, 0, 1, 0], sizes = [4, 1, 8, 8], strides = [1, 1, 1, 1]} : vector<5x2x9x8xbf16> to vector<4x1x8x8xbf16>
    %132 = vector.shape_cast %131 : vector<4x1x8x8xbf16> to vector<4x8x8xbf16>
    %133 = vector.shape_cast %132 : vector<4x8x8xbf16> to vector<32x8xbf16>
    %134 = vector.extract_strided_slice %124 {offsets = [0, 0, 1, 0], sizes = [4, 1, 8, 8], strides = [1, 1, 1, 1]} : vector<5x2x9x8xbf16> to vector<4x1x8x8xbf16>
    %135 = vector.shape_cast %134 : vector<4x1x8x8xbf16> to vector<4x8x8xbf16>
    %136 = vector.shape_cast %135 : vector<4x8x8xbf16> to vector<32x8xbf16>
    %137 = vector.extract_strided_slice %87 {offsets = [0, 1, 0, 0], sizes = [4, 1, 8, 8], strides = [1, 1, 1, 1]} : vector<5x2x9x8xbf16> to vector<4x1x8x8xbf16>
    %138 = vector.shape_cast %137 : vector<4x1x8x8xbf16> to vector<4x8x8xbf16>
    %139 = vector.shape_cast %138 : vector<4x8x8xbf16> to vector<32x8xbf16>
    %140 = vector.extract_strided_slice %124 {offsets = [0, 1, 0, 0], sizes = [4, 1, 8, 8], strides = [1, 1, 1, 1]} : vector<5x2x9x8xbf16> to vector<4x1x8x8xbf16>
    %141 = vector.shape_cast %140 : vector<4x1x8x8xbf16> to vector<4x8x8xbf16>
    %142 = vector.shape_cast %141 : vector<4x8x8xbf16> to vector<32x8xbf16>
    %143 = vector.extract_strided_slice %87 {offsets = [0, 1, 1, 0], sizes = [4, 1, 8, 8], strides = [1, 1, 1, 1]} : vector<5x2x9x8xbf16> to vector<4x1x8x8xbf16>
    %144 = vector.shape_cast %143 : vector<4x1x8x8xbf16> to vector<4x8x8xbf16>
    %145 = vector.shape_cast %144 : vector<4x8x8xbf16> to vector<32x8xbf16>
    %146 = vector.extract_strided_slice %124 {offsets = [0, 1, 1, 0], sizes = [4, 1, 8, 8], strides = [1, 1, 1, 1]} : vector<5x2x9x8xbf16> to vector<4x1x8x8xbf16>
    %147 = vector.shape_cast %146 : vector<4x1x8x8xbf16> to vector<4x8x8xbf16>
    %148 = vector.shape_cast %147 : vector<4x8x8xbf16> to vector<32x8xbf16>
    %149 = vector.extract_strided_slice %87 {offsets = [1, 0, 0, 0], sizes = [4, 1, 8, 8], strides = [1, 1, 1, 1]} : vector<5x2x9x8xbf16> to vector<4x1x8x8xbf16>
    %150 = vector.shape_cast %149 : vector<4x1x8x8xbf16> to vector<4x8x8xbf16>
    %151 = vector.shape_cast %150 : vector<4x8x8xbf16> to vector<32x8xbf16>
    %152 = vector.extract_strided_slice %124 {offsets = [1, 0, 0, 0], sizes = [4, 1, 8, 8], strides = [1, 1, 1, 1]} : vector<5x2x9x8xbf16> to vector<4x1x8x8xbf16>
    %153 = vector.shape_cast %152 : vector<4x1x8x8xbf16> to vector<4x8x8xbf16>
    %154 = vector.shape_cast %153 : vector<4x8x8xbf16> to vector<32x8xbf16>
    %155 = vector.extract_strided_slice %87 {offsets = [1, 0, 1, 0], sizes = [4, 1, 8, 8], strides = [1, 1, 1, 1]} : vector<5x2x9x8xbf16> to vector<4x1x8x8xbf16>
    %156 = vector.shape_cast %155 : vector<4x1x8x8xbf16> to vector<4x8x8xbf16>
    %157 = vector.shape_cast %156 : vector<4x8x8xbf16> to vector<32x8xbf16>
    %158 = vector.extract_strided_slice %124 {offsets = [1, 0, 1, 0], sizes = [4, 1, 8, 8], strides = [1, 1, 1, 1]} : vector<5x2x9x8xbf16> to vector<4x1x8x8xbf16>
    %159 = vector.shape_cast %158 : vector<4x1x8x8xbf16> to vector<4x8x8xbf16>
    %160 = vector.shape_cast %159 : vector<4x8x8xbf16> to vector<32x8xbf16>
    %161 = vector.extract_strided_slice %87 {offsets = [1, 1, 0, 0], sizes = [4, 1, 8, 8], strides = [1, 1, 1, 1]} : vector<5x2x9x8xbf16> to vector<4x1x8x8xbf16>
    %162 = vector.shape_cast %161 : vector<4x1x8x8xbf16> to vector<4x8x8xbf16>
    %163 = vector.shape_cast %162 : vector<4x8x8xbf16> to vector<32x8xbf16>
    %164 = vector.extract_strided_slice %124 {offsets = [1, 1, 0, 0], sizes = [4, 1, 8, 8], strides = [1, 1, 1, 1]} : vector<5x2x9x8xbf16> to vector<4x1x8x8xbf16>
    %165 = vector.shape_cast %164 : vector<4x1x8x8xbf16> to vector<4x8x8xbf16>
    %166 = vector.shape_cast %165 : vector<4x8x8xbf16> to vector<32x8xbf16>
    %167 = vector.extract_strided_slice %87 {offsets = [1, 1, 1, 0], sizes = [4, 1, 8, 8], strides = [1, 1, 1, 1]} : vector<5x2x9x8xbf16> to vector<4x1x8x8xbf16>
    %168 = vector.shape_cast %167 : vector<4x1x8x8xbf16> to vector<4x8x8xbf16>
    %169 = vector.shape_cast %168 : vector<4x8x8xbf16> to vector<32x8xbf16>
    %170 = vector.extract_strided_slice %124 {offsets = [1, 1, 1, 0], sizes = [4, 1, 8, 8], strides = [1, 1, 1, 1]} : vector<5x2x9x8xbf16> to vector<4x1x8x8xbf16>
    %171 = vector.shape_cast %170 : vector<4x1x8x8xbf16> to vector<4x8x8xbf16>
    %172 = vector.shape_cast %171 : vector<4x8x8xbf16> to vector<32x8xbf16>
    %c2_i32_37 = arith.constant 2 : i32
    %173 = arith.addi %2, %c2_i32_37 : i32
    %c0_38 = arith.constant 0 : index
    %174 = arith.index_cast %173 : i32 to index
    %c1 = arith.constant 1 : index
    %c0_39 = arith.constant 0 : index
    %175 = vector.load %arg2[%c0_38, %174, %c1, %c0_39] : memref<1x20x10x8xbf16, #tpu.memory_space<vmem>>, vector<1x8x8x4xbf16>
    %176 = vector.shape_cast %175 : vector<1x8x8x4xbf16> to vector<8x8x4xbf16>
    %177 = vector.shape_cast %176 : vector<8x8x4xbf16> to vector<4x2x8x4xbf16>
    %178 = vector.extract_strided_slice %177 {offsets = [0, 0, 0, 0], sizes = [4, 1, 8, 4], strides = [1, 1, 1, 1]} : vector<4x2x8x4xbf16> to vector<4x1x8x4xbf16>
    %179 = vector.shape_cast %178 : vector<4x1x8x4xbf16> to vector<4x8x4xbf16>
    %180 = vector.shape_cast %179 : vector<4x8x4xbf16> to vector<32x4xbf16>
    %181 = tpu.concatenate %127, %130, %133, %136, %139, %142, %145, %148, %151, %154, %157, %160, %163, %166, %169, %172 in 1 : vector<32x8xbf16>, vector<32x8xbf16>, vector<32x8xbf16>, vector<32x8xbf16>, vector<32x8xbf16>, vector<32x8xbf16>, vector<32x8xbf16>, vector<32x8xbf16>, vector<32x8xbf16>, vector<32x8xbf16>, vector<32x8xbf16>, vector<32x8xbf16>, vector<32x8xbf16>, vector<32x8xbf16>, vector<32x8xbf16>, vector<32x8xbf16> -> vector<32x128xbf16>
    %182 = tpu.concatenate %181, %180 in 1 : vector<32x128xbf16>, vector<32x4xbf16> -> vector<32x132xbf16>
    %c0_40 = arith.constant 0 : index
    %c0_41 = arith.constant 0 : index
    %183 = vector.load %arg5[%c0_40, %c0_41] : memref<132x8xbf16, #tpu.memory_space<vmem>>, vector<132x8xbf16>
    %cst_42 = arith.constant dense<0.000000e+00> : vector<32x8xf32>
    %184 = tpu.matmul %182, %183, %cst_42 {dimension_numbers = #tpu.dot_dimension_numbers<[1], [0], [0], [1], [0, 0, 1, 1], [], []>} : vector<32x132xbf16>, vector<132x8xbf16>, vector<32x8xf32> -> vector<32x8xf32>
    %c0_43 = arith.constant 0 : index
    %c0_44 = arith.constant 0 : index
    %185 = vector.load %arg6[%c0_43, %c0_44] : memref<1x8xf32, #tpu.memory_space<vmem>>, vector<1x8xf32>
    %186 = vector.broadcast %185 : vector<1x8xf32> to vector<32x8xf32>
    %187 = arith.addf %184, %186 : vector<32x8xf32>
    %cst_45 = arith.constant 0.000000e+00 : f32
    %188 = vector.broadcast %cst_45 : f32 to vector<32x8xf32>
    %189 = arith.cmpf oge, %187, %188 : vector<32x8xf32>
    %cst_46 = arith.constant 2.000000e-01 : f32
    %190 = vector.broadcast %cst_46 : f32 to vector<32x8xf32>
    %191 = arith.mulf %190, %187 : vector<32x8xf32>
    %192 = arith.select %189, %187, %191 : vector<32x8xi1>, vector<32x8xf32>
    %c0_47 = arith.constant 0 : index
    %c0_48 = arith.constant 0 : index
    %c0_49 = arith.constant 0 : index
    %193 = vector.load %arg7[%c0_47, %c0_48, %c0_49] : memref<1x32x8xf32, #tpu.memory_space<vmem>>, vector<1x32x8xf32>
    %194 = vector.shape_cast %193 : vector<1x32x8xf32> to vector<32x8xf32>
    %195 = vector.shape_cast %192 : vector<32x8xf32> to vector<1x32x8xf32>
    tpu.vector_store %arg7[%c0_47, %c0_48, %c0_49], %195 {strides = array<i32>} : memref<1x32x8xf32, #tpu.memory_space<vmem>>, vector<1x32x8xf32>,
    return
  }
  func.func @transform_0(%arg0: i32, %arg1: i32) -> (i32, i32, i32, i32) {
    %c0_i32 = arith.constant 0 : i32
    %c0_i32_0 = arith.constant 0 : i32
    %c0_i32_1 = arith.constant 0 : i32
    %c0_i32_2 = arith.constant 0 : i32
    return %arg0, %c0_i32, %c0_i32_0, %c0_i32_1 : i32, i32, i32, i32
  }
  func.func @transform_1(%arg0: i32, %arg1: i32) -> (i32, i32) {
    %c0_i32 = arith.constant 0 : i32
    %c0_i32_0 = arith.constant 0 : i32
    %c0_i32_1 = arith.constant 0 : i32
    return %c0_i32, %c0_i32_0 : i32, i32
  }
  func.func @transform_2(%arg0: i32, %arg1: i32) -> (i32, i32) {
    %c0_i32 = arith.constant 0 : i32
    %c0_i32_0 = arith.constant 0 : i32
    %c0_i32_1 = arith.constant 0 : i32
    return %c0_i32, %c0_i32_0 : i32, i32
  }
  func.func @transform_3(%arg0: i32, %arg1: i32) -> (i32, i32) {
    %c0_i32 = arith.constant 0 : i32
    %c0_i32_0 = arith.constant 0 : i32
    %c0_i32_1 = arith.constant 0 : i32
    return %c0_i32, %c0_i32_0 : i32, i32
  }
  func.func @transform_4(%arg0: i32, %arg1: i32) -> (i32, i32) {
    %c0_i32 = arith.constant 0 : i32
    %c0_i32_0 = arith.constant 0 : i32
    %c0_i32_1 = arith.constant 0 : i32
    return %c0_i32, %c0_i32_0 : i32, i32
  }
  func.func @transform_5(%arg0: i32, %arg1: i32) -> (i32, i32, i32) {
    %c0_i32 = arith.constant 0 : i32
    %c0_i32_0 = arith.constant 0 : i32
    return %arg0, %arg1, %c0_i32 : i32, i32, i32
  }
}

</mosaic_0001>

<llo_original>
// kernel: tpu_custom_call.1
$region0: #{tpu_custom_call.1}
  #allocation0 [shape = 'u32[]', space=smem, size = 0x4, offset = 0x4, fixed_abs, tag = 'smem constant byte address 0x4 - core index']
  #allocation1 [shape = 'u32[144,128]{1,0:T(1,128)}', space=vmem, size = 0x12000, scoped, tag = 'internal scratch']
  %s0 = inlined_call_operand.vmem [shape: bf16[2,20,10,8], index: 0, kind: input, shape index: {}]
  %s1 = inlined_call_operand.vmem [shape: bf16[36,8], index: 1, kind: input, shape index: {}]
  %s2 = inlined_call_operand.vmem [shape: f32[1,8], index: 2, kind: input, shape index: {}]
  %s3 = inlined_call_operand.vmem [shape: bf16[132,8], index: 3, kind: input, shape index: {}]
  %s4 = inlined_call_operand.vmem [shape: f32[1,8], index: 4, kind: input, shape index: {}]
  %s5 = inlined_call_operand.vmem [shape: f32[2,64,8], index: 5, kind: output, shape index: {}]
  %s6 = sld [smem:[#allocation0]]
  $region53: #{tpu_custom_call.1} parent=0
    _
  %s8 = ssub.s32 1, %s6
  %s9 = scalar_select 0, %s8, %s6
  loop: start=0, step=1, limit=6
  $region2: #{tpu_custom_call.1} parent=0 // loop_pre_header
    _
  $region3: #{tpu_custom_call.1} parent=0 // loop_header
    %s11 = sphi 0, %s15
    %p12 = scmp.ge.s32.totalorder %s11, 6
    %s18 = sphi 0, %s30
    %s19 = sphi 0, %s26
    %s20 = sphi 0, %s18
    %s21 = sphi 0, %s19
    %s22 = sphi 0, %s20
    %s23 = sphi 0, %s21
    %s33 = sphi 0, %s35
    %s36 = sphi 0, %s33
    %s37 = sphi 0, %s36
    %s53 = sphi 0, %s37
    %s57 = sphi 0, %s57
    %s59 = sphi 0, %s57
    %s60 = sphi 0, %s59
    %s74 = sphi 0, %s60
    %s78 = sphi 0, %s78
    %s80 = sphi 0, %s78
    %s81 = sphi 0, %s80
    %s95 = sphi 0, %s81
    %s99 = sphi 0, %s99
    %s101 = sphi 0, %s99
    %s102 = sphi 0, %s101
    %s116 = sphi 0, %s102
    %s120 = sphi 0, %s120
    %s122 = sphi 0, %s120
    %s123 = sphi 0, %s122
    %s137 = sphi 0, %s123
    %s145 = sphi 0, %s147
    %s148 = sphi 0, %s145
    %s149 = sphi 0, %s148
    %s165 = sphi 0, %s149
  $region4: #{tpu_custom_call.1} parent=0 // loop_header_branch
    %14 = sbr.rel (%p12) target = $region8
  $region5: #{tpu_custom_call.1} parent=0 // loop_body
    %s16 = ssub.s32 %s11, 1
    %s17 = ssub.s32 %s11, 2
    %s24 = sadd.s32 1, %s19
    %p25 = scmp.ge.s32.totalorder %s24, 2
    %s26 = scalar_select %p25, 0, %s24
    %s27 = sadd.s32 1, %s18
    %s28 = scalar_select %p25, %s27, %s18
    %p29 = scmp.ge.s32.totalorder %s28, 2
    %s30 = scalar_select %p29, 0, %s28
    %s31 = ssub.s32 %s18, %s30
    %p32 = scmp.eq.s32.totalorder %s31, 0
    %s34 = sadd.s32 %s33, 1
    %s35 = scalar_select %p32, %s33, %s34
    %p38 = pneg %p32
    %p39 = scmp.eq.s32.totalorder %s11, 3
    %p40 = por %p38, %p39
    %p41 = scmp.ne.s32.totalorder %s33, %s36
    %p42 = scmp.eq.s32.totalorder %s11, 0
    %p43 = por %p41, %p42
    %p44 = scmp.ne.s32.totalorder %s33, %s36
    %p45 = scmp.eq.s32.totalorder %s16, 3
    %p46 = por %p44, %p45
    %p47 = scmp.ne.s32.totalorder %s36, %s37
    %p48 = scmp.eq.s32.totalorder %s16, 0
    %p49 = por %p47, %p48
    %p50 = scmp.ne.s32.totalorder %s36, %s37
    %p51 = scmp.eq.s32.totalorder %s17, 3
    %p52 = por %p50, %p51
    %p54 = scmp.ne.s32.totalorder %s37, %s53
    %p55 = scmp.eq.s32.totalorder %s17, 0
    %p56 = por %p54, %p55
    %s58 = sadd.s32 %s57, 1
    %p61 = scmp.eq.s32.totalorder %s11, 3
    %p62 = scmp.ne.s32.totalorder %s57, %s59
    %p63 = scmp.eq.s32.totalorder %s11, 0
    %p64 = por %p62, %p63
    %p65 = scmp.ne.s32.totalorder %s57, %s59
    %p66 = scmp.eq.s32.totalorder %s16, 3
    %p67 = por %p65, %p66
    %p68 = scmp.ne.s32.totalorder %s59, %s60
    %p69 = scmp.eq.s32.totalorder %s16, 0
    %p70 = por %p68, %p69
    %p71 = scmp.ne.s32.totalorder %s59, %s60
    %p72 = scmp.eq.s32.totalorder %s17, 3
    %p73 = por %p71, %p72
    %p75 = scmp.ne.s32.totalorder %s60, %s74
    %p76 = scmp.eq.s32.totalorder %s17, 0
    %p77 = por %p75, %p76
    %s79 = sadd.s32 %s78, 1
    %p82 = scmp.eq.s32.totalorder %s11, 3
    %p83 = scmp.ne.s32.totalorder %s78, %s80
    %p84 = scmp.eq.s32.totalorder %s11, 0
    %p85 = por %p83, %p84
    %p86 = scmp.ne.s32.totalorder %s78, %s80
    %p87 = scmp.eq.s32.totalorder %s16, 3
    %p88 = por %p86, %p87
    %p89 = scmp.ne.s32.totalorder %s80, %s81
    %p90 = scmp.eq.s32.totalorder %s16, 0
    %p91 = por %p89, %p90
    %p92 = scmp.ne.s32.totalorder %s80, %s81
    %p93 = scmp.eq.s32.totalorder %s17, 3
    %p94 = por %p92, %p93
    %p96 = scmp.ne.s32.totalorder %s81, %s95
    %p97 = scmp.eq.s32.totalorder %s17, 0
    %p98 = por %p96, %p97
    %s100 = sadd.s32 %s99, 1
    %p103 = scmp.eq.s32.totalorder %s11, 3
    %p104 = scmp.ne.s32.totalorder %s99, %s101
    %p105 = scmp.eq.s32.totalorder %s11, 0
    %p106 = por %p104, %p105
    %p107 = scmp.ne.s32.totalorder %s99, %s101
    %p108 = scmp.eq.s32.totalorder %s16, 3
    %p109 = por %p107, %p108
    %p110 = scmp.ne.s32.totalorder %s101, %s102
    %p111 = scmp.eq.s32.totalorder %s16, 0
    %p112 = por %p110, %p111
    %p113 = scmp.ne.s32.totalorder %s101, %s102
    %p114 = scmp.eq.s32.totalorder %s17, 3
    %p115 = por %p113, %p114
    %p117 = scmp.ne.s32.totalorder %s102, %s116
    %p118 = scmp.eq.s32.totalorder %s17, 0
    %p119 = por %p117, %p118
    %s121 = sadd.s32 %s120, 1
    %p124 = scmp.eq.s32.totalorder %s11, 3
    %p125 = scmp.ne.s32.totalorder %s120, %s122
    %p126 = scmp.eq.s32.totalorder %s11, 0
    %p127 = por %p125, %p126
    %p128 = scmp.ne.s32.totalorder %s120, %s122
    %p129 = scmp.eq.s32.totalorder %s16, 3
    %p130 = por %p128, %p129
    %p131 = scmp.ne.s32.totalorder %s122, %s123
    %p132 = scmp.eq.s32.totalorder %s16, 0
    %p133 = por %p131, %p132
    %p134 = scmp.ne.s32.totalorder %s122, %s123
    %p135 = scmp.eq.s32.totalorder %s17, 3
    %p136 = por %p134, %p135
    %p138 = scmp.ne.s32.totalorder %s123, %s137
    %p139 = scmp.eq.s32.totalorder %s17, 0
    %p140 = por %p138, %p139
    %s141 = ssub.s32 %s18, %s30
    %s142 = ssub.s32 %s19, %s26
    %s143 = sor.u32 %s141, %s142
    %p144 = scmp.eq.s32.totalorder %s143, 0
    %s146 = sadd.s32 %s145, 1
    %s147 = scalar_select %p144, %s145, %s146
    %p150 = pneg %p144
    %p151 = scmp.eq.s32.totalorder %s11, 3
    %p152 = por %p150, %p151
    %p153 = scmp.ne.s32.totalorder %s145, %s148
    %p154 = scmp.eq.s32.totalorder %s11, 0
    %p155 = por %p153, %p154
    %p156 = scmp.ne.s32.totalorder %s145, %s148
    %p157 = scmp.eq.s32.totalorder %s16, 3
    %p158 = por %p156, %p157
    %p159 = scmp.ne.s32.totalorder %s148, %s149
    %p160 = scmp.eq.s32.totalorder %s16, 0
    %p161 = por %p159, %p160
    %p162 = scmp.ne.s32.totalorder %s148, %s149
    %p163 = scmp.eq.s32.totalorder %s17, 3
    %p164 = por %p162, %p163
    %p166 = scmp.ne.s32.totalorder %s149, %s165
    %p167 = scmp.eq.s32.totalorder %s17, 0
    %p168 = por %p166, %p167
    %p169 = scmp.le.s32.totalorder 1, %s11
    %p170 = scmp.lt.s32.totalorder %s11, 5
    %p171 = pnand %p169, %p170
    %p172 = pneg %p171
    // Predicated region
    $region9: #{tpu_custom_call.1} parent=5 // pred_check
      _
    $region10: #{tpu_custom_call.1} parent=5 // pred_check_branch
      %174 = sbr.rel (%p171) target = $region12
    $region11: #{tpu_custom_call.1} parent=5 // pred_region
      %s175 = ssub.s32 %s11, 1
      // Predicated region
      $region13: #{tpu_custom_call.1} parent=11 // pred_check
        %p176 = pneg %p70
      $region14: #{tpu_custom_call.1} parent=11 // pred_check_branch
        %178 = sbr.rel (%p176) target = $region16
      $region15: #{tpu_custom_call.1} parent=11 // pred_region
        _
      $region16: #{tpu_custom_call.1} parent=11 // pred_fallthru
        _
      // Predicated region
      $region17: #{tpu_custom_call.1} parent=11 // pred_check
        %p179 = pneg %p91
      $region18: #{tpu_custom_call.1} parent=11 // pred_check_branch
        %181 = sbr.rel (%p179) target = $region20
      $region19: #{tpu_custom_call.1} parent=11 // pred_region
        _
      $region20: #{tpu_custom_call.1} parent=11 // pred_fallthru
        _
      // Predicated region
      $region21: #{tpu_custom_call.1} parent=11 // pred_check
        %p182 = pneg %p112
      $region22: #{tpu_custom_call.1} parent=11 // pred_check_branch
        %184 = sbr.rel (%p182) target = $region24
      $region23: #{tpu_custom_call.1} parent=11 // pred_region
        _
      $region24: #{tpu_custom_call.1} parent=11 // pred_fallthru
        _
      // Predicated region
      $region25: #{tpu_custom_call.1} parent=11 // pred_check
        %p185 = pneg %p133
      $region26: #{tpu_custom_call.1} parent=11 // pred_check_branch
        %187 = sbr.rel (%p185) target = $region28
      $region27: #{tpu_custom_call.1} parent=11 // pred_region
        _
      $region28: #{tpu_custom_call.1} parent=11 // pred_fallthru
        _
    $region12: #{tpu_custom_call.1} parent=5 // pred_fallthru
      _
    %p188 = scmp.lt.s32.totalorder %s11, 4
    // Predicated region
    $region29: #{tpu_custom_call.1} parent=5 // pred_check
      %p189 = pneg %p188
    $region30: #{tpu_custom_call.1} parent=5 // pred_check_branch
      %191 = sbr.rel (%p189) target = $region32
    $region31: #{tpu_custom_call.1} parent=5 // pred_region
      // Predicated region
      $region33: #{tpu_custom_call.1} parent=31 // pred_check
        %p192 = pneg %p43
      $region34: #{tpu_custom_call.1} parent=31 // pred_check_branch
        %194 = sbr.rel (%p192) target = $region36
      $region35: #{tpu_custom_call.1} parent=31 // pred_region
        %p195 = scmp.lt.s32.totalorder %s18, 1
        %s196 = scalar_select %p195, %s18, 1
        %s197 = smul.addr %s196, 40
        %s198 = smul.addr %s197, 4
        %s199 = scalar_lea.vmem %s0, %s198
      $region36: #{tpu_custom_call.1} parent=31 // pred_fallthru
        _
    $region32: #{tpu_custom_call.1} parent=5 // pred_fallthru
      _
    %p200 = scmp.le.s32.totalorder 1, %s11
    %p201 = scmp.lt.s32.totalorder %s11, 5
    %p202 = pnand %p200, %p201
    %p203 = pneg %p202
    // Predicated region
    $region37: #{tpu_custom_call.1} parent=5 // pred_check
      _
    $region38: #{tpu_custom_call.1} parent=5 // pred_check_branch
      %205 = sbr.rel (%p202) target = $region40
    $region39: #{tpu_custom_call.1} parent=5 // pred_region
      %s206 = ssub.s32 %s11, 1
      %p207 = scmp.lt.s32.totalorder %s20, 1
      %s208 = scalar_select %p207, %s20, 1
      %s209 = smul.addr %s208, 40
      %s210 = smul.addr %s209, 4
      %s211 = scalar_lea.vmem %s0, %s210
      %p212 = pneg %p49
      %p213 = pneg %p46
      %p214 = pneg %p70
      %p215 = pneg %p67
      %p216 = pneg %p91
      %p217 = pneg %p88
      %p218 = pneg %p112
      %p219 = pneg %p109
      %p220 = pneg %p133
      %p221 = pneg %p130
      %p222 = pneg %p161
      %p223 = pneg %p158
      %s224 = smul.u32 4, %s21
      %p225 = scmp.lt.s32.totalorder %s20, 1
      %s226 = scalar_select %p225, %s20, 1
      %p227 = scmp.lt.s32.totalorder %s224, 7
      %s228 = scalar_select %p227, %s224, 7
      %s229 = smul.addr %s226, 8
      %s230 = sadd.s32 %s228, %s229
      %s231 = smul.addr %s230, 8
      %s232 = scalar_lea.vmem %s5, %s231
      %p233 = scmp.lt.s32.totalorder %s20, 1
      %s234 = scalar_select %p233, %s20, 1
      %s235 = smul.addr %s234, 40
      %s236 = smul.addr %s235, 4
      %s237 = scalar_lea.vmem %s0, %s236
      %s238 = smul.u32 4, %s21
      %p239 = scmp.lt.s32.totalorder %s20, 1
      %s240 = scalar_select %p239, %s20, 1
      %p241 = scmp.lt.s32.totalorder %s238, 7
      %s242 = scalar_select %p241, %s238, 7
      %s243 = smul.addr %s240, 8
      %s244 = sadd.s32 %s242, %s243
      %s245 = smul.addr %s244, 8
      %s246 = scalar_lea.vmem %s5, %s245
      %s247 = smul.u32 4, %s21
      %s249 = smul.u32 %s21, 8
      %s250 = smul.u32 %s249, 2
      %s251 = smul.addr %s250, 4
      %s252 = scalar_lea.vmem %s237, %s251
      %v253 = vld [vmem:[%s252] sm:$0xf]
      %v254 = vld [vmem:[%s252 + $0x4] sm:$0x1]
      %v255 = vld [vmem:[%s252 + $0x8] sm:$0xf]
      %v256 = vld [vmem:[%s252 + $0xc] sm:$0x1]
      %v257 = vld [vmem:[%s252 + $0x10] sm:$0xf]
      %v258 = vld [vmem:[%s252 + $0x14] sm:$0x1]
      %v259 = vld [vmem:[%s252 + $0x18] sm:$0xf]
      %v260 = vld [vmem:[%s252 + $0x1c] sm:$0x1]
      %v261 = vld [vmem:[%s252 + $0x20] sm:$0xf]
      %v262 = vld [vmem:[%s252 + $0x24] sm:$0x1]
      %v263 = vld [vmem:[%s252 + $0x28] sm:$0xf]
      %v264 = vld [vmem:[%s252 + $0x2c] sm:$0x1]
      %v265 = vld [vmem:[%s252 + $0x30] sm:$0xf]
      %v266 = vld [vmem:[%s252 + $0x34] sm:$0x1]
      %v267 = vld [vmem:[%s252 + $0x38] sm:$0xf]
      %v268 = vld [vmem:[%s252 + $0x3c] sm:$0x1]
      %v269 = vld [vmem:[%s252 + $0x40] sm:$0xf]
      %v270 = vld [vmem:[%s252 + $0x44] sm:$0x1]
      %v271 = vld [vmem:[%s252 + $0x48] sm:$0xf]
      %v272 = vld [vmem:[%s252 + $0x4c] sm:$0x1]
      %v294 = vunpack.c.l.s4 1966171168
      %v295 = vunpack.c.0.s8 %v294
      %v296 = vlaneseq
      %v297 = vshrl.u32 %v296, 7
      %v298 = vsub.s32 %v295, %v297
      %v299 = vrot.slane %v253, %v298
      %v300 = vcombine.high %v299, %v299
      %v302 = vunpack.c.l.s4 1966171168
      %v303 = vunpack.c.0.s8 %v302
      %v304 = vlaneseq
      %v305 = vshrl.u32 %v304, 7
      %v306 = vsub.s32 %v303, %v305
      %v307 = vrot.slane %v299, %v306
      %v309 = vunpack.c.l.s4 1966171168
      %v310 = vunpack.c.0.s8 %v309
      %v311 = vlaneseq
      %v312 = vshrl.u32 %v311, 7
      %v313 = vsub.s32 %v310, %v312
      %v314 = vrot.slane %v300, %v313
      %v315 = vcombine.high %v307, %v307
      %v316 = vcombine.high %v314, %v314
      %v318 = vunpack.c.l.s4 1966171168
      %v319 = vunpack.c.0.s8 %v318
      %v320 = vlaneseq
      %v321 = vshrl.u32 %v320, 7
      %v322 = vsub.s32 %v319, %v321
      %v323 = vrot.slane %v254, %v322
      %v325 = vunpack.c.l.s4 1966171168
      %v326 = vunpack.c.0.s8 %v325
      %v327 = vlaneseq
      %v328 = vshrl.u32 %v327, 7
      %v329 = vsub.s32 %v326, %v328
      %v330 = vrot.slane %v323, %v329
      %v332 = vunpack.c.l.s4 1966171168
      %v333 = vunpack.c.0.s8 %v332
      %v334 = vlaneseq
      %v335 = vshrl.u32 %v334, 7
      %v336 = vsub.s32 %v333, %v335
      %v337 = vrot.slane %v255, %v336
      %v338 = vcombine.high %v337, %v337
      %v340 = vunpack.c.l.s4 1966171168
      %v341 = vunpack.c.0.s8 %v340
      %v342 = vlaneseq
      %v343 = vshrl.u32 %v342, 7
      %v344 = vsub.s32 %v341, %v343
      %v345 = vrot.slane %v337, %v344
      %v347 = vunpack.c.l.s4 1966171168
      %v348 = vunpack.c.0.s8 %v347
      %v349 = vlaneseq
      %v350 = vshrl.u32 %v349, 7
      %v351 = vsub.s32 %v348, %v350
      %v352 = vrot.slane %v338, %v351
      %v353 = vcombine.high %v345, %v345
      %v354 = vcombine.high %v352, %v352
      %v356 = vunpack.c.l.s4 1966171168
      %v357 = vunpack.c.0.s8 %v356
      %v358 = vlaneseq
      %v359 = vshrl.u32 %v358, 7
      %v360 = vsub.s32 %v357, %v359
      %v361 = vrot.slane %v256, %v360
      %v363 = vunpack.c.l.s4 1966171168
      %v364 = vunpack.c.0.s8 %v363
      %v365 = vlaneseq
      %v366 = vshrl.u32 %v365, 7
      %v367 = vsub.s32 %v364, %v366
      %v368 = vrot.slane %v361, %v367
      %v370 = vunpack.c.l.s4 1966171168
      %v371 = vunpack.c.0.s8 %v370
      %v372 = vlaneseq
      %v373 = vshrl.u32 %v372, 7
      %v374 = vsub.s32 %v371, %v373
      %v375 = vrot.slane %v257, %v374
      %v376 = vcombine.high %v375, %v375
      %v378 = vunpack.c.l.s4 1966171168
      %v379 = vunpack.c.0.s8 %v378
      %v380 = vlaneseq
      %v381 = vshrl.u32 %v380, 7
      %v382 = vsub.s32 %v379, %v381
      %v383 = vrot.slane %v375, %v382
      %v385 = vunpack.c.l.s4 1966171168
      %v386 = vunpack.c.0.s8 %v385
      %v387 = vlaneseq
      %v388 = vshrl.u32 %v387, 7
      %v389 = vsub.s32 %v386, %v388
      %v390 = vrot.slane %v376, %v389
      %v391 = vcombine.high %v383, %v383
      %v392 = vcombine.high %v390, %v390
      %v394 = vunpack.c.l.s4 1966171168
      %v395 = vunpack.c.0.s8 %v394
      %v396 = vlaneseq
      %v397 = vshrl.u32 %v396, 7
      %v398 = vsub.s32 %v395, %v397
      %v399 = vrot.slane %v258, %v398
      %v401 = vunpack.c.l.s4 1966171168
      %v402 = vunpack.c.0.s8 %v401
      %v403 = vlaneseq
      %v404 = vshrl.u32 %v403, 7
      %v405 = vsub.s32 %v402, %v404
      %v406 = vrot.slane %v399, %v405
      %v408 = vunpack.c.l.s4 1966171168
      %v409 = vunpack.c.0.s8 %v408
      %v410 = vlaneseq
      %v411 = vshrl.u32 %v410, 7
      %v412 = vsub.s32 %v409, %v411
      %v413 = vrot.slane %v259, %v412
      %v414 = vcombine.high %v413, %v413
      %v416 = vunpack.c.l.s4 1966171168
      %v417 = vunpack.c.0.s8 %v416
      %v418 = vlaneseq
      %v419 = vshrl.u32 %v418, 7
      %v420 = vsub.s32 %v417, %v419
      %v421 = vrot.slane %v413, %v420
      %v423 = vunpack.c.l.s4 1966171168
      %v424 = vunpack.c.0.s8 %v423
      %v425 = vlaneseq
      %v426 = vshrl.u32 %v425, 7
      %v427 = vsub.s32 %v424, %v426
      %v428 = vrot.slane %v414, %v427
      %v429 = vcombine.high %v421, %v421
      %v430 = vcombine.high %v428, %v428
      %v432 = vunpack.c.l.s4 1966171168
      %v433 = vunpack.c.0.s8 %v432
      %v434 = vlaneseq
      %v435 = vshrl.u32 %v434, 7
      %v436 = vsub.s32 %v433, %v435
      %v437 = vrot.slane %v260, %v436
      %v439 = vunpack.c.l.s4 1966171168
      %v440 = vunpack.c.0.s8 %v439
      %v441 = vlaneseq
      %v442 = vshrl.u32 %v441, 7
      %v443 = vsub.s32 %v440, %v442
      %v444 = vrot.slane %v437, %v443
      %v446 = vunpack.c.l.s4 1966171168
      %v447 = vunpack.c.0.s8 %v446
      %v448 = vlaneseq
      %v449 = vshrl.u32 %v448, 7
      %v450 = vsub.s32 %v447, %v449
      %v451 = vrot.slane %v261, %v450
      %v452 = vcombine.high %v451, %v451
      %v454 = vunpack.c.l.s4 1966171168
      %v455 = vunpack.c.0.s8 %v454
      %v456 = vlaneseq
      %v457 = vshrl.u32 %v456, 7
      %v458 = vsub.s32 %v455, %v457
      %v459 = vrot.slane %v451, %v458
      %v461 = vunpack.c.l.s4 1966171168
      %v462 = vunpack.c.0.s8 %v461
      %v463 = vlaneseq
      %v464 = vshrl.u32 %v463, 7
      %v465 = vsub.s32 %v462, %v464
      %v466 = vrot.slane %v452, %v465
      %v467 = vcombine.high %v459, %v459
      %v468 = vcombine.high %v466, %v466
      %v470 = vunpack.c.l.s4 1966171168
      %v471 = vunpack.c.0.s8 %v470
      %v472 = vlaneseq
      %v473 = vshrl.u32 %v472, 7
      %v474 = vsub.s32 %v471, %v473
      %v475 = vrot.slane %v262, %v474
      %v477 = vunpack.c.l.s4 1966171168
      %v478 = vunpack.c.0.s8 %v477
      %v479 = vlaneseq
      %v480 = vshrl.u32 %v479, 7
      %v481 = vsub.s32 %v478, %v480
      %v482 = vrot.slane %v475, %v481
      %v484 = vunpack.c.l.s4 1966171168
      %v485 = vunpack.c.0.s8 %v484
      %v486 = vlaneseq
      %v487 = vshrl.u32 %v486, 7
      %v488 = vsub.s32 %v485, %v487
      %v489 = vrot.slane %v263, %v488
      %v490 = vcombine.high %v489, %v489
      %v492 = vunpack.c.l.s4 1966171168
      %v493 = vunpack.c.0.s8 %v492
      %v494 = vlaneseq
      %v495 = vshrl.u32 %v494, 7
      %v496 = vsub.s32 %v493, %v495
      %v497 = vrot.slane %v489, %v496
      %v499 = vunpack.c.l.s4 1966171168
      %v500 = vunpack.c.0.s8 %v499
      %v501 = vlaneseq
      %v502 = vshrl.u32 %v501, 7
      %v503 = vsub.s32 %v500, %v502
      %v504 = vrot.slane %v490, %v503
      %v505 = vcombine.high %v497, %v497
      %v506 = vcombine.high %v504, %v504
      %v508 = vunpack.c.l.s4 1966171168
      %v509 = vunpack.c.0.s8 %v508
      %v510 = vlaneseq
      %v511 = vshrl.u32 %v510, 7
      %v512 = vsub.s32 %v509, %v511
      %v513 = vrot.slane %v264, %v512
      %v515 = vunpack.c.l.s4 1966171168
      %v516 = vunpack.c.0.s8 %v515
      %v517 = vlaneseq
      %v518 = vshrl.u32 %v517, 7
      %v519 = vsub.s32 %v516, %v518
      %v520 = vrot.slane %v513, %v519
      %v522 = vunpack.c.l.s4 1966171168
      %v523 = vunpack.c.0.s8 %v522
      %v524 = vlaneseq
      %v525 = vshrl.u32 %v524, 7
      %v526 = vsub.s32 %v523, %v525
      %v527 = vrot.slane %v265, %v526
      %v528 = vcombine.high %v527, %v527
      %v530 = vunpack.c.l.s4 1966171168
      %v531 = vunpack.c.0.s8 %v530
      %v532 = vlaneseq
      %v533 = vshrl.u32 %v532, 7
      %v534 = vsub.s32 %v531, %v533
      %v535 = vrot.slane %v527, %v534
      %v537 = vunpack.c.l.s4 1966171168
      %v538 = vunpack.c.0.s8 %v537
      %v539 = vlaneseq
      %v540 = vshrl.u32 %v539, 7
      %v541 = vsub.s32 %v538, %v540
      %v542 = vrot.slane %v528, %v541
      %v543 = vcombine.high %v535, %v535
      %v544 = vcombine.high %v542, %v542
      %v546 = vunpack.c.l.s4 1966171168
      %v547 = vunpack.c.0.s8 %v546
      %v548 = vlaneseq
      %v549 = vshrl.u32 %v548, 7
      %v550 = vsub.s32 %v547, %v549
      %v551 = vrot.slane %v266, %v550
      %v553 = vunpack.c.l.s4 1966171168
      %v554 = vunpack.c.0.s8 %v553
      %v555 = vlaneseq
      %v556 = vshrl.u32 %v555, 7
      %v557 = vsub.s32 %v554, %v556
      %v558 = vrot.slane %v551, %v557
      %v560 = vunpack.c.l.s4 1966171168
      %v561 = vunpack.c.0.s8 %v560
      %v562 = vlaneseq
      %v563 = vshrl.u32 %v562, 7
      %v564 = vsub.s32 %v561, %v563
      %v565 = vrot.slane %v267, %v564
      %v566 = vcombine.high %v565, %v565
      %v568 = vunpack.c.l.s4 1966171168
      %v569 = vunpack.c.0.s8 %v568
      %v570 = vlaneseq
      %v571 = vshrl.u32 %v570, 7
      %v572 = vsub.s32 %v569, %v571
      %v573 = vrot.slane %v565, %v572
      %v575 = vunpack.c.l.s4 1966171168
      %v576 = vunpack.c.0.s8 %v575
      %v577 = vlaneseq
      %v578 = vshrl.u32 %v577, 7
      %v579 = vsub.s32 %v576, %v578
      %v580 = vrot.slane %v566, %v579
      %v581 = vcombine.high %v573, %v573
      %v582 = vcombine.high %v580, %v580
      %v584 = vunpack.c.l.s4 1966171168
      %v585 = vunpack.c.0.s8 %v584
      %v586 = vlaneseq
      %v587 = vshrl.u32 %v586, 7
      %v588 = vsub.s32 %v585, %v587
      %v589 = vrot.slane %v268, %v588
      %v591 = vunpack.c.l.s4 1966171168
      %v592 = vunpack.c.0.s8 %v591
      %v593 = vlaneseq
      %v594 = vshrl.u32 %v593, 7
      %v595 = vsub.s32 %v592, %v594
      %v596 = vrot.slane %v589, %v595
      %v598 = vunpack.c.l.s4 1966171168
      %v599 = vunpack.c.0.s8 %v598
      %v600 = vlaneseq
      %v601 = vshrl.u32 %v600, 7
      %v602 = vsub.s32 %v599, %v601
      %v603 = vrot.slane %v269, %v602
      %v604 = vcombine.high %v603, %v603
      %v606 = vunpack.c.l.s4 1966171168
      %v607 = vunpack.c.0.s8 %v606
      %v608 = vlaneseq
      %v609 = vshrl.u32 %v608, 7
      %v610 = vsub.s32 %v607, %v609
      %v611 = vrot.slane %v603, %v610
      %v613 = vunpack.c.l.s4 1966171168
      %v614 = vunpack.c.0.s8 %v613
      %v615 = vlaneseq
      %v616 = vshrl.u32 %v615, 7
      %v617 = vsub.s32 %v614, %v616
      %v618 = vrot.slane %v604, %v617
      %v619 = vcombine.high %v611, %v611
      %v620 = vcombine.high %v618, %v618
      %v622 = vunpack.c.l.s4 1966171168
      %v623 = vunpack.c.0.s8 %v622
      %v624 = vlaneseq
      %v625 = vshrl.u32 %v624, 7
      %v626 = vsub.s32 %v623, %v625
      %v627 = vrot.slane %v270, %v626
      %v629 = vunpack.c.l.s4 1966171168
      %v630 = vunpack.c.0.s8 %v629
      %v631 = vlaneseq
      %v632 = vshrl.u32 %v631, 7
      %v633 = vsub.s32 %v630, %v632
      %v634 = vrot.slane %v627, %v633
      %v636 = vunpack.c.l.s4 1966171168
      %v637 = vunpack.c.0.s8 %v636
      %v638 = vlaneseq
      %v639 = vshrl.u32 %v638, 7
      %v640 = vsub.s32 %v637, %v639
      %v641 = vrot.slane %v271, %v640
      %v642 = vcombine.high %v641, %v641
      %v644 = vunpack.c.l.s4 1966171168
      %v645 = vunpack.c.0.s8 %v644
      %v646 = vlaneseq
      %v647 = vshrl.u32 %v646, 7
      %v648 = vsub.s32 %v645, %v647
      %v649 = vrot.slane %v641, %v648
      %v651 = vunpack.c.l.s4 1966171168
      %v652 = vunpack.c.0.s8 %v651
      %v653 = vlaneseq
      %v654 = vshrl.u32 %v653, 7
      %v655 = vsub.s32 %v652, %v654
      %v656 = vrot.slane %v642, %v655
      %v657 = vcombine.high %v649, %v649
      %v658 = vcombine.high %v656, %v656
      %v660 = vunpack.c.l.s4 1966171168
      %v661 = vunpack.c.0.s8 %v660
      %v662 = vlaneseq
      %v663 = vshrl.u32 %v662, 7
      %v664 = vsub.s32 %v661, %v663
      %v665 = vrot.slane %v272, %v664
      %v667 = vunpack.c.l.s4 1966171168
      %v668 = vunpack.c.0.s8 %v667
      %v669 = vlaneseq
      %v670 = vshrl.u32 %v669, 7
      %v671 = vsub.s32 %v668, %v670
      %v672 = vrot.slane %v665, %v671
      %v673 = vunpack.i.l.s16 %v307
      %v674 = vunpack.i.h.s16 %v307
      %v675 = vunpack.i.l.s16 %v314
      %v676 = vunpack.i.h.s16 %v314
      %v677 = vunpack.i.l.s16 %v315
      %v678 = vunpack.i.h.s16 %v315
      %v679 = vunpack.i.l.s16 %v316
      %v680 = vunpack.i.h.s16 %v316
      %v681 = vunpack.i.l.s16 %v330
      %v682 = vunpack.i.l.s16 %v345
      %v683 = vunpack.i.h.s16 %v345
      %v684 = vunpack.i.l.s16 %v352
      %v685 = vunpack.i.h.s16 %v352
      %v686 = vunpack.i.l.s16 %v353
      %v687 = vunpack.i.h.s16 %v353
      %v688 = vunpack.i.l.s16 %v354
      %v689 = vunpack.i.h.s16 %v354
      %v690 = vunpack.i.l.s16 %v368
      %v691 = vunpack.i.l.s16 %v383
      %v692 = vunpack.i.h.s16 %v383
      %v693 = vunpack.i.l.s16 %v390
      %v694 = vunpack.i.h.s16 %v390
      %v695 = vunpack.i.l.s16 %v391
      %v696 = vunpack.i.h.s16 %v391
      %v697 = vunpack.i.l.s16 %v392
      %v698 = vunpack.i.h.s16 %v392
      %v699 = vunpack.i.l.s16 %v406
      %v700 = vunpack.i.l.s16 %v421
      %v701 = vunpack.i.h.s16 %v421
      %v702 = vunpack.i.l.s16 %v428
      %v703 = vunpack.i.h.s16 %v428
      %v704 = vunpack.i.l.s16 %v429
      %v705 = vunpack.i.h.s16 %v429
      %v706 = vunpack.i.l.s16 %v430
      %v707 = vunpack.i.h.s16 %v430
      %v708 = vunpack.i.l.s16 %v444
      %v709 = vunpack.i.l.s16 %v459
      %v710 = vunpack.i.h.s16 %v459
      %v711 = vunpack.i.l.s16 %v466
      %v712 = vunpack.i.h.s16 %v466
      %v713 = vunpack.i.l.s16 %v467
      %v714 = vunpack.i.h.s16 %v467
      %v715 = vunpack.i.l.s16 %v468
      %v716 = vunpack.i.h.s16 %v468
      %v717 = vunpack.i.l.s16 %v482
      %v718 = vunpack.i.l.s16 %v497
      %v719 = vunpack.i.h.s16 %v497
      %v720 = vunpack.i.l.s16 %v504
      %v721 = vunpack.i.h.s16 %v504
      %v722 = vunpack.i.l.s16 %v505
      %v723 = vunpack.i.h.s16 %v505
      %v724 = vunpack.i.l.s16 %v506
      %v725 = vunpack.i.h.s16 %v506
      %v726 = vunpack.i.l.s16 %v520
      %v727 = vunpack.i.l.s16 %v535
      %v728 = vunpack.i.h.s16 %v535
      %v729 = vunpack.i.l.s16 %v542
      %v730 = vunpack.i.h.s16 %v542
      %v731 = vunpack.i.l.s16 %v543
      %v732 = vunpack.i.h.s16 %v543
      %v733 = vunpack.i.l.s16 %v544
      %v734 = vunpack.i.h.s16 %v544
      %v735 = vunpack.i.l.s16 %v558
      %v736 = vunpack.i.l.s16 %v573
      %v737 = vunpack.i.h.s16 %v573
      %v738 = vunpack.i.l.s16 %v580
      %v739 = vunpack.i.h.s16 %v580
      %v740 = vunpack.i.l.s16 %v581
      %v741 = vunpack.i.h.s16 %v581
      %v742 = vunpack.i.l.s16 %v582
      %v743 = vunpack.i.h.s16 %v582
      %v744 = vunpack.i.l.s16 %v596
      %v745 = vunpack.i.l.s16 %v611
      %v746 = vunpack.i.h.s16 %v611
      %v747 = vunpack.i.l.s16 %v618
      %v748 = vunpack.i.h.s16 %v618
      %v749 = vunpack.i.l.s16 %v619
      %v750 = vunpack.i.h.s16 %v619
      %v751 = vunpack.i.l.s16 %v620
      %v752 = vunpack.i.h.s16 %v620
      %v753 = vunpack.i.l.s16 %v634
      %v754 = vunpack.i.l.s16 %v649
      %v755 = vunpack.i.h.s16 %v649
      %v756 = vunpack.i.l.s16 %v656
      %v757 = vunpack.i.h.s16 %v656
      %v758 = vunpack.i.l.s16 %v657
      %v759 = vunpack.i.h.s16 %v657
      %v760 = vunpack.i.l.s16 %v658
      %v761 = vunpack.i.h.s16 %v658
      %v762 = vunpack.i.l.s16 %v672
      %v763 = vunpack.i.h.s16 %v330
      %v764 = vunpack.i.h.s16 %v368
      %v765 = vunpack.i.h.s16 %v406
      %v766 = vunpack.i.h.s16 %v444
      %v767 = vunpack.i.h.s16 %v482
      %v768 = vunpack.i.h.s16 %v520
      %v769 = vunpack.i.h.s16 %v558
      %v770 = vunpack.i.h.s16 %v596
      %v771 = vunpack.i.h.s16 %v634
      %v772 = vunpack.i.h.s16 %v672
      %s773 = sadd.s32 %s249, 1
      %s774 = smul.u32 %s773, 2
      %s775 = smul.addr %s774, 4
      %s776 = scalar_lea.vmem %s237, %s775
      %v777 = vld [vmem:[%s776] sm:$0xf]
      %v778 = vld [vmem:[%s776 + $0x4] sm:$0x1]
      %v779 = vld [vmem:[%s776 + $0x8] sm:$0xf]
      %v780 = vld [vmem:[%s776 + $0xc] sm:$0x1]
      %v781 = vld [vmem:[%s776 + $0x10] sm:$0xf]
      %v782 = vld [vmem:[%s776 + $0x14] sm:$0x1]
      %v783 = vld [vmem:[%s776 + $0x18] sm:$0xf]
      %v784 = vld [vmem:[%s776 + $0x1c] sm:$0x1]
      %v785 = vld [vmem:[%s776 + $0x20] sm:$0xf]
      %v786 = vld [vmem:[%s776 + $0x24] sm:$0x1]
      %v787 = vld [vmem:[%s776 + $0x28] sm:$0xf]
      %v788 = vld [vmem:[%s776 + $0x2c] sm:$0x1]
      %v789 = vld [vmem:[%s776 + $0x30] sm:$0xf]
      %v790 = vld [vmem:[%s776 + $0x34] sm:$0x1]
      %v791 = vld [vmem:[%s776 + $0x38] sm:$0xf]
      %v792 = vld [vmem:[%s776 + $0x3c] sm:$0x1]
      %v793 = vld [vmem:[%s776 + $0x40] sm:$0xf]
      %v794 = vld [vmem:[%s776 + $0x44] sm:$0x1]
      %v795 = vld [vmem:[%s776 + $0x48] sm:$0xf]
      %v796 = vld [vmem:[%s776 + $0x4c] sm:$0x1]
      %v818 = vunpack.c.l.s4 1966171168
      %v819 = vunpack.c.0.s8 %v818
      %v820 = vlaneseq
      %v821 = vshrl.u32 %v820, 7
      %v822 = vsub.s32 %v819, %v821
      %v823 = vrot.slane %v777, %v822
      %v824 = vcombine.high %v823, %v823
      %v826 = vunpack.c.l.s4 1966171168
      %v827 = vunpack.c.0.s8 %v826
      %v828 = vlaneseq
      %v829 = vshrl.u32 %v828, 7
      %v830 = vsub.s32 %v827, %v829
      %v831 = vrot.slane %v823, %v830
      %v833 = vunpack.c.l.s4 1966171168
      %v834 = vunpack.c.0.s8 %v833
      %v835 = vlaneseq
      %v836 = vshrl.u32 %v835, 7
      %v837 = vsub.s32 %v834, %v836
      %v838 = vrot.slane %v824, %v837
      %v839 = vcombine.high %v831, %v831
      %v840 = vcombine.high %v838, %v838
      %v842 = vunpack.c.l.s4 1966171168
      %v843 = vunpack.c.0.s8 %v842
      %v844 = vlaneseq
      %v845 = vshrl.u32 %v844, 7
      %v846 = vsub.s32 %v843, %v845
      %v847 = vrot.slane %v778, %v846
      %v849 = vunpack.c.l.s4 1966171168
      %v850 = vunpack.c.0.s8 %v849
      %v851 = vlaneseq
      %v852 = vshrl.u32 %v851, 7
      %v853 = vsub.s32 %v850, %v852
      %v854 = vrot.slane %v847, %v853
      %v856 = vunpack.c.l.s4 1966171168
      %v857 = vunpack.c.0.s8 %v856
      %v858 = vlaneseq
      %v859 = vshrl.u32 %v858, 7
      %v860 = vsub.s32 %v857, %v859
      %v861 = vrot.slane %v779, %v860
      %v862 = vcombine.high %v861, %v861
      %v864 = vunpack.c.l.s4 1966171168
      %v865 = vunpack.c.0.s8 %v864
      %v866 = vlaneseq
      %v867 = vshrl.u32 %v866, 7
      %v868 = vsub.s32 %v865, %v867
      %v869 = vrot.slane %v861, %v868
      %v871 = vunpack.c.l.s4 1966171168
      %v872 = vunpack.c.0.s8 %v871
      %v873 = vlaneseq
      %v874 = vshrl.u32 %v873, 7
      %v875 = vsub.s32 %v872, %v874
      %v876 = vrot.slane %v862, %v875
      %v877 = vcombine.high %v869, %v869
      %v878 = vcombine.high %v876, %v876
      %v880 = vunpack.c.l.s4 1966171168
      %v881 = vunpack.c.0.s8 %v880
      %v882 = vlaneseq
      %v883 = vshrl.u32 %v882, 7
      %v884 = vsub.s32 %v881, %v883
      %v885 = vrot.slane %v780, %v884
      %v887 = vunpack.c.l.s4 1966171168
      %v888 = vunpack.c.0.s8 %v887
      %v889 = vlaneseq
      %v890 = vshrl.u32 %v889, 7
      %v891 = vsub.s32 %v888, %v890
      %v892 = vrot.slane %v885, %v891
      %v894 = vunpack.c.l.s4 1966171168
      %v895 = vunpack.c.0.s8 %v894
      %v896 = vlaneseq
      %v897 = vshrl.u32 %v896, 7
      %v898 = vsub.s32 %v895, %v897
      %v899 = vrot.slane %v781, %v898
      %v900 = vcombine.high %v899, %v899
      %v902 = vunpack.c.l.s4 1966171168
      %v903 = vunpack.c.0.s8 %v902
      %v904 = vlaneseq
      %v905 = vshrl.u32 %v904, 7
      %v906 = vsub.s32 %v903, %v905
      %v907 = vrot.slane %v899, %v906
      %v909 = vunpack.c.l.s4 1966171168
      %v910 = vunpack.c.0.s8 %v909
      %v911 = vlaneseq
      %v912 = vshrl.u32 %v911, 7
      %v913 = vsub.s32 %v910, %v912
      %v914 = vrot.slane %v900, %v913
      %v915 = vcombine.high %v907, %v907
      %v916 = vcombine.high %v914, %v914
      %v918 = vunpack.c.l.s4 1966171168
      %v919 = vunpack.c.0.s8 %v918
      %v920 = vlaneseq
      %v921 = vshrl.u32 %v920, 7
      %v922 = vsub.s32 %v919, %v921
      %v923 = vrot.slane %v782, %v922
      %v925 = vunpack.c.l.s4 1966171168
      %v926 = vunpack.c.0.s8 %v925
      %v927 = vlaneseq
      %v928 = vshrl.u32 %v927, 7
      %v929 = vsub.s32 %v926, %v928
      %v930 = vrot.slane %v923, %v929
      %v932 = vunpack.c.l.s4 1966171168
      %v933 = vunpack.c.0.s8 %v932
      %v934 = vlaneseq
      %v935 = vshrl.u32 %v934, 7
      %v936 = vsub.s32 %v933, %v935
      %v937 = vrot.slane %v783, %v936
      %v938 = vcombine.high %v937, %v937
      %v940 = vunpack.c.l.s4 1966171168
      %v941 = vunpack.c.0.s8 %v940
      %v942 = vlaneseq
      %v943 = vshrl.u32 %v942, 7
      %v944 = vsub.s32 %v941, %v943
      %v945 = vrot.slane %v937, %v944
      %v947 = vunpack.c.l.s4 1966171168
      %v948 = vunpack.c.0.s8 %v947
      %v949 = vlaneseq
      %v950 = vshrl.u32 %v949, 7
      %v951 = vsub.s32 %v948, %v950
      %v952 = vrot.slane %v938, %v951
      %v953 = vcombine.high %v945, %v945
      %v954 = vcombine.high %v952, %v952
      %v956 = vunpack.c.l.s4 1966171168
      %v957 = vunpack.c.0.s8 %v956
      %v958 = vlaneseq
      %v959 = vshrl.u32 %v958, 7
      %v960 = vsub.s32 %v957, %v959
      %v961 = vrot.slane %v784, %v960
      %v963 = vunpack.c.l.s4 1966171168
      %v964 = vunpack.c.0.s8 %v963
      %v965 = vlaneseq
      %v966 = vshrl.u32 %v965, 7
      %v967 = vsub.s32 %v964, %v966
      %v968 = vrot.slane %v961, %v967
      %v970 = vunpack.c.l.s4 1966171168
      %v971 = vunpack.c.0.s8 %v970
      %v972 = vlaneseq
      %v973 = vshrl.u32 %v972, 7
      %v974 = vsub.s32 %v971, %v973
      %v975 = vrot.slane %v785, %v974
      %v976 = vcombine.high %v975, %v975
      %v978 = vunpack.c.l.s4 1966171168
      %v979 = vunpack.c.0.s8 %v978
      %v980 = vlaneseq
      %v981 = vshrl.u32 %v980, 7
      %v982 = vsub.s32 %v979, %v981
      %v983 = vrot.slane %v975, %v982
      %v985 = vunpack.c.l.s4 1966171168
      %v986 = vunpack.c.0.s8 %v985
      %v987 = vlaneseq
      %v988 = vshrl.u32 %v987, 7
      %v989 = vsub.s32 %v986, %v988
      %v990 = vrot.slane %v976, %v989
      %v991 = vcombine.high %v983, %v983
      %v992 = vcombine.high %v990, %v990
      %v994 = vunpack.c.l.s4 1966171168
      %v995 = vunpack.c.0.s8 %v994
      %v996 = vlaneseq
      %v997 = vshrl.u32 %v996, 7
      %v998 = vsub.s32 %v995, %v997
      %v999 = vrot.slane %v786, %v998
      %v1001 = vunpack.c.l.s4 1966171168
      %v1002 = vunpack.c.0.s8 %v1001
      %v1003 = vlaneseq
      %v1004 = vshrl.u32 %v1003, 7
      %v1005 = vsub.s32 %v1002, %v1004
      %v1006 = vrot.slane %v999, %v1005
      %v1008 = vunpack.c.l.s4 1966171168
      %v1009 = vunpack.c.0.s8 %v1008
      %v1010 = vlaneseq
      %v1011 = vshrl.u32 %v1010, 7
      %v1012 = vsub.s32 %v1009, %v1011
      %v1013 = vrot.slane %v787, %v1012
      %v1014 = vcombine.high %v1013, %v1013
      %v1016 = vunpack.c.l.s4 1966171168
      %v1017 = vunpack.c.0.s8 %v1016
      %v1018 = vlaneseq
      %v1019 = vshrl.u32 %v1018, 7
      %v1020 = vsub.s32 %v1017, %v1019
      %v1021 = vrot.slane %v1013, %v1020
      %v1023 = vunpack.c.l.s4 1966171168
      %v1024 = vunpack.c.0.s8 %v1023
      %v1025 = vlaneseq
      %v1026 = vshrl.u32 %v1025, 7
      %v1027 = vsub.s32 %v1024, %v1026
      %v1028 = vrot.slane %v1014, %v1027
      %v1029 = vcombine.high %v1021, %v1021
      %v1030 = vcombine.high %v1028, %v1028
      %v1032 = vunpack.c.l.s4 1966171168
      %v1033 = vunpack.c.0.s8 %v1032
      %v1034 = vlaneseq
      %v1035 = vshrl.u32 %v1034, 7
      %v1036 = vsub.s32 %v1033, %v1035
      %v1037 = vrot.slane %v788, %v1036
      %v1039 = vunpack.c.l.s4 1966171168
      %v1040 = vunpack.c.0.s8 %v1039
      %v1041 = vlaneseq
      %v1042 = vshrl.u32 %v1041, 7
      %v1043 = vsub.s32 %v1040, %v1042
      %v1044 = vrot.slane %v1037, %v1043
      %v1046 = vunpack.c.l.s4 1966171168
      %v1047 = vunpack.c.0.s8 %v1046
      %v1048 = vlaneseq
      %v1049 = vshrl.u32 %v1048, 7
      %v1050 = vsub.s32 %v1047, %v1049
      %v1051 = vrot.slane %v789, %v1050
      %v1052 = vcombine.high %v1051, %v1051
      %v1054 = vunpack.c.l.s4 1966171168
      %v1055 = vunpack.c.0.s8 %v1054
      %v1056 = vlaneseq
      %v1057 = vshrl.u32 %v1056, 7
      %v1058 = vsub.s32 %v1055, %v1057
      %v1059 = vrot.slane %v1051, %v1058
      %v1061 = vunpack.c.l.s4 1966171168
      %v1062 = vunpack.c.0.s8 %v1061
      %v1063 = vlaneseq
      %v1064 = vshrl.u32 %v1063, 7
      %v1065 = vsub.s32 %v1062, %v1064
      %v1066 = vrot.slane %v1052, %v1065
      %v1067 = vcombine.high %v1059, %v1059
      %v1068 = vcombine.high %v1066, %v1066
      %v1070 = vunpack.c.l.s4 1966171168
      %v1071 = vunpack.c.0.s8 %v1070
      %v1072 = vlaneseq
      %v1073 = vshrl.u32 %v1072, 7
      %v1074 = vsub.s32 %v1071, %v1073
      %v1075 = vrot.slane %v790, %v1074
      %v1077 = vunpack.c.l.s4 1966171168
      %v1078 = vunpack.c.0.s8 %v1077
      %v1079 = vlaneseq
      %v1080 = vshrl.u32 %v1079, 7
      %v1081 = vsub.s32 %v1078, %v1080
      %v1082 = vrot.slane %v1075, %v1081
      %v1084 = vunpack.c.l.s4 1966171168
      %v1085 = vunpack.c.0.s8 %v1084
      %v1086 = vlaneseq
      %v1087 = vshrl.u32 %v1086, 7
      %v1088 = vsub.s32 %v1085, %v1087
      %v1089 = vrot.slane %v791, %v1088
      %v1090 = vcombine.high %v1089, %v1089
      %v1092 = vunpack.c.l.s4 1966171168
      %v1093 = vunpack.c.0.s8 %v1092
      %v1094 = vlaneseq
      %v1095 = vshrl.u32 %v1094, 7
      %v1096 = vsub.s32 %v1093, %v1095
      %v1097 = vrot.slane %v1089, %v1096
      %v1099 = vunpack.c.l.s4 1966171168
      %v1100 = vunpack.c.0.s8 %v1099
      %v1101 = vlaneseq
      %v1102 = vshrl.u32 %v1101, 7
      %v1103 = vsub.s32 %v1100, %v1102
      %v1104 = vrot.slane %v1090, %v1103
      %v1105 = vcombine.high %v1097, %v1097
      %v1106 = vcombine.high %v1104, %v1104
      %v1108 = vunpack.c.l.s4 1966171168
      %v1109 = vunpack.c.0.s8 %v1108
      %v1110 = vlaneseq
      %v1111 = vshrl.u32 %v1110, 7
      %v1112 = vsub.s32 %v1109, %v1111
      %v1113 = vrot.slane %v792, %v1112
      %v1115 = vunpack.c.l.s4 1966171168
      %v1116 = vunpack.c.0.s8 %v1115
      %v1117 = vlaneseq
      %v1118 = vshrl.u32 %v1117, 7
      %v1119 = vsub.s32 %v1116, %v1118
      %v1120 = vrot.slane %v1113, %v1119
      %v1122 = vunpack.c.l.s4 1966171168
      %v1123 = vunpack.c.0.s8 %v1122
      %v1124 = vlaneseq
      %v1125 = vshrl.u32 %v1124, 7
      %v1126 = vsub.s32 %v1123, %v1125
      %v1127 = vrot.slane %v793, %v1126
      %v1128 = vcombine.high %v1127, %v1127
      %v1130 = vunpack.c.l.s4 1966171168
      %v1131 = vunpack.c.0.s8 %v1130
      %v1132 = vlaneseq
      %v1133 = vshrl.u32 %v1132, 7
      %v1134 = vsub.s32 %v1131, %v1133
      %v1135 = vrot.slane %v1127, %v1134
      %v1137 = vunpack.c.l.s4 1966171168
      %v1138 = vunpack.c.0.s8 %v1137
      %v1139 = vlaneseq
      %v1140 = vshrl.u32 %v1139, 7
      %v1141 = vsub.s32 %v1138, %v1140
      %v1142 = vrot.slane %v1128, %v1141
      %v1143 = vcombine.high %v1135, %v1135
      %v1144 = vcombine.high %v1142, %v1142
      %v1146 = vunpack.c.l.s4 1966171168
      %v1147 = vunpack.c.0.s8 %v1146
      %v1148 = vlaneseq
      %v1149 = vshrl.u32 %v1148, 7
      %v1150 = vsub.s32 %v1147, %v1149
      %v1151 = vrot.slane %v794, %v1150
      %v1153 = vunpack.c.l.s4 1966171168
      %v1154 = vunpack.c.0.s8 %v1153
      %v1155 = vlaneseq
      %v1156 = vshrl.u32 %v1155, 7
      %v1157 = vsub.s32 %v1154, %v1156
      %v1158 = vrot.slane %v1151, %v1157
      %v1160 = vunpack.c.l.s4 1966171168
      %v1161 = vunpack.c.0.s8 %v1160
      %v1162 = vlaneseq
      %v1163 = vshrl.u32 %v1162, 7
      %v1164 = vsub.s32 %v1161, %v1163
      %v1165 = vrot.slane %v795, %v1164
      %v1166 = vcombine.high %v1165, %v1165
      %v1168 = vunpack.c.l.s4 1966171168
      %v1169 = vunpack.c.0.s8 %v1168
      %v1170 = vlaneseq
      %v1171 = vshrl.u32 %v1170, 7
      %v1172 = vsub.s32 %v1169, %v1171
      %v1173 = vrot.slane %v1165, %v1172
      %v1175 = vunpack.c.l.s4 1966171168
      %v1176 = vunpack.c.0.s8 %v1175
      %v1177 = vlaneseq
      %v1178 = vshrl.u32 %v1177, 7
      %v1179 = vsub.s32 %v1176, %v1178
      %v1180 = vrot.slane %v1166, %v1179
      %v1181 = vcombine.high %v1173, %v1173
      %v1182 = vcombine.high %v1180, %v1180
      %v1184 = vunpack.c.l.s4 1966171168
      %v1185 = vunpack.c.0.s8 %v1184
      %v1186 = vlaneseq
      %v1187 = vshrl.u32 %v1186, 7
      %v1188 = vsub.s32 %v1185, %v1187
      %v1189 = vrot.slane %v796, %v1188
      %v1191 = vunpack.c.l.s4 1966171168
      %v1192 = vunpack.c.0.s8 %v1191
      %v1193 = vlaneseq
      %v1194 = vshrl.u32 %v1193, 7
      %v1195 = vsub.s32 %v1192, %v1194
      %v1196 = vrot.slane %v1189, %v1195
      %v1197 = vunpack.i.l.s16 %v831
      %v1198 = vunpack.i.h.s16 %v831
      %v1199 = vunpack.i.l.s16 %v838
      %v1200 = vunpack.i.h.s16 %v838
      %v1201 = vunpack.i.l.s16 %v839
      %v1202 = vunpack.i.h.s16 %v839
      %v1203 = vunpack.i.l.s16 %v840
      %v1204 = vunpack.i.h.s16 %v840
      %v1205 = vunpack.i.l.s16 %v854
      %v1206 = vunpack.i.l.s16 %v869
      %v1207 = vunpack.i.h.s16 %v869
      %v1208 = vunpack.i.l.s16 %v876
      %v1209 = vunpack.i.h.s16 %v876
      %v1210 = vunpack.i.l.s16 %v877
      %v1211 = vunpack.i.h.s16 %v877
      %v1212 = vunpack.i.l.s16 %v878
      %v1213 = vunpack.i.h.s16 %v878
      %v1214 = vunpack.i.l.s16 %v892
      %v1215 = vunpack.i.l.s16 %v907
      %v1216 = vunpack.i.h.s16 %v907
      %v1217 = vunpack.i.l.s16 %v914
      %v1218 = vunpack.i.h.s16 %v914
      %v1219 = vunpack.i.l.s16 %v915
      %v1220 = vunpack.i.h.s16 %v915
      %v1221 = vunpack.i.l.s16 %v916
      %v1222 = vunpack.i.h.s16 %v916
      %v1223 = vunpack.i.l.s16 %v930
      %v1224 = vunpack.i.l.s16 %v945
      %v1225 = vunpack.i.h.s16 %v945
      %v1226 = vunpack.i.l.s16 %v952
      %v1227 = vunpack.i.h.s16 %v952
      %v1228 = vunpack.i.l.s16 %v953
      %v1229 = vunpack.i.h.s16 %v953
      %v1230 = vunpack.i.l.s16 %v954
      %v1231 = vunpack.i.h.s16 %v954
      %v1232 = vunpack.i.l.s16 %v968
      %v1233 = vunpack.i.l.s16 %v983
      %v1234 = vunpack.i.h.s16 %v983
      %v1235 = vunpack.i.l.s16 %v990
      %v1236 = vunpack.i.h.s16 %v990
      %v1237 = vunpack.i.l.s16 %v991
      %v1238 = vunpack.i.h.s16 %v991
      %v1239 = vunpack.i.l.s16 %v992
      %v1240 = vunpack.i.h.s16 %v992
      %v1241 = vunpack.i.l.s16 %v1006
      %v1242 = vunpack.i.l.s16 %v1021
      %v1243 = vunpack.i.h.s16 %v1021
      %v1244 = vunpack.i.l.s16 %v1028
      %v1245 = vunpack.i.h.s16 %v1028
      %v1246 = vunpack.i.l.s16 %v1029
      %v1247 = vunpack.i.h.s16 %v1029
      %v1248 = vunpack.i.l.s16 %v1030
      %v1249 = vunpack.i.h.s16 %v1030
      %v1250 = vunpack.i.l.s16 %v1044
      %v1251 = vunpack.i.l.s16 %v1059
      %v1252 = vunpack.i.h.s16 %v1059
      %v1253 = vunpack.i.l.s16 %v1066
      %v1254 = vunpack.i.h.s16 %v1066
      %v1255 = vunpack.i.l.s16 %v1067
      %v1256 = vunpack.i.h.s16 %v1067
      %v1257 = vunpack.i.l.s16 %v1068
      %v1258 = vunpack.i.h.s16 %v1068
      %v1259 = vunpack.i.l.s16 %v1082
      %v1260 = vunpack.i.l.s16 %v1097
      %v1261 = vunpack.i.h.s16 %v1097
      %v1262 = vunpack.i.l.s16 %v1104
      %v1263 = vunpack.i.h.s16 %v1104
      %v1264 = vunpack.i.l.s16 %v1105
      %v1265 = vunpack.i.h.s16 %v1105
      %v1266 = vunpack.i.l.s16 %v1106
      %v1267 = vunpack.i.h.s16 %v1106
      %v1268 = vunpack.i.l.s16 %v1120
      %v1269 = vunpack.i.l.s16 %v1135
      %v1270 = vunpack.i.h.s16 %v1135
      %v1271 = vunpack.i.l.s16 %v1142
      %v1272 = vunpack.i.h.s16 %v1142
      %v1273 = vunpack.i.l.s16 %v1143
      %v1274 = vunpack.i.h.s16 %v1143
      %v1275 = vunpack.i.l.s16 %v1144
      %v1276 = vunpack.i.h.s16 %v1144
      %v1277 = vunpack.i.l.s16 %v1158
      %v1278 = vunpack.i.l.s16 %v1173
      %v1279 = vunpack.i.h.s16 %v1173
      %v1280 = vunpack.i.l.s16 %v1180
      %v1281 = vunpack.i.h.s16 %v1180
      %v1282 = vunpack.i.l.s16 %v1181
      %v1283 = vunpack.i.h.s16 %v1181
      %v1284 = vunpack.i.l.s16 %v1182
      %v1285 = vunpack.i.h.s16 %v1182
      %v1286 = vunpack.i.l.s16 %v1196
      %v1287 = vunpack.i.h.s16 %v854
      %v1288 = vunpack.i.h.s16 %v892
      %v1289 = vunpack.i.h.s16 %v930
      %v1290 = vunpack.i.h.s16 %v968
      %v1291 = vunpack.i.h.s16 %v1006
      %v1292 = vunpack.i.h.s16 %v1044
      %v1293 = vunpack.i.h.s16 %v1082
      %v1294 = vunpack.i.h.s16 %v1120
      %v1295 = vunpack.i.h.s16 %v1158
      %v1296 = vunpack.i.h.s16 %v1196
      %s1297 = sadd.s32 %s249, 2
      %s1298 = smul.u32 %s1297, 2
      %s1299 = smul.addr %s1298, 4
      %s1300 = scalar_lea.vmem %s237, %s1299
      %v1301 = vld [vmem:[%s1300] sm:$0xf]
      %v1302 = vld [vmem:[%s1300 + $0x4] sm:$0x1]
      %v1303 = vld [vmem:[%s1300 + $0x8] sm:$0xf]
      %v1304 = vld [vmem:[%s1300 + $0xc] sm:$0x1]
      %v1305 = vld [vmem:[%s1300 + $0x10] sm:$0xf]
      %v1306 = vld [vmem:[%s1300 + $0x14] sm:$0x1]
      %v1307 = vld [vmem:[%s1300 + $0x18] sm:$0xf]
      %v1308 = vld [vmem:[%s1300 + $0x1c] sm:$0x1]
      %v1309 = vld [vmem:[%s1300 + $0x20] sm:$0xf]
      %v1310 = vld [vmem:[%s1300 + $0x24] sm:$0x1]
      %v1311 = vld [vmem:[%s1300 + $0x28] sm:$0xf]
      %v1312 = vld [vmem:[%s1300 + $0x2c] sm:$0x1]
      %v1313 = vld [vmem:[%s1300 + $0x30] sm:$0xf]
      %v1314 = vld [vmem:[%s1300 + $0x34] sm:$0x1]
      %v1315 = vld [vmem:[%s1300 + $0x38] sm:$0xf]
      %v1316 = vld [vmem:[%s1300 + $0x3c] sm:$0x1]
      %v1317 = vld [vmem:[%s1300 + $0x40] sm:$0xf]
      %v1318 = vld [vmem:[%s1300 + $0x44] sm:$0x1]
      %v1319 = vld [vmem:[%s1300 + $0x48] sm:$0xf]
      %v1320 = vld [vmem:[%s1300 + $0x4c] sm:$0x1]
      %v1342 = vunpack.c.l.s4 1966171168
      %v1343 = vunpack.c.0.s8 %v1342
      %v1344 = vlaneseq
      %v1345 = vshrl.u32 %v1344, 7
      %v1346 = vsub.s32 %v1343, %v1345
      %v1347 = vrot.slane %v1301, %v1346
      %v1348 = vcombine.high %v1347, %v1347
      %v1350 = vunpack.c.l.s4 1966171168
      %v1351 = vunpack.c.0.s8 %v1350
      %v1352 = vlaneseq
      %v1353 = vshrl.u32 %v1352, 7
      %v1354 = vsub.s32 %v1351, %v1353
      %v1355 = vrot.slane %v1347, %v1354
      %v1357 = vunpack.c.l.s4 1966171168
      %v1358 = vunpack.c.0.s8 %v1357
      %v1359 = vlaneseq
      %v1360 = vshrl.u32 %v1359, 7
      %v1361 = vsub.s32 %v1358, %v1360
      %v1362 = vrot.slane %v1348, %v1361
      %v1363 = vcombine.high %v1355, %v1355
      %v1364 = vcombine.high %v1362, %v1362
      %v1366 = vunpack.c.l.s4 1966171168
      %v1367 = vunpack.c.0.s8 %v1366
      %v1368 = vlaneseq
      %v1369 = vshrl.u32 %v1368, 7
      %v1370 = vsub.s32 %v1367, %v1369
      %v1371 = vrot.slane %v1302, %v1370
      %v1373 = vunpack.c.l.s4 1966171168
      %v1374 = vunpack.c.0.s8 %v1373
      %v1375 = vlaneseq
      %v1376 = vshrl.u32 %v1375, 7
      %v1377 = vsub.s32 %v1374, %v1376
      %v1378 = vrot.slane %v1371, %v1377
      %v1380 = vunpack.c.l.s4 1966171168
      %v1381 = vunpack.c.0.s8 %v1380
      %v1382 = vlaneseq
      %v1383 = vshrl.u32 %v1382, 7
      %v1384 = vsub.s32 %v1381, %v1383
      %v1385 = vrot.slane %v1303, %v1384
      %v1386 = vcombine.high %v1385, %v1385
      %v1388 = vunpack.c.l.s4 1966171168
      %v1389 = vunpack.c.0.s8 %v1388
      %v1390 = vlaneseq
      %v1391 = vshrl.u32 %v1390, 7
      %v1392 = vsub.s32 %v1389, %v1391
      %v1393 = vrot.slane %v1385, %v1392
      %v1395 = vunpack.c.l.s4 1966171168
      %v1396 = vunpack.c.0.s8 %v1395
      %v1397 = vlaneseq
      %v1398 = vshrl.u32 %v1397, 7
      %v1399 = vsub.s32 %v1396, %v1398
      %v1400 = vrot.slane %v1386, %v1399
      %v1401 = vcombine.high %v1393, %v1393
      %v1402 = vcombine.high %v1400, %v1400
      %v1404 = vunpack.c.l.s4 1966171168
      %v1405 = vunpack.c.0.s8 %v1404
      %v1406 = vlaneseq
      %v1407 = vshrl.u32 %v1406, 7
      %v1408 = vsub.s32 %v1405, %v1407
      %v1409 = vrot.slane %v1304, %v1408
      %v1411 = vunpack.c.l.s4 1966171168
      %v1412 = vunpack.c.0.s8 %v1411
      %v1413 = vlaneseq
      %v1414 = vshrl.u32 %v1413, 7
      %v1415 = vsub.s32 %v1412, %v1414
      %v1416 = vrot.slane %v1409, %v1415
      %v1418 = vunpack.c.l.s4 1966171168
      %v1419 = vunpack.c.0.s8 %v1418
      %v1420 = vlaneseq
      %v1421 = vshrl.u32 %v1420, 7
      %v1422 = vsub.s32 %v1419, %v1421
      %v1423 = vrot.slane %v1305, %v1422
      %v1424 = vcombine.high %v1423, %v1423
      %v1426 = vunpack.c.l.s4 1966171168
      %v1427 = vunpack.c.0.s8 %v1426
      %v1428 = vlaneseq
      %v1429 = vshrl.u32 %v1428, 7
      %v1430 = vsub.s32 %v1427, %v1429
      %v1431 = vrot.slane %v1423, %v1430
      %v1433 = vunpack.c.l.s4 1966171168
      %v1434 = vunpack.c.0.s8 %v1433
      %v1435 = vlaneseq
      %v1436 = vshrl.u32 %v1435, 7
      %v1437 = vsub.s32 %v1434, %v1436
      %v1438 = vrot.slane %v1424, %v1437
      %v1439 = vcombine.high %v1431, %v1431
      %v1440 = vcombine.high %v1438, %v1438
      %v1442 = vunpack.c.l.s4 1966171168
      %v1443 = vunpack.c.0.s8 %v1442
      %v1444 = vlaneseq
      %v1445 = vshrl.u32 %v1444, 7
      %v1446 = vsub.s32 %v1443, %v1445
      %v1447 = vrot.slane %v1306, %v1446
      %v1449 = vunpack.c.l.s4 1966171168
      %v1450 = vunpack.c.0.s8 %v1449
      %v1451 = vlaneseq
      %v1452 = vshrl.u32 %v1451, 7
      %v1453 = vsub.s32 %v1450, %v1452
      %v1454 = vrot.slane %v1447, %v1453
      %v1456 = vunpack.c.l.s4 1966171168
      %v1457 = vunpack.c.0.s8 %v1456
      %v1458 = vlaneseq
      %v1459 = vshrl.u32 %v1458, 7
      %v1460 = vsub.s32 %v1457, %v1459
      %v1461 = vrot.slane %v1307, %v1460
      %v1462 = vcombine.high %v1461, %v1461
      %v1464 = vunpack.c.l.s4 1966171168
      %v1465 = vunpack.c.0.s8 %v1464
      %v1466 = vlaneseq
      %v1467 = vshrl.u32 %v1466, 7
      %v1468 = vsub.s32 %v1465, %v1467
      %v1469 = vrot.slane %v1461, %v1468
      %v1471 = vunpack.c.l.s4 1966171168
      %v1472 = vunpack.c.0.s8 %v1471
      %v1473 = vlaneseq
      %v1474 = vshrl.u32 %v1473, 7
      %v1475 = vsub.s32 %v1472, %v1474
      %v1476 = vrot.slane %v1462, %v1475
      %v1477 = vcombine.high %v1469, %v1469
      %v1478 = vcombine.high %v1476, %v1476
      %v1480 = vunpack.c.l.s4 1966171168
      %v1481 = vunpack.c.0.s8 %v1480
      %v1482 = vlaneseq
      %v1483 = vshrl.u32 %v1482, 7
      %v1484 = vsub.s32 %v1481, %v1483
      %v1485 = vrot.slane %v1308, %v1484
      %v1487 = vunpack.c.l.s4 1966171168
      %v1488 = vunpack.c.0.s8 %v1487
      %v1489 = vlaneseq
      %v1490 = vshrl.u32 %v1489, 7
      %v1491 = vsub.s32 %v1488, %v1490
      %v1492 = vrot.slane %v1485, %v1491
      %v1494 = vunpack.c.l.s4 1966171168
      %v1495 = vunpack.c.0.s8 %v1494
      %v1496 = vlaneseq
      %v1497 = vshrl.u32 %v1496, 7
      %v1498 = vsub.s32 %v1495, %v1497
      %v1499 = vrot.slane %v1309, %v1498
      %v1500 = vcombine.high %v1499, %v1499
      %v1502 = vunpack.c.l.s4 1966171168
      %v1503 = vunpack.c.0.s8 %v1502
      %v1504 = vlaneseq
      %v1505 = vshrl.u32 %v1504, 7
      %v1506 = vsub.s32 %v1503, %v1505
      %v1507 = vrot.slane %v1499, %v1506
      %v1509 = vunpack.c.l.s4 1966171168
      %v1510 = vunpack.c.0.s8 %v1509
      %v1511 = vlaneseq
      %v1512 = vshrl.u32 %v1511, 7
      %v1513 = vsub.s32 %v1510, %v1512
      %v1514 = vrot.slane %v1500, %v1513
      %v1515 = vcombine.high %v1507, %v1507
      %v1516 = vcombine.high %v1514, %v1514
      %v1518 = vunpack.c.l.s4 1966171168
      %v1519 = vunpack.c.0.s8 %v1518
      %v1520 = vlaneseq
      %v1521 = vshrl.u32 %v1520, 7
      %v1522 = vsub.s32 %v1519, %v1521
      %v1523 = vrot.slane %v1310, %v1522
      %v1525 = vunpack.c.l.s4 1966171168
      %v1526 = vunpack.c.0.s8 %v1525
      %v1527 = vlaneseq
      %v1528 = vshrl.u32 %v1527, 7
      %v1529 = vsub.s32 %v1526, %v1528
      %v1530 = vrot.slane %v1523, %v1529
      %v1532 = vunpack.c.l.s4 1966171168
      %v1533 = vunpack.c.0.s8 %v1532
      %v1534 = vlaneseq
      %v1535 = vshrl.u32 %v1534, 7
      %v1536 = vsub.s32 %v1533, %v1535
      %v1537 = vrot.slane %v1311, %v1536
      %v1538 = vcombine.high %v1537, %v1537
      %v1540 = vunpack.c.l.s4 1966171168
      %v1541 = vunpack.c.0.s8 %v1540
      %v1542 = vlaneseq
      %v1543 = vshrl.u32 %v1542, 7
      %v1544 = vsub.s32 %v1541, %v1543
      %v1545 = vrot.slane %v1537, %v1544
      %v1547 = vunpack.c.l.s4 1966171168
      %v1548 = vunpack.c.0.s8 %v1547
      %v1549 = vlaneseq
      %v1550 = vshrl.u32 %v1549, 7
      %v1551 = vsub.s32 %v1548, %v1550
      %v1552 = vrot.slane %v1538, %v1551
      %v1553 = vcombine.high %v1545, %v1545
      %v1554 = vcombine.high %v1552, %v1552
      %v1556 = vunpack.c.l.s4 1966171168
      %v1557 = vunpack.c.0.s8 %v1556
      %v1558 = vlaneseq
      %v1559 = vshrl.u32 %v1558, 7
      %v1560 = vsub.s32 %v1557, %v1559
      %v1561 = vrot.slane %v1312, %v1560
      %v1563 = vunpack.c.l.s4 1966171168
      %v1564 = vunpack.c.0.s8 %v1563
      %v1565 = vlaneseq
      %v1566 = vshrl.u32 %v1565, 7
      %v1567 = vsub.s32 %v1564, %v1566
      %v1568 = vrot.slane %v1561, %v1567
      %v1570 = vunpack.c.l.s4 1966171168
      %v1571 = vunpack.c.0.s8 %v1570
      %v1572 = vlaneseq
      %v1573 = vshrl.u32 %v1572, 7
      %v1574 = vsub.s32 %v1571, %v1573
      %v1575 = vrot.slane %v1313, %v1574
      %v1576 = vcombine.high %v1575, %v1575
      %v1578 = vunpack.c.l.s4 1966171168
      %v1579 = vunpack.c.0.s8 %v1578
      %v1580 = vlaneseq
      %v1581 = vshrl.u32 %v1580, 7
      %v1582 = vsub.s32 %v1579, %v1581
      %v1583 = vrot.slane %v1575, %v1582
      %v1585 = vunpack.c.l.s4 1966171168
      %v1586 = vunpack.c.0.s8 %v1585
      %v1587 = vlaneseq
      %v1588 = vshrl.u32 %v1587, 7
      %v1589 = vsub.s32 %v1586, %v1588
      %v1590 = vrot.slane %v1576, %v1589
      %v1591 = vcombine.high %v1583, %v1583
      %v1592 = vcombine.high %v1590, %v1590
      %v1594 = vunpack.c.l.s4 1966171168
      %v1595 = vunpack.c.0.s8 %v1594
      %v1596 = vlaneseq
      %v1597 = vshrl.u32 %v1596, 7
      %v1598 = vsub.s32 %v1595, %v1597
      %v1599 = vrot.slane %v1314, %v1598
      %v1601 = vunpack.c.l.s4 1966171168
      %v1602 = vunpack.c.0.s8 %v1601
      %v1603 = vlaneseq
      %v1604 = vshrl.u32 %v1603, 7
      %v1605 = vsub.s32 %v1602, %v1604
      %v1606 = vrot.slane %v1599, %v1605
      %v1608 = vunpack.c.l.s4 1966171168
      %v1609 = vunpack.c.0.s8 %v1608
      %v1610 = vlaneseq
      %v1611 = vshrl.u32 %v1610, 7
      %v1612 = vsub.s32 %v1609, %v1611
      %v1613 = vrot.slane %v1315, %v1612
      %v1614 = vcombine.high %v1613, %v1613
      %v1616 = vunpack.c.l.s4 1966171168
      %v1617 = vunpack.c.0.s8 %v1616
      %v1618 = vlaneseq
      %v1619 = vshrl.u32 %v1618, 7
      %v1620 = vsub.s32 %v1617, %v1619
      %v1621 = vrot.slane %v1613, %v1620
      %v1623 = vunpack.c.l.s4 1966171168
      %v1624 = vunpack.c.0.s8 %v1623
      %v1625 = vlaneseq
      %v1626 = vshrl.u32 %v1625, 7
      %v1627 = vsub.s32 %v1624, %v1626
      %v1628 = vrot.slane %v1614, %v1627
      %v1629 = vcombine.high %v1621, %v1621
      %v1630 = vcombine.high %v1628, %v1628
      %v1632 = vunpack.c.l.s4 1966171168
      %v1633 = vunpack.c.0.s8 %v1632
      %v1634 = vlaneseq
      %v1635 = vshrl.u32 %v1634, 7
      %v1636 = vsub.s32 %v1633, %v1635
      %v1637 = vrot.slane %v1316, %v1636
      %v1639 = vunpack.c.l.s4 1966171168
      %v1640 = vunpack.c.0.s8 %v1639
      %v1641 = vlaneseq
      %v1642 = vshrl.u32 %v1641, 7
      %v1643 = vsub.s32 %v1640, %v1642
      %v1644 = vrot.slane %v1637, %v1643
      %v1646 = vunpack.c.l.s4 1966171168
      %v1647 = vunpack.c.0.s8 %v1646
      %v1648 = vlaneseq
      %v1649 = vshrl.u32 %v1648, 7
      %v1650 = vsub.s32 %v1647, %v1649
      %v1651 = vrot.slane %v1317, %v1650
      %v1652 = vcombine.high %v1651, %v1651
      %v1654 = vunpack.c.l.s4 1966171168
      %v1655 = vunpack.c.0.s8 %v1654
      %v1656 = vlaneseq
      %v1657 = vshrl.u32 %v1656, 7
      %v1658 = vsub.s32 %v1655, %v1657
      %v1659 = vrot.slane %v1651, %v1658
      %v1661 = vunpack.c.l.s4 1966171168
      %v1662 = vunpack.c.0.s8 %v1661
      %v1663 = vlaneseq
      %v1664 = vshrl.u32 %v1663, 7
      %v1665 = vsub.s32 %v1662, %v1664
      %v1666 = vrot.slane %v1652, %v1665
      %v1667 = vcombine.high %v1659, %v1659
      %v1668 = vcombine.high %v1666, %v1666
      %v1670 = vunpack.c.l.s4 1966171168
      %v1671 = vunpack.c.0.s8 %v1670
      %v1672 = vlaneseq
      %v1673 = vshrl.u32 %v1672, 7
      %v1674 = vsub.s32 %v1671, %v1673
      %v1675 = vrot.slane %v1318, %v1674
      %v1677 = vunpack.c.l.s4 1966171168
      %v1678 = vunpack.c.0.s8 %v1677
      %v1679 = vlaneseq
      %v1680 = vshrl.u32 %v1679, 7
      %v1681 = vsub.s32 %v1678, %v1680
      %v1682 = vrot.slane %v1675, %v1681
      %v1684 = vunpack.c.l.s4 1966171168
      %v1685 = vunpack.c.0.s8 %v1684
      %v1686 = vlaneseq
      %v1687 = vshrl.u32 %v1686, 7
      %v1688 = vsub.s32 %v1685, %v1687
      %v1689 = vrot.slane %v1319, %v1688
      %v1690 = vcombine.high %v1689, %v1689
      %v1692 = vunpack.c.l.s4 1966171168
      %v1693 = vunpack.c.0.s8 %v1692
      %v1694 = vlaneseq
      %v1695 = vshrl.u32 %v1694, 7
      %v1696 = vsub.s32 %v1693, %v1695
      %v1697 = vrot.slane %v1689, %v1696
      %v1699 = vunpack.c.l.s4 1966171168
      %v1700 = vunpack.c.0.s8 %v1699
      %v1701 = vlaneseq
      %v1702 = vshrl.u32 %v1701, 7
      %v1703 = vsub.s32 %v1700, %v1702
      %v1704 = vrot.slane %v1690, %v1703
      %v1705 = vcombine.high %v1697, %v1697
      %v1706 = vcombine.high %v1704, %v1704
      %v1708 = vunpack.c.l.s4 1966171168
      %v1709 = vunpack.c.0.s8 %v1708
      %v1710 = vlaneseq
      %v1711 = vshrl.u32 %v1710, 7
      %v1712 = vsub.s32 %v1709, %v1711
      %v1713 = vrot.slane %v1320, %v1712
      %v1715 = vunpack.c.l.s4 1966171168
      %v1716 = vunpack.c.0.s8 %v1715
      %v1717 = vlaneseq
      %v1718 = vshrl.u32 %v1717, 7
      %v1719 = vsub.s32 %v1716, %v1718
      %v1720 = vrot.slane %v1713, %v1719
      %v1721 = vunpack.i.l.s16 %v1355
      %v1722 = vunpack.i.h.s16 %v1355
      %v1723 = vunpack.i.l.s16 %v1362
      %v1724 = vunpack.i.h.s16 %v1362
      %v1725 = vunpack.i.l.s16 %v1363
      %v1726 = vunpack.i.h.s16 %v1363
      %v1727 = vunpack.i.l.s16 %v1364
      %v1728 = vunpack.i.h.s16 %v1364
      %v1729 = vunpack.i.l.s16 %v1378
      %v1730 = vunpack.i.l.s16 %v1393
      %v1731 = vunpack.i.h.s16 %v1393
      %v1732 = vunpack.i.l.s16 %v1400
      %v1733 = vunpack.i.h.s16 %v1400
      %v1734 = vunpack.i.l.s16 %v1401
      %v1735 = vunpack.i.h.s16 %v1401
      %v1736 = vunpack.i.l.s16 %v1402
      %v1737 = vunpack.i.h.s16 %v1402
      %v1738 = vunpack.i.l.s16 %v1416
      %v1739 = vunpack.i.l.s16 %v1431
      %v1740 = vunpack.i.h.s16 %v1431
      %v1741 = vunpack.i.l.s16 %v1438
      %v1742 = vunpack.i.h.s16 %v1438
      %v1743 = vunpack.i.l.s16 %v1439
      %v1744 = vunpack.i.h.s16 %v1439
      %v1745 = vunpack.i.l.s16 %v1440
      %v1746 = vunpack.i.h.s16 %v1440
      %v1747 = vunpack.i.l.s16 %v1454
      %v1748 = vunpack.i.l.s16 %v1469
      %v1749 = vunpack.i.h.s16 %v1469
      %v1750 = vunpack.i.l.s16 %v1476
      %v1751 = vunpack.i.h.s16 %v1476
      %v1752 = vunpack.i.l.s16 %v1477
      %v1753 = vunpack.i.h.s16 %v1477
      %v1754 = vunpack.i.l.s16 %v1478
      %v1755 = vunpack.i.h.s16 %v1478
      %v1756 = vunpack.i.l.s16 %v1492
      %v1757 = vunpack.i.l.s16 %v1507
      %v1758 = vunpack.i.h.s16 %v1507
      %v1759 = vunpack.i.l.s16 %v1514
      %v1760 = vunpack.i.h.s16 %v1514
      %v1761 = vunpack.i.l.s16 %v1515
      %v1762 = vunpack.i.h.s16 %v1515
      %v1763 = vunpack.i.l.s16 %v1516
      %v1764 = vunpack.i.h.s16 %v1516
      %v1765 = vunpack.i.l.s16 %v1530
      %v1766 = vunpack.i.l.s16 %v1545
      %v1767 = vunpack.i.h.s16 %v1545
      %v1768 = vunpack.i.l.s16 %v1552
      %v1769 = vunpack.i.h.s16 %v1552
      %v1770 = vunpack.i.l.s16 %v1553
      %v1771 = vunpack.i.h.s16 %v1553
      %v1772 = vunpack.i.l.s16 %v1554
      %v1773 = vunpack.i.h.s16 %v1554
      %v1774 = vunpack.i.l.s16 %v1568
      %v1775 = vunpack.i.l.s16 %v1583
      %v1776 = vunpack.i.h.s16 %v1583
      %v1777 = vunpack.i.l.s16 %v1590
      %v1778 = vunpack.i.h.s16 %v1590
      %v1779 = vunpack.i.l.s16 %v1591
      %v1780 = vunpack.i.h.s16 %v1591
      %v1781 = vunpack.i.l.s16 %v1592
      %v1782 = vunpack.i.h.s16 %v1592
      %v1783 = vunpack.i.l.s16 %v1606
      %v1784 = vunpack.i.l.s16 %v1621
      %v1785 = vunpack.i.h.s16 %v1621
      %v1786 = vunpack.i.l.s16 %v1628
      %v1787 = vunpack.i.h.s16 %v1628
      %v1788 = vunpack.i.l.s16 %v1629
      %v1789 = vunpack.i.h.s16 %v1629
      %v1790 = vunpack.i.l.s16 %v1630
      %v1791 = vunpack.i.h.s16 %v1630
      %v1792 = vunpack.i.l.s16 %v1644
      %v1793 = vunpack.i.l.s16 %v1659
      %v1794 = vunpack.i.h.s16 %v1659
      %v1795 = vunpack.i.l.s16 %v1666
      %v1796 = vunpack.i.h.s16 %v1666
      %v1797 = vunpack.i.l.s16 %v1667
      %v1798 = vunpack.i.h.s16 %v1667
      %v1799 = vunpack.i.l.s16 %v1668
      %v1800 = vunpack.i.h.s16 %v1668
      %v1801 = vunpack.i.l.s16 %v1682
      %v1802 = vunpack.i.l.s16 %v1697
      %v1803 = vunpack.i.h.s16 %v1697
      %v1804 = vunpack.i.l.s16 %v1704
      %v1805 = vunpack.i.h.s16 %v1704
      %v1806 = vunpack.i.l.s16 %v1705
      %v1807 = vunpack.i.h.s16 %v1705
      %v1808 = vunpack.i.l.s16 %v1706
      %v1809 = vunpack.i.h.s16 %v1706
      %v1810 = vunpack.i.l.s16 %v1720
      %v1811 = vunpack.i.h.s16 %v1378
      %v1812 = vunpack.i.h.s16 %v1416
      %v1813 = vunpack.i.h.s16 %v1454
      %v1814 = vunpack.i.h.s16 %v1492
      %v1815 = vunpack.i.h.s16 %v1530
      %v1816 = vunpack.i.h.s16 %v1568
      %v1817 = vunpack.i.h.s16 %v1606
      %v1818 = vunpack.i.h.s16 %v1644
      %v1819 = vunpack.i.h.s16 %v1682
      %v1820 = vunpack.i.h.s16 %v1720
      %v1821 = vpack.i.b16 %v674, %v673
      %v1822 = vpack.i.b16 %v676, %v675
      %v1823 = vpack.i.b16 %v678, %v677
      %v1824 = vpack.i.b16 %v680, %v679
      %v1825 = vpack.i.b16 %v682, %v681
      %v1826 = vpack.i.b16 %v684, %v683
      %v1827 = vpack.i.b16 %v686, %v685
      %v1828 = vpack.i.b16 %v688, %v687
      %v1829 = vpack.i.b16 %v690, %v689
      %v1830 = vpack.i.b16 %v692, %v691
      %v1831 = vpack.i.b16 %v694, %v693
      %v1832 = vpack.i.b16 %v696, %v695
      %v1833 = vpack.i.b16 %v698, %v697
      %v1834 = vpack.i.b16 %v700, %v699
      %v1835 = vpack.i.b16 %v702, %v701
      %v1836 = vpack.i.b16 %v704, %v703
      %v1837 = vpack.i.b16 %v706, %v705
      %v1838 = vpack.i.b16 %v708, %v707
      %v1839 = vpack.i.b16 %v710, %v709
      %v1840 = vpack.i.b16 %v712, %v711
      %v1841 = vpack.i.b16 %v714, %v713
      %v1842 = vpack.i.b16 %v716, %v715
      %v1843 = vpack.i.b16 %v718, %v717
      %v1844 = vpack.i.b16 %v720, %v719
      %v1845 = vpack.i.b16 %v722, %v721
      %v1846 = vpack.i.b16 %v724, %v723
      %v1847 = vpack.i.b16 %v726, %v725
      %v1848 = vpack.i.b16 %v728, %v727
      %v1849 = vpack.i.b16 %v730, %v729
      %v1850 = vpack.i.b16 %v732, %v731
      %v1851 = vpack.i.b16 %v734, %v733
      %v1852 = vpack.i.b16 %v736, %v735
      %v1853 = vpack.i.b16 %v738, %v737
      %v1854 = vpack.i.b16 %v740, %v739
      %v1855 = vpack.i.b16 %v742, %v741
      %v1856 = vpack.i.b16 %v744, %v743
      %v1857 = vpack.i.b16 %v746, %v745
      %v1858 = vpack.i.b16 %v748, %v747
      %v1859 = vpack.i.b16 %v750, %v749
      %v1860 = vpack.i.b16 %v752, %v751
      %v1861 = vpack.i.b16 %v754, %v753
      %v1862 = vpack.i.b16 %v756, %v755
      %v1863 = vpack.i.b16 %v758, %v757
      %v1864 = vpack.i.b16 %v760, %v759
      %v1865 = vpack.i.b16 %v762, %v761
      %v1866 = vcombine.low %v1821, %v1822
      %v1867 = vcombine.low %v1823, %v1824
      %v1868 = vcombine.low %v1825, %v1826
      %v1869 = vcombine.low %v1827, %v1828
      %v1871 = vunpack.c.l.s4 1966171168
      %v1872 = vunpack.c.0.s8 %v1871
      %v1873 = vlaneseq
      %v1874 = vshrl.u32 %v1873, 7
      %v1875 = vsub.s32 %v1872, %v1874
      %v1876 = vrot.slane %v1866, %v1875
      %v1878 = vunpack.c.l.s4 1966171168
      %v1879 = vunpack.c.0.s8 %v1878
      %v1880 = vlaneseq
      %v1881 = vshrl.u32 %v1880, 7
      %v1882 = vsub.s32 %v1879, %v1881
      %v1883 = vrot.slane %v1867, %v1882
      %v1885 = vunpack.c.l.s4 1966171168
      %v1886 = vunpack.c.0.s8 %v1885
      %v1887 = vlaneseq
      %v1888 = vshrl.u32 %v1887, 7
      %v1889 = vsub.s32 %v1886, %v1888
      %v1890 = vrot.slane %v1868, %v1889
      %v1892 = vunpack.c.l.s4 1966171168
      %v1893 = vunpack.c.0.s8 %v1892
      %v1894 = vlaneseq
      %v1895 = vshrl.u32 %v1894, 7
      %v1896 = vsub.s32 %v1893, %v1895
      %v1897 = vrot.slane %v1869, %v1896
      %v1898 = vcombine.low %v1876, %v1883
      %v1899 = vcombine.low %v1890, %v1897
      %v1901 = vunpack.c.l.s4 1966171168
      %v1902 = vunpack.c.0.s8 %v1901
      %v1903 = vlaneseq
      %v1904 = vshrl.u32 %v1903, 7
      %v1905 = vsub.s32 %v1902, %v1904
      %v1906 = vrot.slane %v1898, %v1905
      %v1908 = vunpack.c.l.s4 1966171168
      %v1909 = vunpack.c.0.s8 %v1908
      %v1910 = vlaneseq
      %v1911 = vshrl.u32 %v1910, 7
      %v1912 = vsub.s32 %v1909, %v1911
      %v1913 = vrot.slane %v1899, %v1912
      %v1914 = vcombine.low %v1906, %v1913
      %v1915 = vcombine.low %v1829, %v1830
      %v1916 = vcombine.low %v1831, %v1832
      %v1917 = vcombine.low %v1833, %v1834
      %v1918 = vcombine.low %v1835, %v1836
      %v1920 = vunpack.c.l.s4 1966171168
      %v1921 = vunpack.c.0.s8 %v1920
      %v1922 = vlaneseq
      %v1923 = vshrl.u32 %v1922, 7
      %v1924 = vsub.s32 %v1921, %v1923
      %v1925 = vrot.slane %v1915, %v1924
      %v1927 = vunpack.c.l.s4 1966171168
      %v1928 = vunpack.c.0.s8 %v1927
      %v1929 = vlaneseq
      %v1930 = vshrl.u32 %v1929, 7
      %v1931 = vsub.s32 %v1928, %v1930
      %v1932 = vrot.slane %v1916, %v1931
      %v1934 = vunpack.c.l.s4 1966171168
      %v1935 = vunpack.c.0.s8 %v1934
      %v1936 = vlaneseq
      %v1937 = vshrl.u32 %v1936, 7
      %v1938 = vsub.s32 %v1935, %v1937
      %v1939 = vrot.slane %v1917, %v1938
      %v1941 = vunpack.c.l.s4 1966171168
      %v1942 = vunpack.c.0.s8 %v1941
      %v1943 = vlaneseq
      %v1944 = vshrl.u32 %v1943, 7
      %v1945 = vsub.s32 %v1942, %v1944
      %v1946 = vrot.slane %v1918, %v1945
      %v1947 = vcombine.low %v1925, %v1932
      %v1948 = vcombine.low %v1939, %v1946
      %v1950 = vunpack.c.l.s4 1966171168
      %v1951 = vunpack.c.0.s8 %v1950
      %v1952 = vlaneseq
      %v1953 = vshrl.u32 %v1952, 7
      %v1954 = vsub.s32 %v1951, %v1953
      %v1955 = vrot.slane %v1947, %v1954
      %v1957 = vunpack.c.l.s4 1966171168
      %v1958 = vunpack.c.0.s8 %v1957
      %v1959 = vlaneseq
      %v1960 = vshrl.u32 %v1959, 7
      %v1961 = vsub.s32 %v1958, %v1960
      %v1962 = vrot.slane %v1948, %v1961
      %v1963 = vcombine.low %v1955, %v1962
      %v1964 = vcombine.low %v1837, %v1838
      %v1965 = vcombine.low %v1839, %v1840
      %v1966 = vcombine.low %v1841, %v1842
      %v1967 = vcombine.low %v1843, %v1844
      %v1969 = vunpack.c.l.s4 1966171168
      %v1970 = vunpack.c.0.s8 %v1969
      %v1971 = vlaneseq
      %v1972 = vshrl.u32 %v1971, 7
      %v1973 = vsub.s32 %v1970, %v1972
      %v1974 = vrot.slane %v1964, %v1973
      %v1976 = vunpack.c.l.s4 1966171168
      %v1977 = vunpack.c.0.s8 %v1976
      %v1978 = vlaneseq
      %v1979 = vshrl.u32 %v1978, 7
      %v1980 = vsub.s32 %v1977, %v1979
      %v1981 = vrot.slane %v1965, %v1980
      %v1983 = vunpack.c.l.s4 1966171168
      %v1984 = vunpack.c.0.s8 %v1983
      %v1985 = vlaneseq
      %v1986 = vshrl.u32 %v1985, 7
      %v1987 = vsub.s32 %v1984, %v1986
      %v1988 = vrot.slane %v1966, %v1987
      %v1990 = vunpack.c.l.s4 1966171168
      %v1991 = vunpack.c.0.s8 %v1990
      %v1992 = vlaneseq
      %v1993 = vshrl.u32 %v1992, 7
      %v1994 = vsub.s32 %v1991, %v1993
      %v1995 = vrot.slane %v1967, %v1994
      %v1996 = vcombine.low %v1974, %v1981
      %v1997 = vcombine.low %v1988, %v1995
      %v1999 = vunpack.c.l.s4 1966171168
      %v2000 = vunpack.c.0.s8 %v1999
      %v2001 = vlaneseq
      %v2002 = vshrl.u32 %v2001, 7
      %v2003 = vsub.s32 %v2000, %v2002
      %v2004 = vrot.slane %v1996, %v2003
      %v2006 = vunpack.c.l.s4 1966171168
      %v2007 = vunpack.c.0.s8 %v2006
      %v2008 = vlaneseq
      %v2009 = vshrl.u32 %v2008, 7
      %v2010 = vsub.s32 %v2007, %v2009
      %v2011 = vrot.slane %v1997, %v2010
      %v2012 = vcombine.low %v2004, %v2011
      %v2013 = vcombine.low %v1845, %v1846
      %v2014 = vcombine.low %v1847, %v1848
      %v2015 = vcombine.low %v1849, %v1850
      %v2016 = vcombine.low %v1851, %v1852
      %v2018 = vunpack.c.l.s4 1966171168
      %v2019 = vunpack.c.0.s8 %v2018
      %v2020 = vlaneseq
      %v2021 = vshrl.u32 %v2020, 7
      %v2022 = vsub.s32 %v2019, %v2021
      %v2023 = vrot.slane %v2013, %v2022
      %v2025 = vunpack.c.l.s4 1966171168
      %v2026 = vunpack.c.0.s8 %v2025
      %v2027 = vlaneseq
      %v2028 = vshrl.u32 %v2027, 7
      %v2029 = vsub.s32 %v2026, %v2028
      %v2030 = vrot.slane %v2014, %v2029
      %v2032 = vunpack.c.l.s4 1966171168
      %v2033 = vunpack.c.0.s8 %v2032
      %v2034 = vlaneseq
      %v2035 = vshrl.u32 %v2034, 7
      %v2036 = vsub.s32 %v2033, %v2035
      %v2037 = vrot.slane %v2015, %v2036
      %v2039 = vunpack.c.l.s4 1966171168
      %v2040 = vunpack.c.0.s8 %v2039
      %v2041 = vlaneseq
      %v2042 = vshrl.u32 %v2041, 7
      %v2043 = vsub.s32 %v2040, %v2042
      %v2044 = vrot.slane %v2016, %v2043
      %v2045 = vcombine.low %v2023, %v2030
      %v2046 = vcombine.low %v2037, %v2044
      %v2048 = vunpack.c.l.s4 1966171168
      %v2049 = vunpack.c.0.s8 %v2048
      %v2050 = vlaneseq
      %v2051 = vshrl.u32 %v2050, 7
      %v2052 = vsub.s32 %v2049, %v2051
      %v2053 = vrot.slane %v2045, %v2052
      %v2055 = vunpack.c.l.s4 1966171168
      %v2056 = vunpack.c.0.s8 %v2055
      %v2057 = vlaneseq
      %v2058 = vshrl.u32 %v2057, 7
      %v2059 = vsub.s32 %v2056, %v2058
      %v2060 = vrot.slane %v2046, %v2059
      %v2061 = vcombine.low %v2053, %v2060
      %v2062 = vcombine.low %v1853, %v1854
      %v2063 = vcombine.low %v1855, %v1856
      %v2064 = vcombine.low %v1857, %v1858
      %v2065 = vcombine.low %v1859, %v1860
      %v2067 = vunpack.c.l.s4 1966171168
      %v2068 = vunpack.c.0.s8 %v2067
      %v2069 = vlaneseq
      %v2070 = vshrl.u32 %v2069, 7
      %v2071 = vsub.s32 %v2068, %v2070
      %v2072 = vrot.slane %v2062, %v2071
      %v2074 = vunpack.c.l.s4 1966171168
      %v2075 = vunpack.c.0.s8 %v2074
      %v2076 = vlaneseq
      %v2077 = vshrl.u32 %v2076, 7
      %v2078 = vsub.s32 %v2075, %v2077
      %v2079 = vrot.slane %v2063, %v2078
      %v2081 = vunpack.c.l.s4 1966171168
      %v2082 = vunpack.c.0.s8 %v2081
      %v2083 = vlaneseq
      %v2084 = vshrl.u32 %v2083, 7
      %v2085 = vsub.s32 %v2082, %v2084
      %v2086 = vrot.slane %v2064, %v2085
      %v2088 = vunpack.c.l.s4 1966171168
      %v2089 = vunpack.c.0.s8 %v2088
      %v2090 = vlaneseq
      %v2091 = vshrl.u32 %v2090, 7
      %v2092 = vsub.s32 %v2089, %v2091
      %v2093 = vrot.slane %v2065, %v2092
      %v2094 = vcombine.low %v2072, %v2079
      %v2095 = vcombine.low %v2086, %v2093
      %v2097 = vunpack.c.l.s4 1966171168
      %v2098 = vunpack.c.0.s8 %v2097
      %v2099 = vlaneseq
      %v2100 = vshrl.u32 %v2099, 7
      %v2101 = vsub.s32 %v2098, %v2100
      %v2102 = vrot.slane %v2094, %v2101
      %v2104 = vunpack.c.l.s4 1966171168
      %v2105 = vunpack.c.0.s8 %v2104
      %v2106 = vlaneseq
      %v2107 = vshrl.u32 %v2106, 7
      %v2108 = vsub.s32 %v2105, %v2107
      %v2109 = vrot.slane %v2095, %v2108
      %v2110 = vcombine.low %v2102, %v2109
      %v2111 = vcombine.low %v1861, %v1862
      %v2112 = vcombine.low %v1863, %v1864
      %v2114 = vunpack.c.l.s4 1966171168
      %v2115 = vunpack.c.0.s8 %v2114
      %v2116 = vlaneseq
      %v2117 = vshrl.u32 %v2116, 7
      %v2118 = vsub.s32 %v2115, %v2117
      %v2119 = vrot.slane %v2111, %v2118
      %v2121 = vunpack.c.l.s4 1966171168
      %v2122 = vunpack.c.0.s8 %v2121
      %v2123 = vlaneseq
      %v2124 = vshrl.u32 %v2123, 7
      %v2125 = vsub.s32 %v2122, %v2124
      %v2126 = vrot.slane %v2112, %v2125
      %v2128 = vunpack.c.l.s4 1966171168
      %v2129 = vunpack.c.0.s8 %v2128
      %v2130 = vlaneseq
      %v2131 = vshrl.u32 %v2130, 7
      %v2132 = vsub.s32 %v2129, %v2131
      %v2133 = vrot.slane %v1865, %v2132
      %v2134 = vcombine.low %v2119, %v2126
      %v2136 = vunpack.c.l.s4 1966171168
      %v2137 = vunpack.c.0.s8 %v2136
      %v2138 = vlaneseq
      %v2139 = vshrl.u32 %v2138, 7
      %v2140 = vsub.s32 %v2137, %v2139
      %v2141 = vrot.slane %v2134, %v2140
      %v2143 = vunpack.c.l.s4 1966171168
      %v2144 = vunpack.c.0.s8 %v2143
      %v2145 = vlaneseq
      %v2146 = vshrl.u32 %v2145, 7
      %v2147 = vsub.s32 %v2144, %v2146
      %v2148 = vrot.slane %v2133, %v2147
      %v2149 = vcombine.low %v2141, %v2148
      %v2150 = vpack.i.b16 %v675, %v674
      %v2151 = vpack.i.b16 %v677, %v676
      %v2152 = vpack.i.b16 %v679, %v678
      %v2153 = vpack.i.b16 %v681, %v680
      %v2154 = vpack.i.b16 %v683, %v763
      %v2155 = vpack.i.b16 %v685, %v684
      %v2156 = vpack.i.b16 %v687, %v686
      %v2157 = vpack.i.b16 %v689, %v688
      %v2158 = vpack.i.b16 %v764, %v690
      %v2159 = vpack.i.b16 %v693, %v692
      %v2160 = vpack.i.b16 %v695, %v694
      %v2161 = vpack.i.b16 %v697, %v696
      %v2162 = vpack.i.b16 %v699, %v698
      %v2163 = vpack.i.b16 %v701, %v765
      %v2164 = vpack.i.b16 %v703, %v702
      %v2165 = vpack.i.b16 %v705, %v704
      %v2166 = vpack.i.b16 %v707, %v706
      %v2167 = vpack.i.b16 %v766, %v708
      %v2168 = vpack.i.b16 %v711, %v710
      %v2169 = vpack.i.b16 %v713, %v712
      %v2170 = vpack.i.b16 %v715, %v714
      %v2171 = vpack.i.b16 %v717, %v716
      %v2172 = vpack.i.b16 %v719, %v767
      %v2173 = vpack.i.b16 %v721, %v720
      %v2174 = vpack.i.b16 %v723, %v722
      %v2175 = vpack.i.b16 %v725, %v724
      %v2176 = vpack.i.b16 %v768, %v726
      %v2177 = vpack.i.b16 %v729, %v728
      %v2178 = vpack.i.b16 %v731, %v730
      %v2179 = vpack.i.b16 %v733, %v732
      %v2180 = vpack.i.b16 %v735, %v734
      %v2181 = vpack.i.b16 %v737, %v769
      %v2182 = vpack.i.b16 %v739, %v738
      %v2183 = vpack.i.b16 %v741, %v740
      %v2184 = vpack.i.b16 %v743, %v742
      %v2185 = vpack.i.b16 %v770, %v744
      %v2186 = vpack.i.b16 %v747, %v746
      %v2187 = vpack.i.b16 %v749, %v748
      %v2188 = vpack.i.b16 %v751, %v750
      %v2189 = vpack.i.b16 %v753, %v752
      %v2190 = vpack.i.b16 %v755, %v771
      %v2191 = vpack.i.b16 %v757, %v756
      %v2192 = vpack.i.b16 %v759, %v758
      %v2193 = vpack.i.b16 %v761, %v760
      %v2194 = vpack.i.b16 %v772, %v762
      %v2195 = vcombine.low %v2150, %v2151
      %v2196 = vcombine.low %v2152, %v2153
      %v2197 = vcombine.low %v2154, %v2155
      %v2198 = vcombine.low %v2156, %v2157
      %v2200 = vunpack.c.l.s4 1966171168
      %v2201 = vunpack.c.0.s8 %v2200
      %v2202 = vlaneseq
      %v2203 = vshrl.u32 %v2202, 7
      %v2204 = vsub.s32 %v2201, %v2203
      %v2205 = vrot.slane %v2195, %v2204
      %v2207 = vunpack.c.l.s4 1966171168
      %v2208 = vunpack.c.0.s8 %v2207
      %v2209 = vlaneseq
      %v2210 = vshrl.u32 %v2209, 7
      %v2211 = vsub.s32 %v2208, %v2210
      %v2212 = vrot.slane %v2196, %v2211
      %v2214 = vunpack.c.l.s4 1966171168
      %v2215 = vunpack.c.0.s8 %v2214
      %v2216 = vlaneseq
      %v2217 = vshrl.u32 %v2216, 7
      %v2218 = vsub.s32 %v2215, %v2217
      %v2219 = vrot.slane %v2197, %v2218
      %v2221 = vunpack.c.l.s4 1966171168
      %v2222 = vunpack.c.0.s8 %v2221
      %v2223 = vlaneseq
      %v2224 = vshrl.u32 %v2223, 7
      %v2225 = vsub.s32 %v2222, %v2224
      %v2226 = vrot.slane %v2198, %v2225
      %v2227 = vcombine.low %v2205, %v2212
      %v2228 = vcombine.low %v2219, %v2226
      %v2230 = vunpack.c.l.s4 1966171168
      %v2231 = vunpack.c.0.s8 %v2230
      %v2232 = vlaneseq
      %v2233 = vshrl.u32 %v2232, 7
      %v2234 = vsub.s32 %v2231, %v2233
      %v2235 = vrot.slane %v2227, %v2234
      %v2237 = vunpack.c.l.s4 1966171168
      %v2238 = vunpack.c.0.s8 %v2237
      %v2239 = vlaneseq
      %v2240 = vshrl.u32 %v2239, 7
      %v2241 = vsub.s32 %v2238, %v2240
      %v2242 = vrot.slane %v2228, %v2241
      %v2243 = vcombine.low %v2235, %v2242
      %v2244 = vcombine.low %v2158, %v2159
      %v2245 = vcombine.low %v2160, %v2161
      %v2246 = vcombine.low %v2162, %v2163
      %v2247 = vcombine.low %v2164, %v2165
      %v2249 = vunpack.c.l.s4 1966171168
      %v2250 = vunpack.c.0.s8 %v2249
      %v2251 = vlaneseq
      %v2252 = vshrl.u32 %v2251, 7
      %v2253 = vsub.s32 %v2250, %v2252
      %v2254 = vrot.slane %v2244, %v2253
      %v2256 = vunpack.c.l.s4 1966171168
      %v2257 = vunpack.c.0.s8 %v2256
      %v2258 = vlaneseq
      %v2259 = vshrl.u32 %v2258, 7
      %v2260 = vsub.s32 %v2257, %v2259
      %v2261 = vrot.slane %v2245, %v2260
      %v2263 = vunpack.c.l.s4 1966171168
      %v2264 = vunpack.c.0.s8 %v2263
      %v2265 = vlaneseq
      %v2266 = vshrl.u32 %v2265, 7
      %v2267 = vsub.s32 %v2264, %v2266
      %v2268 = vrot.slane %v2246, %v2267
      %v2270 = vunpack.c.l.s4 1966171168
      %v2271 = vunpack.c.0.s8 %v2270
      %v2272 = vlaneseq
      %v2273 = vshrl.u32 %v2272, 7
      %v2274 = vsub.s32 %v2271, %v2273
      %v2275 = vrot.slane %v2247, %v2274
      %v2276 = vcombine.low %v2254, %v2261
      %v2277 = vcombine.low %v2268, %v2275
      %v2279 = vunpack.c.l.s4 1966171168
      %v2280 = vunpack.c.0.s8 %v2279
      %v2281 = vlaneseq
      %v2282 = vshrl.u32 %v2281, 7
      %v2283 = vsub.s32 %v2280, %v2282
      %v2284 = vrot.slane %v2276, %v2283
      %v2286 = vunpack.c.l.s4 1966171168
      %v2287 = vunpack.c.0.s8 %v2286
      %v2288 = vlaneseq
      %v2289 = vshrl.u32 %v2288, 7
      %v2290 = vsub.s32 %v2287, %v2289
      %v2291 = vrot.slane %v2277, %v2290
      %v2292 = vcombine.low %v2284, %v2291
      %v2293 = vcombine.low %v2166, %v2167
      %v2294 = vcombine.low %v2168, %v2169
      %v2295 = vcombine.low %v2170, %v2171
      %v2296 = vcombine.low %v2172, %v2173
      %v2298 = vunpack.c.l.s4 1966171168
      %v2299 = vunpack.c.0.s8 %v2298
      %v2300 = vlaneseq
      %v2301 = vshrl.u32 %v2300, 7
      %v2302 = vsub.s32 %v2299, %v2301
      %v2303 = vrot.slane %v2293, %v2302
      %v2305 = vunpack.c.l.s4 1966171168
      %v2306 = vunpack.c.0.s8 %v2305
      %v2307 = vlaneseq
      %v2308 = vshrl.u32 %v2307, 7
      %v2309 = vsub.s32 %v2306, %v2308
      %v2310 = vrot.slane %v2294, %v2309
      %v2312 = vunpack.c.l.s4 1966171168
      %v2313 = vunpack.c.0.s8 %v2312
      %v2314 = vlaneseq
      %v2315 = vshrl.u32 %v2314, 7
      %v2316 = vsub.s32 %v2313, %v2315
      %v2317 = vrot.slane %v2295, %v2316
      %v2319 = vunpack.c.l.s4 1966171168
      %v2320 = vunpack.c.0.s8 %v2319
      %v2321 = vlaneseq
      %v2322 = vshrl.u32 %v2321, 7
      %v2323 = vsub.s32 %v2320, %v2322
      %v2324 = vrot.slane %v2296, %v2323
      %v2325 = vcombine.low %v2303, %v2310
      %v2326 = vcombine.low %v2317, %v2324
      %v2328 = vunpack.c.l.s4 1966171168
      %v2329 = vunpack.c.0.s8 %v2328
      %v2330 = vlaneseq
      %v2331 = vshrl.u32 %v2330, 7
      %v2332 = vsub.s32 %v2329, %v2331
      %v2333 = vrot.slane %v2325, %v2332
      %v2335 = vunpack.c.l.s4 1966171168
      %v2336 = vunpack.c.0.s8 %v2335
      %v2337 = vlaneseq
      %v2338 = vshrl.u32 %v2337, 7
      %v2339 = vsub.s32 %v2336, %v2338
      %v2340 = vrot.slane %v2326, %v2339
      %v2341 = vcombine.low %v2333, %v2340
      %v2342 = vcombine.low %v2174, %v2175
      %v2343 = vcombine.low %v2176, %v2177
      %v2344 = vcombine.low %v2178, %v2179
      %v2345 = vcombine.low %v2180, %v2181
      %v2347 = vunpack.c.l.s4 1966171168
      %v2348 = vunpack.c.0.s8 %v2347
      %v2349 = vlaneseq
      %v2350 = vshrl.u32 %v2349, 7
      %v2351 = vsub.s32 %v2348, %v2350
      %v2352 = vrot.slane %v2342, %v2351
      %v2354 = vunpack.c.l.s4 1966171168
      %v2355 = vunpack.c.0.s8 %v2354
      %v2356 = vlaneseq
      %v2357 = vshrl.u32 %v2356, 7
      %v2358 = vsub.s32 %v2355, %v2357
      %v2359 = vrot.slane %v2343, %v2358
      %v2361 = vunpack.c.l.s4 1966171168
      %v2362 = vunpack.c.0.s8 %v2361
      %v2363 = vlaneseq
      %v2364 = vshrl.u32 %v2363, 7
      %v2365 = vsub.s32 %v2362, %v2364
      %v2366 = vrot.slane %v2344, %v2365
      %v2368 = vunpack.c.l.s4 1966171168
      %v2369 = vunpack.c.0.s8 %v2368
      %v2370 = vlaneseq
      %v2371 = vshrl.u32 %v2370, 7
      %v2372 = vsub.s32 %v2369, %v2371
      %v2373 = vrot.slane %v2345, %v2372
      %v2374 = vcombine.low %v2352, %v2359
      %v2375 = vcombine.low %v2366, %v2373
      %v2377 = vunpack.c.l.s4 1966171168
      %v2378 = vunpack.c.0.s8 %v2377
      %v2379 = vlaneseq
      %v2380 = vshrl.u32 %v2379, 7
      %v2381 = vsub.s32 %v2378, %v2380
      %v2382 = vrot.slane %v2374, %v2381
      %v2384 = vunpack.c.l.s4 1966171168
      %v2385 = vunpack.c.0.s8 %v2384
      %v2386 = vlaneseq
      %v2387 = vshrl.u32 %v2386, 7
      %v2388 = vsub.s32 %v2385, %v2387
      %v2389 = vrot.slane %v2375, %v2388
      %v2390 = vcombine.low %v2382, %v2389
      %v2391 = vcombine.low %v2182, %v2183
      %v2392 = vcombine.low %v2184, %v2185
      %v2393 = vcombine.low %v2186, %v2187
      %v2394 = vcombine.low %v2188, %v2189
      %v2396 = vunpack.c.l.s4 1966171168
      %v2397 = vunpack.c.0.s8 %v2396
      %v2398 = vlaneseq
      %v2399 = vshrl.u32 %v2398, 7
      %v2400 = vsub.s32 %v2397, %v2399
      %v2401 = vrot.slane %v2391, %v2400
      %v2403 = vunpack.c.l.s4 1966171168
      %v2404 = vunpack.c.0.s8 %v2403
      %v2405 = vlaneseq
      %v2406 = vshrl.u32 %v2405, 7
      %v2407 = vsub.s32 %v2404, %v2406
      %v2408 = vrot.slane %v2392, %v2407
      %v2410 = vunpack.c.l.s4 1966171168
      %v2411 = vunpack.c.0.s8 %v2410
      %v2412 = vlaneseq
      %v2413 = vshrl.u32 %v2412, 7
      %v2414 = vsub.s32 %v2411, %v2413
      %v2415 = vrot.slane %v2393, %v2414
      %v2417 = vunpack.c.l.s4 1966171168
      %v2418 = vunpack.c.0.s8 %v2417
      %v2419 = vlaneseq
      %v2420 = vshrl.u32 %v2419, 7
      %v2421 = vsub.s32 %v2418, %v2420
      %v2422 = vrot.slane %v2394, %v2421
      %v2423 = vcombine.low %v2401, %v2408
      %v2424 = vcombine.low %v2415, %v2422
      %v2426 = vunpack.c.l.s4 1966171168
      %v2427 = vunpack.c.0.s8 %v2426
      %v2428 = vlaneseq
      %v2429 = vshrl.u32 %v2428, 7
      %v2430 = vsub.s32 %v2427, %v2429
      %v2431 = vrot.slane %v2423, %v2430
      %v2433 = vunpack.c.l.s4 1966171168
      %v2434 = vunpack.c.0.s8 %v2433
      %v2435 = vlaneseq
      %v2436 = vshrl.u32 %v2435, 7
      %v2437 = vsub.s32 %v2434, %v2436
      %v2438 = vrot.slane %v2424, %v2437
      %v2439 = vcombine.low %v2431, %v2438
      %v2440 = vcombine.low %v2190, %v2191
      %v2441 = vcombine.low %v2192, %v2193
      %v2443 = vunpack.c.l.s4 1966171168
      %v2444 = vunpack.c.0.s8 %v2443
      %v2445 = vlaneseq
      %v2446 = vshrl.u32 %v2445, 7
      %v2447 = vsub.s32 %v2444, %v2446
      %v2448 = vrot.slane %v2440, %v2447
      %v2450 = vunpack.c.l.s4 1966171168
      %v2451 = vunpack.c.0.s8 %v2450
      %v2452 = vlaneseq
      %v2453 = vshrl.u32 %v2452, 7
      %v2454 = vsub.s32 %v2451, %v2453
      %v2455 = vrot.slane %v2441, %v2454
      %v2457 = vunpack.c.l.s4 1966171168
      %v2458 = vunpack.c.0.s8 %v2457
      %v2459 = vlaneseq
      %v2460 = vshrl.u32 %v2459, 7
      %v2461 = vsub.s32 %v2458, %v2460
      %v2462 = vrot.slane %v2194, %v2461
      %v2463 = vcombine.low %v2448, %v2455
      %v2465 = vunpack.c.l.s4 1966171168
      %v2466 = vunpack.c.0.s8 %v2465
      %v2467 = vlaneseq
      %v2468 = vshrl.u32 %v2467, 7
      %v2469 = vsub.s32 %v2466, %v2468
      %v2470 = vrot.slane %v2463, %v2469
      %v2472 = vunpack.c.l.s4 1966171168
      %v2473 = vunpack.c.0.s8 %v2472
      %v2474 = vlaneseq
      %v2475 = vshrl.u32 %v2474, 7
      %v2476 = vsub.s32 %v2473, %v2475
      %v2477 = vrot.slane %v2462, %v2476
      %v2478 = vcombine.low %v2470, %v2477
      %2479 = vrot.lane.b32.xlu0 %v2243, 8
      %v2480 = vpop.permute.xlu0 %2479
      %2481 = vrot.lane.b32.xlu0 %v2292, 8
      %v2482 = vpop.permute.xlu0 %2481
      %2483 = vrot.lane.b32.xlu0 %v2341, 8
      %v2484 = vpop.permute.xlu0 %2483
      %2485 = vrot.lane.b32.xlu0 %v2390, 8
      %v2486 = vpop.permute.xlu0 %2485
      %2487 = vrot.lane.b32.xlu0 %v2439, 8
      %v2488 = vpop.permute.xlu0 %2487
      %2489 = vrot.lane.b32.xlu0 %v2478, 8
      %v2490 = vpop.permute.xlu0 %2489
      %v2491 = vpack.i.b16 %v1198, %v1197
      %v2492 = vpack.i.b16 %v1200, %v1199
      %v2493 = vpack.i.b16 %v1202, %v1201
      %v2494 = vpack.i.b16 %v1204, %v1203
      %v2495 = vpack.i.b16 %v1206, %v1205
      %v2496 = vpack.i.b16 %v1208, %v1207
      %v2497 = vpack.i.b16 %v1210, %v1209
      %v2498 = vpack.i.b16 %v1212, %v1211
      %v2499 = vpack.i.b16 %v1214, %v1213
      %v2500 = vpack.i.b16 %v1216, %v1215
      %v2501 = vpack.i.b16 %v1218, %v1217
      %v2502 = vpack.i.b16 %v1220, %v1219
      %v2503 = vpack.i.b16 %v1222, %v1221
      %v2504 = vpack.i.b16 %v1224, %v1223
      %v2505 = vpack.i.b16 %v1226, %v1225
      %v2506 = vpack.i.b16 %v1228, %v1227
      %v2507 = vpack.i.b16 %v1230, %v1229
      %v2508 = vpack.i.b16 %v1232, %v1231
      %v2509 = vpack.i.b16 %v1234, %v1233
      %v2510 = vpack.i.b16 %v1236, %v1235
      %v2511 = vpack.i.b16 %v1238, %v1237
      %v2512 = vpack.i.b16 %v1240, %v1239
      %v2513 = vpack.i.b16 %v1242, %v1241
      %v2514 = vpack.i.b16 %v1244, %v1243
      %v2515 = vpack.i.b16 %v1246, %v1245
      %v2516 = vpack.i.b16 %v1248, %v1247
      %v2517 = vpack.i.b16 %v1250, %v1249
      %v2518 = vpack.i.b16 %v1252, %v1251
      %v2519 = vpack.i.b16 %v1254, %v1253
      %v2520 = vpack.i.b16 %v1256, %v1255
      %v2521 = vpack.i.b16 %v1258, %v1257
      %v2522 = vpack.i.b16 %v1260, %v1259
      %v2523 = vpack.i.b16 %v1262, %v1261
      %v2524 = vpack.i.b16 %v1264, %v1263
      %v2525 = vpack.i.b16 %v1266, %v1265
      %v2526 = vpack.i.b16 %v1268, %v1267
      %v2527 = vpack.i.b16 %v1270, %v1269
      %v2528 = vpack.i.b16 %v1272, %v1271
      %v2529 = vpack.i.b16 %v1274, %v1273
      %v2530 = vpack.i.b16 %v1276, %v1275
      %v2531 = vpack.i.b16 %v1278, %v1277
      %v2532 = vpack.i.b16 %v1280, %v1279
      %v2533 = vpack.i.b16 %v1282, %v1281
      %v2534 = vpack.i.b16 %v1284, %v1283
      %v2535 = vpack.i.b16 %v1286, %v1285
      %v2536 = vcombine.low %v2491, %v2492
      %v2537 = vcombine.low %v2493, %v2494
      %v2538 = vcombine.low %v2495, %v2496
      %v2539 = vcombine.low %v2497, %v2498
      %v2541 = vunpack.c.l.s4 1966171168
      %v2542 = vunpack.c.0.s8 %v2541
      %v2543 = vlaneseq
      %v2544 = vshrl.u32 %v2543, 7
      %v2545 = vsub.s32 %v2542, %v2544
      %v2546 = vrot.slane %v2536, %v2545
      %v2548 = vunpack.c.l.s4 1966171168
      %v2549 = vunpack.c.0.s8 %v2548
      %v2550 = vlaneseq
      %v2551 = vshrl.u32 %v2550, 7
      %v2552 = vsub.s32 %v2549, %v2551
      %v2553 = vrot.slane %v2537, %v2552
      %v2555 = vunpack.c.l.s4 1966171168
      %v2556 = vunpack.c.0.s8 %v2555
      %v2557 = vlaneseq
      %v2558 = vshrl.u32 %v2557, 7
      %v2559 = vsub.s32 %v2556, %v2558
      %v2560 = vrot.slane %v2538, %v2559
      %v2562 = vunpack.c.l.s4 1966171168
      %v2563 = vunpack.c.0.s8 %v2562
      %v2564 = vlaneseq
      %v2565 = vshrl.u32 %v2564, 7
      %v2566 = vsub.s32 %v2563, %v2565
      %v2567 = vrot.slane %v2539, %v2566
      %v2568 = vcombine.low %v2546, %v2553
      %v2569 = vcombine.low %v2560, %v2567
      %v2571 = vunpack.c.l.s4 1966171168
      %v2572 = vunpack.c.0.s8 %v2571
      %v2573 = vlaneseq
      %v2574 = vshrl.u32 %v2573, 7
      %v2575 = vsub.s32 %v2572, %v2574
      %v2576 = vrot.slane %v2568, %v2575
      %v2578 = vunpack.c.l.s4 1966171168
      %v2579 = vunpack.c.0.s8 %v2578
      %v2580 = vlaneseq
      %v2581 = vshrl.u32 %v2580, 7
      %v2582 = vsub.s32 %v2579, %v2581
      %v2583 = vrot.slane %v2569, %v2582
      %v2584 = vcombine.low %v2576, %v2583
      %v2585 = vcombine.low %v2499, %v2500
      %v2586 = vcombine.low %v2501, %v2502
      %v2587 = vcombine.low %v2503, %v2504
      %v2588 = vcombine.low %v2505, %v2506
      %v2590 = vunpack.c.l.s4 1966171168
      %v2591 = vunpack.c.0.s8 %v2590
      %v2592 = vlaneseq
      %v2593 = vshrl.u32 %v2592, 7
      %v2594 = vsub.s32 %v2591, %v2593
      %v2595 = vrot.slane %v2585, %v2594
      %v2597 = vunpack.c.l.s4 1966171168
      %v2598 = vunpack.c.0.s8 %v2597
      %v2599 = vlaneseq
      %v2600 = vshrl.u32 %v2599, 7
      %v2601 = vsub.s32 %v2598, %v2600
      %v2602 = vrot.slane %v2586, %v2601
      %v2604 = vunpack.c.l.s4 1966171168
      %v2605 = vunpack.c.0.s8 %v2604
      %v2606 = vlaneseq
      %v2607 = vshrl.u32 %v2606, 7
      %v2608 = vsub.s32 %v2605, %v2607
      %v2609 = vrot.slane %v2587, %v2608
      %v2611 = vunpack.c.l.s4 1966171168
      %v2612 = vunpack.c.0.s8 %v2611
      %v2613 = vlaneseq
      %v2614 = vshrl.u32 %v2613, 7
      %v2615 = vsub.s32 %v2612, %v2614
      %v2616 = vrot.slane %v2588, %v2615
      %v2617 = vcombine.low %v2595, %v2602
      %v2618 = vcombine.low %v2609, %v2616
      %v2620 = vunpack.c.l.s4 1966171168
      %v2621 = vunpack.c.0.s8 %v2620
      %v2622 = vlaneseq
      %v2623 = vshrl.u32 %v2622, 7
      %v2624 = vsub.s32 %v2621, %v2623
      %v2625 = vrot.slane %v2617, %v2624
      %v2627 = vunpack.c.l.s4 1966171168
      %v2628 = vunpack.c.0.s8 %v2627
      %v2629 = vlaneseq
      %v2630 = vshrl.u32 %v2629, 7
      %v2631 = vsub.s32 %v2628, %v2630
      %v2632 = vrot.slane %v2618, %v2631
      %v2633 = vcombine.low %v2625, %v2632
      %v2634 = vcombine.low %v2507, %v2508
      %v2635 = vcombine.low %v2509, %v2510
      %v2636 = vcombine.low %v2511, %v2512
      %v2637 = vcombine.low %v2513, %v2514
      %v2639 = vunpack.c.l.s4 1966171168
      %v2640 = vunpack.c.0.s8 %v2639
      %v2641 = vlaneseq
      %v2642 = vshrl.u32 %v2641, 7
      %v2643 = vsub.s32 %v2640, %v2642
      %v2644 = vrot.slane %v2634, %v2643
      %v2646 = vunpack.c.l.s4 1966171168
      %v2647 = vunpack.c.0.s8 %v2646
      %v2648 = vlaneseq
      %v2649 = vshrl.u32 %v2648, 7
      %v2650 = vsub.s32 %v2647, %v2649
      %v2651 = vrot.slane %v2635, %v2650
      %v2653 = vunpack.c.l.s4 1966171168
      %v2654 = vunpack.c.0.s8 %v2653
      %v2655 = vlaneseq
      %v2656 = vshrl.u32 %v2655, 7
      %v2657 = vsub.s32 %v2654, %v2656
      %v2658 = vrot.slane %v2636, %v2657
      %v2660 = vunpack.c.l.s4 1966171168
      %v2661 = vunpack.c.0.s8 %v2660
      %v2662 = vlaneseq
      %v2663 = vshrl.u32 %v2662, 7
      %v2664 = vsub.s32 %v2661, %v2663
      %v2665 = vrot.slane %v2637, %v2664
      %v2666 = vcombine.low %v2644, %v2651
      %v2667 = vcombine.low %v2658, %v2665
      %v2669 = vunpack.c.l.s4 1966171168
      %v2670 = vunpack.c.0.s8 %v2669
      %v2671 = vlaneseq
      %v2672 = vshrl.u32 %v2671, 7
      %v2673 = vsub.s32 %v2670, %v2672
      %v2674 = vrot.slane %v2666, %v2673
      %v2676 = vunpack.c.l.s4 1966171168
      %v2677 = vunpack.c.0.s8 %v2676
      %v2678 = vlaneseq
      %v2679 = vshrl.u32 %v2678, 7
      %v2680 = vsub.s32 %v2677, %v2679
      %v2681 = vrot.slane %v2667, %v2680
      %v2682 = vcombine.low %v2674, %v2681
      %v2683 = vcombine.low %v2515, %v2516
      %v2684 = vcombine.low %v2517, %v2518
      %v2685 = vcombine.low %v2519, %v2520
      %v2686 = vcombine.low %v2521, %v2522
      %v2688 = vunpack.c.l.s4 1966171168
      %v2689 = vunpack.c.0.s8 %v2688
      %v2690 = vlaneseq
      %v2691 = vshrl.u32 %v2690, 7
      %v2692 = vsub.s32 %v2689, %v2691
      %v2693 = vrot.slane %v2683, %v2692
      %v2695 = vunpack.c.l.s4 1966171168
      %v2696 = vunpack.c.0.s8 %v2695
      %v2697 = vlaneseq
      %v2698 = vshrl.u32 %v2697, 7
      %v2699 = vsub.s32 %v2696, %v2698
      %v2700 = vrot.slane %v2684, %v2699
      %v2702 = vunpack.c.l.s4 1966171168
      %v2703 = vunpack.c.0.s8 %v2702
      %v2704 = vlaneseq
      %v2705 = vshrl.u32 %v2704, 7
      %v2706 = vsub.s32 %v2703, %v2705
      %v2707 = vrot.slane %v2685, %v2706
      %v2709 = vunpack.c.l.s4 1966171168
      %v2710 = vunpack.c.0.s8 %v2709
      %v2711 = vlaneseq
      %v2712 = vshrl.u32 %v2711, 7
      %v2713 = vsub.s32 %v2710, %v2712
      %v2714 = vrot.slane %v2686, %v2713
      %v2715 = vcombine.low %v2693, %v2700
      %v2716 = vcombine.low %v2707, %v2714
      %v2718 = vunpack.c.l.s4 1966171168
      %v2719 = vunpack.c.0.s8 %v2718
      %v2720 = vlaneseq
      %v2721 = vshrl.u32 %v2720, 7
      %v2722 = vsub.s32 %v2719, %v2721
      %v2723 = vrot.slane %v2715, %v2722
      %v2725 = vunpack.c.l.s4 1966171168
      %v2726 = vunpack.c.0.s8 %v2725
      %v2727 = vlaneseq
      %v2728 = vshrl.u32 %v2727, 7
      %v2729 = vsub.s32 %v2726, %v2728
      %v2730 = vrot.slane %v2716, %v2729
      %v2731 = vcombine.low %v2723, %v2730
      %v2732 = vcombine.low %v2523, %v2524
      %v2733 = vcombine.low %v2525, %v2526
      %v2734 = vcombine.low %v2527, %v2528
      %v2735 = vcombine.low %v2529, %v2530
      %v2737 = vunpack.c.l.s4 1966171168
      %v2738 = vunpack.c.0.s8 %v2737
      %v2739 = vlaneseq
      %v2740 = vshrl.u32 %v2739, 7
      %v2741 = vsub.s32 %v2738, %v2740
      %v2742 = vrot.slane %v2732, %v2741
      %v2744 = vunpack.c.l.s4 1966171168
      %v2745 = vunpack.c.0.s8 %v2744
      %v2746 = vlaneseq
      %v2747 = vshrl.u32 %v2746, 7
      %v2748 = vsub.s32 %v2745, %v2747
      %v2749 = vrot.slane %v2733, %v2748
      %v2751 = vunpack.c.l.s4 1966171168
      %v2752 = vunpack.c.0.s8 %v2751
      %v2753 = vlaneseq
      %v2754 = vshrl.u32 %v2753, 7
      %v2755 = vsub.s32 %v2752, %v2754
      %v2756 = vrot.slane %v2734, %v2755
      %v2758 = vunpack.c.l.s4 1966171168
      %v2759 = vunpack.c.0.s8 %v2758
      %v2760 = vlaneseq
      %v2761 = vshrl.u32 %v2760, 7
      %v2762 = vsub.s32 %v2759, %v2761
      %v2763 = vrot.slane %v2735, %v2762
      %v2764 = vcombine.low %v2742, %v2749
      %v2765 = vcombine.low %v2756, %v2763
      %v2767 = vunpack.c.l.s4 1966171168
      %v2768 = vunpack.c.0.s8 %v2767
      %v2769 = vlaneseq
      %v2770 = vshrl.u32 %v2769, 7
      %v2771 = vsub.s32 %v2768, %v2770
      %v2772 = vrot.slane %v2764, %v2771
      %v2774 = vunpack.c.l.s4 1966171168
      %v2775 = vunpack.c.0.s8 %v2774
      %v2776 = vlaneseq
      %v2777 = vshrl.u32 %v2776, 7
      %v2778 = vsub.s32 %v2775, %v2777
      %v2779 = vrot.slane %v2765, %v2778
      %v2780 = vcombine.low %v2772, %v2779
      %v2781 = vcombine.low %v2531, %v2532
      %v2782 = vcombine.low %v2533, %v2534
      %v2784 = vunpack.c.l.s4 1966171168
      %v2785 = vunpack.c.0.s8 %v2784
      %v2786 = vlaneseq
      %v2787 = vshrl.u32 %v2786, 7
      %v2788 = vsub.s32 %v2785, %v2787
      %v2789 = vrot.slane %v2781, %v2788
      %v2791 = vunpack.c.l.s4 1966171168
      %v2792 = vunpack.c.0.s8 %v2791
      %v2793 = vlaneseq
      %v2794 = vshrl.u32 %v2793, 7
      %v2795 = vsub.s32 %v2792, %v2794
      %v2796 = vrot.slane %v2782, %v2795
      %v2798 = vunpack.c.l.s4 1966171168
      %v2799 = vunpack.c.0.s8 %v2798
      %v2800 = vlaneseq
      %v2801 = vshrl.u32 %v2800, 7
      %v2802 = vsub.s32 %v2799, %v2801
      %v2803 = vrot.slane %v2535, %v2802
      %v2804 = vcombine.low %v2789, %v2796
      %v2806 = vunpack.c.l.s4 1966171168
      %v2807 = vunpack.c.0.s8 %v2806
      %v2808 = vlaneseq
      %v2809 = vshrl.u32 %v2808, 7
      %v2810 = vsub.s32 %v2807, %v2809
      %v2811 = vrot.slane %v2804, %v2810
      %v2813 = vunpack.c.l.s4 1966171168
      %v2814 = vunpack.c.0.s8 %v2813
      %v2815 = vlaneseq
      %v2816 = vshrl.u32 %v2815, 7
      %v2817 = vsub.s32 %v2814, %v2816
      %v2818 = vrot.slane %v2803, %v2817
      %v2819 = vcombine.low %v2811, %v2818
      %2820 = vrot.lane.b32.xlu0 %v2584, 12
      %v2821 = vpop.permute.xlu0 %2820
      %2822 = vrot.lane.b32.xlu0 %v2633, 12
      %v2823 = vpop.permute.xlu0 %2822
      %2824 = vrot.lane.b32.xlu0 %v2682, 12
      %v2825 = vpop.permute.xlu0 %2824
      %2826 = vrot.lane.b32.xlu0 %v2731, 12
      %v2827 = vpop.permute.xlu0 %2826
      %2828 = vrot.lane.b32.xlu0 %v2780, 12
      %v2829 = vpop.permute.xlu0 %2828
      %2830 = vrot.lane.b32.xlu0 %v2819, 12
      %v2831 = vpop.permute.xlu0 %2830
      %v2832 = vpack.i.b16 %v1199, %v1198
      %v2833 = vpack.i.b16 %v1201, %v1200
      %v2834 = vpack.i.b16 %v1203, %v1202
      %v2835 = vpack.i.b16 %v1205, %v1204
      %v2836 = vpack.i.b16 %v1207, %v1287
      %v2837 = vpack.i.b16 %v1209, %v1208
      %v2838 = vpack.i.b16 %v1211, %v1210
      %v2839 = vpack.i.b16 %v1213, %v1212
      %v2840 = vpack.i.b16 %v1288, %v1214
      %v2841 = vpack.i.b16 %v1217, %v1216
      %v2842 = vpack.i.b16 %v1219, %v1218
      %v2843 = vpack.i.b16 %v1221, %v1220
      %v2844 = vpack.i.b16 %v1223, %v1222
      %v2845 = vpack.i.b16 %v1225, %v1289
      %v2846 = vpack.i.b16 %v1227, %v1226
      %v2847 = vpack.i.b16 %v1229, %v1228
      %v2848 = vpack.i.b16 %v1231, %v1230
      %v2849 = vpack.i.b16 %v1290, %v1232
      %v2850 = vpack.i.b16 %v1235, %v1234
      %v2851 = vpack.i.b16 %v1237, %v1236
      %v2852 = vpack.i.b16 %v1239, %v1238
      %v2853 = vpack.i.b16 %v1241, %v1240
      %v2854 = vpack.i.b16 %v1243, %v1291
      %v2855 = vpack.i.b16 %v1245, %v1244
      %v2856 = vpack.i.b16 %v1247, %v1246
      %v2857 = vpack.i.b16 %v1249, %v1248
      %v2858 = vpack.i.b16 %v1292, %v1250
      %v2859 = vpack.i.b16 %v1253, %v1252
      %v2860 = vpack.i.b16 %v1255, %v1254
      %v2861 = vpack.i.b16 %v1257, %v1256
      %v2862 = vpack.i.b16 %v1259, %v1258
      %v2863 = vpack.i.b16 %v1261, %v1293
      %v2864 = vpack.i.b16 %v1263, %v1262
      %v2865 = vpack.i.b16 %v1265, %v1264
      %v2866 = vpack.i.b16 %v1267, %v1266
      %v2867 = vpack.i.b16 %v1294, %v1268
      %v2868 = vpack.i.b16 %v1271, %v1270
      %v2869 = vpack.i.b16 %v1273, %v1272
      %v2870 = vpack.i.b16 %v1275, %v1274
      %v2871 = vpack.i.b16 %v1277, %v1276
      %v2872 = vpack.i.b16 %v1279, %v1295
      %v2873 = vpack.i.b16 %v1281, %v1280
      %v2874 = vpack.i.b16 %v1283, %v1282
      %v2875 = vpack.i.b16 %v1285, %v1284
      %v2876 = vpack.i.b16 %v1296, %v1286
      %v2877 = vcombine.low %v2832, %v2833
      %v2878 = vcombine.low %v2834, %v2835
      %v2879 = vcombine.low %v2836, %v2837
      %v2880 = vcombine.low %v2838, %v2839
      %v2882 = vunpack.c.l.s4 1966171168
      %v2883 = vunpack.c.0.s8 %v2882
      %v2884 = vlaneseq
      %v2885 = vshrl.u32 %v2884, 7
      %v2886 = vsub.s32 %v2883, %v2885
      %v2887 = vrot.slane %v2877, %v2886
      %v2889 = vunpack.c.l.s4 1966171168
      %v2890 = vunpack.c.0.s8 %v2889
      %v2891 = vlaneseq
      %v2892 = vshrl.u32 %v2891, 7
      %v2893 = vsub.s32 %v2890, %v2892
      %v2894 = vrot.slane %v2878, %v2893
      %v2896 = vunpack.c.l.s4 1966171168
      %v2897 = vunpack.c.0.s8 %v2896
      %v2898 = vlaneseq
      %v2899 = vshrl.u32 %v2898, 7
      %v2900 = vsub.s32 %v2897, %v2899
      %v2901 = vrot.slane %v2879, %v2900
      %v2903 = vunpack.c.l.s4 1966171168
      %v2904 = vunpack.c.0.s8 %v2903
      %v2905 = vlaneseq
      %v2906 = vshrl.u32 %v2905, 7
      %v2907 = vsub.s32 %v2904, %v2906
      %v2908 = vrot.slane %v2880, %v2907
      %v2909 = vcombine.low %v2887, %v2894
      %v2910 = vcombine.low %v2901, %v2908
      %v2912 = vunpack.c.l.s4 1966171168
      %v2913 = vunpack.c.0.s8 %v2912
      %v2914 = vlaneseq
      %v2915 = vshrl.u32 %v2914, 7
      %v2916 = vsub.s32 %v2913, %v2915
      %v2917 = vrot.slane %v2909, %v2916
      %v2919 = vunpack.c.l.s4 1966171168
      %v2920 = vunpack.c.0.s8 %v2919
      %v2921 = vlaneseq
      %v2922 = vshrl.u32 %v2921, 7
      %v2923 = vsub.s32 %v2920, %v2922
      %v2924 = vrot.slane %v2910, %v2923
      %v2925 = vcombine.low %v2917, %v2924
      %v2926 = vcombine.low %v2840, %v2841
      %v2927 = vcombine.low %v2842, %v2843
      %v2928 = vcombine.low %v2844, %v2845
      %v2929 = vcombine.low %v2846, %v2847
      %v2931 = vunpack.c.l.s4 1966171168
      %v2932 = vunpack.c.0.s8 %v2931
      %v2933 = vlaneseq
      %v2934 = vshrl.u32 %v2933, 7
      %v2935 = vsub.s32 %v2932, %v2934
      %v2936 = vrot.slane %v2926, %v2935
      %v2938 = vunpack.c.l.s4 1966171168
      %v2939 = vunpack.c.0.s8 %v2938
      %v2940 = vlaneseq
      %v2941 = vshrl.u32 %v2940, 7
      %v2942 = vsub.s32 %v2939, %v2941
      %v2943 = vrot.slane %v2927, %v2942
      %v2945 = vunpack.c.l.s4 1966171168
      %v2946 = vunpack.c.0.s8 %v2945
      %v2947 = vlaneseq
      %v2948 = vshrl.u32 %v2947, 7
      %v2949 = vsub.s32 %v2946, %v2948
      %v2950 = vrot.slane %v2928, %v2949
      %v2952 = vunpack.c.l.s4 1966171168
      %v2953 = vunpack.c.0.s8 %v2952
      %v2954 = vlaneseq
      %v2955 = vshrl.u32 %v2954, 7
      %v2956 = vsub.s32 %v2953, %v2955
      %v2957 = vrot.slane %v2929, %v2956
      %v2958 = vcombine.low %v2936, %v2943
      %v2959 = vcombine.low %v2950, %v2957
      %v2961 = vunpack.c.l.s4 1966171168
      %v2962 = vunpack.c.0.s8 %v2961
      %v2963 = vlaneseq
      %v2964 = vshrl.u32 %v2963, 7
      %v2965 = vsub.s32 %v2962, %v2964
      %v2966 = vrot.slane %v2958, %v2965
      %v2968 = vunpack.c.l.s4 1966171168
      %v2969 = vunpack.c.0.s8 %v2968
      %v2970 = vlaneseq
      %v2971 = vshrl.u32 %v2970, 7
      %v2972 = vsub.s32 %v2969, %v2971
      %v2973 = vrot.slane %v2959, %v2972
      %v2974 = vcombine.low %v2966, %v2973
      %v2975 = vcombine.low %v2848, %v2849
      %v2976 = vcombine.low %v2850, %v2851
      %v2977 = vcombine.low %v2852, %v2853
      %v2978 = vcombine.low %v2854, %v2855
      %v2980 = vunpack.c.l.s4 1966171168
      %v2981 = vunpack.c.0.s8 %v2980
      %v2982 = vlaneseq
      %v2983 = vshrl.u32 %v2982, 7
      %v2984 = vsub.s32 %v2981, %v2983
      %v2985 = vrot.slane %v2975, %v2984
      %v2987 = vunpack.c.l.s4 1966171168
      %v2988 = vunpack.c.0.s8 %v2987
      %v2989 = vlaneseq
      %v2990 = vshrl.u32 %v2989, 7
      %v2991 = vsub.s32 %v2988, %v2990
      %v2992 = vrot.slane %v2976, %v2991
      %v2994 = vunpack.c.l.s4 1966171168
      %v2995 = vunpack.c.0.s8 %v2994
      %v2996 = vlaneseq
      %v2997 = vshrl.u32 %v2996, 7
      %v2998 = vsub.s32 %v2995, %v2997
      %v2999 = vrot.slane %v2977, %v2998
      %v3001 = vunpack.c.l.s4 1966171168
      %v3002 = vunpack.c.0.s8 %v3001
      %v3003 = vlaneseq
      %v3004 = vshrl.u32 %v3003, 7
      %v3005 = vsub.s32 %v3002, %v3004
      %v3006 = vrot.slane %v2978, %v3005
      %v3007 = vcombine.low %v2985, %v2992
      %v3008 = vcombine.low %v2999, %v3006
      %v3010 = vunpack.c.l.s4 1966171168
      %v3011 = vunpack.c.0.s8 %v3010
      %v3012 = vlaneseq
      %v3013 = vshrl.u32 %v3012, 7
      %v3014 = vsub.s32 %v3011, %v3013
      %v3015 = vrot.slane %v3007, %v3014
      %v3017 = vunpack.c.l.s4 1966171168
      %v3018 = vunpack.c.0.s8 %v3017
      %v3019 = vlaneseq
      %v3020 = vshrl.u32 %v3019, 7
      %v3021 = vsub.s32 %v3018, %v3020
      %v3022 = vrot.slane %v3008, %v3021
      %v3023 = vcombine.low %v3015, %v3022
      %v3024 = vcombine.low %v2856, %v2857
      %v3025 = vcombine.low %v2858, %v2859
      %v3026 = vcombine.low %v2860, %v2861
      %v3027 = vcombine.low %v2862, %v2863
      %v3029 = vunpack.c.l.s4 1966171168
      %v3030 = vunpack.c.0.s8 %v3029
      %v3031 = vlaneseq
      %v3032 = vshrl.u32 %v3031, 7
      %v3033 = vsub.s32 %v3030, %v3032
      %v3034 = vrot.slane %v3024, %v3033
      %v3036 = vunpack.c.l.s4 1966171168
      %v3037 = vunpack.c.0.s8 %v3036
      %v3038 = vlaneseq
      %v3039 = vshrl.u32 %v3038, 7
      %v3040 = vsub.s32 %v3037, %v3039
      %v3041 = vrot.slane %v3025, %v3040
      %v3043 = vunpack.c.l.s4 1966171168
      %v3044 = vunpack.c.0.s8 %v3043
      %v3045 = vlaneseq
      %v3046 = vshrl.u32 %v3045, 7
      %v3047 = vsub.s32 %v3044, %v3046
      %v3048 = vrot.slane %v3026, %v3047
      %v3050 = vunpack.c.l.s4 1966171168
      %v3051 = vunpack.c.0.s8 %v3050
      %v3052 = vlaneseq
      %v3053 = vshrl.u32 %v3052, 7
      %v3054 = vsub.s32 %v3051, %v3053
      %v3055 = vrot.slane %v3027, %v3054
      %v3056 = vcombine.low %v3034, %v3041
      %v3057 = vcombine.low %v3048, %v3055
      %v3059 = vunpack.c.l.s4 1966171168
      %v3060 = vunpack.c.0.s8 %v3059
      %v3061 = vlaneseq
      %v3062 = vshrl.u32 %v3061, 7
      %v3063 = vsub.s32 %v3060, %v3062
      %v3064 = vrot.slane %v3056, %v3063
      %v3066 = vunpack.c.l.s4 1966171168
      %v3067 = vunpack.c.0.s8 %v3066
      %v3068 = vlaneseq
      %v3069 = vshrl.u32 %v3068, 7
      %v3070 = vsub.s32 %v3067, %v3069
      %v3071 = vrot.slane %v3057, %v3070
      %v3072 = vcombine.low %v3064, %v3071
      %v3073 = vcombine.low %v2864, %v2865
      %v3074 = vcombine.low %v2866, %v2867
      %v3075 = vcombine.low %v2868, %v2869
      %v3076 = vcombine.low %v2870, %v2871
      %v3078 = vunpack.c.l.s4 1966171168
      %v3079 = vunpack.c.0.s8 %v3078
      %v3080 = vlaneseq
      %v3081 = vshrl.u32 %v3080, 7
      %v3082 = vsub.s32 %v3079, %v3081
      %v3083 = vrot.slane %v3073, %v3082
      %v3085 = vunpack.c.l.s4 1966171168
      %v3086 = vunpack.c.0.s8 %v3085
      %v3087 = vlaneseq
      %v3088 = vshrl.u32 %v3087, 7
      %v3089 = vsub.s32 %v3086, %v3088
      %v3090 = vrot.slane %v3074, %v3089
      %v3092 = vunpack.c.l.s4 1966171168
      %v3093 = vunpack.c.0.s8 %v3092
      %v3094 = vlaneseq
      %v3095 = vshrl.u32 %v3094, 7
      %v3096 = vsub.s32 %v3093, %v3095
      %v3097 = vrot.slane %v3075, %v3096
      %v3099 = vunpack.c.l.s4 1966171168
      %v3100 = vunpack.c.0.s8 %v3099
      %v3101 = vlaneseq
      %v3102 = vshrl.u32 %v3101, 7
      %v3103 = vsub.s32 %v3100, %v3102
      %v3104 = vrot.slane %v3076, %v3103
      %v3105 = vcombine.low %v3083, %v3090
      %v3106 = vcombine.low %v3097, %v3104
      %v3108 = vunpack.c.l.s4 1966171168
      %v3109 = vunpack.c.0.s8 %v3108
      %v3110 = vlaneseq
      %v3111 = vshrl.u32 %v3110, 7
      %v3112 = vsub.s32 %v3109, %v3111
      %v3113 = vrot.slane %v3105, %v3112
      %v3115 = vunpack.c.l.s4 1966171168
      %v3116 = vunpack.c.0.s8 %v3115
      %v3117 = vlaneseq
      %v3118 = vshrl.u32 %v3117, 7
      %v3119 = vsub.s32 %v3116, %v3118
      %v3120 = vrot.slane %v3106, %v3119
      %v3121 = vcombine.low %v3113, %v3120
      %v3122 = vcombine.low %v2872, %v2873
      %v3123 = vcombine.low %v2874, %v2875
      %v3125 = vunpack.c.l.s4 1966171168
      %v3126 = vunpack.c.0.s8 %v3125
      %v3127 = vlaneseq
      %v3128 = vshrl.u32 %v3127, 7
      %v3129 = vsub.s32 %v3126, %v3128
      %v3130 = vrot.slane %v3122, %v3129
      %v3132 = vunpack.c.l.s4 1966171168
      %v3133 = vunpack.c.0.s8 %v3132
      %v3134 = vlaneseq
      %v3135 = vshrl.u32 %v3134, 7
      %v3136 = vsub.s32 %v3133, %v3135
      %v3137 = vrot.slane %v3123, %v3136
      %v3139 = vunpack.c.l.s4 1966171168
      %v3140 = vunpack.c.0.s8 %v3139
      %v3141 = vlaneseq
      %v3142 = vshrl.u32 %v3141, 7
      %v3143 = vsub.s32 %v3140, %v3142
      %v3144 = vrot.slane %v2876, %v3143
      %v3145 = vcombine.low %v3130, %v3137
      %v3147 = vunpack.c.l.s4 1966171168
      %v3148 = vunpack.c.0.s8 %v3147
      %v3149 = vlaneseq
      %v3150 = vshrl.u32 %v3149, 7
      %v3151 = vsub.s32 %v3148, %v3150
      %v3152 = vrot.slane %v3145, %v3151
      %v3154 = vunpack.c.l.s4 1966171168
      %v3155 = vunpack.c.0.s8 %v3154
      %v3156 = vlaneseq
      %v3157 = vshrl.u32 %v3156, 7
      %v3158 = vsub.s32 %v3155, %v3157
      %v3159 = vrot.slane %v3144, %v3158
      %v3160 = vcombine.low %v3152, %v3159
      %3161 = vrot.lane.b32.xlu0 %v2925, 20
      %v3162 = vpop.permute.xlu0 %3161
      %3163 = vrot.lane.b32.xlu0 %v2974, 20
      %v3164 = vpop.permute.xlu0 %3163
      %3165 = vrot.lane.b32.xlu0 %v3023, 20
      %v3166 = vpop.permute.xlu0 %3165
      %3167 = vrot.lane.b32.xlu0 %v3072, 20
      %v3168 = vpop.permute.xlu0 %3167
      %3169 = vrot.lane.b32.xlu0 %v3121, 20
      %v3170 = vpop.permute.xlu0 %3169
      %3171 = vrot.lane.b32.xlu0 %v3160, 20
      %v3172 = vpop.permute.xlu0 %3171
      %v3173 = vpack.i.b16 %v1722, %v1721
      %v3174 = vpack.i.b16 %v1724, %v1723
      %v3175 = vpack.i.b16 %v1726, %v1725
      %v3176 = vpack.i.b16 %v1728, %v1727
      %v3177 = vpack.i.b16 %v1730, %v1729
      %v3178 = vpack.i.b16 %v1732, %v1731
      %v3179 = vpack.i.b16 %v1734, %v1733
      %v3180 = vpack.i.b16 %v1736, %v1735
      %v3181 = vpack.i.b16 %v1738, %v1737
      %v3182 = vpack.i.b16 %v1740, %v1739
      %v3183 = vpack.i.b16 %v1742, %v1741
      %v3184 = vpack.i.b16 %v1744, %v1743
      %v3185 = vpack.i.b16 %v1746, %v1745
      %v3186 = vpack.i.b16 %v1748, %v1747
      %v3187 = vpack.i.b16 %v1750, %v1749
      %v3188 = vpack.i.b16 %v1752, %v1751
      %v3189 = vpack.i.b16 %v1754, %v1753
      %v3190 = vpack.i.b16 %v1756, %v1755
      %v3191 = vpack.i.b16 %v1758, %v1757
      %v3192 = vpack.i.b16 %v1760, %v1759
      %v3193 = vpack.i.b16 %v1762, %v1761
      %v3194 = vpack.i.b16 %v1764, %v1763
      %v3195 = vpack.i.b16 %v1766, %v1765
      %v3196 = vpack.i.b16 %v1768, %v1767
      %v3197 = vpack.i.b16 %v1770, %v1769
      %v3198 = vpack.i.b16 %v1772, %v1771
      %v3199 = vpack.i.b16 %v1774, %v1773
      %v3200 = vpack.i.b16 %v1776, %v1775
      %v3201 = vpack.i.b16 %v1778, %v1777
      %v3202 = vpack.i.b16 %v1780, %v1779
      %v3203 = vpack.i.b16 %v1782, %v1781
      %v3204 = vpack.i.b16 %v1784, %v1783
      %v3205 = vpack.i.b16 %v1786, %v1785
      %v3206 = vpack.i.b16 %v1788, %v1787
      %v3207 = vpack.i.b16 %v1790, %v1789
      %v3208 = vpack.i.b16 %v1792, %v1791
      %v3209 = vpack.i.b16 %v1794, %v1793
      %v3210 = vpack.i.b16 %v1796, %v1795
      %v3211 = vpack.i.b16 %v1798, %v1797
      %v3212 = vpack.i.b16 %v1800, %v1799
      %v3213 = vpack.i.b16 %v1802, %v1801
      %v3214 = vpack.i.b16 %v1804, %v1803
      %v3215 = vpack.i.b16 %v1806, %v1805
      %v3216 = vpack.i.b16 %v1808, %v1807
      %v3217 = vpack.i.b16 %v1810, %v1809
      %v3218 = vcombine.low %v3173, %v3174
      %v3219 = vcombine.low %v3175, %v3176
      %v3220 = vcombine.low %v3177, %v3178
      %v3221 = vcombine.low %v3179, %v3180
      %v3223 = vunpack.c.l.s4 1966171168
      %v3224 = vunpack.c.0.s8 %v3223
      %v3225 = vlaneseq
      %v3226 = vshrl.u32 %v3225, 7
      %v3227 = vsub.s32 %v3224, %v3226
      %v3228 = vrot.slane %v3218, %v3227
      %v3230 = vunpack.c.l.s4 1966171168
      %v3231 = vunpack.c.0.s8 %v3230
      %v3232 = vlaneseq
      %v3233 = vshrl.u32 %v3232, 7
      %v3234 = vsub.s32 %v3231, %v3233
      %v3235 = vrot.slane %v3219, %v3234
      %v3237 = vunpack.c.l.s4 1966171168
      %v3238 = vunpack.c.0.s8 %v3237
      %v3239 = vlaneseq
      %v3240 = vshrl.u32 %v3239, 7
      %v3241 = vsub.s32 %v3238, %v3240
      %v3242 = vrot.slane %v3220, %v3241
      %v3244 = vunpack.c.l.s4 1966171168
      %v3245 = vunpack.c.0.s8 %v3244
      %v3246 = vlaneseq
      %v3247 = vshrl.u32 %v3246, 7
      %v3248 = vsub.s32 %v3245, %v3247
      %v3249 = vrot.slane %v3221, %v3248
      %v3250 = vcombine.low %v3228, %v3235
      %v3251 = vcombine.low %v3242, %v3249
      %v3253 = vunpack.c.l.s4 1966171168
      %v3254 = vunpack.c.0.s8 %v3253
      %v3255 = vlaneseq
      %v3256 = vshrl.u32 %v3255, 7
      %v3257 = vsub.s32 %v3254, %v3256
      %v3258 = vrot.slane %v3250, %v3257
      %v3260 = vunpack.c.l.s4 1966171168
      %v3261 = vunpack.c.0.s8 %v3260
      %v3262 = vlaneseq
      %v3263 = vshrl.u32 %v3262, 7
      %v3264 = vsub.s32 %v3261, %v3263
      %v3265 = vrot.slane %v3251, %v3264
      %v3266 = vcombine.low %v3258, %v3265
      %v3267 = vcombine.low %v3181, %v3182
      %v3268 = vcombine.low %v3183, %v3184
      %v3269 = vcombine.low %v3185, %v3186
      %v3270 = vcombine.low %v3187, %v3188
      %v3272 = vunpack.c.l.s4 1966171168
      %v3273 = vunpack.c.0.s8 %v3272
      %v3274 = vlaneseq
      %v3275 = vshrl.u32 %v3274, 7
      %v3276 = vsub.s32 %v3273, %v3275
      %v3277 = vrot.slane %v3267, %v3276
      %v3279 = vunpack.c.l.s4 1966171168
      %v3280 = vunpack.c.0.s8 %v3279
      %v3281 = vlaneseq
      %v3282 = vshrl.u32 %v3281, 7
      %v3283 = vsub.s32 %v3280, %v3282
      %v3284 = vrot.slane %v3268, %v3283
      %v3286 = vunpack.c.l.s4 1966171168
      %v3287 = vunpack.c.0.s8 %v3286
      %v3288 = vlaneseq
      %v3289 = vshrl.u32 %v3288, 7
      %v3290 = vsub.s32 %v3287, %v3289
      %v3291 = vrot.slane %v3269, %v3290
      %v3293 = vunpack.c.l.s4 1966171168
      %v3294 = vunpack.c.0.s8 %v3293
      %v3295 = vlaneseq
      %v3296 = vshrl.u32 %v3295, 7
      %v3297 = vsub.s32 %v3294, %v3296
      %v3298 = vrot.slane %v3270, %v3297
      %v3299 = vcombine.low %v3277, %v3284
      %v3300 = vcombine.low %v3291, %v3298
      %v3302 = vunpack.c.l.s4 1966171168
      %v3303 = vunpack.c.0.s8 %v3302
      %v3304 = vlaneseq
      %v3305 = vshrl.u32 %v3304, 7
      %v3306 = vsub.s32 %v3303, %v3305
      %v3307 = vrot.slane %v3299, %v3306
      %v3309 = vunpack.c.l.s4 1966171168
      %v3310 = vunpack.c.0.s8 %v3309
      %v3311 = vlaneseq
      %v3312 = vshrl.u32 %v3311, 7
      %v3313 = vsub.s32 %v3310, %v3312
      %v3314 = vrot.slane %v3300, %v3313
      %v3315 = vcombine.low %v3307, %v3314
      %v3316 = vcombine.low %v3189, %v3190
      %v3317 = vcombine.low %v3191, %v3192
      %v3318 = vcombine.low %v3193, %v3194
      %v3319 = vcombine.low %v3195, %v3196
      %v3321 = vunpack.c.l.s4 1966171168
      %v3322 = vunpack.c.0.s8 %v3321
      %v3323 = vlaneseq
      %v3324 = vshrl.u32 %v3323, 7
      %v3325 = vsub.s32 %v3322, %v3324
      %v3326 = vrot.slane %v3316, %v3325
      %v3328 = vunpack.c.l.s4 1966171168
      %v3329 = vunpack.c.0.s8 %v3328
      %v3330 = vlaneseq
      %v3331 = vshrl.u32 %v3330, 7
      %v3332 = vsub.s32 %v3329, %v3331
      %v3333 = vrot.slane %v3317, %v3332
      %v3335 = vunpack.c.l.s4 1966171168
      %v3336 = vunpack.c.0.s8 %v3335
      %v3337 = vlaneseq
      %v3338 = vshrl.u32 %v3337, 7
      %v3339 = vsub.s32 %v3336, %v3338
      %v3340 = vrot.slane %v3318, %v3339
      %v3342 = vunpack.c.l.s4 1966171168
      %v3343 = vunpack.c.0.s8 %v3342
      %v3344 = vlaneseq
      %v3345 = vshrl.u32 %v3344, 7
      %v3346 = vsub.s32 %v3343, %v3345
      %v3347 = vrot.slane %v3319, %v3346
      %v3348 = vcombine.low %v3326, %v3333
      %v3349 = vcombine.low %v3340, %v3347
      %v3351 = vunpack.c.l.s4 1966171168
      %v3352 = vunpack.c.0.s8 %v3351
      %v3353 = vlaneseq
      %v3354 = vshrl.u32 %v3353, 7
      %v3355 = vsub.s32 %v3352, %v3354
      %v3356 = vrot.slane %v3348, %v3355
      %v3358 = vunpack.c.l.s4 1966171168
      %v3359 = vunpack.c.0.s8 %v3358
      %v3360 = vlaneseq
      %v3361 = vshrl.u32 %v3360, 7
      %v3362 = vsub.s32 %v3359, %v3361
      %v3363 = vrot.slane %v3349, %v3362
      %v3364 = vcombine.low %v3356, %v3363
      %v3365 = vcombine.low %v3197, %v3198
      %v3366 = vcombine.low %v3199, %v3200
      %v3367 = vcombine.low %v3201, %v3202
      %v3368 = vcombine.low %v3203, %v3204
      %v3370 = vunpack.c.l.s4 1966171168
      %v3371 = vunpack.c.0.s8 %v3370
      %v3372 = vlaneseq
      %v3373 = vshrl.u32 %v3372, 7
      %v3374 = vsub.s32 %v3371, %v3373
      %v3375 = vrot.slane %v3365, %v3374
      %v3377 = vunpack.c.l.s4 1966171168
      %v3378 = vunpack.c.0.s8 %v3377
      %v3379 = vlaneseq
      %v3380 = vshrl.u32 %v3379, 7
      %v3381 = vsub.s32 %v3378, %v3380
      %v3382 = vrot.slane %v3366, %v3381
      %v3384 = vunpack.c.l.s4 1966171168
      %v3385 = vunpack.c.0.s8 %v3384
      %v3386 = vlaneseq
      %v3387 = vshrl.u32 %v3386, 7
      %v3388 = vsub.s32 %v3385, %v3387
      %v3389 = vrot.slane %v3367, %v3388
      %v3391 = vunpack.c.l.s4 1966171168
      %v3392 = vunpack.c.0.s8 %v3391
      %v3393 = vlaneseq
      %v3394 = vshrl.u32 %v3393, 7
      %v3395 = vsub.s32 %v3392, %v3394
      %v3396 = vrot.slane %v3368, %v3395
      %v3397 = vcombine.low %v3375, %v3382
      %v3398 = vcombine.low %v3389, %v3396
      %v3400 = vunpack.c.l.s4 1966171168
      %v3401 = vunpack.c.0.s8 %v3400
      %v3402 = vlaneseq
      %v3403 = vshrl.u32 %v3402, 7
      %v3404 = vsub.s32 %v3401, %v3403
      %v3405 = vrot.slane %v3397, %v3404
      %v3407 = vunpack.c.l.s4 1966171168
      %v3408 = vunpack.c.0.s8 %v3407
      %v3409 = vlaneseq
      %v3410 = vshrl.u32 %v3409, 7
      %v3411 = vsub.s32 %v3408, %v3410
      %v3412 = vrot.slane %v3398, %v3411
      %v3413 = vcombine.low %v3405, %v3412
      %v3414 = vcombine.low %v3205, %v3206
      %v3415 = vcombine.low %v3207, %v3208
      %v3416 = vcombine.low %v3209, %v3210
      %v3417 = vcombine.low %v3211, %v3212
      %v3419 = vunpack.c.l.s4 1966171168
      %v3420 = vunpack.c.0.s8 %v3419
      %v3421 = vlaneseq
      %v3422 = vshrl.u32 %v3421, 7
      %v3423 = vsub.s32 %v3420, %v3422
      %v3424 = vrot.slane %v3414, %v3423
      %v3426 = vunpack.c.l.s4 1966171168
      %v3427 = vunpack.c.0.s8 %v3426
      %v3428 = vlaneseq
      %v3429 = vshrl.u32 %v3428, 7
      %v3430 = vsub.s32 %v3427, %v3429
      %v3431 = vrot.slane %v3415, %v3430
      %v3433 = vunpack.c.l.s4 1966171168
      %v3434 = vunpack.c.0.s8 %v3433
      %v3435 = vlaneseq
      %v3436 = vshrl.u32 %v3435, 7
      %v3437 = vsub.s32 %v3434, %v3436
      %v3438 = vrot.slane %v3416, %v3437
      %v3440 = vunpack.c.l.s4 1966171168
      %v3441 = vunpack.c.0.s8 %v3440
      %v3442 = vlaneseq
      %v3443 = vshrl.u32 %v3442, 7
      %v3444 = vsub.s32 %v3441, %v3443
      %v3445 = vrot.slane %v3417, %v3444
      %v3446 = vcombine.low %v3424, %v3431
      %v3447 = vcombine.low %v3438, %v3445
      %v3449 = vunpack.c.l.s4 1966171168
      %v3450 = vunpack.c.0.s8 %v3449
      %v3451 = vlaneseq
      %v3452 = vshrl.u32 %v3451, 7
      %v3453 = vsub.s32 %v3450, %v3452
      %v3454 = vrot.slane %v3446, %v3453
      %v3456 = vunpack.c.l.s4 1966171168
      %v3457 = vunpack.c.0.s8 %v3456
      %v3458 = vlaneseq
      %v3459 = vshrl.u32 %v3458, 7
      %v3460 = vsub.s32 %v3457, %v3459
      %v3461 = vrot.slane %v3447, %v3460
      %v3462 = vcombine.low %v3454, %v3461
      %v3463 = vcombine.low %v3213, %v3214
      %v3464 = vcombine.low %v3215, %v3216
      %v3466 = vunpack.c.l.s4 1966171168
      %v3467 = vunpack.c.0.s8 %v3466
      %v3468 = vlaneseq
      %v3469 = vshrl.u32 %v3468, 7
      %v3470 = vsub.s32 %v3467, %v3469
      %v3471 = vrot.slane %v3463, %v3470
      %v3473 = vunpack.c.l.s4 1966171168
      %v3474 = vunpack.c.0.s8 %v3473
      %v3475 = vlaneseq
      %v3476 = vshrl.u32 %v3475, 7
      %v3477 = vsub.s32 %v3474, %v3476
      %v3478 = vrot.slane %v3464, %v3477
      %v3480 = vunpack.c.l.s4 1966171168
      %v3481 = vunpack.c.0.s8 %v3480
      %v3482 = vlaneseq
      %v3483 = vshrl.u32 %v3482, 7
      %v3484 = vsub.s32 %v3481, %v3483
      %v3485 = vrot.slane %v3217, %v3484
      %v3486 = vcombine.low %v3471, %v3478
      %v3488 = vunpack.c.l.s4 1966171168
      %v3489 = vunpack.c.0.s8 %v3488
      %v3490 = vlaneseq
      %v3491 = vshrl.u32 %v3490, 7
      %v3492 = vsub.s32 %v3489, %v3491
      %v3493 = vrot.slane %v3486, %v3492
      %v3495 = vunpack.c.l.s4 1966171168
      %v3496 = vunpack.c.0.s8 %v3495
      %v3497 = vlaneseq
      %v3498 = vshrl.u32 %v3497, 7
      %v3499 = vsub.s32 %v3496, %v3498
      %v3500 = vrot.slane %v3485, %v3499
      %v3501 = vcombine.low %v3493, %v3500
      %3502 = vrot.lane.b32.xlu0 %v3266, 24
      %v3503 = vpop.permute.xlu0 %3502
      %3504 = vrot.lane.b32.xlu0 %v3315, 24
      %v3505 = vpop.permute.xlu0 %3504
      %3506 = vrot.lane.b32.xlu0 %v3364, 24
      %v3507 = vpop.permute.xlu0 %3506
      %3508 = vrot.lane.b32.xlu0 %v3413, 24
      %v3509 = vpop.permute.xlu0 %3508
      %3510 = vrot.lane.b32.xlu0 %v3462, 24
      %v3511 = vpop.permute.xlu0 %3510
      %3512 = vrot.lane.b32.xlu0 %v3501, 24
      %v3513 = vpop.permute.xlu0 %3512
      %v3514 = vpack.i.b16 %v1723, %v1722
      %v3515 = vpack.i.b16 %v1725, %v1724
      %v3516 = vpack.i.b16 %v1727, %v1726
      %v3517 = vpack.i.b16 %v1729, %v1728
      %v3518 = vpack.i.b16 %v1731, %v1811
      %v3519 = vpack.i.b16 %v1733, %v1732
      %v3520 = vpack.i.b16 %v1735, %v1734
      %v3521 = vpack.i.b16 %v1737, %v1736
      %v3522 = vpack.i.b16 %v1812, %v1738
      %v3523 = vpack.i.b16 %v1741, %v1740
      %v3524 = vpack.i.b16 %v1743, %v1742
      %v3525 = vpack.i.b16 %v1745, %v1744
      %v3526 = vpack.i.b16 %v1747, %v1746
      %v3527 = vpack.i.b16 %v1749, %v1813
      %v3528 = vpack.i.b16 %v1751, %v1750
      %v3529 = vpack.i.b16 %v1753, %v1752
      %v3530 = vpack.i.b16 %v1755, %v1754
      %v3531 = vpack.i.b16 %v1814, %v1756
      %v3532 = vpack.i.b16 %v1759, %v1758
      %v3533 = vpack.i.b16 %v1761, %v1760
      %v3534 = vpack.i.b16 %v1763, %v1762
      %v3535 = vpack.i.b16 %v1765, %v1764
      %v3536 = vpack.i.b16 %v1767, %v1815
      %v3537 = vpack.i.b16 %v1769, %v1768
      %v3538 = vpack.i.b16 %v1771, %v1770
      %v3539 = vpack.i.b16 %v1773, %v1772
      %v3540 = vpack.i.b16 %v1816, %v1774
      %v3541 = vpack.i.b16 %v1777, %v1776
      %v3542 = vpack.i.b16 %v1779, %v1778
      %v3543 = vpack.i.b16 %v1781, %v1780
      %v3544 = vpack.i.b16 %v1783, %v1782
      %v3545 = vpack.i.b16 %v1785, %v1817
      %v3546 = vpack.i.b16 %v1787, %v1786
      %v3547 = vpack.i.b16 %v1789, %v1788
      %v3548 = vpack.i.b16 %v1791, %v1790
      %v3549 = vpack.i.b16 %v1818, %v1792
      %v3550 = vpack.i.b16 %v1795, %v1794
      %v3551 = vpack.i.b16 %v1797, %v1796
      %v3552 = vpack.i.b16 %v1799, %v1798
      %v3553 = vpack.i.b16 %v1801, %v1800
      %v3554 = vpack.i.b16 %v1803, %v1819
      %v3555 = vpack.i.b16 %v1805, %v1804
      %v3556 = vpack.i.b16 %v1807, %v1806
      %v3557 = vpack.i.b16 %v1809, %v1808
      %v3558 = vpack.i.b16 %v1820, %v1810
      %v3559 = vcombine.low %v3514, %v3515
      %v3560 = vcombine.low %v3516, %v3517
      %v3561 = vcombine.low %v3518, %v3519
      %v3562 = vcombine.low %v3520, %v3521
      %v3564 = vunpack.c.l.s4 1966171168
      %v3565 = vunpack.c.0.s8 %v3564
      %v3566 = vlaneseq
      %v3567 = vshrl.u32 %v3566, 7
      %v3568 = vsub.s32 %v3565, %v3567
      %v3569 = vrot.slane %v3559, %v3568
      %v3571 = vunpack.c.l.s4 1966171168
      %v3572 = vunpack.c.0.s8 %v3571
      %v3573 = vlaneseq
      %v3574 = vshrl.u32 %v3573, 7
      %v3575 = vsub.s32 %v3572, %v3574
      %v3576 = vrot.slane %v3560, %v3575
      %v3578 = vunpack.c.l.s4 1966171168
      %v3579 = vunpack.c.0.s8 %v3578
      %v3580 = vlaneseq
      %v3581 = vshrl.u32 %v3580, 7
      %v3582 = vsub.s32 %v3579, %v3581
      %v3583 = vrot.slane %v3561, %v3582
      %v3585 = vunpack.c.l.s4 1966171168
      %v3586 = vunpack.c.0.s8 %v3585
      %v3587 = vlaneseq
      %v3588 = vshrl.u32 %v3587, 7
      %v3589 = vsub.s32 %v3586, %v3588
      %v3590 = vrot.slane %v3562, %v3589
      %v3591 = vcombine.low %v3569, %v3576
      %v3592 = vcombine.low %v3583, %v3590
      %v3594 = vunpack.c.l.s4 1966171168
      %v3595 = vunpack.c.0.s8 %v3594
      %v3596 = vlaneseq
      %v3597 = vshrl.u32 %v3596, 7
      %v3598 = vsub.s32 %v3595, %v3597
      %v3599 = vrot.slane %v3591, %v3598
      %v3601 = vunpack.c.l.s4 1966171168
      %v3602 = vunpack.c.0.s8 %v3601
      %v3603 = vlaneseq
      %v3604 = vshrl.u32 %v3603, 7
      %v3605 = vsub.s32 %v3602, %v3604
      %v3606 = vrot.slane %v3592, %v3605
      %v3607 = vcombine.low %v3599, %v3606
      %v3608 = vcombine.low %v3522, %v3523
      %v3609 = vcombine.low %v3524, %v3525
      %v3610 = vcombine.low %v3526, %v3527
      %v3611 = vcombine.low %v3528, %v3529
      %v3613 = vunpack.c.l.s4 1966171168
      %v3614 = vunpack.c.0.s8 %v3613
      %v3615 = vlaneseq
      %v3616 = vshrl.u32 %v3615, 7
      %v3617 = vsub.s32 %v3614, %v3616
      %v3618 = vrot.slane %v3608, %v3617
      %v3620 = vunpack.c.l.s4 1966171168
      %v3621 = vunpack.c.0.s8 %v3620
      %v3622 = vlaneseq
      %v3623 = vshrl.u32 %v3622, 7
      %v3624 = vsub.s32 %v3621, %v3623
      %v3625 = vrot.slane %v3609, %v3624
      %v3627 = vunpack.c.l.s4 1966171168
      %v3628 = vunpack.c.0.s8 %v3627
      %v3629 = vlaneseq
      %v3630 = vshrl.u32 %v3629, 7
      %v3631 = vsub.s32 %v3628, %v3630
      %v3632 = vrot.slane %v3610, %v3631
      %v3634 = vunpack.c.l.s4 1966171168
      %v3635 = vunpack.c.0.s8 %v3634
      %v3636 = vlaneseq
      %v3637 = vshrl.u32 %v3636, 7
      %v3638 = vsub.s32 %v3635, %v3637
      %v3639 = vrot.slane %v3611, %v3638
      %v3640 = vcombine.low %v3618, %v3625
      %v3641 = vcombine.low %v3632, %v3639
      %v3643 = vunpack.c.l.s4 1966171168
      %v3644 = vunpack.c.0.s8 %v3643
      %v3645 = vlaneseq
      %v3646 = vshrl.u32 %v3645, 7
      %v3647 = vsub.s32 %v3644, %v3646
      %v3648 = vrot.slane %v3640, %v3647
      %v3650 = vunpack.c.l.s4 1966171168
      %v3651 = vunpack.c.0.s8 %v3650
      %v3652 = vlaneseq
      %v3653 = vshrl.u32 %v3652, 7
      %v3654 = vsub.s32 %v3651, %v3653
      %v3655 = vrot.slane %v3641, %v3654
      %v3656 = vcombine.low %v3648, %v3655
      %v3657 = vcombine.low %v3530, %v3531
      %v3658 = vcombine.low %v3532, %v3533
      %v3659 = vcombine.low %v3534, %v3535
      %v3660 = vcombine.low %v3536, %v3537
      %v3662 = vunpack.c.l.s4 1966171168
      %v3663 = vunpack.c.0.s8 %v3662
      %v3664 = vlaneseq
      %v3665 = vshrl.u32 %v3664, 7
      %v3666 = vsub.s32 %v3663, %v3665
      %v3667 = vrot.slane %v3657, %v3666
      %v3669 = vunpack.c.l.s4 1966171168
      %v3670 = vunpack.c.0.s8 %v3669
      %v3671 = vlaneseq
      %v3672 = vshrl.u32 %v3671, 7
      %v3673 = vsub.s32 %v3670, %v3672
      %v3674 = vrot.slane %v3658, %v3673
      %v3676 = vunpack.c.l.s4 1966171168
      %v3677 = vunpack.c.0.s8 %v3676
      %v3678 = vlaneseq
      %v3679 = vshrl.u32 %v3678, 7
      %v3680 = vsub.s32 %v3677, %v3679
      %v3681 = vrot.slane %v3659, %v3680
      %v3683 = vunpack.c.l.s4 1966171168
      %v3684 = vunpack.c.0.s8 %v3683
      %v3685 = vlaneseq
      %v3686 = vshrl.u32 %v3685, 7
      %v3687 = vsub.s32 %v3684, %v3686
      %v3688 = vrot.slane %v3660, %v3687
      %v3689 = vcombine.low %v3667, %v3674
      %v3690 = vcombine.low %v3681, %v3688
      %v3692 = vunpack.c.l.s4 1966171168
      %v3693 = vunpack.c.0.s8 %v3692
      %v3694 = vlaneseq
      %v3695 = vshrl.u32 %v3694, 7
      %v3696 = vsub.s32 %v3693, %v3695
      %v3697 = vrot.slane %v3689, %v3696
      %v3699 = vunpack.c.l.s4 1966171168
      %v3700 = vunpack.c.0.s8 %v3699
      %v3701 = vlaneseq
      %v3702 = vshrl.u32 %v3701, 7
      %v3703 = vsub.s32 %v3700, %v3702
      %v3704 = vrot.slane %v3690, %v3703
      %v3705 = vcombine.low %v3697, %v3704
      %v3706 = vcombine.low %v3538, %v3539
      %v3707 = vcombine.low %v3540, %v3541
      %v3708 = vcombine.low %v3542, %v3543
      %v3709 = vcombine.low %v3544, %v3545
      %v3711 = vunpack.c.l.s4 1966171168
      %v3712 = vunpack.c.0.s8 %v3711
      %v3713 = vlaneseq
      %v3714 = vshrl.u32 %v3713, 7
      %v3715 = vsub.s32 %v3712, %v3714
      %v3716 = vrot.slane %v3706, %v3715
      %v3718 = vunpack.c.l.s4 1966171168
      %v3719 = vunpack.c.0.s8 %v3718
      %v3720 = vlaneseq
      %v3721 = vshrl.u32 %v3720, 7
      %v3722 = vsub.s32 %v3719, %v3721
      %v3723 = vrot.slane %v3707, %v3722
      %v3725 = vunpack.c.l.s4 1966171168
      %v3726 = vunpack.c.0.s8 %v3725
      %v3727 = vlaneseq
      %v3728 = vshrl.u32 %v3727, 7
      %v3729 = vsub.s32 %v3726, %v3728
      %v3730 = vrot.slane %v3708, %v3729
      %v3732 = vunpack.c.l.s4 1966171168
      %v3733 = vunpack.c.0.s8 %v3732
      %v3734 = vlaneseq
      %v3735 = vshrl.u32 %v3734, 7
      %v3736 = vsub.s32 %v3733, %v3735
      %v3737 = vrot.slane %v3709, %v3736
      %v3738 = vcombine.low %v3716, %v3723
      %v3739 = vcombine.low %v3730, %v3737
      %v3741 = vunpack.c.l.s4 1966171168
      %v3742 = vunpack.c.0.s8 %v3741
      %v3743 = vlaneseq
      %v3744 = vshrl.u32 %v3743, 7
      %v3745 = vsub.s32 %v3742, %v3744
      %v3746 = vrot.slane %v3738, %v3745
      %v3748 = vunpack.c.l.s4 1966171168
      %v3749 = vunpack.c.0.s8 %v3748
      %v3750 = vlaneseq
      %v3751 = vshrl.u32 %v3750, 7
      %v3752 = vsub.s32 %v3749, %v3751
      %v3753 = vrot.slane %v3739, %v3752
      %v3754 = vcombine.low %v3746, %v3753
      %v3755 = vcombine.low %v3546, %v3547
      %v3756 = vcombine.low %v3548, %v3549
      %v3757 = vcombine.low %v3550, %v3551
      %v3758 = vcombine.low %v3552, %v3553
      %v3760 = vunpack.c.l.s4 1966171168
      %v3761 = vunpack.c.0.s8 %v3760
      %v3762 = vlaneseq
      %v3763 = vshrl.u32 %v3762, 7
      %v3764 = vsub.s32 %v3761, %v3763
      %v3765 = vrot.slane %v3755, %v3764
      %v3767 = vunpack.c.l.s4 1966171168
      %v3768 = vunpack.c.0.s8 %v3767
      %v3769 = vlaneseq
      %v3770 = vshrl.u32 %v3769, 7
      %v3771 = vsub.s32 %v3768, %v3770
      %v3772 = vrot.slane %v3756, %v3771
      %v3774 = vunpack.c.l.s4 1966171168
      %v3775 = vunpack.c.0.s8 %v3774
      %v3776 = vlaneseq
      %v3777 = vshrl.u32 %v3776, 7
      %v3778 = vsub.s32 %v3775, %v3777
      %v3779 = vrot.slane %v3757, %v3778
      %v3781 = vunpack.c.l.s4 1966171168
      %v3782 = vunpack.c.0.s8 %v3781
      %v3783 = vlaneseq
      %v3784 = vshrl.u32 %v3783, 7
      %v3785 = vsub.s32 %v3782, %v3784
      %v3786 = vrot.slane %v3758, %v3785
      %v3787 = vcombine.low %v3765, %v3772
      %v3788 = vcombine.low %v3779, %v3786
      %v3790 = vunpack.c.l.s4 1966171168
      %v3791 = vunpack.c.0.s8 %v3790
      %v3792 = vlaneseq
      %v3793 = vshrl.u32 %v3792, 7
      %v3794 = vsub.s32 %v3791, %v3793
      %v3795 = vrot.slane %v3787, %v3794
      %v3797 = vunpack.c.l.s4 1966171168
      %v3798 = vunpack.c.0.s8 %v3797
      %v3799 = vlaneseq
      %v3800 = vshrl.u32 %v3799, 7
      %v3801 = vsub.s32 %v3798, %v3800
      %v3802 = vrot.slane %v3788, %v3801
      %v3803 = vcombine.low %v3795, %v3802
      %v3804 = vcombine.low %v3554, %v3555
      %v3805 = vcombine.low %v3556, %v3557
      %v3807 = vunpack.c.l.s4 1966171168
      %v3808 = vunpack.c.0.s8 %v3807
      %v3809 = vlaneseq
      %v3810 = vshrl.u32 %v3809, 7
      %v3811 = vsub.s32 %v3808, %v3810
      %v3812 = vrot.slane %v3804, %v3811
      %v3814 = vunpack.c.l.s4 1966171168
      %v3815 = vunpack.c.0.s8 %v3814
      %v3816 = vlaneseq
      %v3817 = vshrl.u32 %v3816, 7
      %v3818 = vsub.s32 %v3815, %v3817
      %v3819 = vrot.slane %v3805, %v3818
      %v3821 = vunpack.c.l.s4 1966171168
      %v3822 = vunpack.c.0.s8 %v3821
      %v3823 = vlaneseq
      %v3824 = vshrl.u32 %v3823, 7
      %v3825 = vsub.s32 %v3822, %v3824
      %v3826 = vrot.slane %v3558, %v3825
      %v3827 = vcombine.low %v3812, %v3819
      %v3829 = vunpack.c.l.s4 1966171168
      %v3830 = vunpack.c.0.s8 %v3829
      %v3831 = vlaneseq
      %v3832 = vshrl.u32 %v3831, 7
      %v3833 = vsub.s32 %v3830, %v3832
      %v3834 = vrot.slane %v3827, %v3833
      %v3836 = vunpack.c.l.s4 1966171168
      %v3837 = vunpack.c.0.s8 %v3836
      %v3838 = vlaneseq
      %v3839 = vshrl.u32 %v3838, 7
      %v3840 = vsub.s32 %v3837, %v3839
      %v3841 = vrot.slane %v3826, %v3840
      %v3842 = vcombine.low %v3834, %v3841
      %3843 = vrot.lane.b32.xlu0 %v3607, 32
      %v3844 = vpop.permute.xlu0 %3843
      %3845 = vrot.lane.b32.xlu0 %v3656, 32
      %v3846 = vpop.permute.xlu0 %3845
      %3847 = vrot.lane.b32.xlu0 %v3705, 32
      %v3848 = vpop.permute.xlu0 %3847
      %3849 = vrot.lane.b32.xlu0 %v3754, 32
      %v3850 = vpop.permute.xlu0 %3849
      %3851 = vrot.lane.b32.xlu0 %v3803, 32
      %v3852 = vpop.permute.xlu0 %3851
      %3853 = vrot.lane.b32.xlu0 %v3842, 32
      %v3854 = vpop.permute.xlu0 %3853
      %vm3855 = vcmask 31744
      %v3857 = vsel %vm3855, %v1914, %v1914
      %v3859 = vsel %vm3855, %v1963, %v1963
      %v3861 = vsel %vm3855, %v2012, %v2012
      %v3863 = vsel %vm3855, %v2061, %v2061
      %v3865 = vsel %vm3855, %v2110, %v2110
      %v3867 = vsel %vm3855, %v2149, %v2149
      %vm3868 = vcmask 64512
      %v3870 = vsel %vm3868, %v3857, %v2480
      %v3872 = vsel %vm3868, %v3859, %v2482
      %v3874 = vsel %vm3868, %v3861, %v2484
      %v3876 = vsel %vm3868, %v3863, %v2486
      %v3878 = vsel %vm3868, %v3865, %v2488
      %v3880 = vsel %vm3868, %v3867, %v2490
      %vm3881 = vcmask 97280
      %v3883 = vsel %vm3881, %v3870, %v2821
      %v3885 = vsel %vm3881, %v3872, %v2823
      %v3887 = vsel %vm3881, %v3874, %v2825
      %v3889 = vsel %vm3881, %v3876, %v2827
      %v3891 = vsel %vm3881, %v3878, %v2829
      %v3893 = vsel %vm3881, %v3880, %v2831
      %vm3894 = vcmask 130048
      %v3895 = vsel %vm3894, %v3883, %v2821
      %v3896 = vsel %vm3894, %v3885, %v2823
      %v3897 = vsel %vm3894, %v3887, %v2825
      %v3898 = vsel %vm3894, %v3889, %v2827
      %v3899 = vsel %vm3894, %v3891, %v2829
      %v3900 = vsel %vm3894, %v3893, %v2831
      %vm3901 = vcmask 162816
      %v3903 = vsel %vm3901, %v3895, %v3162
      %v3905 = vsel %vm3901, %v3896, %v3164
      %v3907 = vsel %vm3901, %v3897, %v3166
      %v3909 = vsel %vm3901, %v3898, %v3168
      %v3911 = vsel %vm3901, %v3899, %v3170
      %v3913 = vsel %vm3901, %v3900, %v3172
      %vm3914 = vcmask 195584
      %v3916 = vsel %vm3914, %v3903, %v3503
      %v3918 = vsel %vm3914, %v3905, %v3505
      %v3920 = vsel %vm3914, %v3907, %v3507
      %v3922 = vsel %vm3914, %v3909, %v3509
      %v3924 = vsel %vm3914, %v3911, %v3511
      %v3926 = vsel %vm3914, %v3913, %v3513
      %vm3927 = vcmask 228352
      %v3928 = vsel %vm3927, %v3916, %v3503
      %v3929 = vsel %vm3927, %v3918, %v3505
      %v3930 = vsel %vm3927, %v3920, %v3507
      %v3931 = vsel %vm3927, %v3922, %v3509
      %v3932 = vsel %vm3927, %v3924, %v3511
      %v3933 = vsel %vm3927, %v3926, %v3513
      %vm3934 = vcmask 261120
      %v3936 = vsel %vm3934, %v3928, %v3844
      %v3938 = vsel %vm3934, %v3929, %v3846
      %v3940 = vsel %vm3934, %v3930, %v3848
      %v3942 = vsel %vm3934, %v3931, %v3850
      %v3944 = vsel %vm3934, %v3932, %v3852
      %v3946 = vsel %vm3934, %v3933, %v3854
      %v3947 = vld [vmem:[%s1] sm:$0xf]
      %v3948 = vld [vmem:[%s1 + $0x4] sm:$0xf]
      %v3949 = vld [vmem:[%s1 + $0x8] sm:$0xf]
      %v3950 = vld [vmem:[%s1 + $0xc] sm:$0xf]
      %v3951 = vld [vmem:[%s1 + $0x10] sm:$0x3]
      %v3952 = vld [vmem:[%s2] sm:$0x1]
      %v3954 = vlaneseq
      %v3955 = vshrl.u32 %v3954, 7
      %v3956 = vsub.s32 0, %v3955
      %v3957 = vrot.slane %v3952, %v3956
      %v3964 = vunpack.c.l.b16 %v3947
      %v3965 = vunpack.c.l.b16 %v3948
      %v3966 = vunpack.c.l.b16 %v3949
      %v3967 = vunpack.c.l.b16 %v3950
      %v3968 = vunpack.c.l.b16 %v3951
      %v3969 = vpack.c.b16 %v3965, %v3964
      %v3970 = vpack.c.b16 %v3967, %v3966
      %v3971 = vpack.c.b16 %v3968, %v3968
      %vm3974 = vcmask 293888
      %v3975 = vsel %vm3974, %v3936, 0
      %v3977 = vsel %vm3974, %v3938, 0
      %v3979 = vsel %vm3974, %v3940, 0
      %v3981 = vsel %vm3974, %v3942, 0
      %v3983 = vsel %vm3974, %v3944, 0
      %v3985 = vsel %vm3974, %v3946, 0
      %vm3987 = vcmask 1041408
      %v3989 = vsel %vm3987, %v3971, 0
      %3991 = vmatprep.subr.bf16.mxu0 0
      %3992 = vmatpush1.bf16.msra.mxu0 0
      %3993 = vmatprep.subr.bf16.mxu0 0
      %3994 = vmatpush1.bf16.msra.mxu0 0
      %3995 = vmatprep.subr.bf16.mxu0 0
      %3996 = vmatpush1.bf16.msra.mxu0 0
      %3997 = vmatprep.subr.bf16.mxu0 0
      %3998 = vmatpush1.bf16.msra.mxu0 0
      %3999 = vmatprep.subr.bf16.mxu0 0
      %4000 = vmatpush1.bf16.msra.mxu0 0
      %4001 = vmatprep.subr.bf16.mxu0 0
      %4002 = vmatpush1.bf16.msra.mxu0 %v3989
      %4003 = vmatprep.subr.bf16.mxu0 0
      %4004 = vmatpush1.bf16.msra.mxu0 %v3970
      %4005 = vmatprep.subr.bf16.mxu0 0
      %4006 = vmatpush1.bf16.msra.mxu0 %v3969
      %4007 = vmatprep.subr.bf16.mxu0 0
      %4008 = vmatpush2.bf16.msra.mxu0 0
      %4009 = vmatprep.subr.bf16.mxu0 0
      %4010 = vmatpush2.bf16.msra.mxu0 0
      %4011 = vmatprep.subr.bf16.mxu0 0
      %4012 = vmatpush2.bf16.msra.mxu0 0
      %4013 = vmatprep.subr.bf16.mxu0 0
      %4014 = vmatpush2.bf16.msra.mxu0 0
      %4015 = vmatprep.subr.bf16.mxu0 0
      %4016 = vmatpush2.bf16.msra.mxu0 0
      %4017 = vmatprep.subr.bf16.mxu0 0
      %4018 = vmatpush2.bf16.msra.mxu0 0
      %4019 = vmatprep.subr.bf16.mxu0 0
      %4020 = vmatpush2.bf16.msra.mxu0 0
      %4021 = vmatprep.subr.bf16.mxu0 0
      %4022 = vmatpush2.bf16.msra.mxu0 0
      %4023 = vmatprep.mubr.bf16.mxu0 0
      %4024 = vmatmul.mubr.bf16.gmra.mxu0 %v3975
      %v4025 = vpop.f32.mrf.mxu0
      %v4026 = vadd.f32 %v3957, %v4025
      %v4027 = vpop.f32.mrf.mxu0
      %v4028 = vpop.f32.mrf.mxu0
      %v4029 = vadd.f32 %v3957, %v4028
      %v4030 = vpop.f32.mrf.mxu0
      %4031 = vmatprep.mubr.bf16.mxu0 0
      %4032 = vmatmul.mubr.bf16.gmra.mxu0 %v3977
      %v4033 = vpop.f32.mrf.mxu0
      %v4034 = vadd.f32 %v3957, %v4033
      %v4035 = vpop.f32.mrf.mxu0
      %v4036 = vpop.f32.mrf.mxu0
      %v4037 = vadd.f32 %v3957, %v4036
      %v4038 = vpop.f32.mrf.mxu0
      %4039 = vmatprep.mubr.bf16.mxu0 0
      %4040 = vmatmul.mubr.bf16.gmra.mxu0 %v3979
      %v4041 = vpop.f32.mrf.mxu0
      %v4042 = vadd.f32 %v3957, %v4041
      %v4043 = vpop.f32.mrf.mxu0
      %v4044 = vpop.f32.mrf.mxu0
      %v4045 = vadd.f32 %v3957, %v4044
      %v4046 = vpop.f32.mrf.mxu0
      %4047 = vmatprep.mubr.bf16.mxu0 0
      %4048 = vmatmul.mubr.bf16.gmra.mxu0 %v3981
      %v4049 = vpop.f32.mrf.mxu0
      %v4050 = vadd.f32 %v3957, %v4049
      %v4051 = vpop.f32.mrf.mxu0
      %v4052 = vpop.f32.mrf.mxu0
      %v4053 = vadd.f32 %v3957, %v4052
      %v4054 = vpop.f32.mrf.mxu0
      %4055 = vmatprep.mubr.bf16.mxu0 0
      %4056 = vmatmul.mubr.bf16.gmra.mxu0 %v3983
      %v4057 = vpop.f32.mrf.mxu0
      %v4058 = vadd.f32 %v3957, %v4057
      %v4059 = vpop.f32.mrf.mxu0
      %v4060 = vpop.f32.mrf.mxu0
      %v4061 = vadd.f32 %v3957, %v4060
      %v4062 = vpop.f32.mrf.mxu0
      %4063 = vmatprep.mubr.bf16.mxu0 0
      %4064 = vmatmul.mubr.bf16.gmra.mxu0 %v3985
      %v4065 = vpop.f32.mrf.mxu0
      %v4066 = vadd.f32 %v3957, %v4065
      %v4067 = vpop.f32.mrf.mxu0
      %v4068 = vpop.f32.mrf.mxu0
      %v4069 = vadd.f32 %v3957, %v4068
      %v4070 = vpop.f32.mrf.mxu0
      %4071 = vdwg.mxu0
      %vm4072 = vcmp.ge.f32.partialorder %v4026, 0.0
      %vm4073 = vcmp.ge.f32.partialorder %v4029, 0.0
      %vm4074 = vcmp.ge.f32.partialorder %v4034, 0.0
      %vm4075 = vcmp.ge.f32.partialorder %v4037, 0.0
      %vm4076 = vcmp.ge.f32.partialorder %v4042, 0.0
      %vm4077 = vcmp.ge.f32.partialorder %v4045, 0.0
      %vm4078 = vcmp.ge.f32.partialorder %v4050, 0.0
      %vm4079 = vcmp.ge.f32.partialorder %v4053, 0.0
      %vm4080 = vcmp.ge.f32.partialorder %v4058, 0.0
      %vm4081 = vcmp.ge.f32.partialorder %v4061, 0.0
      %vm4082 = vcmp.ge.f32.partialorder %v4066, 0.0
      %vm4083 = vcmp.ge.f32.partialorder %v4069, 0.0
      %v4084 = vmul.f32 %v4026, 0.2
      %v4085 = vmul.f32 %v4029, 0.2
      %v4086 = vmul.f32 %v4034, 0.2
      %v4087 = vmul.f32 %v4037, 0.2
      %v4088 = vmul.f32 %v4042, 0.2
      %v4089 = vmul.f32 %v4045, 0.2
      %v4090 = vmul.f32 %v4050, 0.2
      %v4091 = vmul.f32 %v4053, 0.2
      %v4092 = vmul.f32 %v4058, 0.2
      %v4093 = vmul.f32 %v4061, 0.2
      %v4094 = vmul.f32 %v4066, 0.2
      %v4095 = vmul.f32 %v4069, 0.2
      %v4096 = vsel %vm4072, %v4026, %v4084
      %v4097 = vsel %vm4073, %v4029, %v4085
      %v4098 = vsel %vm4074, %v4034, %v4086
      %v4099 = vsel %vm4075, %v4037, %v4087
      %v4100 = vsel %vm4076, %v4042, %v4088
      %v4101 = vsel %vm4077, %v4045, %v4089
      %v4102 = vsel %vm4078, %v4050, %v4090
      %v4103 = vsel %vm4079, %v4053, %v4091
      %v4104 = vsel %vm4080, %v4058, %v4092
      %v4105 = vsel %vm4081, %v4061, %v4093
      %v4106 = vsel %vm4082, %v4066, %v4094
      %v4107 = vsel %vm4083, %v4069, %v4095
      %v4120 = vcombine.high %v4096, %v4096
      %v4122 = vunpack.c.l.s4 1966171168
      %v4123 = vunpack.c.0.s8 %v4122
      %v4124 = vlaneseq
      %v4125 = vshrl.u32 %v4124, 7
      %v4126 = vsub.s32 %v4123, %v4125
      %v4127 = vrot.slane %v4096, %v4126
      %v4129 = vunpack.c.l.s4 1966171168
      %v4130 = vunpack.c.0.s8 %v4129
      %v4131 = vlaneseq
      %v4132 = vshrl.u32 %v4131, 7
      %v4133 = vsub.s32 %v4130, %v4132
      %v4134 = vrot.slane %v4120, %v4133
      %v4135 = vcombine.high %v4127, %v4127
      %v4136 = vcombine.high %v4134, %v4134
      %v4138 = vunpack.c.l.s4 1966171168
      %v4139 = vunpack.c.0.s8 %v4138
      %v4140 = vlaneseq
      %v4141 = vshrl.u32 %v4140, 7
      %v4142 = vsub.s32 %v4139, %v4141
      %v4143 = vrot.slane %v4127, %v4142
      %v4145 = vunpack.c.l.s4 1966171168
      %v4146 = vunpack.c.0.s8 %v4145
      %v4147 = vlaneseq
      %v4148 = vshrl.u32 %v4147, 7
      %v4149 = vsub.s32 %v4146, %v4148
      %v4150 = vrot.slane %v4134, %v4149
      %v4152 = vunpack.c.l.s4 1966171168
      %v4153 = vunpack.c.0.s8 %v4152
      %v4154 = vlaneseq
      %v4155 = vshrl.u32 %v4154, 7
      %v4156 = vsub.s32 %v4153, %v4155
      %v4157 = vrot.slane %v4135, %v4156
      %v4159 = vunpack.c.l.s4 1966171168
      %v4160 = vunpack.c.0.s8 %v4159
      %v4161 = vlaneseq
      %v4162 = vshrl.u32 %v4161, 7
      %v4163 = vsub.s32 %v4160, %v4162
      %v4164 = vrot.slane %v4136, %v4163
      %v4165 = vcombine.high %v4143, %v4143
      %v4166 = vcombine.high %v4150, %v4150
      %v4167 = vcombine.high %v4157, %v4157
      %v4168 = vcombine.high %v4164, %v4164
      %v4169 = vcombine.high %v4097, %v4097
      %v4171 = vunpack.c.l.s4 1966171168
      %v4172 = vunpack.c.0.s8 %v4171
      %v4173 = vlaneseq
      %v4174 = vshrl.u32 %v4173, 7
      %v4175 = vsub.s32 %v4172, %v4174
      %v4176 = vrot.slane %v4097, %v4175
      %v4178 = vunpack.c.l.s4 1966171168
      %v4179 = vunpack.c.0.s8 %v4178
      %v4180 = vlaneseq
      %v4181 = vshrl.u32 %v4180, 7
      %v4182 = vsub.s32 %v4179, %v4181
      %v4183 = vrot.slane %v4169, %v4182
      %v4184 = vcombine.high %v4176, %v4176
      %v4185 = vcombine.high %v4183, %v4183
      %v4187 = vunpack.c.l.s4 1966171168
      %v4188 = vunpack.c.0.s8 %v4187
      %v4189 = vlaneseq
      %v4190 = vshrl.u32 %v4189, 7
      %v4191 = vsub.s32 %v4188, %v4190
      %v4192 = vrot.slane %v4176, %v4191
      %v4194 = vunpack.c.l.s4 1966171168
      %v4195 = vunpack.c.0.s8 %v4194
      %v4196 = vlaneseq
      %v4197 = vshrl.u32 %v4196, 7
      %v4198 = vsub.s32 %v4195, %v4197
      %v4199 = vrot.slane %v4183, %v4198
      %v4201 = vunpack.c.l.s4 1966171168
      %v4202 = vunpack.c.0.s8 %v4201
      %v4203 = vlaneseq
      %v4204 = vshrl.u32 %v4203, 7
      %v4205 = vsub.s32 %v4202, %v4204
      %v4206 = vrot.slane %v4184, %v4205
      %v4208 = vunpack.c.l.s4 1966171168
      %v4209 = vunpack.c.0.s8 %v4208
      %v4210 = vlaneseq
      %v4211 = vshrl.u32 %v4210, 7
      %v4212 = vsub.s32 %v4209, %v4211
      %v4213 = vrot.slane %v4185, %v4212
      %v4214 = vcombine.high %v4192, %v4192
      %v4215 = vcombine.high %v4199, %v4199
      %v4216 = vcombine.high %v4206, %v4206
      %v4217 = vcombine.high %v4213, %v4213
      %v4218 = vcombine.high %v4098, %v4098
      %v4220 = vunpack.c.l.s4 1966171168
      %v4221 = vunpack.c.0.s8 %v4220
      %v4222 = vlaneseq
      %v4223 = vshrl.u32 %v4222, 7
      %v4224 = vsub.s32 %v4221, %v4223
      %v4225 = vrot.slane %v4098, %v4224
      %v4227 = vunpack.c.l.s4 1966171168
      %v4228 = vunpack.c.0.s8 %v4227
      %v4229 = vlaneseq
      %v4230 = vshrl.u32 %v4229, 7
      %v4231 = vsub.s32 %v4228, %v4230
      %v4232 = vrot.slane %v4218, %v4231
      %v4233 = vcombine.high %v4225, %v4225
      %v4234 = vcombine.high %v4232, %v4232
      %v4236 = vunpack.c.l.s4 1966171168
      %v4237 = vunpack.c.0.s8 %v4236
      %v4238 = vlaneseq
      %v4239 = vshrl.u32 %v4238, 7
      %v4240 = vsub.s32 %v4237, %v4239
      %v4241 = vrot.slane %v4225, %v4240
      %v4243 = vunpack.c.l.s4 1966171168
      %v4244 = vunpack.c.0.s8 %v4243
      %v4245 = vlaneseq
      %v4246 = vshrl.u32 %v4245, 7
      %v4247 = vsub.s32 %v4244, %v4246
      %v4248 = vrot.slane %v4232, %v4247
      %v4250 = vunpack.c.l.s4 1966171168
      %v4251 = vunpack.c.0.s8 %v4250
      %v4252 = vlaneseq
      %v4253 = vshrl.u32 %v4252, 7
      %v4254 = vsub.s32 %v4251, %v4253
      %v4255 = vrot.slane %v4233, %v4254
      %v4257 = vunpack.c.l.s4 1966171168
      %v4258 = vunpack.c.0.s8 %v4257
      %v4259 = vlaneseq
      %v4260 = vshrl.u32 %v4259, 7
      %v4261 = vsub.s32 %v4258, %v4260
      %v4262 = vrot.slane %v4234, %v4261
      %v4263 = vcombine.high %v4241, %v4241
      %v4264 = vcombine.high %v4248, %v4248
      %v4265 = vcombine.high %v4255, %v4255
      %v4266 = vcombine.high %v4262, %v4262
      %v4267 = vcombine.high %v4099, %v4099
      %v4269 = vunpack.c.l.s4 1966171168
      %v4270 = vunpack.c.0.s8 %v4269
      %v4271 = vlaneseq
      %v4272 = vshrl.u32 %v4271, 7
      %v4273 = vsub.s32 %v4270, %v4272
      %v4274 = vrot.slane %v4099, %v4273
      %v4276 = vunpack.c.l.s4 1966171168
      %v4277 = vunpack.c.0.s8 %v4276
      %v4278 = vlaneseq
      %v4279 = vshrl.u32 %v4278, 7
      %v4280 = vsub.s32 %v4277, %v4279
      %v4281 = vrot.slane %v4267, %v4280
      %v4282 = vcombine.high %v4274, %v4274
      %v4283 = vcombine.high %v4281, %v4281
      %v4285 = vunpack.c.l.s4 1966171168
      %v4286 = vunpack.c.0.s8 %v4285
      %v4287 = vlaneseq
      %v4288 = vshrl.u32 %v4287, 7
      %v4289 = vsub.s32 %v4286, %v4288
      %v4290 = vrot.slane %v4274, %v4289
      %v4292 = vunpack.c.l.s4 1966171168
      %v4293 = vunpack.c.0.s8 %v4292
      %v4294 = vlaneseq
      %v4295 = vshrl.u32 %v4294, 7
      %v4296 = vsub.s32 %v4293, %v4295
      %v4297 = vrot.slane %v4281, %v4296
      %v4299 = vunpack.c.l.s4 1966171168
      %v4300 = vunpack.c.0.s8 %v4299
      %v4301 = vlaneseq
      %v4302 = vshrl.u32 %v4301, 7
      %v4303 = vsub.s32 %v4300, %v4302
      %v4304 = vrot.slane %v4282, %v4303
      %v4306 = vunpack.c.l.s4 1966171168
      %v4307 = vunpack.c.0.s8 %v4306
      %v4308 = vlaneseq
      %v4309 = vshrl.u32 %v4308, 7
      %v4310 = vsub.s32 %v4307, %v4309
      %v4311 = vrot.slane %v4283, %v4310
      %v4312 = vcombine.high %v4290, %v4290
      %v4313 = vcombine.high %v4297, %v4297
      %v4314 = vcombine.high %v4304, %v4304
      %v4315 = vcombine.high %v4311, %v4311
      %v4316 = vcombine.high %v4100, %v4100
      %v4318 = vunpack.c.l.s4 1966171168
      %v4319 = vunpack.c.0.s8 %v4318
      %v4320 = vlaneseq
      %v4321 = vshrl.u32 %v4320, 7
      %v4322 = vsub.s32 %v4319, %v4321
      %v4323 = vrot.slane %v4100, %v4322
      %v4325 = vunpack.c.l.s4 1966171168
      %v4326 = vunpack.c.0.s8 %v4325
      %v4327 = vlaneseq
      %v4328 = vshrl.u32 %v4327, 7
      %v4329 = vsub.s32 %v4326, %v4328
      %v4330 = vrot.slane %v4316, %v4329
      %v4331 = vcombine.high %v4323, %v4323
      %v4332 = vcombine.high %v4330, %v4330
      %v4334 = vunpack.c.l.s4 1966171168
      %v4335 = vunpack.c.0.s8 %v4334
      %v4336 = vlaneseq
      %v4337 = vshrl.u32 %v4336, 7
      %v4338 = vsub.s32 %v4335, %v4337
      %v4339 = vrot.slane %v4323, %v4338
      %v4341 = vunpack.c.l.s4 1966171168
      %v4342 = vunpack.c.0.s8 %v4341
      %v4343 = vlaneseq
      %v4344 = vshrl.u32 %v4343, 7
      %v4345 = vsub.s32 %v4342, %v4344
      %v4346 = vrot.slane %v4330, %v4345
      %v4348 = vunpack.c.l.s4 1966171168
      %v4349 = vunpack.c.0.s8 %v4348
      %v4350 = vlaneseq
      %v4351 = vshrl.u32 %v4350, 7
      %v4352 = vsub.s32 %v4349, %v4351
      %v4353 = vrot.slane %v4331, %v4352
      %v4355 = vunpack.c.l.s4 1966171168
      %v4356 = vunpack.c.0.s8 %v4355
      %v4357 = vlaneseq
      %v4358 = vshrl.u32 %v4357, 7
      %v4359 = vsub.s32 %v4356, %v4358
      %v4360 = vrot.slane %v4332, %v4359
      %v4361 = vcombine.high %v4339, %v4339
      %v4362 = vcombine.high %v4346, %v4346
      %v4363 = vcombine.high %v4353, %v4353
      %v4364 = vcombine.high %v4360, %v4360
      %v4365 = vcombine.high %v4101, %v4101
      %v4367 = vunpack.c.l.s4 1966171168
      %v4368 = vunpack.c.0.s8 %v4367
      %v4369 = vlaneseq
      %v4370 = vshrl.u32 %v4369, 7
      %v4371 = vsub.s32 %v4368, %v4370
      %v4372 = vrot.slane %v4101, %v4371
      %v4374 = vunpack.c.l.s4 1966171168
      %v4375 = vunpack.c.0.s8 %v4374
      %v4376 = vlaneseq
      %v4377 = vshrl.u32 %v4376, 7
      %v4378 = vsub.s32 %v4375, %v4377
      %v4379 = vrot.slane %v4365, %v4378
      %v4380 = vcombine.high %v4372, %v4372
      %v4381 = vcombine.high %v4379, %v4379
      %v4383 = vunpack.c.l.s4 1966171168
      %v4384 = vunpack.c.0.s8 %v4383
      %v4385 = vlaneseq
      %v4386 = vshrl.u32 %v4385, 7
      %v4387 = vsub.s32 %v4384, %v4386
      %v4388 = vrot.slane %v4372, %v4387
      %v4390 = vunpack.c.l.s4 1966171168
      %v4391 = vunpack.c.0.s8 %v4390
      %v4392 = vlaneseq
      %v4393 = vshrl.u32 %v4392, 7
      %v4394 = vsub.s32 %v4391, %v4393
      %v4395 = vrot.slane %v4379, %v4394
      %v4397 = vunpack.c.l.s4 1966171168
      %v4398 = vunpack.c.0.s8 %v4397
      %v4399 = vlaneseq
      %v4400 = vshrl.u32 %v4399, 7
      %v4401 = vsub.s32 %v4398, %v4400
      %v4402 = vrot.slane %v4380, %v4401
      %v4404 = vunpack.c.l.s4 1966171168
      %v4405 = vunpack.c.0.s8 %v4404
      %v4406 = vlaneseq
      %v4407 = vshrl.u32 %v4406, 7
      %v4408 = vsub.s32 %v4405, %v4407
      %v4409 = vrot.slane %v4381, %v4408
      %v4410 = vcombine.high %v4388, %v4388
      %v4411 = vcombine.high %v4395, %v4395
      %v4412 = vcombine.high %v4402, %v4402
      %v4413 = vcombine.high %v4409, %v4409
      %v4414 = vcombine.high %v4102, %v4102
      %v4416 = vunpack.c.l.s4 1966171168
      %v4417 = vunpack.c.0.s8 %v4416
      %v4418 = vlaneseq
      %v4419 = vshrl.u32 %v4418, 7
      %v4420 = vsub.s32 %v4417, %v4419
      %v4421 = vrot.slane %v4102, %v4420
      %v4423 = vunpack.c.l.s4 1966171168
      %v4424 = vunpack.c.0.s8 %v4423
      %v4425 = vlaneseq
      %v4426 = vshrl.u32 %v4425, 7
      %v4427 = vsub.s32 %v4424, %v4426
      %v4428 = vrot.slane %v4414, %v4427
      %v4429 = vcombine.high %v4421, %v4421
      %v4430 = vcombine.high %v4428, %v4428
      %v4432 = vunpack.c.l.s4 1966171168
      %v4433 = vunpack.c.0.s8 %v4432
      %v4434 = vlaneseq
      %v4435 = vshrl.u32 %v4434, 7
      %v4436 = vsub.s32 %v4433, %v4435
      %v4437 = vrot.slane %v4421, %v4436
      %v4439 = vunpack.c.l.s4 1966171168
      %v4440 = vunpack.c.0.s8 %v4439
      %v4441 = vlaneseq
      %v4442 = vshrl.u32 %v4441, 7
      %v4443 = vsub.s32 %v4440, %v4442
      %v4444 = vrot.slane %v4428, %v4443
      %v4446 = vunpack.c.l.s4 1966171168
      %v4447 = vunpack.c.0.s8 %v4446
      %v4448 = vlaneseq
      %v4449 = vshrl.u32 %v4448, 7
      %v4450 = vsub.s32 %v4447, %v4449
      %v4451 = vrot.slane %v4429, %v4450
      %v4453 = vunpack.c.l.s4 1966171168
      %v4454 = vunpack.c.0.s8 %v4453
      %v4455 = vlaneseq
      %v4456 = vshrl.u32 %v4455, 7
      %v4457 = vsub.s32 %v4454, %v4456
      %v4458 = vrot.slane %v4430, %v4457
      %v4459 = vcombine.high %v4437, %v4437
      %v4460 = vcombine.high %v4444, %v4444
      %v4461 = vcombine.high %v4451, %v4451
      %v4462 = vcombine.high %v4458, %v4458
      %v4463 = vcombine.high %v4103, %v4103
      %v4465 = vunpack.c.l.s4 1966171168
      %v4466 = vunpack.c.0.s8 %v4465
      %v4467 = vlaneseq
      %v4468 = vshrl.u32 %v4467, 7
      %v4469 = vsub.s32 %v4466, %v4468
      %v4470 = vrot.slane %v4103, %v4469
      %v4472 = vunpack.c.l.s4 1966171168
      %v4473 = vunpack.c.0.s8 %v4472
      %v4474 = vlaneseq
      %v4475 = vshrl.u32 %v4474, 7
      %v4476 = vsub.s32 %v4473, %v4475
      %v4477 = vrot.slane %v4463, %v4476
      %v4478 = vcombine.high %v4470, %v4470
      %v4479 = vcombine.high %v4477, %v4477
      %v4481 = vunpack.c.l.s4 1966171168
      %v4482 = vunpack.c.0.s8 %v4481
      %v4483 = vlaneseq
      %v4484 = vshrl.u32 %v4483, 7
      %v4485 = vsub.s32 %v4482, %v4484
      %v4486 = vrot.slane %v4470, %v4485
      %v4488 = vunpack.c.l.s4 1966171168
      %v4489 = vunpack.c.0.s8 %v4488
      %v4490 = vlaneseq
      %v4491 = vshrl.u32 %v4490, 7
      %v4492 = vsub.s32 %v4489, %v4491
      %v4493 = vrot.slane %v4477, %v4492
      %v4495 = vunpack.c.l.s4 1966171168
      %v4496 = vunpack.c.0.s8 %v4495
      %v4497 = vlaneseq
      %v4498 = vshrl.u32 %v4497, 7
      %v4499 = vsub.s32 %v4496, %v4498
      %v4500 = vrot.slane %v4478, %v4499
      %v4502 = vunpack.c.l.s4 1966171168
      %v4503 = vunpack.c.0.s8 %v4502
      %v4504 = vlaneseq
      %v4505 = vshrl.u32 %v4504, 7
      %v4506 = vsub.s32 %v4503, %v4505
      %v4507 = vrot.slane %v4479, %v4506
      %v4508 = vcombine.high %v4486, %v4486
      %v4509 = vcombine.high %v4493, %v4493
      %v4510 = vcombine.high %v4500, %v4500
      %v4511 = vcombine.high %v4507, %v4507
      %v4512 = vcombine.high %v4104, %v4104
      %v4514 = vunpack.c.l.s4 1966171168
      %v4515 = vunpack.c.0.s8 %v4514
      %v4516 = vlaneseq
      %v4517 = vshrl.u32 %v4516, 7
      %v4518 = vsub.s32 %v4515, %v4517
      %v4519 = vrot.slane %v4104, %v4518
      %v4521 = vunpack.c.l.s4 1966171168
      %v4522 = vunpack.c.0.s8 %v4521
      %v4523 = vlaneseq
      %v4524 = vshrl.u32 %v4523, 7
      %v4525 = vsub.s32 %v4522, %v4524
      %v4526 = vrot.slane %v4512, %v4525
      %v4527 = vcombine.high %v4519, %v4519
      %v4528 = vcombine.high %v4526, %v4526
      %v4530 = vunpack.c.l.s4 1966171168
      %v4531 = vunpack.c.0.s8 %v4530
      %v4532 = vlaneseq
      %v4533 = vshrl.u32 %v4532, 7
      %v4534 = vsub.s32 %v4531, %v4533
      %v4535 = vrot.slane %v4519, %v4534
      %v4537 = vunpack.c.l.s4 1966171168
      %v4538 = vunpack.c.0.s8 %v4537
      %v4539 = vlaneseq
      %v4540 = vshrl.u32 %v4539, 7
      %v4541 = vsub.s32 %v4538, %v4540
      %v4542 = vrot.slane %v4526, %v4541
      %v4544 = vunpack.c.l.s4 1966171168
      %v4545 = vunpack.c.0.s8 %v4544
      %v4546 = vlaneseq
      %v4547 = vshrl.u32 %v4546, 7
      %v4548 = vsub.s32 %v4545, %v4547
      %v4549 = vrot.slane %v4527, %v4548
      %v4551 = vunpack.c.l.s4 1966171168
      %v4552 = vunpack.c.0.s8 %v4551
      %v4553 = vlaneseq
      %v4554 = vshrl.u32 %v4553, 7
      %v4555 = vsub.s32 %v4552, %v4554
      %v4556 = vrot.slane %v4528, %v4555
      %v4557 = vcombine.high %v4535, %v4535
      %v4558 = vcombine.high %v4542, %v4542
      %v4559 = vcombine.high %v4549, %v4549
      %v4560 = vcombine.high %v4556, %v4556
      %v4561 = vcombine.high %v4105, %v4105
      %v4563 = vunpack.c.l.s4 1966171168
      %v4564 = vunpack.c.0.s8 %v4563
      %v4565 = vlaneseq
      %v4566 = vshrl.u32 %v4565, 7
      %v4567 = vsub.s32 %v4564, %v4566
      %v4568 = vrot.slane %v4105, %v4567
      %v4570 = vunpack.c.l.s4 1966171168
      %v4571 = vunpack.c.0.s8 %v4570
      %v4572 = vlaneseq
      %v4573 = vshrl.u32 %v4572, 7
      %v4574 = vsub.s32 %v4571, %v4573
      %v4575 = vrot.slane %v4561, %v4574
      %v4576 = vcombine.high %v4568, %v4568
      %v4577 = vcombine.high %v4575, %v4575
      %v4579 = vunpack.c.l.s4 1966171168
      %v4580 = vunpack.c.0.s8 %v4579
      %v4581 = vlaneseq
      %v4582 = vshrl.u32 %v4581, 7
      %v4583 = vsub.s32 %v4580, %v4582
      %v4584 = vrot.slane %v4568, %v4583
      %v4586 = vunpack.c.l.s4 1966171168
      %v4587 = vunpack.c.0.s8 %v4586
      %v4588 = vlaneseq
      %v4589 = vshrl.u32 %v4588, 7
      %v4590 = vsub.s32 %v4587, %v4589
      %v4591 = vrot.slane %v4575, %v4590
      %v4593 = vunpack.c.l.s4 1966171168
      %v4594 = vunpack.c.0.s8 %v4593
      %v4595 = vlaneseq
      %v4596 = vshrl.u32 %v4595, 7
      %v4597 = vsub.s32 %v4594, %v4596
      %v4598 = vrot.slane %v4576, %v4597
      %v4600 = vunpack.c.l.s4 1966171168
      %v4601 = vunpack.c.0.s8 %v4600
      %v4602 = vlaneseq
      %v4603 = vshrl.u32 %v4602, 7
      %v4604 = vsub.s32 %v4601, %v4603
      %v4605 = vrot.slane %v4577, %v4604
      %v4606 = vcombine.high %v4584, %v4584
      %v4607 = vcombine.high %v4591, %v4591
      %v4608 = vcombine.high %v4598, %v4598
      %v4609 = vcombine.high %v4605, %v4605
      %v4610 = vcombine.high %v4106, %v4106
      %v4612 = vunpack.c.l.s4 1966171168
      %v4613 = vunpack.c.0.s8 %v4612
      %v4614 = vlaneseq
      %v4615 = vshrl.u32 %v4614, 7
      %v4616 = vsub.s32 %v4613, %v4615
      %v4617 = vrot.slane %v4106, %v4616
      %v4619 = vunpack.c.l.s4 1966171168
      %v4620 = vunpack.c.0.s8 %v4619
      %v4621 = vlaneseq
      %v4622 = vshrl.u32 %v4621, 7
      %v4623 = vsub.s32 %v4620, %v4622
      %v4624 = vrot.slane %v4610, %v4623
      %v4625 = vcombine.high %v4617, %v4617
      %v4626 = vcombine.high %v4624, %v4624
      %v4628 = vunpack.c.l.s4 1966171168
      %v4629 = vunpack.c.0.s8 %v4628
      %v4630 = vlaneseq
      %v4631 = vshrl.u32 %v4630, 7
      %v4632 = vsub.s32 %v4629, %v4631
      %v4633 = vrot.slane %v4617, %v4632
      %v4635 = vunpack.c.l.s4 1966171168
      %v4636 = vunpack.c.0.s8 %v4635
      %v4637 = vlaneseq
      %v4638 = vshrl.u32 %v4637, 7
      %v4639 = vsub.s32 %v4636, %v4638
      %v4640 = vrot.slane %v4624, %v4639
      %v4642 = vunpack.c.l.s4 1966171168
      %v4643 = vunpack.c.0.s8 %v4642
      %v4644 = vlaneseq
      %v4645 = vshrl.u32 %v4644, 7
      %v4646 = vsub.s32 %v4643, %v4645
      %v4647 = vrot.slane %v4625, %v4646
      %v4649 = vunpack.c.l.s4 1966171168
      %v4650 = vunpack.c.0.s8 %v4649
      %v4651 = vlaneseq
      %v4652 = vshrl.u32 %v4651, 7
      %v4653 = vsub.s32 %v4650, %v4652
      %v4654 = vrot.slane %v4626, %v4653
      %v4655 = vcombine.high %v4633, %v4633
      %v4656 = vcombine.high %v4640, %v4640
      %v4657 = vcombine.high %v4647, %v4647
      %v4658 = vcombine.high %v4654, %v4654
      %v4660 = vunpack.c.l.s4 1966171168
      %v4661 = vunpack.c.0.s8 %v4660
      %v4662 = vlaneseq
      %v4663 = vshrl.u32 %v4662, 7
      %v4664 = vsub.s32 %v4661, %v4663
      %v4665 = vrot.slane %v4107, %v4664
      %v4666 = vcombine.high %v4665, %v4665
      %v4668 = vunpack.c.l.s4 1966171168
      %v4669 = vunpack.c.0.s8 %v4668
      %v4670 = vlaneseq
      %v4671 = vshrl.u32 %v4670, 7
      %v4672 = vsub.s32 %v4669, %v4671
      %v4673 = vrot.slane %v4665, %v4672
      %v4675 = vunpack.c.l.s4 1966171168
      %v4676 = vunpack.c.0.s8 %v4675
      %v4677 = vlaneseq
      %v4678 = vshrl.u32 %v4677, 7
      %v4679 = vsub.s32 %v4676, %v4678
      %v4680 = vrot.slane %v4666, %v4679
      %v4681 = vlaneseq
      %v4682 = vshrl.u32 %v4681, 7
      %v4683 = vadd.s32 %v4682, 8
      %s4684 = ssub.s32 %s249, 1
      %v4685 = vstv %s4684
      %v4686 = vadd.s32 %v4685, 1
      %v4687 = vadd.s32 %v4685, 2
      %v4688 = vadd.s32 %v4685, 3
      %v4689 = vadd.s32 %v4685, 4
      %v4690 = vadd.s32 %v4685, 5
      %v4691 = vadd.s32 %v4685, 6
      %v4692 = vadd.s32 %v4685, 7
      %v4693 = vadd.s32 %v4685, 8
      %v4694 = vadd.s32 %v4685, 9
      %v4695 = vmul.u32 %v4682, 2
      %v4696 = vmul.u32 %v4683, 2
      %v4697 = vadd.s32 %v4695, 4294967295
      %v4698 = vadd.s32 %v4696, 4294967295
      %vm4699 = vcmp.ge.s32.totalorder %v4685, 0
      %vm4700 = vcmp.ge.s32.totalorder %v4686, 0
      %vm4701 = vcmp.ge.s32.totalorder %v4687, 0
      %vm4702 = vcmp.ge.s32.totalorder %v4688, 0
      %vm4703 = vcmp.ge.s32.totalorder %v4689, 0
      %vm4704 = vcmp.ge.s32.totalorder %v4690, 0
      %vm4705 = vcmp.ge.s32.totalorder %v4691, 0
      %vm4706 = vcmp.ge.s32.totalorder %v4692, 0
      %vm4707 = vcmp.ge.s32.totalorder %v4693, 0
      %vm4708 = vcmp.ge.s32.totalorder %v4694, 0
      %vm4709 = vcmp.lt.s32.totalorder %v4685, 16
      %vm4710 = vcmp.lt.s32.totalorder %v4686, 16
      %vm4711 = vcmp.lt.s32.totalorder %v4687, 16
      %vm4712 = vcmp.lt.s32.totalorder %v4688, 16
      %vm4713 = vcmp.lt.s32.totalorder %v4689, 16
      %vm4714 = vcmp.lt.s32.totalorder %v4690, 16
      %vm4715 = vcmp.lt.s32.totalorder %v4691, 16
      %vm4716 = vcmp.lt.s32.totalorder %v4692, 16
      %vm4717 = vcmp.lt.s32.totalorder %v4693, 16
      %vm4718 = vcmp.lt.s32.totalorder %v4694, 16
      %vm4719 = vmand %vm4699, %vm4709
      %vm4720 = vmand %vm4700, %vm4710
      %vm4721 = vmand %vm4701, %vm4711
      %vm4722 = vmand %vm4702, %vm4712
      %vm4723 = vmand %vm4703, %vm4713
      %vm4724 = vmand %vm4704, %vm4714
      %vm4725 = vmand %vm4705, %vm4715
      %vm4726 = vmand %vm4706, %vm4716
      %vm4727 = vmand %vm4707, %vm4717
      %vm4728 = vmand %vm4708, %vm4718
      %vm4729 = vcmp.ge.s32.totalorder %v4697, 0
      %vm4730 = vcmp.ge.s32.totalorder %v4698, 0
      %vm4731 = vmand %vm4719, %vm4729
      %vm4732 = vmand %vm4719, %vm4730
      %vm4733 = vmand %vm4720, %vm4729
      %vm4734 = vmand %vm4720, %vm4730
      %vm4735 = vmand %vm4721, %vm4729
      %vm4736 = vmand %vm4721, %vm4730
      %vm4737 = vmand %vm4722, %vm4729
      %vm4738 = vmand %vm4722, %vm4730
      %vm4739 = vmand %vm4723, %vm4729
      %vm4740 = vmand %vm4723, %vm4730
      %vm4741 = vmand %vm4724, %vm4729
      %vm4742 = vmand %vm4724, %vm4730
      %vm4743 = vmand %vm4725, %vm4729
      %vm4744 = vmand %vm4725, %vm4730
      %vm4745 = vmand %vm4726, %vm4729
      %vm4746 = vmand %vm4726, %vm4730
      %vm4747 = vmand %vm4727, %vm4729
      %vm4748 = vmand %vm4727, %vm4730
      %vm4749 = vmand %vm4728, %vm4729
      %vm4750 = vmand %vm4728, %vm4730
      %vm4751 = vcmp.lt.s32.totalorder %v4697, 16
      %vm4752 = vcmp.lt.s32.totalorder %v4698, 16
      %vm4753 = vmand %vm4731, %vm4751
      %vm4754 = vmand %vm4732, %vm4752
      %vm4755 = vmand %vm4733, %vm4751
      %vm4756 = vmand %vm4734, %vm4752
      %vm4757 = vmand %vm4735, %vm4751
      %vm4758 = vmand %vm4736, %vm4752
      %vm4759 = vmand %vm4737, %vm4751
      %vm4760 = vmand %vm4738, %vm4752
      %vm4761 = vmand %vm4739, %vm4751
      %vm4762 = vmand %vm4740, %vm4752
      %vm4763 = vmand %vm4741, %vm4751
      %vm4764 = vmand %vm4742, %vm4752
      %vm4765 = vmand %vm4743, %vm4751
      %vm4766 = vmand %vm4744, %vm4752
      %vm4767 = vmand %vm4745, %vm4751
      %vm4768 = vmand %vm4746, %vm4752
      %vm4769 = vmand %vm4747, %vm4751
      %vm4770 = vmand %vm4748, %vm4752
      %vm4771 = vmand %vm4749, %vm4751
      %vm4772 = vmand %vm4750, %vm4752
      %v4773 = vcombine.low %v4143, %v4157
      %v4774 = vcombine.low %v4165, %v4167
      %v4775 = vcombine.low %v4150, %v4164
      %v4776 = vcombine.low %v4166, %v4168
      %v4778 = vunpack.c.l.s4 1966171168
      %v4779 = vunpack.c.0.s8 %v4778
      %v4780 = vlaneseq
      %v4781 = vshrl.u32 %v4780, 7
      %v4782 = vsub.s32 %v4779, %v4781
      %v4783 = vrot.slane %v4773, %v4782
      %v4785 = vunpack.c.l.s4 1966171168
      %v4786 = vunpack.c.0.s8 %v4785
      %v4787 = vlaneseq
      %v4788 = vshrl.u32 %v4787, 7
      %v4789 = vsub.s32 %v4786, %v4788
      %v4790 = vrot.slane %v4774, %v4789
      %v4792 = vunpack.c.l.s4 1966171168
      %v4793 = vunpack.c.0.s8 %v4792
      %v4794 = vlaneseq
      %v4795 = vshrl.u32 %v4794, 7
      %v4796 = vsub.s32 %v4793, %v4795
      %v4797 = vrot.slane %v4775, %v4796
      %v4799 = vunpack.c.l.s4 1966171168
      %v4800 = vunpack.c.0.s8 %v4799
      %v4801 = vlaneseq
      %v4802 = vshrl.u32 %v4801, 7
      %v4803 = vsub.s32 %v4800, %v4802
      %v4804 = vrot.slane %v4776, %v4803
      %v4805 = vcombine.low %v4783, %v4790
      %v4806 = vcombine.low %v4797, %v4804
      %v4808 = vunpack.c.l.s4 1966171168
      %v4809 = vunpack.c.0.s8 %v4808
      %v4810 = vlaneseq
      %v4811 = vshrl.u32 %v4810, 7
      %v4812 = vsub.s32 %v4809, %v4811
      %v4813 = vrot.slane %v4805, %v4812
      %v4815 = vunpack.c.l.s4 1966171168
      %v4816 = vunpack.c.0.s8 %v4815
      %v4817 = vlaneseq
      %v4818 = vshrl.u32 %v4817, 7
      %v4819 = vsub.s32 %v4816, %v4818
      %v4820 = vrot.slane %v4806, %v4819
      %v4821 = vcombine.low %v4813, %v4820
      %v4823 = vunpack.c.l.s4 1966171168
      %v4824 = vunpack.c.0.s8 %v4823
      %v4825 = vlaneseq
      %v4826 = vshrl.u32 %v4825, 7
      %v4827 = vsub.s32 %v4824, %v4826
      %v4828 = vrot.slane %v4192, %v4827
      %v4830 = vunpack.c.l.s4 1966171168
      %v4831 = vunpack.c.0.s8 %v4830
      %v4832 = vlaneseq
      %v4833 = vshrl.u32 %v4832, 7
      %v4834 = vsub.s32 %v4831, %v4833
      %v4835 = vrot.slane %v4828, %v4834
      %v4836 = vcombine.low %v4206, %v4214
      %v4837 = vcombine.low %v4216, %v4199
      %v4838 = vcombine.low %v4213, %v4215
      %v4839 = vcombine.low %v4217, %v4241
      %v4841 = vunpack.c.l.s4 1966171168
      %v4842 = vunpack.c.0.s8 %v4841
      %v4843 = vlaneseq
      %v4844 = vshrl.u32 %v4843, 7
      %v4845 = vsub.s32 %v4842, %v4844
      %v4846 = vrot.slane %v4836, %v4845
      %v4848 = vunpack.c.l.s4 1966171168
      %v4849 = vunpack.c.0.s8 %v4848
      %v4850 = vlaneseq
      %v4851 = vshrl.u32 %v4850, 7
      %v4852 = vsub.s32 %v4849, %v4851
      %v4853 = vrot.slane %v4837, %v4852
      %v4855 = vunpack.c.l.s4 1966171168
      %v4856 = vunpack.c.0.s8 %v4855
      %v4857 = vlaneseq
      %v4858 = vshrl.u32 %v4857, 7
      %v4859 = vsub.s32 %v4856, %v4858
      %v4860 = vrot.slane %v4838, %v4859
      %v4862 = vunpack.c.l.s4 1966171168
      %v4863 = vunpack.c.0.s8 %v4862
      %v4864 = vlaneseq
      %v4865 = vshrl.u32 %v4864, 7
      %v4866 = vsub.s32 %v4863, %v4865
      %v4867 = vrot.slane %v4839, %v4866
      %v4868 = vcombine.low %v4846, %v4853
      %v4869 = vcombine.low %v4860, %v4867
      %v4871 = vunpack.c.l.s4 1966171168
      %v4872 = vunpack.c.0.s8 %v4871
      %v4873 = vlaneseq
      %v4874 = vshrl.u32 %v4873, 7
      %v4875 = vsub.s32 %v4872, %v4874
      %v4876 = vrot.slane %v4868, %v4875
      %v4878 = vunpack.c.l.s4 1966171168
      %v4879 = vunpack.c.0.s8 %v4878
      %v4880 = vlaneseq
      %v4881 = vshrl.u32 %v4880, 7
      %v4882 = vsub.s32 %v4879, %v4881
      %v4883 = vrot.slane %v4869, %v4882
      %v4884 = vcombine.low %v4876, %v4883
      %v4886 = vunpack.c.l.s4 1966171168
      %v4887 = vunpack.c.0.s8 %v4886
      %v4888 = vlaneseq
      %v4889 = vshrl.u32 %v4888, 7
      %v4890 = vsub.s32 %v4887, %v4889
      %v4891 = vrot.slane %v4255, %v4890
      %v4893 = vunpack.c.l.s4 1966171168
      %v4894 = vunpack.c.0.s8 %v4893
      %v4895 = vlaneseq
      %v4896 = vshrl.u32 %v4895, 7
      %v4897 = vsub.s32 %v4894, %v4896
      %v4898 = vrot.slane %v4891, %v4897
      %v4899 = vcombine.low %v4263, %v4265
      %v4900 = vcombine.low %v4248, %v4262
      %v4901 = vcombine.low %v4264, %v4266
      %v4902 = vcombine.low %v4290, %v4304
      %v4904 = vunpack.c.l.s4 1966171168
      %v4905 = vunpack.c.0.s8 %v4904
      %v4906 = vlaneseq
      %v4907 = vshrl.u32 %v4906, 7
      %v4908 = vsub.s32 %v4905, %v4907
      %v4909 = vrot.slane %v4899, %v4908
      %v4911 = vunpack.c.l.s4 1966171168
      %v4912 = vunpack.c.0.s8 %v4911
      %v4913 = vlaneseq
      %v4914 = vshrl.u32 %v4913, 7
      %v4915 = vsub.s32 %v4912, %v4914
      %v4916 = vrot.slane %v4900, %v4915
      %v4918 = vunpack.c.l.s4 1966171168
      %v4919 = vunpack.c.0.s8 %v4918
      %v4920 = vlaneseq
      %v4921 = vshrl.u32 %v4920, 7
      %v4922 = vsub.s32 %v4919, %v4921
      %v4923 = vrot.slane %v4901, %v4922
      %v4925 = vunpack.c.l.s4 1966171168
      %v4926 = vunpack.c.0.s8 %v4925
      %v4927 = vlaneseq
      %v4928 = vshrl.u32 %v4927, 7
      %v4929 = vsub.s32 %v4926, %v4928
      %v4930 = vrot.slane %v4902, %v4929
      %v4931 = vcombine.low %v4909, %v4916
      %v4932 = vcombine.low %v4923, %v4930
      %v4934 = vunpack.c.l.s4 1966171168
      %v4935 = vunpack.c.0.s8 %v4934
      %v4936 = vlaneseq
      %v4937 = vshrl.u32 %v4936, 7
      %v4938 = vsub.s32 %v4935, %v4937
      %v4939 = vrot.slane %v4931, %v4938
      %v4941 = vunpack.c.l.s4 1966171168
      %v4942 = vunpack.c.0.s8 %v4941
      %v4943 = vlaneseq
      %v4944 = vshrl.u32 %v4943, 7
      %v4945 = vsub.s32 %v4942, %v4944
      %v4946 = vrot.slane %v4932, %v4945
      %v4947 = vcombine.low %v4939, %v4946
      %v4949 = vunpack.c.l.s4 1966171168
      %v4950 = vunpack.c.0.s8 %v4949
      %v4951 = vlaneseq
      %v4952 = vshrl.u32 %v4951, 7
      %v4953 = vsub.s32 %v4950, %v4952
      %v4954 = vrot.slane %v4312, %v4953
      %v4956 = vunpack.c.l.s4 1966171168
      %v4957 = vunpack.c.0.s8 %v4956
      %v4958 = vlaneseq
      %v4959 = vshrl.u32 %v4958, 7
      %v4960 = vsub.s32 %v4957, %v4959
      %v4961 = vrot.slane %v4954, %v4960
      %v4962 = vcombine.low %v4314, %v4297
      %v4963 = vcombine.low %v4311, %v4313
      %v4964 = vcombine.low %v4315, %v4339
      %v4965 = vcombine.low %v4353, %v4361
      %v4967 = vunpack.c.l.s4 1966171168
      %v4968 = vunpack.c.0.s8 %v4967
      %v4969 = vlaneseq
      %v4970 = vshrl.u32 %v4969, 7
      %v4971 = vsub.s32 %v4968, %v4970
      %v4972 = vrot.slane %v4962, %v4971
      %v4974 = vunpack.c.l.s4 1966171168
      %v4975 = vunpack.c.0.s8 %v4974
      %v4976 = vlaneseq
      %v4977 = vshrl.u32 %v4976, 7
      %v4978 = vsub.s32 %v4975, %v4977
      %v4979 = vrot.slane %v4963, %v4978
      %v4981 = vunpack.c.l.s4 1966171168
      %v4982 = vunpack.c.0.s8 %v4981
      %v4983 = vlaneseq
      %v4984 = vshrl.u32 %v4983, 7
      %v4985 = vsub.s32 %v4982, %v4984
      %v4986 = vrot.slane %v4964, %v4985
      %v4988 = vunpack.c.l.s4 1966171168
      %v4989 = vunpack.c.0.s8 %v4988
      %v4990 = vlaneseq
      %v4991 = vshrl.u32 %v4990, 7
      %v4992 = vsub.s32 %v4989, %v4991
      %v4993 = vrot.slane %v4965, %v4992
      %v4994 = vcombine.low %v4972, %v4979
      %v4995 = vcombine.low %v4986, %v4993
      %v4997 = vunpack.c.l.s4 1966171168
      %v4998 = vunpack.c.0.s8 %v4997
      %v4999 = vlaneseq
      %v5000 = vshrl.u32 %v4999, 7
      %v5001 = vsub.s32 %v4998, %v5000
      %v5002 = vrot.slane %v4994, %v5001
      %v5004 = vunpack.c.l.s4 1966171168
      %v5005 = vunpack.c.0.s8 %v5004
      %v5006 = vlaneseq
      %v5007 = vshrl.u32 %v5006, 7
      %v5008 = vsub.s32 %v5005, %v5007
      %v5009 = vrot.slane %v4995, %v5008
      %v5010 = vcombine.low %v5002, %v5009
      %v5012 = vunpack.c.l.s4 1966171168
      %v5013 = vunpack.c.0.s8 %v5012
      %v5014 = vlaneseq
      %v5015 = vshrl.u32 %v5014, 7
      %v5016 = vsub.s32 %v5013, %v5015
      %v5017 = vrot.slane %v4363, %v5016
      %v5019 = vunpack.c.l.s4 1966171168
      %v5020 = vunpack.c.0.s8 %v5019
      %v5021 = vlaneseq
      %v5022 = vshrl.u32 %v5021, 7
      %v5023 = vsub.s32 %v5020, %v5022
      %v5024 = vrot.slane %v5017, %v5023
      %v5025 = vcombine.low %v4346, %v4360
      %v5026 = vcombine.low %v4362, %v4364
      %v5027 = vcombine.low %v4388, %v4402
      %v5028 = vcombine.low %v4410, %v4412
      %v5030 = vunpack.c.l.s4 1966171168
      %v5031 = vunpack.c.0.s8 %v5030
      %v5032 = vlaneseq
      %v5033 = vshrl.u32 %v5032, 7
      %v5034 = vsub.s32 %v5031, %v5033
      %v5035 = vrot.slane %v5025, %v5034
      %v5037 = vunpack.c.l.s4 1966171168
      %v5038 = vunpack.c.0.s8 %v5037
      %v5039 = vlaneseq
      %v5040 = vshrl.u32 %v5039, 7
      %v5041 = vsub.s32 %v5038, %v5040
      %v5042 = vrot.slane %v5026, %v5041
      %v5044 = vunpack.c.l.s4 1966171168
      %v5045 = vunpack.c.0.s8 %v5044
      %v5046 = vlaneseq
      %v5047 = vshrl.u32 %v5046, 7
      %v5048 = vsub.s32 %v5045, %v5047
      %v5049 = vrot.slane %v5027, %v5048
      %v5051 = vunpack.c.l.s4 1966171168
      %v5052 = vunpack.c.0.s8 %v5051
      %v5053 = vlaneseq
      %v5054 = vshrl.u32 %v5053, 7
      %v5055 = vsub.s32 %v5052, %v5054
      %v5056 = vrot.slane %v5028, %v5055
      %v5057 = vcombine.low %v5035, %v5042
      %v5058 = vcombine.low %v5049, %v5056
      %v5060 = vunpack.c.l.s4 1966171168
      %v5061 = vunpack.c.0.s8 %v5060
      %v5062 = vlaneseq
      %v5063 = vshrl.u32 %v5062, 7
      %v5064 = vsub.s32 %v5061, %v5063
      %v5065 = vrot.slane %v5057, %v5064
      %v5067 = vunpack.c.l.s4 1966171168
      %v5068 = vunpack.c.0.s8 %v5067
      %v5069 = vlaneseq
      %v5070 = vshrl.u32 %v5069, 7
      %v5071 = vsub.s32 %v5068, %v5070
      %v5072 = vrot.slane %v5058, %v5071
      %v5073 = vcombine.low %v5065, %v5072
      %v5075 = vunpack.c.l.s4 1966171168
      %v5076 = vunpack.c.0.s8 %v5075
      %v5077 = vlaneseq
      %v5078 = vshrl.u32 %v5077, 7
      %v5079 = vsub.s32 %v5076, %v5078
      %v5080 = vrot.slane %v4395, %v5079
      %v5082 = vunpack.c.l.s4 1966171168
      %v5083 = vunpack.c.0.s8 %v5082
      %v5084 = vlaneseq
      %v5085 = vshrl.u32 %v5084, 7
      %v5086 = vsub.s32 %v5083, %v5085
      %v5087 = vrot.slane %v5080, %v5086
      %v5088 = vcombine.low %v4409, %v4411
      %v5089 = vcombine.low %v4413, %v4437
      %v5090 = vcombine.low %v4451, %v4459
      %v5091 = vcombine.low %v4461, %v4444
      %v5093 = vunpack.c.l.s4 1966171168
      %v5094 = vunpack.c.0.s8 %v5093
      %v5095 = vlaneseq
      %v5096 = vshrl.u32 %v5095, 7
      %v5097 = vsub.s32 %v5094, %v5096
      %v5098 = vrot.slane %v5088, %v5097
      %v5100 = vunpack.c.l.s4 1966171168
      %v5101 = vunpack.c.0.s8 %v5100
      %v5102 = vlaneseq
      %v5103 = vshrl.u32 %v5102, 7
      %v5104 = vsub.s32 %v5101, %v5103
      %v5105 = vrot.slane %v5089, %v5104
      %v5107 = vunpack.c.l.s4 1966171168
      %v5108 = vunpack.c.0.s8 %v5107
      %v5109 = vlaneseq
      %v5110 = vshrl.u32 %v5109, 7
      %v5111 = vsub.s32 %v5108, %v5110
      %v5112 = vrot.slane %v5090, %v5111
      %v5114 = vunpack.c.l.s4 1966171168
      %v5115 = vunpack.c.0.s8 %v5114
      %v5116 = vlaneseq
      %v5117 = vshrl.u32 %v5116, 7
      %v5118 = vsub.s32 %v5115, %v5117
      %v5119 = vrot.slane %v5091, %v5118
      %v5120 = vcombine.low %v5098, %v5105
      %v5121 = vcombine.low %v5112, %v5119
      %v5123 = vunpack.c.l.s4 1966171168
      %v5124 = vunpack.c.0.s8 %v5123
      %v5125 = vlaneseq
      %v5126 = vshrl.u32 %v5125, 7
      %v5127 = vsub.s32 %v5124, %v5126
      %v5128 = vrot.slane %v5120, %v5127
      %v5130 = vunpack.c.l.s4 1966171168
      %v5131 = vunpack.c.0.s8 %v5130
      %v5132 = vlaneseq
      %v5133 = vshrl.u32 %v5132, 7
      %v5134 = vsub.s32 %v5131, %v5133
      %v5135 = vrot.slane %v5121, %v5134
      %v5136 = vcombine.low %v5128, %v5135
      %v5138 = vunpack.c.l.s4 1966171168
      %v5139 = vunpack.c.0.s8 %v5138
      %v5140 = vlaneseq
      %v5141 = vshrl.u32 %v5140, 7
      %v5142 = vsub.s32 %v5139, %v5141
      %v5143 = vrot.slane %v4458, %v5142
      %v5145 = vunpack.c.l.s4 1966171168
      %v5146 = vunpack.c.0.s8 %v5145
      %v5147 = vlaneseq
      %v5148 = vshrl.u32 %v5147, 7
      %v5149 = vsub.s32 %v5146, %v5148
      %v5150 = vrot.slane %v5143, %v5149
      %v5151 = vcombine.low %v4460, %v4462
      %v5152 = vcombine.low %v4486, %v4500
      %v5153 = vcombine.low %v4508, %v4510
      %v5154 = vcombine.low %v4493, %v4507
      %v5156 = vunpack.c.l.s4 1966171168
      %v5157 = vunpack.c.0.s8 %v5156
      %v5158 = vlaneseq
      %v5159 = vshrl.u32 %v5158, 7
      %v5160 = vsub.s32 %v5157, %v5159
      %v5161 = vrot.slane %v5151, %v5160
      %v5163 = vunpack.c.l.s4 1966171168
      %v5164 = vunpack.c.0.s8 %v5163
      %v5165 = vlaneseq
      %v5166 = vshrl.u32 %v5165, 7
      %v5167 = vsub.s32 %v5164, %v5166
      %v5168 = vrot.slane %v5152, %v5167
      %v5170 = vunpack.c.l.s4 1966171168
      %v5171 = vunpack.c.0.s8 %v5170
      %v5172 = vlaneseq
      %v5173 = vshrl.u32 %v5172, 7
      %v5174 = vsub.s32 %v5171, %v5173
      %v5175 = vrot.slane %v5153, %v5174
      %v5177 = vunpack.c.l.s4 1966171168
      %v5178 = vunpack.c.0.s8 %v5177
      %v5179 = vlaneseq
      %v5180 = vshrl.u32 %v5179, 7
      %v5181 = vsub.s32 %v5178, %v5180
      %v5182 = vrot.slane %v5154, %v5181
      %v5183 = vcombine.low %v5161, %v5168
      %v5184 = vcombine.low %v5175, %v5182
      %v5186 = vunpack.c.l.s4 1966171168
      %v5187 = vunpack.c.0.s8 %v5186
      %v5188 = vlaneseq
      %v5189 = vshrl.u32 %v5188, 7
      %v5190 = vsub.s32 %v5187, %v5189
      %v5191 = vrot.slane %v5183, %v5190
      %v5193 = vunpack.c.l.s4 1966171168
      %v5194 = vunpack.c.0.s8 %v5193
      %v5195 = vlaneseq
      %v5196 = vshrl.u32 %v5195, 7
      %v5197 = vsub.s32 %v5194, %v5196
      %v5198 = vrot.slane %v5184, %v5197
      %v5199 = vcombine.low %v5191, %v5198
      %v5201 = vunpack.c.l.s4 1966171168
      %v5202 = vunpack.c.0.s8 %v5201
      %v5203 = vlaneseq
      %v5204 = vshrl.u32 %v5203, 7
      %v5205 = vsub.s32 %v5202, %v5204
      %v5206 = vrot.slane %v4509, %v5205
      %v5208 = vunpack.c.l.s4 1966171168
      %v5209 = vunpack.c.0.s8 %v5208
      %v5210 = vlaneseq
      %v5211 = vshrl.u32 %v5210, 7
      %v5212 = vsub.s32 %v5209, %v5211
      %v5213 = vrot.slane %v5206, %v5212
      %v5214 = vcombine.low %v4511, %v4535
      %v5215 = vcombine.low %v4549, %v4557
      %v5216 = vcombine.low %v4559, %v4542
      %v5217 = vcombine.low %v4556, %v4558
      %v5219 = vunpack.c.l.s4 1966171168
      %v5220 = vunpack.c.0.s8 %v5219
      %v5221 = vlaneseq
      %v5222 = vshrl.u32 %v5221, 7
      %v5223 = vsub.s32 %v5220, %v5222
      %v5224 = vrot.slane %v5214, %v5223
      %v5226 = vunpack.c.l.s4 1966171168
      %v5227 = vunpack.c.0.s8 %v5226
      %v5228 = vlaneseq
      %v5229 = vshrl.u32 %v5228, 7
      %v5230 = vsub.s32 %v5227, %v5229
      %v5231 = vrot.slane %v5215, %v5230
      %v5233 = vunpack.c.l.s4 1966171168
      %v5234 = vunpack.c.0.s8 %v5233
      %v5235 = vlaneseq
      %v5236 = vshrl.u32 %v5235, 7
      %v5237 = vsub.s32 %v5234, %v5236
      %v5238 = vrot.slane %v5216, %v5237
      %v5240 = vunpack.c.l.s4 1966171168
      %v5241 = vunpack.c.0.s8 %v5240
      %v5242 = vlaneseq
      %v5243 = vshrl.u32 %v5242, 7
      %v5244 = vsub.s32 %v5241, %v5243
      %v5245 = vrot.slane %v5217, %v5244
      %v5246 = vcombine.low %v5224, %v5231
      %v5247 = vcombine.low %v5238, %v5245
      %v5249 = vunpack.c.l.s4 1966171168
      %v5250 = vunpack.c.0.s8 %v5249
      %v5251 = vlaneseq
      %v5252 = vshrl.u32 %v5251, 7
      %v5253 = vsub.s32 %v5250, %v5252
      %v5254 = vrot.slane %v5246, %v5253
      %v5256 = vunpack.c.l.s4 1966171168
      %v5257 = vunpack.c.0.s8 %v5256
      %v5258 = vlaneseq
      %v5259 = vshrl.u32 %v5258, 7
      %v5260 = vsub.s32 %v5257, %v5259
      %v5261 = vrot.slane %v5247, %v5260
      %v5262 = vcombine.low %v5254, %v5261
      %v5264 = vunpack.c.l.s4 1966171168
      %v5265 = vunpack.c.0.s8 %v5264
      %v5266 = vlaneseq
      %v5267 = vshrl.u32 %v5266, 7
      %v5268 = vsub.s32 %v5265, %v5267
      %v5269 = vrot.slane %v4560, %v5268
      %v5271 = vunpack.c.l.s4 1966171168
      %v5272 = vunpack.c.0.s8 %v5271
      %v5273 = vlaneseq
      %v5274 = vshrl.u32 %v5273, 7
      %v5275 = vsub.s32 %v5272, %v5274
      %v5276 = vrot.slane %v5269, %v5275
      %v5277 = vcombine.low %v4584, %v4598
      %v5278 = vcombine.low %v4606, %v4608
      %v5279 = vcombine.low %v4591, %v4605
      %v5280 = vcombine.low %v4607, %v4609
      %v5282 = vunpack.c.l.s4 1966171168
      %v5283 = vunpack.c.0.s8 %v5282
      %v5284 = vlaneseq
      %v5285 = vshrl.u32 %v5284, 7
      %v5286 = vsub.s32 %v5283, %v5285
      %v5287 = vrot.slane %v5277, %v5286
      %v5289 = vunpack.c.l.s4 1966171168
      %v5290 = vunpack.c.0.s8 %v5289
      %v5291 = vlaneseq
      %v5292 = vshrl.u32 %v5291, 7
      %v5293 = vsub.s32 %v5290, %v5292
      %v5294 = vrot.slane %v5278, %v5293
      %v5296 = vunpack.c.l.s4 1966171168
      %v5297 = vunpack.c.0.s8 %v5296
      %v5298 = vlaneseq
      %v5299 = vshrl.u32 %v5298, 7
      %v5300 = vsub.s32 %v5297, %v5299
      %v5301 = vrot.slane %v5279, %v5300
      %v5303 = vunpack.c.l.s4 1966171168
      %v5304 = vunpack.c.0.s8 %v5303
      %v5305 = vlaneseq
      %v5306 = vshrl.u32 %v5305, 7
      %v5307 = vsub.s32 %v5304, %v5306
      %v5308 = vrot.slane %v5280, %v5307
      %v5309 = vcombine.low %v5287, %v5294
      %v5310 = vcombine.low %v5301, %v5308
      %v5312 = vunpack.c.l.s4 1966171168
      %v5313 = vunpack.c.0.s8 %v5312
      %v5314 = vlaneseq
      %v5315 = vshrl.u32 %v5314, 7
      %v5316 = vsub.s32 %v5313, %v5315
      %v5317 = vrot.slane %v5309, %v5316
      %v5319 = vunpack.c.l.s4 1966171168
      %v5320 = vunpack.c.0.s8 %v5319
      %v5321 = vlaneseq
      %v5322 = vshrl.u32 %v5321, 7
      %v5323 = vsub.s32 %v5320, %v5322
      %v5324 = vrot.slane %v5310, %v5323
      %v5325 = vcombine.low %v5317, %v5324
      %v5327 = vunpack.c.l.s4 1966171168
      %v5328 = vunpack.c.0.s8 %v5327
      %v5329 = vlaneseq
      %v5330 = vshrl.u32 %v5329, 7
      %v5331 = vsub.s32 %v5328, %v5330
      %v5332 = vrot.slane %v4633, %v5331
      %v5334 = vunpack.c.l.s4 1966171168
      %v5335 = vunpack.c.0.s8 %v5334
      %v5336 = vlaneseq
      %v5337 = vshrl.u32 %v5336, 7
      %v5338 = vsub.s32 %v5335, %v5337
      %v5339 = vrot.slane %v5332, %v5338
      %v5340 = vcombine.low %v4647, %v4655
      %v5341 = vcombine.low %v4657, %v4640
      %v5342 = vcombine.low %v4654, %v4656
      %v5343 = vcombine.low %v4658, %v4673
      %v5345 = vunpack.c.l.s4 1966171168
      %v5346 = vunpack.c.0.s8 %v5345
      %v5347 = vlaneseq
      %v5348 = vshrl.u32 %v5347, 7
      %v5349 = vsub.s32 %v5346, %v5348
      %v5350 = vrot.slane %v5340, %v5349
      %v5352 = vunpack.c.l.s4 1966171168
      %v5353 = vunpack.c.0.s8 %v5352
      %v5354 = vlaneseq
      %v5355 = vshrl.u32 %v5354, 7
      %v5356 = vsub.s32 %v5353, %v5355
      %v5357 = vrot.slane %v5341, %v5356
      %v5359 = vunpack.c.l.s4 1966171168
      %v5360 = vunpack.c.0.s8 %v5359
      %v5361 = vlaneseq
      %v5362 = vshrl.u32 %v5361, 7
      %v5363 = vsub.s32 %v5360, %v5362
      %v5364 = vrot.slane %v5342, %v5363
      %v5366 = vunpack.c.l.s4 1966171168
      %v5367 = vunpack.c.0.s8 %v5366
      %v5368 = vlaneseq
      %v5369 = vshrl.u32 %v5368, 7
      %v5370 = vsub.s32 %v5367, %v5369
      %v5371 = vrot.slane %v5343, %v5370
      %v5372 = vcombine.low %v5350, %v5357
      %v5373 = vcombine.low %v5364, %v5371
      %v5375 = vunpack.c.l.s4 1966171168
      %v5376 = vunpack.c.0.s8 %v5375
      %v5377 = vlaneseq
      %v5378 = vshrl.u32 %v5377, 7
      %v5379 = vsub.s32 %v5376, %v5378
      %v5380 = vrot.slane %v5372, %v5379
      %v5382 = vunpack.c.l.s4 1966171168
      %v5383 = vunpack.c.0.s8 %v5382
      %v5384 = vlaneseq
      %v5385 = vshrl.u32 %v5384, 7
      %v5386 = vsub.s32 %v5383, %v5385
      %v5387 = vrot.slane %v5373, %v5386
      %v5388 = vcombine.low %v5380, %v5387
      %v5390 = vunpack.c.l.s4 1966171168
      %v5391 = vunpack.c.0.s8 %v5390
      %v5392 = vlaneseq
      %v5393 = vshrl.u32 %v5392, 7
      %v5394 = vsub.s32 %v5391, %v5393
      %v5395 = vrot.slane %v4680, %v5394
      %v5397 = vunpack.c.l.s4 1966171168
      %v5398 = vunpack.c.0.s8 %v5397
      %v5399 = vlaneseq
      %v5400 = vshrl.u32 %v5399, 7
      %v5401 = vsub.s32 %v5398, %v5400
      %v5402 = vrot.slane %v5395, %v5401
      %v5423 = vsel %vm4753, %v4821, 0.0
      %v5424 = vsel %vm4754, %v4835, 0.0
      %v5425 = vsel %vm4755, %v4884, 0.0
      %v5426 = vsel %vm4756, %v4898, 0.0
      %v5427 = vsel %vm4757, %v4947, 0.0
      %v5428 = vsel %vm4758, %v4961, 0.0
      %v5429 = vsel %vm4759, %v5010, 0.0
      %v5430 = vsel %vm4760, %v5024, 0.0
      %v5431 = vsel %vm4761, %v5073, 0.0
      %v5432 = vsel %vm4762, %v5087, 0.0
      %v5433 = vsel %vm4763, %v5136, 0.0
      %v5434 = vsel %vm4764, %v5150, 0.0
      %v5435 = vsel %vm4765, %v5199, 0.0
      %v5436 = vsel %vm4766, %v5213, 0.0
      %v5437 = vsel %vm4767, %v5262, 0.0
      %v5438 = vsel %vm4768, %v5276, 0.0
      %v5439 = vsel %vm4769, %v5325, 0.0
      %v5440 = vsel %vm4770, %v5339, 0.0
      %v5441 = vsel %vm4771, %v5388, 0.0
      %v5442 = vsel %vm4772, %v5402, 0.0
      %v5443 = vpack.c.bf16 %v5424, %v5423
      %v5444 = vpack.c.bf16 %v5426, %v5425
      %v5445 = vpack.c.bf16 %v5428, %v5427
      %v5446 = vpack.c.bf16 %v5430, %v5429
      %v5447 = vpack.c.bf16 %v5432, %v5431
      %v5448 = vpack.c.bf16 %v5434, %v5433
      %v5449 = vpack.c.bf16 %v5436, %v5435
      %v5450 = vpack.c.bf16 %v5438, %v5437
      %v5451 = vpack.c.bf16 %v5440, %v5439
      %v5452 = vpack.c.bf16 %v5442, %v5441
      %5453 = vrot.lane.b32.xlu0 %v1914, 124
      %v5454 = vpop.permute.xlu0 %5453
      %5455 = vrot.lane.b32.xlu0 %v1963, 124
      %v5456 = vpop.permute.xlu0 %5455
      %5457 = vrot.lane.b32.xlu0 %v2012, 124
      %v5458 = vpop.permute.xlu0 %5457
      %5459 = vrot.lane.b32.xlu0 %v2061, 124
      %v5460 = vpop.permute.xlu0 %5459
      %5461 = vrot.lane.b32.xlu0 %v2110, 124
      %v5462 = vpop.permute.xlu0 %5461
      %5463 = vrot.lane.b32.xlu0 %v2149, 124
      %v5464 = vpop.permute.xlu0 %5463
      %5465 = vrot.lane.b32.xlu0 %v2243, 4
      %v5466 = vpop.permute.xlu0 %5465
      %5467 = vrot.lane.b32.xlu0 %v2292, 4
      %v5468 = vpop.permute.xlu0 %5467
      %5469 = vrot.lane.b32.xlu0 %v2341, 4
      %v5470 = vpop.permute.xlu0 %5469
      %5471 = vrot.lane.b32.xlu0 %v2390, 4
      %v5472 = vpop.permute.xlu0 %5471
      %5473 = vrot.lane.b32.xlu0 %v2439, 4
      %v5474 = vpop.permute.xlu0 %5473
      %5475 = vrot.lane.b32.xlu0 %v2478, 4
      %v5476 = vpop.permute.xlu0 %5475
      %5477 = vrot.lane.b32.xlu0 %v2584, 8
      %v5478 = vpop.permute.xlu0 %5477
      %5479 = vrot.lane.b32.xlu0 %v2633, 8
      %v5480 = vpop.permute.xlu0 %5479
      %5481 = vrot.lane.b32.xlu0 %v2682, 8
      %v5482 = vpop.permute.xlu0 %5481
      %5483 = vrot.lane.b32.xlu0 %v2731, 8
      %v5484 = vpop.permute.xlu0 %5483
      %5485 = vrot.lane.b32.xlu0 %v2780, 8
      %v5486 = vpop.permute.xlu0 %5485
      %5487 = vrot.lane.b32.xlu0 %v2819, 8
      %v5488 = vpop.permute.xlu0 %5487
      %5489 = vrot.lane.b32.xlu0 %v2925, 16
      %v5490 = vpop.permute.xlu0 %5489
      %5491 = vrot.lane.b32.xlu0 %v2974, 16
      %v5492 = vpop.permute.xlu0 %5491
      %5493 = vrot.lane.b32.xlu0 %v3023, 16
      %v5494 = vpop.permute.xlu0 %5493
      %5495 = vrot.lane.b32.xlu0 %v3072, 16
      %v5496 = vpop.permute.xlu0 %5495
      %5497 = vrot.lane.b32.xlu0 %v3121, 16
      %v5498 = vpop.permute.xlu0 %5497
      %5499 = vrot.lane.b32.xlu0 %v3160, 16
      %v5500 = vpop.permute.xlu0 %5499
      %5501 = vrot.lane.b32.xlu0 %v3266, 20
      %v5502 = vpop.permute.xlu0 %5501
      %5503 = vrot.lane.b32.xlu0 %v3315, 20
      %v5504 = vpop.permute.xlu0 %5503
      %5505 = vrot.lane.b32.xlu0 %v3364, 20
      %v5506 = vpop.permute.xlu0 %5505
      %5507 = vrot.lane.b32.xlu0 %v3413, 20
      %v5508 = vpop.permute.xlu0 %5507
      %5509 = vrot.lane.b32.xlu0 %v3462, 20
      %v5510 = vpop.permute.xlu0 %5509
      %5511 = vrot.lane.b32.xlu0 %v3501, 20
      %v5512 = vpop.permute.xlu0 %5511
      %5513 = vrot.lane.b32.xlu0 %v3607, 28
      %v5514 = vpop.permute.xlu0 %5513
      %5515 = vrot.lane.b32.xlu0 %v3656, 28
      %v5516 = vpop.permute.xlu0 %5515
      %5517 = vrot.lane.b32.xlu0 %v3705, 28
      %v5518 = vpop.permute.xlu0 %5517
      %5519 = vrot.lane.b32.xlu0 %v3754, 28
      %v5520 = vpop.permute.xlu0 %5519
      %5521 = vrot.lane.b32.xlu0 %v3803, 28
      %v5522 = vpop.permute.xlu0 %5521
      %5523 = vrot.lane.b32.xlu0 %v3842, 28
      %v5524 = vpop.permute.xlu0 %5523
      %v5527 = vsel %vm3855, %v5454, %v5466
      %v5530 = vsel %vm3855, %v5456, %v5468
      %v5533 = vsel %vm3855, %v5458, %v5470
      %v5536 = vsel %vm3855, %v5460, %v5472
      %v5539 = vsel %vm3855, %v5462, %v5474
      %v5542 = vsel %vm3855, %v5464, %v5476
      %v5543 = vsel %vm3868, %v5527, %v5466
      %v5544 = vsel %vm3868, %v5530, %v5468
      %v5545 = vsel %vm3868, %v5533, %v5470
      %v5546 = vsel %vm3868, %v5536, %v5472
      %v5547 = vsel %vm3868, %v5539, %v5474
      %v5548 = vsel %vm3868, %v5542, %v5476
      %v5550 = vsel %vm3881, %v5543, %v5478
      %v5552 = vsel %vm3881, %v5544, %v5480
      %v5554 = vsel %vm3881, %v5545, %v5482
      %v5556 = vsel %vm3881, %v5546, %v5484
      %v5558 = vsel %vm3881, %v5547, %v5486
      %v5560 = vsel %vm3881, %v5548, %v5488
      %v5562 = vsel %vm3894, %v5550, %v5490
      %v5564 = vsel %vm3894, %v5552, %v5492
      %v5566 = vsel %vm3894, %v5554, %v5494
      %v5568 = vsel %vm3894, %v5556, %v5496
      %v5570 = vsel %vm3894, %v5558, %v5498
      %v5572 = vsel %vm3894, %v5560, %v5500
      %v5573 = vsel %vm3901, %v5562, %v5490
      %v5574 = vsel %vm3901, %v5564, %v5492
      %v5575 = vsel %vm3901, %v5566, %v5494
      %v5576 = vsel %vm3901, %v5568, %v5496
      %v5577 = vsel %vm3901, %v5570, %v5498
      %v5578 = vsel %vm3901, %v5572, %v5500
      %v5580 = vsel %vm3914, %v5573, %v5502
      %v5582 = vsel %vm3914, %v5574, %v5504
      %v5584 = vsel %vm3914, %v5575, %v5506
      %v5586 = vsel %vm3914, %v5576, %v5508
      %v5588 = vsel %vm3914, %v5577, %v5510
      %v5590 = vsel %vm3914, %v5578, %v5512
      %v5592 = vsel %vm3927, %v5580, %v5514
      %v5594 = vsel %vm3927, %v5582, %v5516
      %v5596 = vsel %vm3927, %v5584, %v5518
      %v5598 = vsel %vm3927, %v5586, %v5520
      %v5600 = vsel %vm3927, %v5588, %v5522
      %v5602 = vsel %vm3927, %v5590, %v5524
      %v5603 = vsel %vm3934, %v5592, %v5514
      %v5604 = vsel %vm3934, %v5594, %v5516
      %v5605 = vsel %vm3934, %v5596, %v5518
      %v5606 = vsel %vm3934, %v5598, %v5520
      %v5607 = vsel %vm3934, %v5600, %v5522
      %v5608 = vsel %vm3934, %v5602, %v5524
      %v5609 = vsel %vm3974, %v5603, 0
      %v5611 = vsel %vm3974, %v5604, 0
      %v5613 = vsel %vm3974, %v5605, 0
      %v5615 = vsel %vm3974, %v5606, 0
      %v5617 = vsel %vm3974, %v5607, 0
      %v5619 = vsel %vm3974, %v5608, 0
      %5621 = vmatprep.subr.bf16.mxu0 0
      %5622 = vmatpush1.bf16.msra.mxu0 0
      %5623 = vmatprep.subr.bf16.mxu0 0
      %5624 = vmatpush1.bf16.msra.mxu0 0
      %5625 = vmatprep.subr.bf16.mxu0 0
      %5626 = vmatpush1.bf16.msra.mxu0 0
      %5627 = vmatprep.subr.bf16.mxu0 0
      %5628 = vmatpush1.bf16.msra.mxu0 0
      %5629 = vmatprep.subr.bf16.mxu0 0
      %5630 = vmatpush1.bf16.msra.mxu0 0
      %5631 = vmatprep.subr.bf16.mxu0 0
      %5632 = vmatpush1.bf16.msra.mxu0 %v3989
      %5633 = vmatprep.subr.bf16.mxu0 0
      %5634 = vmatpush1.bf16.msra.mxu0 %v3970
      %5635 = vmatprep.subr.bf16.mxu0 0
      %5636 = vmatpush1.bf16.msra.mxu0 %v3969
      %5637 = vmatprep.subr.bf16.mxu0 0
      %5638 = vmatpush2.bf16.msra.mxu0 0
      %5639 = vmatprep.subr.bf16.mxu0 0
      %5640 = vmatpush2.bf16.msra.mxu0 0
      %5641 = vmatprep.subr.bf16.mxu0 0
      %5642 = vmatpush2.bf16.msra.mxu0 0
      %5643 = vmatprep.subr.bf16.mxu0 0
      %5644 = vmatpush2.bf16.msra.mxu0 0
      %5645 = vmatprep.subr.bf16.mxu0 0
      %5646 = vmatpush2.bf16.msra.mxu0 0
      %5647 = vmatprep.subr.bf16.mxu0 0
      %5648 = vmatpush2.bf16.msra.mxu0 0
      %5649 = vmatprep.subr.bf16.mxu0 0
      %5650 = vmatpush2.bf16.msra.mxu0 0
      %5651 = vmatprep.subr.bf16.mxu0 0
      %5652 = vmatpush2.bf16.msra.mxu0 0
      %5653 = vmatprep.mubr.bf16.mxu0 0
      %5654 = vmatmul.mubr.bf16.gmra.mxu0 %v5609
      %v5655 = vpop.f32.mrf.mxu0
      %v5656 = vadd.f32 %v3957, %v5655
      %v5657 = vpop.f32.mrf.mxu0
      %v5658 = vpop.f32.mrf.mxu0
      %v5659 = vadd.f32 %v3957, %v5658
      %v5660 = vpop.f32.mrf.mxu0
      %5661 = vmatprep.mubr.bf16.mxu0 0
      %5662 = vmatmul.mubr.bf16.gmra.mxu0 %v5611
      %v5663 = vpop.f32.mrf.mxu0
      %v5664 = vadd.f32 %v3957, %v5663
      %v5665 = vpop.f32.mrf.mxu0
      %v5666 = vpop.f32.mrf.mxu0
      %v5667 = vadd.f32 %v3957, %v5666
      %v5668 = vpop.f32.mrf.mxu0
      %5669 = vmatprep.mubr.bf16.mxu0 0
      %5670 = vmatmul.mubr.bf16.gmra.mxu0 %v5613
      %v5671 = vpop.f32.mrf.mxu0
      %v5672 = vadd.f32 %v3957, %v5671
      %v5673 = vpop.f32.mrf.mxu0
      %v5674 = vpop.f32.mrf.mxu0
      %v5675 = vadd.f32 %v3957, %v5674
      %v5676 = vpop.f32.mrf.mxu0
      %5677 = vmatprep.mubr.bf16.mxu0 0
      %5678 = vmatmul.mubr.bf16.gmra.mxu0 %v5615
      %v5679 = vpop.f32.mrf.mxu0
      %v5680 = vadd.f32 %v3957, %v5679
      %v5681 = vpop.f32.mrf.mxu0
      %v5682 = vpop.f32.mrf.mxu0
      %v5683 = vadd.f32 %v3957, %v5682
      %v5684 = vpop.f32.mrf.mxu0
      %5685 = vmatprep.mubr.bf16.mxu0 0
      %5686 = vmatmul.mubr.bf16.gmra.mxu0 %v5617
      %v5687 = vpop.f32.mrf.mxu0
      %v5688 = vadd.f32 %v3957, %v5687
      %v5689 = vpop.f32.mrf.mxu0
      %v5690 = vpop.f32.mrf.mxu0
      %v5691 = vadd.f32 %v3957, %v5690
      %v5692 = vpop.f32.mrf.mxu0
      %5693 = vmatprep.mubr.bf16.mxu0 0
      %5694 = vmatmul.mubr.bf16.gmra.mxu0 %v5619
      %v5695 = vpop.f32.mrf.mxu0
      %v5696 = vadd.f32 %v3957, %v5695
      %v5697 = vpop.f32.mrf.mxu0
      %v5698 = vpop.f32.mrf.mxu0
      %v5699 = vadd.f32 %v3957, %v5698
      %v5700 = vpop.f32.mrf.mxu0
      %5701 = vdwg.mxu0
      %vm5702 = vcmp.ge.f32.partialorder %v5656, 0.0
      %vm5703 = vcmp.ge.f32.partialorder %v5659, 0.0
      %vm5704 = vcmp.ge.f32.partialorder %v5664, 0.0
      %vm5705 = vcmp.ge.f32.partialorder %v5667, 0.0
      %vm5706 = vcmp.ge.f32.partialorder %v5672, 0.0
      %vm5707 = vcmp.ge.f32.partialorder %v5675, 0.0
      %vm5708 = vcmp.ge.f32.partialorder %v5680, 0.0
      %vm5709 = vcmp.ge.f32.partialorder %v5683, 0.0
      %vm5710 = vcmp.ge.f32.partialorder %v5688, 0.0
      %vm5711 = vcmp.ge.f32.partialorder %v5691, 0.0
      %vm5712 = vcmp.ge.f32.partialorder %v5696, 0.0
      %vm5713 = vcmp.ge.f32.partialorder %v5699, 0.0
      %v5714 = vmul.f32 %v5656, 0.2
      %v5715 = vmul.f32 %v5659, 0.2
      %v5716 = vmul.f32 %v5664, 0.2
      %v5717 = vmul.f32 %v5667, 0.2
      %v5718 = vmul.f32 %v5672, 0.2
      %v5719 = vmul.f32 %v5675, 0.2
      %v5720 = vmul.f32 %v5680, 0.2
      %v5721 = vmul.f32 %v5683, 0.2
      %v5722 = vmul.f32 %v5688, 0.2
      %v5723 = vmul.f32 %v5691, 0.2
      %v5724 = vmul.f32 %v5696, 0.2
      %v5725 = vmul.f32 %v5699, 0.2
      %v5726 = vsel %vm5702, %v5656, %v5714
      %v5727 = vsel %vm5703, %v5659, %v5715
      %v5728 = vsel %vm5704, %v5664, %v5716
      %v5729 = vsel %vm5705, %v5667, %v5717
      %v5730 = vsel %vm5706, %v5672, %v5718
      %v5731 = vsel %vm5707, %v5675, %v5719
      %v5732 = vsel %vm5708, %v5680, %v5720
      %v5733 = vsel %vm5709, %v5683, %v5721
      %v5734 = vsel %vm5710, %v5688, %v5722
      %v5735 = vsel %vm5711, %v5691, %v5723
      %v5736 = vsel %vm5712, %v5696, %v5724
      %v5737 = vsel %vm5713, %v5699, %v5725
      %v5750 = vcombine.high %v5726, %v5726
      %v5752 = vunpack.c.l.s4 1966171168
      %v5753 = vunpack.c.0.s8 %v5752
      %v5754 = vlaneseq
      %v5755 = vshrl.u32 %v5754, 7
      %v5756 = vsub.s32 %v5753, %v5755
      %v5757 = vrot.slane %v5726, %v5756
      %v5759 = vunpack.c.l.s4 1966171168
      %v5760 = vunpack.c.0.s8 %v5759
      %v5761 = vlaneseq
      %v5762 = vshrl.u32 %v5761, 7
      %v5763 = vsub.s32 %v5760, %v5762
      %v5764 = vrot.slane %v5750, %v5763
      %v5765 = vcombine.high %v5757, %v5757
      %v5766 = vcombine.high %v5764, %v5764
      %v5768 = vunpack.c.l.s4 1966171168
      %v5769 = vunpack.c.0.s8 %v5768
      %v5770 = vlaneseq
      %v5771 = vshrl.u32 %v5770, 7
      %v5772 = vsub.s32 %v5769, %v5771
      %v5773 = vrot.slane %v5757, %v5772
      %v5775 = vunpack.c.l.s4 1966171168
      %v5776 = vunpack.c.0.s8 %v5775
      %v5777 = vlaneseq
      %v5778 = vshrl.u32 %v5777, 7
      %v5779 = vsub.s32 %v5776, %v5778
      %v5780 = vrot.slane %v5764, %v5779
      %v5782 = vunpack.c.l.s4 1966171168
      %v5783 = vunpack.c.0.s8 %v5782
      %v5784 = vlaneseq
      %v5785 = vshrl.u32 %v5784, 7
      %v5786 = vsub.s32 %v5783, %v5785
      %v5787 = vrot.slane %v5765, %v5786
      %v5789 = vunpack.c.l.s4 1966171168
      %v5790 = vunpack.c.0.s8 %v5789
      %v5791 = vlaneseq
      %v5792 = vshrl.u32 %v5791, 7
      %v5793 = vsub.s32 %v5790, %v5792
      %v5794 = vrot.slane %v5766, %v5793
      %v5795 = vcombine.high %v5773, %v5773
      %v5796 = vcombine.high %v5780, %v5780
      %v5797 = vcombine.high %v5787, %v5787
      %v5798 = vcombine.high %v5794, %v5794
      %v5799 = vcombine.high %v5727, %v5727
      %v5801 = vunpack.c.l.s4 1966171168
      %v5802 = vunpack.c.0.s8 %v5801
      %v5803 = vlaneseq
      %v5804 = vshrl.u32 %v5803, 7
      %v5805 = vsub.s32 %v5802, %v5804
      %v5806 = vrot.slane %v5727, %v5805
      %v5808 = vunpack.c.l.s4 1966171168
      %v5809 = vunpack.c.0.s8 %v5808
      %v5810 = vlaneseq
      %v5811 = vshrl.u32 %v5810, 7
      %v5812 = vsub.s32 %v5809, %v5811
      %v5813 = vrot.slane %v5799, %v5812
      %v5814 = vcombine.high %v5806, %v5806
      %v5815 = vcombine.high %v5813, %v5813
      %v5817 = vunpack.c.l.s4 1966171168
      %v5818 = vunpack.c.0.s8 %v5817
      %v5819 = vlaneseq
      %v5820 = vshrl.u32 %v5819, 7
      %v5821 = vsub.s32 %v5818, %v5820
      %v5822 = vrot.slane %v5806, %v5821
      %v5824 = vunpack.c.l.s4 1966171168
      %v5825 = vunpack.c.0.s8 %v5824
      %v5826 = vlaneseq
      %v5827 = vshrl.u32 %v5826, 7
      %v5828 = vsub.s32 %v5825, %v5827
      %v5829 = vrot.slane %v5813, %v5828
      %v5831 = vunpack.c.l.s4 1966171168
      %v5832 = vunpack.c.0.s8 %v5831
      %v5833 = vlaneseq
      %v5834 = vshrl.u32 %v5833, 7
      %v5835 = vsub.s32 %v5832, %v5834
      %v5836 = vrot.slane %v5814, %v5835
      %v5838 = vunpack.c.l.s4 1966171168
      %v5839 = vunpack.c.0.s8 %v5838
      %v5840 = vlaneseq
      %v5841 = vshrl.u32 %v5840, 7
      %v5842 = vsub.s32 %v5839, %v5841
      %v5843 = vrot.slane %v5815, %v5842
      %v5844 = vcombine.high %v5822, %v5822
      %v5845 = vcombine.high %v5829, %v5829
      %v5846 = vcombine.high %v5836, %v5836
      %v5847 = vcombine.high %v5843, %v5843
      %v5848 = vcombine.high %v5728, %v5728
      %v5850 = vunpack.c.l.s4 1966171168
      %v5851 = vunpack.c.0.s8 %v5850
      %v5852 = vlaneseq
      %v5853 = vshrl.u32 %v5852, 7
      %v5854 = vsub.s32 %v5851, %v5853
      %v5855 = vrot.slane %v5728, %v5854
      %v5857 = vunpack.c.l.s4 1966171168
      %v5858 = vunpack.c.0.s8 %v5857
      %v5859 = vlaneseq
      %v5860 = vshrl.u32 %v5859, 7
      %v5861 = vsub.s32 %v5858, %v5860
      %v5862 = vrot.slane %v5848, %v5861
      %v5863 = vcombine.high %v5855, %v5855
      %v5864 = vcombine.high %v5862, %v5862
      %v5866 = vunpack.c.l.s4 1966171168
      %v5867 = vunpack.c.0.s8 %v5866
      %v5868 = vlaneseq
      %v5869 = vshrl.u32 %v5868, 7
      %v5870 = vsub.s32 %v5867, %v5869
      %v5871 = vrot.slane %v5855, %v5870
      %v5873 = vunpack.c.l.s4 1966171168
      %v5874 = vunpack.c.0.s8 %v5873
      %v5875 = vlaneseq
      %v5876 = vshrl.u32 %v5875, 7
      %v5877 = vsub.s32 %v5874, %v5876
      %v5878 = vrot.slane %v5862, %v5877
      %v5880 = vunpack.c.l.s4 1966171168
      %v5881 = vunpack.c.0.s8 %v5880
      %v5882 = vlaneseq
      %v5883 = vshrl.u32 %v5882, 7
      %v5884 = vsub.s32 %v5881, %v5883
      %v5885 = vrot.slane %v5863, %v5884
      %v5887 = vunpack.c.l.s4 1966171168
      %v5888 = vunpack.c.0.s8 %v5887
      %v5889 = vlaneseq
      %v5890 = vshrl.u32 %v5889, 7
      %v5891 = vsub.s32 %v5888, %v5890
      %v5892 = vrot.slane %v5864, %v5891
      %v5893 = vcombine.high %v5871, %v5871
      %v5894 = vcombine.high %v5878, %v5878
      %v5895 = vcombine.high %v5885, %v5885
      %v5896 = vcombine.high %v5892, %v5892
      %v5897 = vcombine.high %v5729, %v5729
      %v5899 = vunpack.c.l.s4 1966171168
      %v5900 = vunpack.c.0.s8 %v5899
      %v5901 = vlaneseq
      %v5902 = vshrl.u32 %v5901, 7
      %v5903 = vsub.s32 %v5900, %v5902
      %v5904 = vrot.slane %v5729, %v5903
      %v5906 = vunpack.c.l.s4 1966171168
      %v5907 = vunpack.c.0.s8 %v5906
      %v5908 = vlaneseq
      %v5909 = vshrl.u32 %v5908, 7
      %v5910 = vsub.s32 %v5907, %v5909
      %v5911 = vrot.slane %v5897, %v5910
      %v5912 = vcombine.high %v5904, %v5904
      %v5913 = vcombine.high %v5911, %v5911
      %v5915 = vunpack.c.l.s4 1966171168
      %v5916 = vunpack.c.0.s8 %v5915
      %v5917 = vlaneseq
      %v5918 = vshrl.u32 %v5917, 7
      %v5919 = vsub.s32 %v5916, %v5918
      %v5920 = vrot.slane %v5904, %v5919
      %v5922 = vunpack.c.l.s4 1966171168
      %v5923 = vunpack.c.0.s8 %v5922
      %v5924 = vlaneseq
      %v5925 = vshrl.u32 %v5924, 7
      %v5926 = vsub.s32 %v5923, %v5925
      %v5927 = vrot.slane %v5911, %v5926
      %v5929 = vunpack.c.l.s4 1966171168
      %v5930 = vunpack.c.0.s8 %v5929
      %v5931 = vlaneseq
      %v5932 = vshrl.u32 %v5931, 7
      %v5933 = vsub.s32 %v5930, %v5932
      %v5934 = vrot.slane %v5912, %v5933
      %v5936 = vunpack.c.l.s4 1966171168
      %v5937 = vunpack.c.0.s8 %v5936
      %v5938 = vlaneseq
      %v5939 = vshrl.u32 %v5938, 7
      %v5940 = vsub.s32 %v5937, %v5939
      %v5941 = vrot.slane %v5913, %v5940
      %v5942 = vcombine.high %v5920, %v5920
      %v5943 = vcombine.high %v5927, %v5927
      %v5944 = vcombine.high %v5934, %v5934
      %v5945 = vcombine.high %v5941, %v5941
      %v5946 = vcombine.high %v5730, %v5730
      %v5948 = vunpack.c.l.s4 1966171168
      %v5949 = vunpack.c.0.s8 %v5948
      %v5950 = vlaneseq
      %v5951 = vshrl.u32 %v5950, 7
      %v5952 = vsub.s32 %v5949, %v5951
      %v5953 = vrot.slane %v5730, %v5952
      %v5955 = vunpack.c.l.s4 1966171168
      %v5956 = vunpack.c.0.s8 %v5955
      %v5957 = vlaneseq
      %v5958 = vshrl.u32 %v5957, 7
      %v5959 = vsub.s32 %v5956, %v5958
      %v5960 = vrot.slane %v5946, %v5959
      %v5961 = vcombine.high %v5953, %v5953
      %v5962 = vcombine.high %v5960, %v5960
      %v5964 = vunpack.c.l.s4 1966171168
      %v5965 = vunpack.c.0.s8 %v5964
      %v5966 = vlaneseq
      %v5967 = vshrl.u32 %v5966, 7
      %v5968 = vsub.s32 %v5965, %v5967
      %v5969 = vrot.slane %v5953, %v5968
      %v5971 = vunpack.c.l.s4 1966171168
      %v5972 = vunpack.c.0.s8 %v5971
      %v5973 = vlaneseq
      %v5974 = vshrl.u32 %v5973, 7
      %v5975 = vsub.s32 %v5972, %v5974
      %v5976 = vrot.slane %v5960, %v5975
      %v5978 = vunpack.c.l.s4 1966171168
      %v5979 = vunpack.c.0.s8 %v5978
      %v5980 = vlaneseq
      %v5981 = vshrl.u32 %v5980, 7
      %v5982 = vsub.s32 %v5979, %v5981
      %v5983 = vrot.slane %v5961, %v5982
      %v5985 = vunpack.c.l.s4 1966171168
      %v5986 = vunpack.c.0.s8 %v5985
      %v5987 = vlaneseq
      %v5988 = vshrl.u32 %v5987, 7
      %v5989 = vsub.s32 %v5986, %v5988
      %v5990 = vrot.slane %v5962, %v5989
      %v5991 = vcombine.high %v5969, %v5969
      %v5992 = vcombine.high %v5976, %v5976
      %v5993 = vcombine.high %v5983, %v5983
      %v5994 = vcombine.high %v5990, %v5990
      %v5995 = vcombine.high %v5731, %v5731
      %v5997 = vunpack.c.l.s4 1966171168
      %v5998 = vunpack.c.0.s8 %v5997
      %v5999 = vlaneseq
      %v6000 = vshrl.u32 %v5999, 7
      %v6001 = vsub.s32 %v5998, %v6000
      %v6002 = vrot.slane %v5731, %v6001
      %v6004 = vunpack.c.l.s4 1966171168
      %v6005 = vunpack.c.0.s8 %v6004
      %v6006 = vlaneseq
      %v6007 = vshrl.u32 %v6006, 7
      %v6008 = vsub.s32 %v6005, %v6007
      %v6009 = vrot.slane %v5995, %v6008
      %v6010 = vcombine.high %v6002, %v6002
      %v6011 = vcombine.high %v6009, %v6009
      %v6013 = vunpack.c.l.s4 1966171168
      %v6014 = vunpack.c.0.s8 %v6013
      %v6015 = vlaneseq
      %v6016 = vshrl.u32 %v6015, 7
      %v6017 = vsub.s32 %v6014, %v6016
      %v6018 = vrot.slane %v6002, %v6017
      %v6020 = vunpack.c.l.s4 1966171168
      %v6021 = vunpack.c.0.s8 %v6020
      %v6022 = vlaneseq
      %v6023 = vshrl.u32 %v6022, 7
      %v6024 = vsub.s32 %v6021, %v6023
      %v6025 = vrot.slane %v6009, %v6024
      %v6027 = vunpack.c.l.s4 1966171168
      %v6028 = vunpack.c.0.s8 %v6027
      %v6029 = vlaneseq
      %v6030 = vshrl.u32 %v6029, 7
      %v6031 = vsub.s32 %v6028, %v6030
      %v6032 = vrot.slane %v6010, %v6031
      %v6034 = vunpack.c.l.s4 1966171168
      %v6035 = vunpack.c.0.s8 %v6034
      %v6036 = vlaneseq
      %v6037 = vshrl.u32 %v6036, 7
      %v6038 = vsub.s32 %v6035, %v6037
      %v6039 = vrot.slane %v6011, %v6038
      %v6040 = vcombine.high %v6018, %v6018
      %v6041 = vcombine.high %v6025, %v6025
      %v6042 = vcombine.high %v6032, %v6032
      %v6043 = vcombine.high %v6039, %v6039
      %v6044 = vcombine.high %v5732, %v5732
      %v6046 = vunpack.c.l.s4 1966171168
      %v6047 = vunpack.c.0.s8 %v6046
      %v6048 = vlaneseq
      %v6049 = vshrl.u32 %v6048, 7
      %v6050 = vsub.s32 %v6047, %v6049
      %v6051 = vrot.slane %v5732, %v6050
      %v6053 = vunpack.c.l.s4 1966171168
      %v6054 = vunpack.c.0.s8 %v6053
      %v6055 = vlaneseq
      %v6056 = vshrl.u32 %v6055, 7
      %v6057 = vsub.s32 %v6054, %v6056
      %v6058 = vrot.slane %v6044, %v6057
      %v6059 = vcombine.high %v6051, %v6051
      %v6060 = vcombine.high %v6058, %v6058
      %v6062 = vunpack.c.l.s4 1966171168
      %v6063 = vunpack.c.0.s8 %v6062
      %v6064 = vlaneseq
      %v6065 = vshrl.u32 %v6064, 7
      %v6066 = vsub.s32 %v6063, %v6065
      %v6067 = vrot.slane %v6051, %v6066
      %v6069 = vunpack.c.l.s4 1966171168
      %v6070 = vunpack.c.0.s8 %v6069
      %v6071 = vlaneseq
      %v6072 = vshrl.u32 %v6071, 7
      %v6073 = vsub.s32 %v6070, %v6072
      %v6074 = vrot.slane %v6058, %v6073
      %v6076 = vunpack.c.l.s4 1966171168
      %v6077 = vunpack.c.0.s8 %v6076
      %v6078 = vlaneseq
      %v6079 = vshrl.u32 %v6078, 7
      %v6080 = vsub.s32 %v6077, %v6079
      %v6081 = vrot.slane %v6059, %v6080
      %v6083 = vunpack.c.l.s4 1966171168
      %v6084 = vunpack.c.0.s8 %v6083
      %v6085 = vlaneseq
      %v6086 = vshrl.u32 %v6085, 7
      %v6087 = vsub.s32 %v6084, %v6086
      %v6088 = vrot.slane %v6060, %v6087
      %v6089 = vcombine.high %v6067, %v6067
      %v6090 = vcombine.high %v6074, %v6074
      %v6091 = vcombine.high %v6081, %v6081
      %v6092 = vcombine.high %v6088, %v6088
      %v6093 = vcombine.high %v5733, %v5733
      %v6095 = vunpack.c.l.s4 1966171168
      %v6096 = vunpack.c.0.s8 %v6095
      %v6097 = vlaneseq
      %v6098 = vshrl.u32 %v6097, 7
      %v6099 = vsub.s32 %v6096, %v6098
      %v6100 = vrot.slane %v5733, %v6099
      %v6102 = vunpack.c.l.s4 1966171168
      %v6103 = vunpack.c.0.s8 %v6102
      %v6104 = vlaneseq
      %v6105 = vshrl.u32 %v6104, 7
      %v6106 = vsub.s32 %v6103, %v6105
      %v6107 = vrot.slane %v6093, %v6106
      %v6108 = vcombine.high %v6100, %v6100
      %v6109 = vcombine.high %v6107, %v6107
      %v6111 = vunpack.c.l.s4 1966171168
      %v6112 = vunpack.c.0.s8 %v6111
      %v6113 = vlaneseq
      %v6114 = vshrl.u32 %v6113, 7
      %v6115 = vsub.s32 %v6112, %v6114
      %v6116 = vrot.slane %v6100, %v6115
      %v6118 = vunpack.c.l.s4 1966171168
      %v6119 = vunpack.c.0.s8 %v6118
      %v6120 = vlaneseq
      %v6121 = vshrl.u32 %v6120, 7
      %v6122 = vsub.s32 %v6119, %v6121
      %v6123 = vrot.slane %v6107, %v6122
      %v6125 = vunpack.c.l.s4 1966171168
      %v6126 = vunpack.c.0.s8 %v6125
      %v6127 = vlaneseq
      %v6128 = vshrl.u32 %v6127, 7
      %v6129 = vsub.s32 %v6126, %v6128
      %v6130 = vrot.slane %v6108, %v6129
      %v6132 = vunpack.c.l.s4 1966171168
      %v6133 = vunpack.c.0.s8 %v6132
      %v6134 = vlaneseq
      %v6135 = vshrl.u32 %v6134, 7
      %v6136 = vsub.s32 %v6133, %v6135
      %v6137 = vrot.slane %v6109, %v6136
      %v6138 = vcombine.high %v6116, %v6116
      %v6139 = vcombine.high %v6123, %v6123
      %v6140 = vcombine.high %v6130, %v6130
      %v6141 = vcombine.high %v6137, %v6137
      %v6142 = vcombine.high %v5734, %v5734
      %v6144 = vunpack.c.l.s4 1966171168
      %v6145 = vunpack.c.0.s8 %v6144
      %v6146 = vlaneseq
      %v6147 = vshrl.u32 %v6146, 7
      %v6148 = vsub.s32 %v6145, %v6147
      %v6149 = vrot.slane %v5734, %v6148
      %v6151 = vunpack.c.l.s4 1966171168
      %v6152 = vunpack.c.0.s8 %v6151
      %v6153 = vlaneseq
      %v6154 = vshrl.u32 %v6153, 7
      %v6155 = vsub.s32 %v6152, %v6154
      %v6156 = vrot.slane %v6142, %v6155
      %v6157 = vcombine.high %v6149, %v6149
      %v6158 = vcombine.high %v6156, %v6156
      %v6160 = vunpack.c.l.s4 1966171168
      %v6161 = vunpack.c.0.s8 %v6160
      %v6162 = vlaneseq
      %v6163 = vshrl.u32 %v6162, 7
      %v6164 = vsub.s32 %v6161, %v6163
      %v6165 = vrot.slane %v6149, %v6164
      %v6167 = vunpack.c.l.s4 1966171168
      %v6168 = vunpack.c.0.s8 %v6167
      %v6169 = vlaneseq
      %v6170 = vshrl.u32 %v6169, 7
      %v6171 = vsub.s32 %v6168, %v6170
      %v6172 = vrot.slane %v6156, %v6171
      %v6174 = vunpack.c.l.s4 1966171168
      %v6175 = vunpack.c.0.s8 %v6174
      %v6176 = vlaneseq
      %v6177 = vshrl.u32 %v6176, 7
      %v6178 = vsub.s32 %v6175, %v6177
      %v6179 = vrot.slane %v6157, %v6178
      %v6181 = vunpack.c.l.s4 1966171168
      %v6182 = vunpack.c.0.s8 %v6181
      %v6183 = vlaneseq
      %v6184 = vshrl.u32 %v6183, 7
      %v6185 = vsub.s32 %v6182, %v6184
      %v6186 = vrot.slane %v6158, %v6185
      %v6187 = vcombine.high %v6165, %v6165
      %v6188 = vcombine.high %v6172, %v6172
      %v6189 = vcombine.high %v6179, %v6179
      %v6190 = vcombine.high %v6186, %v6186
      %v6191 = vcombine.high %v5735, %v5735
      %v6193 = vunpack.c.l.s4 1966171168
      %v6194 = vunpack.c.0.s8 %v6193
      %v6195 = vlaneseq
      %v6196 = vshrl.u32 %v6195, 7
      %v6197 = vsub.s32 %v6194, %v6196
      %v6198 = vrot.slane %v5735, %v6197
      %v6200 = vunpack.c.l.s4 1966171168
      %v6201 = vunpack.c.0.s8 %v6200
      %v6202 = vlaneseq
      %v6203 = vshrl.u32 %v6202, 7
      %v6204 = vsub.s32 %v6201, %v6203
      %v6205 = vrot.slane %v6191, %v6204
      %v6206 = vcombine.high %v6198, %v6198
      %v6207 = vcombine.high %v6205, %v6205
      %v6209 = vunpack.c.l.s4 1966171168
      %v6210 = vunpack.c.0.s8 %v6209
      %v6211 = vlaneseq
      %v6212 = vshrl.u32 %v6211, 7
      %v6213 = vsub.s32 %v6210, %v6212
      %v6214 = vrot.slane %v6198, %v6213
      %v6216 = vunpack.c.l.s4 1966171168
      %v6217 = vunpack.c.0.s8 %v6216
      %v6218 = vlaneseq
      %v6219 = vshrl.u32 %v6218, 7
      %v6220 = vsub.s32 %v6217, %v6219
      %v6221 = vrot.slane %v6205, %v6220
      %v6223 = vunpack.c.l.s4 1966171168
      %v6224 = vunpack.c.0.s8 %v6223
      %v6225 = vlaneseq
      %v6226 = vshrl.u32 %v6225, 7
      %v6227 = vsub.s32 %v6224, %v6226
      %v6228 = vrot.slane %v6206, %v6227
      %v6230 = vunpack.c.l.s4 1966171168
      %v6231 = vunpack.c.0.s8 %v6230
      %v6232 = vlaneseq
      %v6233 = vshrl.u32 %v6232, 7
      %v6234 = vsub.s32 %v6231, %v6233
      %v6235 = vrot.slane %v6207, %v6234
      %v6236 = vcombine.high %v6214, %v6214
      %v6237 = vcombine.high %v6221, %v6221
      %v6238 = vcombine.high %v6228, %v6228
      %v6239 = vcombine.high %v6235, %v6235
      %v6240 = vcombine.high %v5736, %v5736
      %v6242 = vunpack.c.l.s4 1966171168
      %v6243 = vunpack.c.0.s8 %v6242
      %v6244 = vlaneseq
      %v6245 = vshrl.u32 %v6244, 7
      %v6246 = vsub.s32 %v6243, %v6245
      %v6247 = vrot.slane %v5736, %v6246
      %v6249 = vunpack.c.l.s4 1966171168
      %v6250 = vunpack.c.0.s8 %v6249
      %v6251 = vlaneseq
      %v6252 = vshrl.u32 %v6251, 7
      %v6253 = vsub.s32 %v6250, %v6252
      %v6254 = vrot.slane %v6240, %v6253
      %v6255 = vcombine.high %v6247, %v6247
      %v6256 = vcombine.high %v6254, %v6254
      %v6258 = vunpack.c.l.s4 1966171168
      %v6259 = vunpack.c.0.s8 %v6258
      %v6260 = vlaneseq
      %v6261 = vshrl.u32 %v6260, 7
      %v6262 = vsub.s32 %v6259, %v6261
      %v6263 = vrot.slane %v6247, %v6262
      %v6265 = vunpack.c.l.s4 1966171168
      %v6266 = vunpack.c.0.s8 %v6265
      %v6267 = vlaneseq
      %v6268 = vshrl.u32 %v6267, 7
      %v6269 = vsub.s32 %v6266, %v6268
      %v6270 = vrot.slane %v6254, %v6269
      %v6272 = vunpack.c.l.s4 1966171168
      %v6273 = vunpack.c.0.s8 %v6272
      %v6274 = vlaneseq
      %v6275 = vshrl.u32 %v6274, 7
      %v6276 = vsub.s32 %v6273, %v6275
      %v6277 = vrot.slane %v6255, %v6276
      %v6279 = vunpack.c.l.s4 1966171168
      %v6280 = vunpack.c.0.s8 %v6279
      %v6281 = vlaneseq
      %v6282 = vshrl.u32 %v6281, 7
      %v6283 = vsub.s32 %v6280, %v6282
      %v6284 = vrot.slane %v6256, %v6283
      %v6285 = vcombine.high %v6263, %v6263
      %v6286 = vcombine.high %v6270, %v6270
      %v6287 = vcombine.high %v6277, %v6277
      %v6288 = vcombine.high %v6284, %v6284
      %v6290 = vunpack.c.l.s4 1966171168
      %v6291 = vunpack.c.0.s8 %v6290
      %v6292 = vlaneseq
      %v6293 = vshrl.u32 %v6292, 7
      %v6294 = vsub.s32 %v6291, %v6293
      %v6295 = vrot.slane %v5737, %v6294
      %v6296 = vcombine.high %v6295, %v6295
      %v6298 = vunpack.c.l.s4 1966171168
      %v6299 = vunpack.c.0.s8 %v6298
      %v6300 = vlaneseq
      %v6301 = vshrl.u32 %v6300, 7
      %v6302 = vsub.s32 %v6299, %v6301
      %v6303 = vrot.slane %v6295, %v6302
      %v6305 = vunpack.c.l.s4 1966171168
      %v6306 = vunpack.c.0.s8 %v6305
      %v6307 = vlaneseq
      %v6308 = vshrl.u32 %v6307, 7
      %v6309 = vsub.s32 %v6306, %v6308
      %v6310 = vrot.slane %v6296, %v6309
      %vm6311 = vcmp.ge.s32.totalorder %v4695, 0
      %vm6312 = vcmp.ge.s32.totalorder %v4696, 0
      %vm6313 = vmand %vm4719, %vm6311
      %vm6314 = vmand %vm4719, %vm6312
      %vm6315 = vmand %vm4720, %vm6311
      %vm6316 = vmand %vm4720, %vm6312
      %vm6317 = vmand %vm4721, %vm6311
      %vm6318 = vmand %vm4721, %vm6312
      %vm6319 = vmand %vm4722, %vm6311
      %vm6320 = vmand %vm4722, %vm6312
      %vm6321 = vmand %vm4723, %vm6311
      %vm6322 = vmand %vm4723, %vm6312
      %vm6323 = vmand %vm4724, %vm6311
      %vm6324 = vmand %vm4724, %vm6312
      %vm6325 = vmand %vm4725, %vm6311
      %vm6326 = vmand %vm4725, %vm6312
      %vm6327 = vmand %vm4726, %vm6311
      %vm6328 = vmand %vm4726, %vm6312
      %vm6329 = vmand %vm4727, %vm6311
      %vm6330 = vmand %vm4727, %vm6312
      %vm6331 = vmand %vm4728, %vm6311
      %vm6332 = vmand %vm4728, %vm6312
      %vm6333 = vcmp.lt.s32.totalorder %v4695, 16
      %vm6334 = vcmp.lt.s32.totalorder %v4696, 16
      %vm6335 = vmand %vm6313, %vm6333
      %vm6336 = vmand %vm6314, %vm6334
      %vm6337 = vmand %vm6315, %vm6333
      %vm6338 = vmand %vm6316, %vm6334
      %vm6339 = vmand %vm6317, %vm6333
      %vm6340 = vmand %vm6318, %vm6334
      %vm6341 = vmand %vm6319, %vm6333
      %vm6342 = vmand %vm6320, %vm6334
      %vm6343 = vmand %vm6321, %vm6333
      %vm6344 = vmand %vm6322, %vm6334
      %vm6345 = vmand %vm6323, %vm6333
      %vm6346 = vmand %vm6324, %vm6334
      %vm6347 = vmand %vm6325, %vm6333
      %vm6348 = vmand %vm6326, %vm6334
      %vm6349 = vmand %vm6327, %vm6333
      %vm6350 = vmand %vm6328, %vm6334
      %vm6351 = vmand %vm6329, %vm6333
      %vm6352 = vmand %vm6330, %vm6334
      %vm6353 = vmand %vm6331, %vm6333
      %vm6354 = vmand %vm6332, %vm6334
      %v6355 = vcombine.low %v5773, %v5787
      %v6356 = vcombine.low %v5795, %v5797
      %v6357 = vcombine.low %v5780, %v5794
      %v6358 = vcombine.low %v5796, %v5798
      %v6360 = vunpack.c.l.s4 1966171168
      %v6361 = vunpack.c.0.s8 %v6360
      %v6362 = vlaneseq
      %v6363 = vshrl.u32 %v6362, 7
      %v6364 = vsub.s32 %v6361, %v6363
      %v6365 = vrot.slane %v6355, %v6364
      %v6367 = vunpack.c.l.s4 1966171168
      %v6368 = vunpack.c.0.s8 %v6367
      %v6369 = vlaneseq
      %v6370 = vshrl.u32 %v6369, 7
      %v6371 = vsub.s32 %v6368, %v6370
      %v6372 = vrot.slane %v6356, %v6371
      %v6374 = vunpack.c.l.s4 1966171168
      %v6375 = vunpack.c.0.s8 %v6374
      %v6376 = vlaneseq
      %v6377 = vshrl.u32 %v6376, 7
      %v6378 = vsub.s32 %v6375, %v6377
      %v6379 = vrot.slane %v6357, %v6378
      %v6381 = vunpack.c.l.s4 1966171168
      %v6382 = vunpack.c.0.s8 %v6381
      %v6383 = vlaneseq
      %v6384 = vshrl.u32 %v6383, 7
      %v6385 = vsub.s32 %v6382, %v6384
      %v6386 = vrot.slane %v6358, %v6385
      %v6387 = vcombine.low %v6365, %v6372
      %v6388 = vcombine.low %v6379, %v6386
      %v6390 = vunpack.c.l.s4 1966171168
      %v6391 = vunpack.c.0.s8 %v6390
      %v6392 = vlaneseq
      %v6393 = vshrl.u32 %v6392, 7
      %v6394 = vsub.s32 %v6391, %v6393
      %v6395 = vrot.slane %v6387, %v6394
      %v6397 = vunpack.c.l.s4 1966171168
      %v6398 = vunpack.c.0.s8 %v6397
      %v6399 = vlaneseq
      %v6400 = vshrl.u32 %v6399, 7
      %v6401 = vsub.s32 %v6398, %v6400
      %v6402 = vrot.slane %v6388, %v6401
      %v6403 = vcombine.low %v6395, %v6402
      %v6405 = vunpack.c.l.s4 1966171168
      %v6406 = vunpack.c.0.s8 %v6405
      %v6407 = vlaneseq
      %v6408 = vshrl.u32 %v6407, 7
      %v6409 = vsub.s32 %v6406, %v6408
      %v6410 = vrot.slane %v5822, %v6409
      %v6412 = vunpack.c.l.s4 1966171168
      %v6413 = vunpack.c.0.s8 %v6412
      %v6414 = vlaneseq
      %v6415 = vshrl.u32 %v6414, 7
      %v6416 = vsub.s32 %v6413, %v6415
      %v6417 = vrot.slane %v6410, %v6416
      %v6418 = vcombine.low %v5836, %v5844
      %v6419 = vcombine.low %v5846, %v5829
      %v6420 = vcombine.low %v5843, %v5845
      %v6421 = vcombine.low %v5847, %v5871
      %v6423 = vunpack.c.l.s4 1966171168
      %v6424 = vunpack.c.0.s8 %v6423
      %v6425 = vlaneseq
      %v6426 = vshrl.u32 %v6425, 7
      %v6427 = vsub.s32 %v6424, %v6426
      %v6428 = vrot.slane %v6418, %v6427
      %v6430 = vunpack.c.l.s4 1966171168
      %v6431 = vunpack.c.0.s8 %v6430
      %v6432 = vlaneseq
      %v6433 = vshrl.u32 %v6432, 7
      %v6434 = vsub.s32 %v6431, %v6433
      %v6435 = vrot.slane %v6419, %v6434
      %v6437 = vunpack.c.l.s4 1966171168
      %v6438 = vunpack.c.0.s8 %v6437
      %v6439 = vlaneseq
      %v6440 = vshrl.u32 %v6439, 7
      %v6441 = vsub.s32 %v6438, %v6440
      %v6442 = vrot.slane %v6420, %v6441
      %v6444 = vunpack.c.l.s4 1966171168
      %v6445 = vunpack.c.0.s8 %v6444
      %v6446 = vlaneseq
      %v6447 = vshrl.u32 %v6446, 7
      %v6448 = vsub.s32 %v6445, %v6447
      %v6449 = vrot.slane %v6421, %v6448
      %v6450 = vcombine.low %v6428, %v6435
      %v6451 = vcombine.low %v6442, %v6449
      %v6453 = vunpack.c.l.s4 1966171168
      %v6454 = vunpack.c.0.s8 %v6453
      %v6455 = vlaneseq
      %v6456 = vshrl.u32 %v6455, 7
      %v6457 = vsub.s32 %v6454, %v6456
      %v6458 = vrot.slane %v6450, %v6457
      %v6460 = vunpack.c.l.s4 1966171168
      %v6461 = vunpack.c.0.s8 %v6460
      %v6462 = vlaneseq
      %v6463 = vshrl.u32 %v6462, 7
      %v6464 = vsub.s32 %v6461, %v6463
      %v6465 = vrot.slane %v6451, %v6464
      %v6466 = vcombine.low %v6458, %v6465
      %v6468 = vunpack.c.l.s4 1966171168
      %v6469 = vunpack.c.0.s8 %v6468
      %v6470 = vlaneseq
      %v6471 = vshrl.u32 %v6470, 7
      %v6472 = vsub.s32 %v6469, %v6471
      %v6473 = vrot.slane %v5885, %v6472
      %v6475 = vunpack.c.l.s4 1966171168
      %v6476 = vunpack.c.0.s8 %v6475
      %v6477 = vlaneseq
      %v6478 = vshrl.u32 %v6477, 7
      %v6479 = vsub.s32 %v6476, %v6478
      %v6480 = vrot.slane %v6473, %v6479
      %v6481 = vcombine.low %v5893, %v5895
      %v6482 = vcombine.low %v5878, %v5892
      %v6483 = vcombine.low %v5894, %v5896
      %v6484 = vcombine.low %v5920, %v5934
      %v6486 = vunpack.c.l.s4 1966171168
      %v6487 = vunpack.c.0.s8 %v6486
      %v6488 = vlaneseq
      %v6489 = vshrl.u32 %v6488, 7
      %v6490 = vsub.s32 %v6487, %v6489
      %v6491 = vrot.slane %v6481, %v6490
      %v6493 = vunpack.c.l.s4 1966171168
      %v6494 = vunpack.c.0.s8 %v6493
      %v6495 = vlaneseq
      %v6496 = vshrl.u32 %v6495, 7
      %v6497 = vsub.s32 %v6494, %v6496
      %v6498 = vrot.slane %v6482, %v6497
      %v6500 = vunpack.c.l.s4 1966171168
      %v6501 = vunpack.c.0.s8 %v6500
      %v6502 = vlaneseq
      %v6503 = vshrl.u32 %v6502, 7
      %v6504 = vsub.s32 %v6501, %v6503
      %v6505 = vrot.slane %v6483, %v6504
      %v6507 = vunpack.c.l.s4 1966171168
      %v6508 = vunpack.c.0.s8 %v6507
      %v6509 = vlaneseq
      %v6510 = vshrl.u32 %v6509, 7
      %v6511 = vsub.s32 %v6508, %v6510
      %v6512 = vrot.slane %v6484, %v6511
      %v6513 = vcombine.low %v6491, %v6498
      %v6514 = vcombine.low %v6505, %v6512
      %v6516 = vunpack.c.l.s4 1966171168
      %v6517 = vunpack.c.0.s8 %v6516
      %v6518 = vlaneseq
      %v6519 = vshrl.u32 %v6518, 7
      %v6520 = vsub.s32 %v6517, %v6519
      %v6521 = vrot.slane %v6513, %v6520
      %v6523 = vunpack.c.l.s4 1966171168
      %v6524 = vunpack.c.0.s8 %v6523
      %v6525 = vlaneseq
      %v6526 = vshrl.u32 %v6525, 7
      %v6527 = vsub.s32 %v6524, %v6526
      %v6528 = vrot.slane %v6514, %v6527
      %v6529 = vcombine.low %v6521, %v6528
      %v6531 = vunpack.c.l.s4 1966171168
      %v6532 = vunpack.c.0.s8 %v6531
      %v6533 = vlaneseq
      %v6534 = vshrl.u32 %v6533, 7
      %v6535 = vsub.s32 %v6532, %v6534
      %v6536 = vrot.slane %v5942, %v6535
      %v6538 = vunpack.c.l.s4 1966171168
      %v6539 = vunpack.c.0.s8 %v6538
      %v6540 = vlaneseq
      %v6541 = vshrl.u32 %v6540, 7
      %v6542 = vsub.s32 %v6539, %v6541
      %v6543 = vrot.slane %v6536, %v6542
      %v6544 = vcombine.low %v5944, %v5927
      %v6545 = vcombine.low %v5941, %v5943
      %v6546 = vcombine.low %v5945, %v5969
      %v6547 = vcombine.low %v5983, %v5991
      %v6549 = vunpack.c.l.s4 1966171168
      %v6550 = vunpack.c.0.s8 %v6549
      %v6551 = vlaneseq
      %v6552 = vshrl.u32 %v6551, 7
      %v6553 = vsub.s32 %v6550, %v6552
      %v6554 = vrot.slane %v6544, %v6553
      %v6556 = vunpack.c.l.s4 1966171168
      %v6557 = vunpack.c.0.s8 %v6556
      %v6558 = vlaneseq
      %v6559 = vshrl.u32 %v6558, 7
      %v6560 = vsub.s32 %v6557, %v6559
      %v6561 = vrot.slane %v6545, %v6560
      %v6563 = vunpack.c.l.s4 1966171168
      %v6564 = vunpack.c.0.s8 %v6563
      %v6565 = vlaneseq
      %v6566 = vshrl.u32 %v6565, 7
      %v6567 = vsub.s32 %v6564, %v6566
      %v6568 = vrot.slane %v6546, %v6567
      %v6570 = vunpack.c.l.s4 1966171168
      %v6571 = vunpack.c.0.s8 %v6570
      %v6572 = vlaneseq
      %v6573 = vshrl.u32 %v6572, 7
      %v6574 = vsub.s32 %v6571, %v6573
      %v6575 = vrot.slane %v6547, %v6574
      %v6576 = vcombine.low %v6554, %v6561
      %v6577 = vcombine.low %v6568, %v6575
      %v6579 = vunpack.c.l.s4 1966171168
      %v6580 = vunpack.c.0.s8 %v6579
      %v6581 = vlaneseq
      %v6582 = vshrl.u32 %v6581, 7
      %v6583 = vsub.s32 %v6580, %v6582
      %v6584 = vrot.slane %v6576, %v6583
      %v6586 = vunpack.c.l.s4 1966171168
      %v6587 = vunpack.c.0.s8 %v6586
      %v6588 = vlaneseq
      %v6589 = vshrl.u32 %v6588, 7
      %v6590 = vsub.s32 %v6587, %v6589
      %v6591 = vrot.slane %v6577, %v6590
      %v6592 = vcombine.low %v6584, %v6591
      %v6594 = vunpack.c.l.s4 1966171168
      %v6595 = vunpack.c.0.s8 %v6594
      %v6596 = vlaneseq
      %v6597 = vshrl.u32 %v6596, 7
      %v6598 = vsub.s32 %v6595, %v6597
      %v6599 = vrot.slane %v5993, %v6598
      %v6601 = vunpack.c.l.s4 1966171168
      %v6602 = vunpack.c.0.s8 %v6601
      %v6603 = vlaneseq
      %v6604 = vshrl.u32 %v6603, 7
      %v6605 = vsub.s32 %v6602, %v6604
      %v6606 = vrot.slane %v6599, %v6605
      %v6607 = vcombine.low %v5976, %v5990
      %v6608 = vcombine.low %v5992, %v5994
      %v6609 = vcombine.low %v6018, %v6032
      %v6610 = vcombine.low %v6040, %v6042
      %v6612 = vunpack.c.l.s4 1966171168
      %v6613 = vunpack.c.0.s8 %v6612
      %v6614 = vlaneseq
      %v6615 = vshrl.u32 %v6614, 7
      %v6616 = vsub.s32 %v6613, %v6615
      %v6617 = vrot.slane %v6607, %v6616
      %v6619 = vunpack.c.l.s4 1966171168
      %v6620 = vunpack.c.0.s8 %v6619
      %v6621 = vlaneseq
      %v6622 = vshrl.u32 %v6621, 7
      %v6623 = vsub.s32 %v6620, %v6622
      %v6624 = vrot.slane %v6608, %v6623
      %v6626 = vunpack.c.l.s4 1966171168
      %v6627 = vunpack.c.0.s8 %v6626
      %v6628 = vlaneseq
      %v6629 = vshrl.u32 %v6628, 7
      %v6630 = vsub.s32 %v6627, %v6629
      %v6631 = vrot.slane %v6609, %v6630
      %v6633 = vunpack.c.l.s4 1966171168
      %v6634 = vunpack.c.0.s8 %v6633
      %v6635 = vlaneseq
      %v6636 = vshrl.u32 %v6635, 7
      %v6637 = vsub.s32 %v6634, %v6636
      %v6638 = vrot.slane %v6610, %v6637
      %v6639 = vcombine.low %v6617, %v6624
      %v6640 = vcombine.low %v6631, %v6638
      %v6642 = vunpack.c.l.s4 1966171168
      %v6643 = vunpack.c.0.s8 %v6642
      %v6644 = vlaneseq
      %v6645 = vshrl.u32 %v6644, 7
      %v6646 = vsub.s32 %v6643, %v6645
      %v6647 = vrot.slane %v6639, %v6646
      %v6649 = vunpack.c.l.s4 1966171168
      %v6650 = vunpack.c.0.s8 %v6649
      %v6651 = vlaneseq
      %v6652 = vshrl.u32 %v6651, 7
      %v6653 = vsub.s32 %v6650, %v6652
      %v6654 = vrot.slane %v6640, %v6653
      %v6655 = vcombine.low %v6647, %v6654
      %v6657 = vunpack.c.l.s4 1966171168
      %v6658 = vunpack.c.0.s8 %v6657
      %v6659 = vlaneseq
      %v6660 = vshrl.u32 %v6659, 7
      %v6661 = vsub.s32 %v6658, %v6660
      %v6662 = vrot.slane %v6025, %v6661
      %v6664 = vunpack.c.l.s4 1966171168
      %v6665 = vunpack.c.0.s8 %v6664
      %v6666 = vlaneseq
      %v6667 = vshrl.u32 %v6666, 7
      %v6668 = vsub.s32 %v6665, %v6667
      %v6669 = vrot.slane %v6662, %v6668
      %v6670 = vcombine.low %v6039, %v6041
      %v6671 = vcombine.low %v6043, %v6067
      %v6672 = vcombine.low %v6081, %v6089
      %v6673 = vcombine.low %v6091, %v6074
      %v6675 = vunpack.c.l.s4 1966171168
      %v6676 = vunpack.c.0.s8 %v6675
      %v6677 = vlaneseq
      %v6678 = vshrl.u32 %v6677, 7
      %v6679 = vsub.s32 %v6676, %v6678
      %v6680 = vrot.slane %v6670, %v6679
      %v6682 = vunpack.c.l.s4 1966171168
      %v6683 = vunpack.c.0.s8 %v6682
      %v6684 = vlaneseq
      %v6685 = vshrl.u32 %v6684, 7
      %v6686 = vsub.s32 %v6683, %v6685
      %v6687 = vrot.slane %v6671, %v6686
      %v6689 = vunpack.c.l.s4 1966171168
      %v6690 = vunpack.c.0.s8 %v6689
      %v6691 = vlaneseq
      %v6692 = vshrl.u32 %v6691, 7
      %v6693 = vsub.s32 %v6690, %v6692
      %v6694 = vrot.slane %v6672, %v6693
      %v6696 = vunpack.c.l.s4 1966171168
      %v6697 = vunpack.c.0.s8 %v6696
      %v6698 = vlaneseq
      %v6699 = vshrl.u32 %v6698, 7
      %v6700 = vsub.s32 %v6697, %v6699
      %v6701 = vrot.slane %v6673, %v6700
      %v6702 = vcombine.low %v6680, %v6687
      %v6703 = vcombine.low %v6694, %v6701
      %v6705 = vunpack.c.l.s4 1966171168
      %v6706 = vunpack.c.0.s8 %v6705
      %v6707 = vlaneseq
      %v6708 = vshrl.u32 %v6707, 7
      %v6709 = vsub.s32 %v6706, %v6708
      %v6710 = vrot.slane %v6702, %v6709
      %v6712 = vunpack.c.l.s4 1966171168
      %v6713 = vunpack.c.0.s8 %v6712
      %v6714 = vlaneseq
      %v6715 = vshrl.u32 %v6714, 7
      %v6716 = vsub.s32 %v6713, %v6715
      %v6717 = vrot.slane %v6703, %v6716
      %v6718 = vcombine.low %v6710, %v6717
      %v6720 = vunpack.c.l.s4 1966171168
      %v6721 = vunpack.c.0.s8 %v6720
      %v6722 = vlaneseq
      %v6723 = vshrl.u32 %v6722, 7
      %v6724 = vsub.s32 %v6721, %v6723
      %v6725 = vrot.slane %v6088, %v6724
      %v6727 = vunpack.c.l.s4 1966171168
      %v6728 = vunpack.c.0.s8 %v6727
      %v6729 = vlaneseq
      %v6730 = vshrl.u32 %v6729, 7
      %v6731 = vsub.s32 %v6728, %v6730
      %v6732 = vrot.slane %v6725, %v6731
      %v6733 = vcombine.low %v6090, %v6092
      %v6734 = vcombine.low %v6116, %v6130
      %v6735 = vcombine.low %v6138, %v6140
      %v6736 = vcombine.low %v6123, %v6137
      %v6738 = vunpack.c.l.s4 1966171168
      %v6739 = vunpack.c.0.s8 %v6738
      %v6740 = vlaneseq
      %v6741 = vshrl.u32 %v6740, 7
      %v6742 = vsub.s32 %v6739, %v6741
      %v6743 = vrot.slane %v6733, %v6742
      %v6745 = vunpack.c.l.s4 1966171168
      %v6746 = vunpack.c.0.s8 %v6745
      %v6747 = vlaneseq
      %v6748 = vshrl.u32 %v6747, 7
      %v6749 = vsub.s32 %v6746, %v6748
      %v6750 = vrot.slane %v6734, %v6749
      %v6752 = vunpack.c.l.s4 1966171168
      %v6753 = vunpack.c.0.s8 %v6752
      %v6754 = vlaneseq
      %v6755 = vshrl.u32 %v6754, 7
      %v6756 = vsub.s32 %v6753, %v6755
      %v6757 = vrot.slane %v6735, %v6756
      %v6759 = vunpack.c.l.s4 1966171168
      %v6760 = vunpack.c.0.s8 %v6759
      %v6761 = vlaneseq
      %v6762 = vshrl.u32 %v6761, 7
      %v6763 = vsub.s32 %v6760, %v6762
      %v6764 = vrot.slane %v6736, %v6763
      %v6765 = vcombine.low %v6743, %v6750
      %v6766 = vcombine.low %v6757, %v6764
      %v6768 = vunpack.c.l.s4 1966171168
      %v6769 = vunpack.c.0.s8 %v6768
      %v6770 = vlaneseq
      %v6771 = vshrl.u32 %v6770, 7
      %v6772 = vsub.s32 %v6769, %v6771
      %v6773 = vrot.slane %v6765, %v6772
      %v6775 = vunpack.c.l.s4 1966171168
      %v6776 = vunpack.c.0.s8 %v6775
      %v6777 = vlaneseq
      %v6778 = vshrl.u32 %v6777, 7
      %v6779 = vsub.s32 %v6776, %v6778
      %v6780 = vrot.slane %v6766, %v6779
      %v6781 = vcombine.low %v6773, %v6780
      %v6783 = vunpack.c.l.s4 1966171168
      %v6784 = vunpack.c.0.s8 %v6783
      %v6785 = vlaneseq
      %v6786 = vshrl.u32 %v6785, 7
      %v6787 = vsub.s32 %v6784, %v6786
      %v6788 = vrot.slane %v6139, %v6787
      %v6790 = vunpack.c.l.s4 1966171168
      %v6791 = vunpack.c.0.s8 %v6790
      %v6792 = vlaneseq
      %v6793 = vshrl.u32 %v6792, 7
      %v6794 = vsub.s32 %v6791, %v6793
      %v6795 = vrot.slane %v6788, %v6794
      %v6796 = vcombine.low %v6141, %v6165
      %v6797 = vcombine.low %v6179, %v6187
      %v6798 = vcombine.low %v6189, %v6172
      %v6799 = vcombine.low %v6186, %v6188
      %v6801 = vunpack.c.l.s4 1966171168
      %v6802 = vunpack.c.0.s8 %v6801
      %v6803 = vlaneseq
      %v6804 = vshrl.u32 %v6803, 7
      %v6805 = vsub.s32 %v6802, %v6804
      %v6806 = vrot.slane %v6796, %v6805
      %v6808 = vunpack.c.l.s4 1966171168
      %v6809 = vunpack.c.0.s8 %v6808
      %v6810 = vlaneseq
      %v6811 = vshrl.u32 %v6810, 7
      %v6812 = vsub.s32 %v6809, %v6811
      %v6813 = vrot.slane %v6797, %v6812
      %v6815 = vunpack.c.l.s4 1966171168
      %v6816 = vunpack.c.0.s8 %v6815
      %v6817 = vlaneseq
      %v6818 = vshrl.u32 %v6817, 7
      %v6819 = vsub.s32 %v6816, %v6818
      %v6820 = vrot.slane %v6798, %v6819
      %v6822 = vunpack.c.l.s4 1966171168
      %v6823 = vunpack.c.0.s8 %v6822
      %v6824 = vlaneseq
      %v6825 = vshrl.u32 %v6824, 7
      %v6826 = vsub.s32 %v6823, %v6825
      %v6827 = vrot.slane %v6799, %v6826
      %v6828 = vcombine.low %v6806, %v6813
      %v6829 = vcombine.low %v6820, %v6827
      %v6831 = vunpack.c.l.s4 1966171168
      %v6832 = vunpack.c.0.s8 %v6831
      %v6833 = vlaneseq
      %v6834 = vshrl.u32 %v6833, 7
      %v6835 = vsub.s32 %v6832, %v6834
      %v6836 = vrot.slane %v6828, %v6835
      %v6838 = vunpack.c.l.s4 1966171168
      %v6839 = vunpack.c.0.s8 %v6838
      %v6840 = vlaneseq
      %v6841 = vshrl.u32 %v6840, 7
      %v6842 = vsub.s32 %v6839, %v6841
      %v6843 = vrot.slane %v6829, %v6842
      %v6844 = vcombine.low %v6836, %v6843
      %v6846 = vunpack.c.l.s4 1966171168
      %v6847 = vunpack.c.0.s8 %v6846
      %v6848 = vlaneseq
      %v6849 = vshrl.u32 %v6848, 7
      %v6850 = vsub.s32 %v6847, %v6849
      %v6851 = vrot.slane %v6190, %v6850
      %v6853 = vunpack.c.l.s4 1966171168
      %v6854 = vunpack.c.0.s8 %v6853
      %v6855 = vlaneseq
      %v6856 = vshrl.u32 %v6855, 7
      %v6857 = vsub.s32 %v6854, %v6856
      %v6858 = vrot.slane %v6851, %v6857
      %v6859 = vcombine.low %v6214, %v6228
      %v6860 = vcombine.low %v6236, %v6238
      %v6861 = vcombine.low %v6221, %v6235
      %v6862 = vcombine.low %v6237, %v6239
      %v6864 = vunpack.c.l.s4 1966171168
      %v6865 = vunpack.c.0.s8 %v6864
      %v6866 = vlaneseq
      %v6867 = vshrl.u32 %v6866, 7
      %v6868 = vsub.s32 %v6865, %v6867
      %v6869 = vrot.slane %v6859, %v6868
      %v6871 = vunpack.c.l.s4 1966171168
      %v6872 = vunpack.c.0.s8 %v6871
      %v6873 = vlaneseq
      %v6874 = vshrl.u32 %v6873, 7
      %v6875 = vsub.s32 %v6872, %v6874
      %v6876 = vrot.slane %v6860, %v6875
      %v6878 = vunpack.c.l.s4 1966171168
      %v6879 = vunpack.c.0.s8 %v6878
      %v6880 = vlaneseq
      %v6881 = vshrl.u32 %v6880, 7
      %v6882 = vsub.s32 %v6879, %v6881
      %v6883 = vrot.slane %v6861, %v6882
      %v6885 = vunpack.c.l.s4 1966171168
      %v6886 = vunpack.c.0.s8 %v6885
      %v6887 = vlaneseq
      %v6888 = vshrl.u32 %v6887, 7
      %v6889 = vsub.s32 %v6886, %v6888
      %v6890 = vrot.slane %v6862, %v6889
      %v6891 = vcombine.low %v6869, %v6876
      %v6892 = vcombine.low %v6883, %v6890
      %v6894 = vunpack.c.l.s4 1966171168
      %v6895 = vunpack.c.0.s8 %v6894
      %v6896 = vlaneseq
      %v6897 = vshrl.u32 %v6896, 7
      %v6898 = vsub.s32 %v6895, %v6897
      %v6899 = vrot.slane %v6891, %v6898
      %v6901 = vunpack.c.l.s4 1966171168
      %v6902 = vunpack.c.0.s8 %v6901
      %v6903 = vlaneseq
      %v6904 = vshrl.u32 %v6903, 7
      %v6905 = vsub.s32 %v6902, %v6904
      %v6906 = vrot.slane %v6892, %v6905
      %v6907 = vcombine.low %v6899, %v6906
      %v6909 = vunpack.c.l.s4 1966171168
      %v6910 = vunpack.c.0.s8 %v6909
      %v6911 = vlaneseq
      %v6912 = vshrl.u32 %v6911, 7
      %v6913 = vsub.s32 %v6910, %v6912
      %v6914 = vrot.slane %v6263, %v6913
      %v6916 = vunpack.c.l.s4 1966171168
      %v6917 = vunpack.c.0.s8 %v6916
      %v6918 = vlaneseq
      %v6919 = vshrl.u32 %v6918, 7
      %v6920 = vsub.s32 %v6917, %v6919
      %v6921 = vrot.slane %v6914, %v6920
      %v6922 = vcombine.low %v6277, %v6285
      %v6923 = vcombine.low %v6287, %v6270
      %v6924 = vcombine.low %v6284, %v6286
      %v6925 = vcombine.low %v6288, %v6303
      %v6927 = vunpack.c.l.s4 1966171168
      %v6928 = vunpack.c.0.s8 %v6927
      %v6929 = vlaneseq
      %v6930 = vshrl.u32 %v6929, 7
      %v6931 = vsub.s32 %v6928, %v6930
      %v6932 = vrot.slane %v6922, %v6931
      %v6934 = vunpack.c.l.s4 1966171168
      %v6935 = vunpack.c.0.s8 %v6934
      %v6936 = vlaneseq
      %v6937 = vshrl.u32 %v6936, 7
      %v6938 = vsub.s32 %v6935, %v6937
      %v6939 = vrot.slane %v6923, %v6938
      %v6941 = vunpack.c.l.s4 1966171168
      %v6942 = vunpack.c.0.s8 %v6941
      %v6943 = vlaneseq
      %v6944 = vshrl.u32 %v6943, 7
      %v6945 = vsub.s32 %v6942, %v6944
      %v6946 = vrot.slane %v6924, %v6945
      %v6948 = vunpack.c.l.s4 1966171168
      %v6949 = vunpack.c.0.s8 %v6948
      %v6950 = vlaneseq
      %v6951 = vshrl.u32 %v6950, 7
      %v6952 = vsub.s32 %v6949, %v6951
      %v6953 = vrot.slane %v6925, %v6952
      %v6954 = vcombine.low %v6932, %v6939
      %v6955 = vcombine.low %v6946, %v6953
      %v6957 = vunpack.c.l.s4 1966171168
      %v6958 = vunpack.c.0.s8 %v6957
      %v6959 = vlaneseq
      %v6960 = vshrl.u32 %v6959, 7
      %v6961 = vsub.s32 %v6958, %v6960
      %v6962 = vrot.slane %v6954, %v6961
      %v6964 = vunpack.c.l.s4 1966171168
      %v6965 = vunpack.c.0.s8 %v6964
      %v6966 = vlaneseq
      %v6967 = vshrl.u32 %v6966, 7
      %v6968 = vsub.s32 %v6965, %v6967
      %v6969 = vrot.slane %v6955, %v6968
      %v6970 = vcombine.low %v6962, %v6969
      %v6972 = vunpack.c.l.s4 1966171168
      %v6973 = vunpack.c.0.s8 %v6972
      %v6974 = vlaneseq
      %v6975 = vshrl.u32 %v6974, 7
      %v6976 = vsub.s32 %v6973, %v6975
      %v6977 = vrot.slane %v6310, %v6976
      %v6979 = vunpack.c.l.s4 1966171168
      %v6980 = vunpack.c.0.s8 %v6979
      %v6981 = vlaneseq
      %v6982 = vshrl.u32 %v6981, 7
      %v6983 = vsub.s32 %v6980, %v6982
      %v6984 = vrot.slane %v6977, %v6983
      %v7005 = vsel %vm6335, %v6403, 0.0
      %v7006 = vsel %vm6336, %v6417, 0.0
      %v7007 = vsel %vm6337, %v6466, 0.0
      %v7008 = vsel %vm6338, %v6480, 0.0
      %v7009 = vsel %vm6339, %v6529, 0.0
      %v7010 = vsel %vm6340, %v6543, 0.0
      %v7011 = vsel %vm6341, %v6592, 0.0
      %v7012 = vsel %vm6342, %v6606, 0.0
      %v7013 = vsel %vm6343, %v6655, 0.0
      %v7014 = vsel %vm6344, %v6669, 0.0
      %v7015 = vsel %vm6345, %v6718, 0.0
      %v7016 = vsel %vm6346, %v6732, 0.0
      %v7017 = vsel %vm6347, %v6781, 0.0
      %v7018 = vsel %vm6348, %v6795, 0.0
      %v7019 = vsel %vm6349, %v6844, 0.0
      %v7020 = vsel %vm6350, %v6858, 0.0
      %v7021 = vsel %vm6351, %v6907, 0.0
      %v7022 = vsel %vm6352, %v6921, 0.0
      %v7023 = vsel %vm6353, %v6970, 0.0
      %v7024 = vsel %vm6354, %v6984, 0.0
      %v7025 = vpack.c.bf16 %v7006, %v7005
      %v7026 = vpack.c.bf16 %v7008, %v7007
      %v7027 = vpack.c.bf16 %v7010, %v7009
      %v7028 = vpack.c.bf16 %v7012, %v7011
      %v7029 = vpack.c.bf16 %v7014, %v7013
      %v7030 = vpack.c.bf16 %v7016, %v7015
      %v7031 = vpack.c.bf16 %v7018, %v7017
      %v7032 = vpack.c.bf16 %v7020, %v7019
      %v7033 = vpack.c.bf16 %v7022, %v7021
      %v7034 = vpack.c.bf16 %v7024, %v7023
      %v7039 = vunpack.c.l.b16 %v5443
      %v7040 = vunpack.c.h.b16 %v5443
      %v7041 = vunpack.c.l.b16 %v5445
      %v7042 = vunpack.c.h.b16 %v5445
      %v7043 = vunpack.c.l.b16 %v5447
      %v7044 = vunpack.c.h.b16 %v5447
      %v7045 = vunpack.c.l.b16 %v5449
      %v7046 = vunpack.c.h.b16 %v5449
      %v7047 = vpack.c.b16 %v7039, %v7039
      %v7048 = vpack.c.b16 %v7040, %v7040
      %v7049 = vpack.c.b16 %v7041, %v7041
      %v7050 = vpack.c.b16 %v7042, %v7042
      %v7051 = vpack.c.b16 %v7043, %v7043
      %v7052 = vpack.c.b16 %v7044, %v7044
      %v7053 = vpack.c.b16 %v7045, %v7045
      %v7054 = vpack.c.b16 %v7046, %v7046
      %vm7055 = vsmask.f32 3328
      %vm7056 = vsmask.f32 7440
      %vm7057 = vmor %vm7055, %vm7056
      %v7059 = vshrl.u32 %v7047, 16
      %v7061 = vrot.slane %v7059, 4
      %v7062 = vshll.u32 %v7047, 16
      %v7064 = vrot.slane %v7062, 5
      %v7065 = vor.u32 %v7061, %v7064
      %v7066 = vrot.slane %v7065, 4
      %v7068 = vshll.u32 %v7048, 16
      %v7070 = vrot.slane %v7068, 5
      %v7071 = vsel %vm7057, %v7066, %v7070
      %v7073 = vshrl.u32 %v7049, 16
      %v7075 = vrot.slane %v7073, 4
      %v7076 = vshll.u32 %v7049, 16
      %v7078 = vrot.slane %v7076, 5
      %v7079 = vor.u32 %v7075, %v7078
      %v7080 = vrot.slane %v7079, 4
      %v7082 = vshll.u32 %v7050, 16
      %v7084 = vrot.slane %v7082, 5
      %v7085 = vsel %vm7057, %v7080, %v7084
      %v7087 = vshrl.u32 %v7051, 16
      %v7089 = vrot.slane %v7087, 4
      %v7090 = vshll.u32 %v7051, 16
      %v7092 = vrot.slane %v7090, 5
      %v7093 = vor.u32 %v7089, %v7092
      %v7094 = vrot.slane %v7093, 4
      %v7096 = vshll.u32 %v7052, 16
      %v7098 = vrot.slane %v7096, 5
      %v7099 = vsel %vm7057, %v7094, %v7098
      %v7101 = vshrl.u32 %v7053, 16
      %v7103 = vrot.slane %v7101, 4
      %v7104 = vshll.u32 %v7053, 16
      %v7106 = vrot.slane %v7104, 5
      %v7107 = vor.u32 %v7103, %v7106
      %v7108 = vrot.slane %v7107, 4
      %v7110 = vshll.u32 %v7054, 16
      %v7112 = vrot.slane %v7110, 5
      %v7113 = vsel %vm7057, %v7108, %v7112
      %v7118 = vunpack.c.l.b16 %v7025
      %v7119 = vunpack.c.h.b16 %v7025
      %v7120 = vunpack.c.l.b16 %v7027
      %v7121 = vunpack.c.h.b16 %v7027
      %v7122 = vunpack.c.l.b16 %v7029
      %v7123 = vunpack.c.h.b16 %v7029
      %v7124 = vunpack.c.l.b16 %v7031
      %v7125 = vunpack.c.h.b16 %v7031
      %v7126 = vpack.c.b16 %v7118, %v7118
      %v7127 = vpack.c.b16 %v7119, %v7119
      %v7128 = vpack.c.b16 %v7120, %v7120
      %v7129 = vpack.c.b16 %v7121, %v7121
      %v7130 = vpack.c.b16 %v7122, %v7122
      %v7131 = vpack.c.b16 %v7123, %v7123
      %v7132 = vpack.c.b16 %v7124, %v7124
      %v7133 = vpack.c.b16 %v7125, %v7125
      %v7135 = vshrl.u32 %v7126, 16
      %v7137 = vrot.slane %v7135, 4
      %v7138 = vshll.u32 %v7126, 16
      %v7140 = vrot.slane %v7138, 5
      %v7141 = vor.u32 %v7137, %v7140
      %v7142 = vrot.slane %v7141, 4
      %v7144 = vshll.u32 %v7127, 16
      %v7146 = vrot.slane %v7144, 5
      %v7147 = vsel %vm7057, %v7142, %v7146
      %v7149 = vshrl.u32 %v7128, 16
      %v7151 = vrot.slane %v7149, 4
      %v7152 = vshll.u32 %v7128, 16
      %v7154 = vrot.slane %v7152, 5
      %v7155 = vor.u32 %v7151, %v7154
      %v7156 = vrot.slane %v7155, 4
      %v7158 = vshll.u32 %v7129, 16
      %v7160 = vrot.slane %v7158, 5
      %v7161 = vsel %vm7057, %v7156, %v7160
      %v7163 = vshrl.u32 %v7130, 16
      %v7165 = vrot.slane %v7163, 4
      %v7166 = vshll.u32 %v7130, 16
      %v7168 = vrot.slane %v7166, 5
      %v7169 = vor.u32 %v7165, %v7168
      %v7170 = vrot.slane %v7169, 4
      %v7172 = vshll.u32 %v7131, 16
      %v7174 = vrot.slane %v7172, 5
      %v7175 = vsel %vm7057, %v7170, %v7174
      %v7177 = vshrl.u32 %v7132, 16
      %v7179 = vrot.slane %v7177, 4
      %v7180 = vshll.u32 %v7132, 16
      %v7182 = vrot.slane %v7180, 5
      %v7183 = vor.u32 %v7179, %v7182
      %v7184 = vrot.slane %v7183, 4
      %v7186 = vshll.u32 %v7133, 16
      %v7188 = vrot.slane %v7186, 5
      %v7189 = vsel %vm7057, %v7184, %v7188
      %v7194 = vunpack.c.l.b16 %v5444
      %v7195 = vunpack.c.h.b16 %v5444
      %v7196 = vunpack.c.l.b16 %v5446
      %v7197 = vunpack.c.h.b16 %v5446
      %v7198 = vunpack.c.l.b16 %v5448
      %v7199 = vunpack.c.h.b16 %v5448
      %v7200 = vunpack.c.l.b16 %v5450
      %v7201 = vunpack.c.h.b16 %v5450
      %v7202 = vpack.c.b16 %v7194, %v7194
      %v7203 = vpack.c.b16 %v7195, %v7195
      %v7204 = vpack.c.b16 %v7196, %v7196
      %v7205 = vpack.c.b16 %v7197, %v7197
      %v7206 = vpack.c.b16 %v7198, %v7198
      %v7207 = vpack.c.b16 %v7199, %v7199
      %v7208 = vpack.c.b16 %v7200, %v7200
      %v7209 = vpack.c.b16 %v7201, %v7201
      %v7211 = vshrl.u32 %v7202, 16
      %v7213 = vrot.slane %v7211, 4
      %v7214 = vshll.u32 %v7202, 16
      %v7216 = vrot.slane %v7214, 5
      %v7217 = vor.u32 %v7213, %v7216
      %v7218 = vrot.slane %v7217, 4
      %v7220 = vshll.u32 %v7203, 16
      %v7222 = vrot.slane %v7220, 5
      %v7223 = vsel %vm7057, %v7218, %v7222
      %v7225 = vshrl.u32 %v7204, 16
      %v7227 = vrot.slane %v7225, 4
      %v7228 = vshll.u32 %v7204, 16
      %v7230 = vrot.slane %v7228, 5
      %v7231 = vor.u32 %v7227, %v7230
      %v7232 = vrot.slane %v7231, 4
      %v7234 = vshll.u32 %v7205, 16
      %v7236 = vrot.slane %v7234, 5
      %v7237 = vsel %vm7057, %v7232, %v7236
      %v7239 = vshrl.u32 %v7206, 16
      %v7241 = vrot.slane %v7239, 4
      %v7242 = vshll.u32 %v7206, 16
      %v7244 = vrot.slane %v7242, 5
      %v7245 = vor.u32 %v7241, %v7244
      %v7246 = vrot.slane %v7245, 4
      %v7248 = vshll.u32 %v7207, 16
      %v7250 = vrot.slane %v7248, 5
      %v7251 = vsel %vm7057, %v7246, %v7250
      %v7253 = vshrl.u32 %v7208, 16
      %v7255 = vrot.slane %v7253, 4
      %v7256 = vshll.u32 %v7208, 16
      %v7258 = vrot.slane %v7256, 5
      %v7259 = vor.u32 %v7255, %v7258
      %v7260 = vrot.slane %v7259, 4
      %v7262 = vshll.u32 %v7209, 16
      %v7264 = vrot.slane %v7262, 5
      %v7265 = vsel %vm7057, %v7260, %v7264
      %v7270 = vunpack.c.l.b16 %v7026
      %v7271 = vunpack.c.h.b16 %v7026
      %v7272 = vunpack.c.l.b16 %v7028
      %v7273 = vunpack.c.h.b16 %v7028
      %v7274 = vunpack.c.l.b16 %v7030
      %v7275 = vunpack.c.h.b16 %v7030
      %v7276 = vunpack.c.l.b16 %v7032
      %v7277 = vunpack.c.h.b16 %v7032
      %v7278 = vpack.c.b16 %v7270, %v7270
      %v7279 = vpack.c.b16 %v7271, %v7271
      %v7280 = vpack.c.b16 %v7272, %v7272
      %v7281 = vpack.c.b16 %v7273, %v7273
      %v7282 = vpack.c.b16 %v7274, %v7274
      %v7283 = vpack.c.b16 %v7275, %v7275
      %v7284 = vpack.c.b16 %v7276, %v7276
      %v7285 = vpack.c.b16 %v7277, %v7277
      %v7287 = vshrl.u32 %v7278, 16
      %v7289 = vrot.slane %v7287, 4
      %v7290 = vshll.u32 %v7278, 16
      %v7292 = vrot.slane %v7290, 5
      %v7293 = vor.u32 %v7289, %v7292
      %v7294 = vrot.slane %v7293, 4
      %v7296 = vshll.u32 %v7279, 16
      %v7298 = vrot.slane %v7296, 5
      %v7299 = vsel %vm7057, %v7294, %v7298
      %v7301 = vshrl.u32 %v7280, 16
      %v7303 = vrot.slane %v7301, 4
      %v7304 = vshll.u32 %v7280, 16
      %v7306 = vrot.slane %v7304, 5
      %v7307 = vor.u32 %v7303, %v7306
      %v7308 = vrot.slane %v7307, 4
      %v7310 = vshll.u32 %v7281, 16
      %v7312 = vrot.slane %v7310, 5
      %v7313 = vsel %vm7057, %v7308, %v7312
      %v7315 = vshrl.u32 %v7282, 16
      %v7317 = vrot.slane %v7315, 4
      %v7318 = vshll.u32 %v7282, 16
      %v7320 = vrot.slane %v7318, 5
      %v7321 = vor.u32 %v7317, %v7320
      %v7322 = vrot.slane %v7321, 4
      %v7324 = vshll.u32 %v7283, 16
      %v7326 = vrot.slane %v7324, 5
      %v7327 = vsel %vm7057, %v7322, %v7326
      %v7329 = vshrl.u32 %v7284, 16
      %v7331 = vrot.slane %v7329, 4
      %v7332 = vshll.u32 %v7284, 16
      %v7334 = vrot.slane %v7332, 5
      %v7335 = vor.u32 %v7331, %v7334
      %v7336 = vrot.slane %v7335, 4
      %v7338 = vshll.u32 %v7285, 16
      %v7340 = vrot.slane %v7338, 5
      %v7341 = vsel %vm7057, %v7336, %v7340
      %v7343 = vunpack.c.l.b16 %v5451
      %v7344 = vunpack.c.h.b16 %v5451
      %v7345 = vpack.c.b16 %v7343, %v7343
      %v7346 = vpack.c.b16 %v7344, %v7344
      %v7348 = vshrl.u32 %v7345, 16
      %v7350 = vrot.slane %v7348, 4
      %v7351 = vshll.u32 %v7345, 16
      %v7353 = vrot.slane %v7351, 5
      %v7354 = vor.u32 %v7350, %v7353
      %v7355 = vrot.slane %v7354, 4
      %v7357 = vshll.u32 %v7346, 16
      %v7359 = vrot.slane %v7357, 5
      %v7360 = vsel %vm7057, %v7355, %v7359
      %v7362 = vunpack.c.l.b16 %v7033
      %v7363 = vunpack.c.h.b16 %v7033
      %v7364 = vpack.c.b16 %v7362, %v7362
      %v7365 = vpack.c.b16 %v7363, %v7363
      %v7367 = vshrl.u32 %v7364, 16
      %v7369 = vrot.slane %v7367, 4
      %v7370 = vshll.u32 %v7364, 16
      %v7372 = vrot.slane %v7370, 5
      %v7373 = vor.u32 %v7369, %v7372
      %v7374 = vrot.slane %v7373, 4
      %v7376 = vshll.u32 %v7365, 16
      %v7378 = vrot.slane %v7376, 5
      %v7379 = vsel %vm7057, %v7374, %v7378
      %v7381 = vunpack.c.l.b16 %v5452
      %v7382 = vunpack.c.h.b16 %v5452
      %v7383 = vpack.c.b16 %v7381, %v7381
      %v7384 = vpack.c.b16 %v7382, %v7382
      %v7386 = vshrl.u32 %v7383, 16
      %v7388 = vrot.slane %v7386, 4
      %v7389 = vshll.u32 %v7383, 16
      %v7391 = vrot.slane %v7389, 5
      %v7392 = vor.u32 %v7388, %v7391
      %v7393 = vrot.slane %v7392, 4
      %v7395 = vshll.u32 %v7384, 16
      %v7397 = vrot.slane %v7395, 5
      %v7398 = vsel %vm7057, %v7393, %v7397
      %v7400 = vunpack.c.l.b16 %v7034
      %v7401 = vunpack.c.h.b16 %v7034
      %v7402 = vpack.c.b16 %v7400, %v7400
      %v7403 = vpack.c.b16 %v7401, %v7401
      %v7405 = vshrl.u32 %v7402, 16
      %v7407 = vrot.slane %v7405, 4
      %v7408 = vshll.u32 %v7402, 16
      %v7410 = vrot.slane %v7408, 5
      %v7411 = vor.u32 %v7407, %v7410
      %v7412 = vrot.slane %v7411, 4
      %v7414 = vshll.u32 %v7403, 16
      %v7416 = vrot.slane %v7414, 5
      %v7417 = vsel %vm7057, %v7412, %v7416
      %v7418 = vld [vmem:[%s1300] sm:$0xf]
      %v7419 = vld [vmem:[%s1300 + $0x4] sm:$0x1]
      %v7420 = vld [vmem:[%s1300 + $0x10] sm:$0xf]
      %v7421 = vld [vmem:[%s1300 + $0x14] sm:$0x1]
      %v7422 = vld [vmem:[%s1300 + $0x20] sm:$0xf]
      %v7423 = vld [vmem:[%s1300 + $0x24] sm:$0x1]
      %v7424 = vld [vmem:[%s1300 + $0x30] sm:$0xf]
      %v7425 = vld [vmem:[%s1300 + $0x34] sm:$0x1]
      %v7427 = vshrl.u32 %v7418, 16
      %v7429 = vrot.slane %v7427, 4
      %v7430 = vshll.u32 %v7418, 16
      %v7432 = vrot.slane %v7430, 5
      %v7433 = vor.u32 %v7429, %v7432
      %v7434 = vrot.slane %v7433, 4
      %v7436 = vshll.u32 %v7419, 16
      %v7438 = vrot.slane %v7436, 5
      %v7439 = vsel %vm7057, %v7434, %v7438
      %v7441 = vshrl.u32 %v7420, 16
      %v7443 = vrot.slane %v7441, 4
      %v7444 = vshll.u32 %v7420, 16
      %v7446 = vrot.slane %v7444, 5
      %v7447 = vor.u32 %v7443, %v7446
      %v7448 = vrot.slane %v7447, 4
      %v7450 = vshll.u32 %v7421, 16
      %v7452 = vrot.slane %v7450, 5
      %v7453 = vsel %vm7057, %v7448, %v7452
      %v7455 = vshrl.u32 %v7422, 16
      %v7457 = vrot.slane %v7455, 4
      %v7458 = vshll.u32 %v7422, 16
      %v7460 = vrot.slane %v7458, 5
      %v7461 = vor.u32 %v7457, %v7460
      %v7462 = vrot.slane %v7461, 4
      %v7464 = vshll.u32 %v7423, 16
      %v7466 = vrot.slane %v7464, 5
      %v7467 = vsel %vm7057, %v7462, %v7466
      %v7469 = vshrl.u32 %v7424, 16
      %v7471 = vrot.slane %v7469, 4
      %v7472 = vshll.u32 %v7424, 16
      %v7474 = vrot.slane %v7472, 5
      %v7475 = vor.u32 %v7471, %v7474
      %v7476 = vrot.slane %v7475, 4
      %v7478 = vshll.u32 %v7425, 16
      %v7480 = vrot.slane %v7478, 5
      %v7481 = vsel %vm7057, %v7476, %v7480
      %v7482 = vpack.c.b16 %v7041, %v7039
      %v7483 = vpack.c.b16 %v7045, %v7043
      %v7484 = vpack.c.b16 %v7120, %v7118
      %v7485 = vpack.c.b16 %v7124, %v7122
      %7486 = vrot.lane.b32.xlu0 %v7484, 8
      %v7487 = vpop.permute.xlu0 %7486
      %7488 = vrot.lane.b32.xlu0 %v7485, 8
      %v7489 = vpop.permute.xlu0 %7488
      %v7490 = vunpack.c.l.b16 %v7071
      %v7491 = vunpack.c.l.b16 %v7085
      %v7492 = vunpack.c.l.b16 %v7099
      %v7493 = vunpack.c.l.b16 %v7113
      %v7494 = vpack.c.b16 %v7491, %v7490
      %v7495 = vpack.c.b16 %v7493, %v7492
      %7496 = vrot.lane.b32.xlu0 %v7494, 16
      %v7497 = vpop.permute.xlu0 %7496
      %7498 = vrot.lane.b32.xlu0 %v7495, 16
      %v7499 = vpop.permute.xlu0 %7498
      %v7500 = vunpack.c.l.b16 %v7147
      %v7501 = vunpack.c.l.b16 %v7161
      %v7502 = vunpack.c.l.b16 %v7175
      %v7503 = vunpack.c.l.b16 %v7189
      %v7504 = vpack.c.b16 %v7501, %v7500
      %v7505 = vpack.c.b16 %v7503, %v7502
      %7506 = vrot.lane.b32.xlu0 %v7504, 24
      %v7507 = vpop.permute.xlu0 %7506
      %7508 = vrot.lane.b32.xlu0 %v7505, 24
      %v7509 = vpop.permute.xlu0 %7508
      %v7510 = vpack.c.b16 %v7196, %v7194
      %v7511 = vpack.c.b16 %v7200, %v7198
      %7512 = vrot.lane.b32.xlu0 %v7510, 32
      %v7513 = vpop.permute.xlu0 %7512
      %7514 = vrot.lane.b32.xlu0 %v7511, 32
      %v7515 = vpop.permute.xlu0 %7514
      %v7516 = vpack.c.b16 %v7272, %v7270
      %v7517 = vpack.c.b16 %v7276, %v7274
      %7518 = vrot.lane.b32.xlu0 %v7516, 40
      %v7519 = vpop.permute.xlu0 %7518
      %7520 = vrot.lane.b32.xlu0 %v7517, 40
      %v7521 = vpop.permute.xlu0 %7520
      %v7522 = vunpack.c.l.b16 %v7223
      %v7523 = vunpack.c.l.b16 %v7237
      %v7524 = vunpack.c.l.b16 %v7251
      %v7525 = vunpack.c.l.b16 %v7265
      %v7526 = vpack.c.b16 %v7523, %v7522
      %v7527 = vpack.c.b16 %v7525, %v7524
      %7528 = vrot.lane.b32.xlu0 %v7526, 48
      %v7529 = vpop.permute.xlu0 %7528
      %7530 = vrot.lane.b32.xlu0 %v7527, 48
      %v7531 = vpop.permute.xlu0 %7530
      %v7532 = vunpack.c.l.b16 %v7299
      %v7533 = vunpack.c.l.b16 %v7313
      %v7534 = vunpack.c.l.b16 %v7327
      %v7535 = vunpack.c.l.b16 %v7341
      %v7536 = vpack.c.b16 %v7533, %v7532
      %v7537 = vpack.c.b16 %v7535, %v7534
      %7538 = vrot.lane.b32.xlu0 %v7536, 56
      %v7539 = vpop.permute.xlu0 %7538
      %7540 = vrot.lane.b32.xlu0 %v7537, 56
      %v7541 = vpop.permute.xlu0 %7540
      %v7542 = vpack.c.b16 %v7043, %v7041
      %v7543 = vpack.c.b16 %v7343, %v7045
      %7544 = vrot.lane.b32.xlu0 %v7542, 64
      %v7545 = vpop.permute.xlu0 %7544
      %7546 = vrot.lane.b32.xlu0 %v7543, 64
      %v7547 = vpop.permute.xlu0 %7546
      %v7548 = vpack.c.b16 %v7122, %v7120
      %v7549 = vpack.c.b16 %v7362, %v7124
      %7550 = vrot.lane.b32.xlu0 %v7548, 72
      %v7551 = vpop.permute.xlu0 %7550
      %7552 = vrot.lane.b32.xlu0 %v7549, 72
      %v7553 = vpop.permute.xlu0 %7552
      %v7554 = vunpack.c.l.b16 %v7360
      %v7555 = vpack.c.b16 %v7492, %v7491
      %v7556 = vpack.c.b16 %v7554, %v7493
      %7557 = vrot.lane.b32.xlu0 %v7555, 80
      %v7558 = vpop.permute.xlu0 %7557
      %7559 = vrot.lane.b32.xlu0 %v7556, 80
      %v7560 = vpop.permute.xlu0 %7559
      %v7561 = vunpack.c.l.b16 %v7379
      %v7562 = vpack.c.b16 %v7502, %v7501
      %v7563 = vpack.c.b16 %v7561, %v7503
      %7564 = vrot.lane.b32.xlu0 %v7562, 88
      %v7565 = vpop.permute.xlu0 %7564
      %7566 = vrot.lane.b32.xlu0 %v7563, 88
      %v7567 = vpop.permute.xlu0 %7566
      %v7568 = vpack.c.b16 %v7198, %v7196
      %v7569 = vpack.c.b16 %v7381, %v7200
      %7570 = vrot.lane.b32.xlu0 %v7568, 96
      %v7571 = vpop.permute.xlu0 %7570
      %7572 = vrot.lane.b32.xlu0 %v7569, 96
      %v7573 = vpop.permute.xlu0 %7572
      %v7574 = vpack.c.b16 %v7274, %v7272
      %v7575 = vpack.c.b16 %v7400, %v7276
      %7576 = vrot.lane.b32.xlu0 %v7574, 104
      %v7577 = vpop.permute.xlu0 %7576
      %7578 = vrot.lane.b32.xlu0 %v7575, 104
      %v7579 = vpop.permute.xlu0 %7578
      %v7580 = vunpack.c.l.b16 %v7398
      %v7581 = vpack.c.b16 %v7524, %v7523
      %v7582 = vpack.c.b16 %v7580, %v7525
      %7583 = vrot.lane.b32.xlu0 %v7581, 112
      %v7584 = vpop.permute.xlu0 %7583
      %7585 = vrot.lane.b32.xlu0 %v7582, 112
      %v7586 = vpop.permute.xlu0 %7585
      %v7587 = vunpack.c.l.b16 %v7417
      %v7588 = vpack.c.b16 %v7534, %v7533
      %v7589 = vpack.c.b16 %v7587, %v7535
      %7590 = vrot.lane.b32.xlu0 %v7588, 120
      %v7591 = vpop.permute.xlu0 %7590
      %7592 = vrot.lane.b32.xlu0 %v7589, 120
      %v7593 = vpop.permute.xlu0 %7592
      %v7596 = vsel %vm3868, %v7482, %v7487
      %v7599 = vsel %vm3868, %v7483, %v7489
      %v7601 = vsel %vm3894, %v7596, %v7497
      %v7603 = vsel %vm3894, %v7599, %v7499
      %v7605 = vsel %vm3914, %v7601, %v7507
      %v7607 = vsel %vm3914, %v7603, %v7509
      %v7609 = vsel %vm3934, %v7605, %v7513
      %v7611 = vsel %vm3934, %v7607, %v7515
      %vm7612 = vcmask 326656
      %v7614 = vsel %vm7612, %v7609, %v7519
      %v7616 = vsel %vm7612, %v7611, %v7521
      %vm7617 = vcmask 392192
      %v7619 = vsel %vm7617, %v7614, %v7529
      %v7621 = vsel %vm7617, %v7616, %v7531
      %vm7622 = vcmask 457728
      %v7624 = vsel %vm7622, %v7619, %v7539
      %v7626 = vsel %vm7622, %v7621, %v7541
      %vm7627 = vcmask 523264
      %v7629 = vsel %vm7627, %v7624, %v7545
      %v7631 = vsel %vm7627, %v7626, %v7547
      %vm7632 = vcmask 588800
      %v7634 = vsel %vm7632, %v7629, %v7551
      %v7636 = vsel %vm7632, %v7631, %v7553
      %vm7637 = vcmask 654336
      %v7639 = vsel %vm7637, %v7634, %v7558
      %v7641 = vsel %vm7637, %v7636, %v7560
      %vm7642 = vcmask 719872
      %v7644 = vsel %vm7642, %v7639, %v7565
      %v7646 = vsel %vm7642, %v7641, %v7567
      %vm7647 = vcmask 785408
      %v7649 = vsel %vm7647, %v7644, %v7571
      %v7651 = vsel %vm7647, %v7646, %v7573
      %vm7652 = vcmask 850944
      %v7654 = vsel %vm7652, %v7649, %v7577
      %v7656 = vsel %vm7652, %v7651, %v7579
      %vm7657 = vcmask 916480
      %v7659 = vsel %vm7657, %v7654, %v7584
      %v7661 = vsel %vm7657, %v7656, %v7586
      %vm7662 = vcmask 982016
      %v7664 = vsel %vm7662, %v7659, %v7591
      %v7667 = vsel %vm7662, %v7661, %v7593
      %v7669 = vunpack.c.l.b16 %v7439
      %v7670 = vunpack.c.l.b16 %v7453
      %v7671 = vunpack.c.l.b16 %v7467
      %v7672 = vunpack.c.l.b16 %v7481
      %v7673 = vpack.c.b16 %v7670, %v7669
      %v7674 = vpack.c.b16 %v7672, %v7671
      %v7675 = vld [vmem:[%s3] sm:$0xf]
      %v7676 = vld [vmem:[%s3 + $0x4] sm:$0xf]
      %v7677 = vld [vmem:[%s3 + $0x8] sm:$0xf]
      %v7678 = vld [vmem:[%s3 + $0xc] sm:$0xf]
      %v7679 = vld [vmem:[%s3 + $0x10] sm:$0xf]
      %v7680 = vld [vmem:[%s3 + $0x14] sm:$0xf]
      %v7681 = vld [vmem:[%s3 + $0x18] sm:$0xf]
      %v7682 = vld [vmem:[%s3 + $0x1c] sm:$0xf]
      %v7683 = vld [vmem:[%s3 + $0x20] sm:$0xf]
      %v7684 = vld [vmem:[%s3 + $0x24] sm:$0xf]
      %v7685 = vld [vmem:[%s3 + $0x28] sm:$0xf]
      %v7686 = vld [vmem:[%s3 + $0x2c] sm:$0xf]
      %v7687 = vld [vmem:[%s3 + $0x30] sm:$0xf]
      %v7688 = vld [vmem:[%s3 + $0x34] sm:$0xf]
      %v7689 = vld [vmem:[%s3 + $0x38] sm:$0xf]
      %v7690 = vld [vmem:[%s3 + $0x3c] sm:$0xf]
      %v7691 = vld [vmem:[%s3 + $0x40] sm:$0x3]
      %v7692 = vld [vmem:[%s4] sm:$0x1]
      %v7694 = vlaneseq
      %v7695 = vshrl.u32 %v7694, 7
      %v7696 = vsub.s32 0, %v7695
      %v7697 = vrot.slane %v7692, %v7696
      %v7716 = vunpack.c.l.b16 %v7675
      %v7717 = vunpack.c.l.b16 %v7676
      %v7718 = vunpack.c.l.b16 %v7677
      %v7719 = vunpack.c.l.b16 %v7678
      %v7720 = vunpack.c.l.b16 %v7679
      %v7721 = vunpack.c.l.b16 %v7680
      %v7722 = vunpack.c.l.b16 %v7681
      %v7723 = vunpack.c.l.b16 %v7682
      %v7724 = vunpack.c.l.b16 %v7683
      %v7725 = vunpack.c.l.b16 %v7684
      %v7726 = vunpack.c.l.b16 %v7685
      %v7727 = vunpack.c.l.b16 %v7686
      %v7728 = vunpack.c.l.b16 %v7687
      %v7729 = vunpack.c.l.b16 %v7688
      %v7730 = vunpack.c.l.b16 %v7689
      %v7731 = vunpack.c.l.b16 %v7690
      %v7732 = vunpack.c.l.b16 %v7691
      %v7733 = vpack.c.b16 %v7717, %v7716
      %v7734 = vpack.c.b16 %v7719, %v7718
      %v7735 = vpack.c.b16 %v7721, %v7720
      %v7736 = vpack.c.b16 %v7723, %v7722
      %v7737 = vpack.c.b16 %v7725, %v7724
      %v7738 = vpack.c.b16 %v7727, %v7726
      %v7739 = vpack.c.b16 %v7729, %v7728
      %v7740 = vpack.c.b16 %v7731, %v7730
      %v7741 = vpack.c.b16 %v7732, %v7732
      %v7751 = vsel %vm3855, %v7673, 0
      %v7754 = vsel %vm3855, %v7674, 0
      %v7757 = vsel %vm3987, %v7741, 0
      %7759 = vmatprep.subr.bf16.mxu0 0
      %7760 = vmatpush1.bf16.msra.mxu0 %v7740
      %7761 = vmatprep.subr.bf16.mxu0 0
      %7762 = vmatpush1.bf16.msra.mxu0 %v7739
      %7763 = vmatprep.subr.bf16.mxu0 0
      %7764 = vmatpush1.bf16.msra.mxu0 %v7738
      %7765 = vmatprep.subr.bf16.mxu0 0
      %7766 = vmatpush1.bf16.msra.mxu0 %v7737
      %7767 = vmatprep.subr.bf16.mxu0 0
      %7768 = vmatpush1.bf16.msra.mxu0 %v7736
      %7769 = vmatprep.subr.bf16.mxu0 0
      %7770 = vmatpush1.bf16.msra.mxu0 %v7735
      %7771 = vmatprep.subr.bf16.mxu0 0
      %7772 = vmatpush1.bf16.msra.mxu0 %v7734
      %7773 = vmatprep.subr.bf16.mxu0 0
      %7774 = vmatpush1.bf16.msra.mxu0 %v7733
      %7775 = vmatprep.subr.bf16.mxu0 0
      %7776 = vmatpush2.bf16.msra.mxu0 0
      %7777 = vmatprep.subr.bf16.mxu0 0
      %7778 = vmatpush2.bf16.msra.mxu0 0
      %7779 = vmatprep.subr.bf16.mxu0 0
      %7780 = vmatpush2.bf16.msra.mxu0 0
      %7781 = vmatprep.subr.bf16.mxu0 0
      %7782 = vmatpush2.bf16.msra.mxu0 0
      %7783 = vmatprep.subr.bf16.mxu0 0
      %7784 = vmatpush2.bf16.msra.mxu0 0
      %7785 = vmatprep.subr.bf16.mxu0 0
      %7786 = vmatpush2.bf16.msra.mxu0 0
      %7787 = vmatprep.subr.bf16.mxu0 0
      %7788 = vmatpush2.bf16.msra.mxu0 0
      %7789 = vmatprep.subr.bf16.mxu0 0
      %7790 = vmatpush2.bf16.msra.mxu0 %v7757
      %7791 = vmatprep.mubr.bf16.mxu0 %v7751
      %7792 = vmatmul.mubr.bf16.gmra.mxu0 %v7664
      %v7793 = vpop.f32.mrf.mxu0
      %v7794 = vadd.f32 %v7697, %v7793
      %v7795 = vpop.f32.mrf.mxu0
      %v7796 = vpop.f32.mrf.mxu0
      %v7797 = vadd.f32 %v7697, %v7796
      %v7798 = vpop.f32.mrf.mxu0
      %7799 = vmatprep.mubr.bf16.mxu0 %v7754
      %7800 = vmatmul.mubr.bf16.gmra.mxu0 %v7667
      %v7801 = vpop.f32.mrf.mxu0
      %v7802 = vadd.f32 %v7697, %v7801
      %v7803 = vpop.f32.mrf.mxu0
      %v7804 = vpop.f32.mrf.mxu0
      %v7805 = vadd.f32 %v7697, %v7804
      %v7806 = vpop.f32.mrf.mxu0
      %7807 = vdwg.mxu0
      %vm7808 = vcmp.ge.f32.partialorder %v7794, 0.0
      %vm7809 = vcmp.ge.f32.partialorder %v7797, 0.0
      %vm7810 = vcmp.ge.f32.partialorder %v7802, 0.0
      %vm7811 = vcmp.ge.f32.partialorder %v7805, 0.0
      %v7812 = vmul.f32 %v7794, 0.2
      %v7813 = vmul.f32 %v7797, 0.2
      %v7814 = vmul.f32 %v7802, 0.2
      %v7815 = vmul.f32 %v7805, 0.2
      %v7816 = vsel %vm7808, %v7794, %v7812
      %v7817 = vsel %vm7809, %v7797, %v7813
      %v7818 = vsel %vm7810, %v7802, %v7814
      %v7819 = vsel %vm7811, %v7805, %v7815
      %7820 = vst.msk [vmem:[%s246] sm:$0xff] %vm3868, %v7816
      %7821 = vst.msk [vmem:[%s246 + $0x8] sm:$0xff] %vm3868, %v7817
      %7822 = vst.msk [vmem:[%s246 + $0x10] sm:$0xff] %vm3868, %v7818
      %7823 = vst.msk [vmem:[%s246 + $0x18] sm:$0xff] %vm3868, %v7819
      %s7824 = smul.u32 4, %s21
      %p7825 = scmp.lt.s32.totalorder %s20, 1
      %s7826 = scalar_select %p7825, %s20, 1
      %p7827 = scmp.lt.s32.totalorder %s7824, 7
      %s7828 = scalar_select %p7827, %s7824, 7
      %s7829 = smul.addr %s7826, 8
      %s7830 = sadd.s32 %s7828, %s7829
      %s7831 = smul.addr %s7830, 8
      %s7832 = scalar_lea.vmem %s5, %s7831
      // Predicated region
      $region41: #{tpu_custom_call.1} parent=39 // pred_check
        %p7833 = pneg %p158
      $region42: #{tpu_custom_call.1} parent=39 // pred_check_branch
        %7835 = sbr.rel (%p7833) target = $region44
      $region43: #{tpu_custom_call.1} parent=39 // pred_region
        %s7836 = smul.u32 4, %s21
      $region44: #{tpu_custom_call.1} parent=39 // pred_fallthru
        _
    $region40: #{tpu_custom_call.1} parent=5 // pred_fallthru
      _
    %p7837 = scmp.le.s32.totalorder 2, %s11
    // Predicated region
    $region45: #{tpu_custom_call.1} parent=5 // pred_check
      %p7838 = pneg %p7837
    $region46: #{tpu_custom_call.1} parent=5 // pred_check_branch
      %7840 = sbr.rel (%p7838) target = $region48
    $region47: #{tpu_custom_call.1} parent=5 // pred_region
      %s7841 = ssub.s32 %s11, 2
      // Predicated region
      $region49: #{tpu_custom_call.1} parent=47 // pred_check
        %p7842 = pneg %p164
      $region50: #{tpu_custom_call.1} parent=47 // pred_check_branch
        %7844 = sbr.rel (%p7842) target = $region52
      $region51: #{tpu_custom_call.1} parent=47 // pred_region
        %s7845 = smul.u32 4, %s23
        %p7846 = scmp.lt.s32.totalorder %s22, 1
        %s7847 = scalar_select %p7846, %s22, 1
        %p7848 = scmp.lt.s32.totalorder %s7845, 7
        %s7849 = scalar_select %p7848, %s7845, 7
        %s7850 = smul.addr %s7847, 8
        %s7851 = sadd.s32 %s7849, %s7850
        %s7852 = smul.addr %s7851, 8
        %s7853 = scalar_lea.vmem %s5, %s7852
      $region52: #{tpu_custom_call.1} parent=47 // pred_fallthru
        _
    $region48: #{tpu_custom_call.1} parent=5 // pred_fallthru
      _
  $region6: #{tpu_custom_call.1} parent=0 // loop_footer
    %s15 = sadd.s32 1, %s11
  $region7: #{tpu_custom_call.1} parent=0 // loop_footer_branch
    %10 = sbr.rel target = $region3
  $region8: #{tpu_custom_call.1} parent=0 // loop_exit
    _

</llo_original>
